<compile_context>
chip_gen: v7x
topology: tpu7x:2x2x1
jax: 0.10.0
libtpu: 0.0.40
codegen_flags: <defaults>
</compile_context>

<pallas_src>
import functools

import jax
import jax.numpy as jnp
from jax import lax
from jax.experimental import pallas as pl
from jax.experimental.pallas import tpu as pltpu

# ----------------------------- model sizes -----------------------------
B = 2          # batch
N = 8          # tokens per sample
D = 32         # plm_hidden_dim
H = 4          # n_attention_head
FF = 2048      # TransformerEncoderLayer default dim_feedforward
G = 5          # graph nodes per sample
E = 4          # entities per sample
M = 3          # max_mention_num


# ----------------------------- BlockSpec helpers -----------------------------
def _rep(shape):
    """Full-array block re-used at every grid step (weight slabs)."""
    return pl.BlockSpec(shape, lambda b: (0,) * len(shape))


def _perb(shape):
    """Per-sample block: leading axis indexed by the batch grid."""
    return pl.BlockSpec(shape, lambda b: (b,) + (0,) * (len(shape) - 1))


_PARALLEL = pltpu.CompilerParams(dimension_semantics=("parallel",))


# ----------------------------- kernel helpers -----------------------------
def _layernorm(x, w, b, eps=1e-5):
    mu = jnp.mean(x, axis=-1, keepdims=True)
    var = jnp.mean((x - mu) ** 2, axis=-1, keepdims=True)
    return (x - mu) * lax.rsqrt(var + eps) * w + b


def _tel_layer(x, negpad, layer, qkv_ref, w1_ref, b1_ref, w2_ref,
               w32_ref, vec32_ref, nheads):
    """Post-norm TransformerEncoderLayer (eval mode) on an (N, D) tile.

    Weight slabs (static slices only):
      qkv_ref   (2, D+1, 3D)  rows 0:D = Wqkv, row D = bias
      w1_ref    (2, D, FF) bf16, b1_ref (2, 1, FF) f32, w2_ref (2, FF, D) bf16
      w32_ref   rows [layer*D : (layer+1)*D] = Wo
      vec32_ref rows [8*layer + 0..5] = bo, ln1w, ln1b, b2, ln2w, ln2b
    """
    Nn, Dd = x.shape
    dh = Dd // nheads
    scale = 1.0 / float(dh) ** 0.5

    # fused QKV projection: one (N,D)x(D,3D) matmul instead of 12 per-head ones
    wqkv = qkv_ref[layer, 0:Dd, :]                    # (D, 3D)
    bqkv = qkv_ref[layer, Dd:Dd + 1, :]               # (1, 3D)
    qkv = jnp.dot(x, wqkv, preferred_element_type=jnp.float32) + bqkv

    vb = 8 * layer
    bo = vec32_ref[vb + 0:vb + 1, :]
    ln1w = vec32_ref[vb + 1:vb + 2, :]
    ln1b = vec32_ref[vb + 2:vb + 3, :]
    b2 = vec32_ref[vb + 3:vb + 4, :]
    ln2w = vec32_ref[vb + 4:vb + 5, :]
    ln2b = vec32_ref[vb + 5:vb + 6, :]

    acc = jnp.zeros((Nn, Dd), jnp.float32)
    for h in range(nheads):
        qh = qkv[:, h * dh:(h + 1) * dh]
        kh = qkv[:, Dd + h * dh:Dd + (h + 1) * dh]
        vh = qkv[:, 2 * Dd + h * dh:2 * Dd + (h + 1) * dh]
        s = lax.dot_general(qh, kh, (((1,), (1,)), ((), ())),
                            preferred_element_type=jnp.float32) * scale  # (N, N)
        if negpad is not None:           # hoisted: computed once by the caller
            s = s - negpad
        s = s - jnp.max(s, axis=-1, keepdims=True)
        e = jnp.exp(s)
        p = e * pl.reciprocal(jnp.sum(e, axis=-1, keepdims=True), approx=True)
        ctx = jnp.dot(p, vh, preferred_element_type=jnp.float32)         # (N, dh)
        wo_h = w32_ref[layer * Dd + h * dh:layer * Dd + (h + 1) * dh, :]  # (dh, D)
        acc = acc + jnp.dot(ctx, wo_h, preferred_element_type=jnp.float32)
    attn = acc + bo

    # post-norm (PyTorch norm_first=False), dropout = identity (eval)
    h1 = _layernorm(x + attn, ln1w, ln1b)
    # FF block in bf16 (native MXU path), f32 accumulation.
    ff = jnp.dot(h1.astype(jnp.bfloat16), w1_ref[layer],
                 preferred_element_type=jnp.float32) + b1_ref[layer]
    ff = jnp.maximum(ff, 0.0)
    ff = jnp.dot(ff.astype(jnp.bfloat16), w2_ref[layer],
                 preferred_element_type=jnp.float32) + b2
    return _layernorm(h1 + ff, ln2w, ln2b)


def _entity_path(x1, mmask_ref, lens_ref, selt_ref, lstm_ref, w32_ref, vec32_ref):
    """Mention pool -> factor_transform(+tanh) -> length-masked BiLSTM
    (pack_padded_sequence semantics) -> fc2_1 -> scatter back to tokens."""
    Nn, Dd = x1.shape
    Mm, Ee = mmask_ref.shape[1], mmask_ref.shape[2]
    lens = lens_ref[0]                                   # (E, 1) float

    ftw = w32_ref[2 * Dd:3 * Dd, :]                      # factor_transform (D, D)
    fcw = w32_ref[3 * Dd:5 * Dd, :]                      # fc2_1 (2D, D)
    ftb = vec32_ref[16:17, :]
    fcb = vec32_ref[17:18, :]

    # mention pooling + factor_transform per timestep (rows (e, m=t))
    xs = []
    for t in range(Mm):
        e_t = jnp.dot(mmask_ref[0, t], x1, preferred_element_type=jnp.float32)  # (E, D)
        xs.append(jnp.tanh(jnp.dot(e_t, ftw,
                                   preferred_element_type=jnp.float32) + ftb))

    # fused gates: one (E,2D)x(2D,4D) matmul per step per direction,
    # gate order [i, f, g, o] along the 4D axis (PyTorch convention).
    def step(x_t, hh, cc, w, b):
        g = jnp.dot(jnp.concatenate([x_t, hh], axis=-1), w,
                    preferred_element_type=jnp.float32) + b                    # (E, 4D)
        i = jax.nn.sigmoid(g[:, 0:Dd])
        f = jax.nn.sigmoid(g[:, Dd:2 * Dd])
        gg = jnp.tanh(g[:, 2 * Dd:3 * Dd])
        o = jax.nn.sigmoid(g[:, 3 * Dd:4 * Dd])
        c_new = f * cc + i * gg
        return o * jnp.tanh(c_new), c_new

    wfw = lstm_ref[0, 0:2 * Dd, :]
    wfb = lstm_ref[0, 2 * Dd:2 * Dd + 1, :]
    wbw = lstm_ref[1, 0:2 * Dd, :]
    wbb = lstm_ref[1, 2 * Dd:2 * Dd + 1, :]

    zero = jnp.zeros((Ee, Dd), jnp.float32)

    # forward direction (fully unrolled; padded steps carry state, emit zeros)
    hf, cf = zero, zero
    hfs = [None] * Mm
    for t in range(Mm):
        valid = (lens > t).astype(jnp.float32)           # (E, 1)
        h_new, c_new = step(xs[t], hf, cf, wfw, wfb)
        hf = valid * h_new + (1.0 - valid) * hf
        cf = valid * c_new + (1.0 - valid) * cf
        hfs[t] = valid * hf

    # backward direction: walk t = M-1 .. 0; state starts updating at t = len-1
    hb, cb = zero, zero
    hbs = [None] * Mm
    for s in range(Mm):
        t = Mm - 1 - s
        valid = (lens > t).astype(jnp.float32)
        h_new, c_new = step(xs[t], hb, cb, wbw, wbb)
        hb = valid * h_new + (1.0 - valid) * hb
        cb = valid * c_new + (1.0 - valid) * cb
        hbs[t] = valid * hb

    # fc2_1 on [h_fwd | h_bwd] + token scatter via per-timestep one-hot matmuls
    upd = jnp.zeros((Nn, Dd), jnp.float32)
    for t in range(Mm):
        y = jnp.dot(jnp.concatenate([hfs[t], hbs[t]], axis=-1), fcw,
                    preferred_element_type=jnp.float32) + fcb                  # (E, D)
        upd = upd + jnp.dot(selt_ref[0, t], y,
                            preferred_element_type=jnp.float32)                # (N, D)
    return upd


# ----------------------------- fused forward kernel -----------------------------
def _fused_kernel(x_ref, nmask_ref, selg_ref, mmask_ref, lens_ref, selt_ref,
                  pad_ref, qkv_ref, w1_ref, b1_ref, w2_ref, lstm_ref, w32_ref,
                  vec32_ref, o_ref, *, nheads):
    x = x_ref[0]                                                            # (N, D)

    # ===== intra event encoding (capture states) =====
    factor = jnp.dot(nmask_ref[0], x, preferred_element_type=jnp.float32)   # (G, D)
    # TODO(synk): self.graph_encoder is an external GNN (2 layers) not defined
    # in this module; identity pass-through on the factor embeddings here.
    tok = jnp.dot(selg_ref[0], factor, preferred_element_type=jnp.float32)  # (N, D)
    x1 = _tel_layer(tok + x, None, 0, qkv_ref, w1_ref, b1_ref, w2_ref,
                    w32_ref, vec32_ref, nheads)

    # ===== inter entity encoding =====
    tmp = _entity_path(x1, mmask_ref, lens_ref, selt_ref, lstm_ref,
                       w32_ref, vec32_ref)

    # ===== inter event encoding =====
    negpad = pad_ref[0] * 1e9          # (1, N); NaN-free as long as >=1 key valid
    o_ref[0] = _tel_layer(x1 + tmp, negpad, 1, qkv_ref, w1_ref, b1_ref, w2_ref,
                          w32_ref, vec32_ref, nheads)


# ----------------------------- parameters -----------------------------
def init_params(key):
    ks = list(jax.random.split(key, 32))
    it = iter(ks)

    def nrm(shape):
        return 0.02 * jax.random.normal(next(it), shape, jnp.float32)

    def tel():
        return dict(
            wq=nrm((D, D)), bq=jnp.zeros((D,), jnp.float32),
            wk=nrm((D, D)), bk=jnp.zeros((D,), jnp.float32),
            wv=nrm((D, D)), bv=jnp.zeros((D,), jnp.float32),
            wo=nrm((D, D)), bo=jnp.zeros((D,), jnp.float32),
            ln1w=jnp.ones((D,), jnp.float32), ln1b=jnp.zeros((D,), jnp.float32),
            w1=nrm((D, FF)), b1=jnp.zeros((FF,), jnp.float32),
            w2=nrm((FF, D)), b2=jnp.zeros((D,), jnp.float32),
            ln2w=jnp.ones((D,), jnp.float32), ln2b=jnp.zeros((D,), jnp.float32),
        )

    return dict(
        factor_transform_w=nrm((D, D)),
        factor_transform_b=jnp.zeros((D,), jnp.float32),
        fc2_1_w=nrm((2 * D, D)),
        fc2_1_b=jnp.zeros((D,), jnp.float32),
        lstm=dict(
            wi_f=nrm((D, 4 * D)), wh_f=nrm((D, 4 * D)), b_f=jnp.zeros((4 * D,), jnp.float32),
            wi_b=nrm((D, 4 * D)), wh_b=nrm((D, 4 * D)), b_b=jnp.zeros((4 * D,), jnp.float32),
        ),
        propagator_1=tel(),
        propagator_2=tel(),
    )


def prepack_params(params):
    """One-time repacking of PyTorch-shaped params into kernel slabs.

    Runs OUTSIDE the jitted forward so no reshape/transpose/cast sits on the
    forward critical path, and FF weights are stored as bf16 in HBM.
    """
    p1, p2 = params['propagator_1'], params['propagator_2']

    def tel_qkv(p):
        wqkv = jnp.concatenate([p['wq'], p['wk'], p['wv']], axis=1)        # (D, 3D)
        bqkv = jnp.concatenate([p['bq'], p['bk'], p['bv']])[None, :]       # (1, 3D)
        return jnp.concatenate([wqkv, bqkv], axis=0)                       # (D+1, 3D)

    def tel_vec(p):
        rows = jnp.stack([p['bo'], p['ln1w'], p['ln1b'],
                          p['b2'], p['ln2w'], p['ln2b']])                  # (6, D)
        return jnp.concatenate([rows, jnp.zeros((2, D), jnp.float32)], axis=0)

    lstm = params['lstm']

    def dir_pack(wi, wh, b):
        w = jnp.concatenate([wi, wh], axis=0)                              # (2D, 4D)
        return jnp.concatenate([w, b[None, :]], axis=0)                    # (2D+1, 4D)

    return dict(
        qkv=jnp.stack([tel_qkv(p1), tel_qkv(p2)]),                         # (2, D+1, 3D)
        w1=jnp.stack([p1['w1'], p2['w1']]).astype(jnp.bfloat16),           # (2, D, FF)
        b1=jnp.stack([p1['b1'][None, :], p2['b1'][None, :]]),              # (2, 1, FF)
        w2=jnp.stack([p1['w2'], p2['w2']]).astype(jnp.bfloat16),           # (2, FF, D)
        lstm=jnp.stack([dir_pack(lstm['wi_f'], lstm['wh_f'], lstm['b_f']),
                        dir_pack(lstm['wi_b'], lstm['wh_b'], lstm['b_b'])]),  # (2, 2D+1, 4D)
        w32=jnp.concatenate([p1['wo'], p2['wo'],
                             params['factor_transform_w'],
                             params['fc2_1_w']], axis=0),                  # (5D, D)
        vec32=jnp.concatenate([tel_vec(p1), tel_vec(p2),
                               params['factor_transform_b'][None, :],
                               params['fc2_1_b'][None, :],
                               jnp.zeros((6, D), jnp.float32)], axis=0),   # (24, D)
    )


# ----------------------------- jitted forward core -----------------------------
@jax.jit
def _forward_core(packed, x, nmask_norm, sel_g, mmask_t, lens, sel_t, key_pad):
    Bc, Nn, Dd = x.shape
    Gg = nmask_norm.shape[1]
    Mm, Ee = mmask_t.shape[1], mmask_t.shape[2]
    FFd = packed['w1'].shape[2]

    in_specs = [
        _perb((1, Nn, Dd)),              # text embeddings
        _perb((1, Gg, Nn)),              # normalized node pooling mask
        _perb((1, Nn, Gg)),              # node -> token one-hot
        _perb((1, Mm, Ee, Nn)),          # normalized mention pooling mask
        _perb((1, Ee, 1)),               # num mentions per entity
        _perb((1, Mm, Nn, Ee)),          # (entity, mention) -> token one-hot
        _perb((1, 1, Nn)),               # key padding mask (1 = padded)
        _rep((2, Dd + 1, 3 * Dd)),       # fused QKV weight + bias slab
        _rep((2, Dd, FFd)),              # FF1 weight, bf16
        _rep((2, 1, FFd)),               # FF1 bias
        _rep((2, FFd, Dd)),              # FF2 weight, bf16
        _rep((2, 2 * Dd + 1, 4 * Dd)),   # LSTM fused [Wi|Wh] + bias slab
        _rep((5 * Dd, Dd)),              # Wo x2, factor_transform_w, fc2_1_w
        _rep((24, Dd)),                  # biases / LayerNorm params
    ]
    return pl.pallas_call(
        functools.partial(_fused_kernel, nheads=H),
        grid=(Bc,),
        in_specs=in_specs,
        out_specs=_perb((1, Nn, Dd)),
        out_shape=jax.ShapeDtypeStruct((Bc, Nn, Dd), jnp.float32),
        compiler_params=_PARALLEL,
    )(x, nmask_norm, sel_g, mmask_t, lens, sel_t, key_pad,
      packed['qkv'], packed['w1'], packed['b1'], packed['w2'],
      packed['lstm'], packed['w32'], packed['vec32'])


def event_reasoning_forward(packed, text_embeddings, input_ids, text_graphs,
                            entities, attn_mask):
    del input_ids  # only consumed by the external encode_factors helper in the repo
    Bc, Nn, Dd = text_embeddings.shape

    # --- intra-event preprocessing: normalized node-pool matrix + node->token one-hot
    nmask = text_graphs['node_token_mask'].astype(jnp.float32)               # (B, G, N)
    nmask_norm = nmask / jnp.maximum(jnp.sum(nmask, -1, keepdims=True), 1.0)
    Gg = nmask.shape[1]
    t2n_g = text_graphs['token2nodepos']                                     # global b*G+g or -1
    local = t2n_g - (jnp.arange(Bc, dtype=t2n_g.dtype) * Gg)[:, None]
    local = jnp.where(t2n_g >= 0, local, -1)                                 # tokens only reference own sample's nodes
    sel_g = jax.nn.one_hot(local, Gg, dtype=jnp.float32)                     # (B, N, G); -1 -> zero row

    # --- inter-entity preprocessing: stack the per-sample dicts (E, M equal across batch)
    Ee = entities[0]['num_entities']
    Mm = entities[0]['max_mention_num']
    mmask = jnp.stack([s['mention_token_mask'] for s in entities]).astype(jnp.float32)  # (B, E*M, N)
    mmask_norm = mmask / jnp.maximum(jnp.sum(mmask, -1, keepdims=True), 1.0)
    mmask_t = mmask_norm.reshape(Bc, Ee, Mm, Nn).transpose(0, 2, 1, 3)       # (B, M, E, N)
    lens = jnp.stack([s['num_mentions'] for s in entities]).astype(jnp.float32)[..., None]  # (B, E, 1)
    t2n_e = jnp.stack([s['token2nodepos'] for s in entities])                # (B, N)
    sel_flat = jax.nn.one_hot(t2n_e, Ee * Mm, dtype=jnp.float32)             # (B, N, E*M); -1 -> zeros
    sel_t = sel_flat.reshape(Bc, Nn, Ee, Mm).transpose(0, 3, 1, 2)           # (B, M, N, E)

    key_pad = (1.0 - attn_mask.astype(jnp.float32)).reshape(Bc, 1, Nn)       # 1 = padded key
    return _forward_core(packed, text_embeddings, nmask_norm, sel_g,
                         mmask_t, lens, sel_t, key_pad)


# ----------------------------- main -----------------------------
if __name__ == "__main__":
    key = jax.random.PRNGKey(0)
    kp, kx = jax.random.split(key)
    params = init_params(kp)
    packed = prepack_params(params)          # one-time repack, outside the jit

    text_embeddings = jax.random.normal(kx, (B, N, D), jnp.float32)
    input_ids = jnp.arange(B * N, dtype=jnp.int32).reshape(B, N)
    attn_mask = jnp.array([[1] * N, [1] * 6 + [0] * 2], jnp.float32)

    # graph data: node g of sample b covers tokens {g, g+1}
    nm = jnp.zeros((B, G, N), jnp.float32)
    for b in range(B):
        for g in range(G):
            nm = nm.at[b, g, g].set(1.0)
            nm = nm.at[b, g, (g + 1) % N].set(1.0)
    t2n_graph = jnp.stack([
        jnp.array([b * G + (t % G) if t < N - 1 else -1 for t in range(N)], jnp.int32)
        for b in range(B)])
    text_graphs = dict(node_token_mask=nm, token2nodepos=t2n_graph,
                       num_nodes=jnp.full((B,), G, jnp.int32))

    # entity data per sample
    mention_counts = [[3, 2, 1, 3], [2, 3, 1, 1]]   # max must equal M
    entities = []
    for b in range(B):
        msk = jnp.zeros((E * M, N), jnp.float32)
        t2n = -jnp.ones((N,), jnp.int32)
        for e in range(E):
            for m in range(mention_counts[b][e]):
                tok = (e * M + m + b) % N
                msk = msk.at[e * M + m, tok].set(1.0)
                t2n = t2n.at[tok].set(e * M + m)
        entities.append(dict(num_entities=E, max_mention_num=M,
                             num_mentions=jnp.array(mention_counts[b], jnp.int32),
                             mention_token_mask=msk, token2nodepos=t2n))

    out = event_reasoning_forward(packed, text_embeddings, input_ids,
                                  text_graphs, entities, attn_mask)
    jax.block_until_ready(out)
    assert out.shape == (B, N, D)
    print("KERNEL_OK")
</pallas_src>

<mosaic_0001>
module attributes {stable_mosaic.version = 11 : i64} {
  func.func @_fused_kernel(%arg0: i32, %arg1: memref<1x8x32xf32, #tpu.memory_space<vmem>>, %arg2: memref<1x5x8xf32, #tpu.memory_space<vmem>>, %arg3: memref<1x8x5xf32, #tpu.memory_space<vmem>>, %arg4: memref<1x3x4x8xf32, #tpu.memory_space<vmem>>, %arg5: memref<1x4x1xf32, #tpu.memory_space<vmem>>, %arg6: memref<1x3x8x4xf32, #tpu.memory_space<vmem>>, %arg7: memref<1x1x8xf32, #tpu.memory_space<vmem>>, %arg8: memref<2x33x96xf32, #tpu.memory_space<vmem>>, %arg9: memref<2x32x2048xbf16, #tpu.memory_space<vmem>>, %arg10: memref<2x1x2048xf32, #tpu.memory_space<vmem>>, %arg11: memref<2x2048x32xbf16, #tpu.memory_space<vmem>>, %arg12: memref<2x65x128xf32, #tpu.memory_space<vmem>>, %arg13: memref<160x32xf32, #tpu.memory_space<vmem>>, %arg14: memref<24x32xf32, #tpu.memory_space<vmem>>, %arg15: memref<1x8x32xf32, #tpu.memory_space<vmem>>) attributes {dimension_semantics = [#tpu.dimension_semantics<parallel>], iteration_bounds = array<i64: 2>, scalar_prefetch = 0 : i64, scratch_operands = 0 : i64, tpu.core_type = #tpu.core_type<tc>, window_params = [{transform_indices = @transform_0, window_bounds = array<i64: 1, 8, 32>}, {transform_indices = @transform_1, window_bounds = array<i64: 1, 5, 8>}, {transform_indices = @transform_2, window_bounds = array<i64: 1, 8, 5>}, {transform_indices = @transform_3, window_bounds = array<i64: 1, 3, 4, 8>}, {transform_indices = @transform_4, window_bounds = array<i64: 1, 4, 1>}, {transform_indices = @transform_5, window_bounds = array<i64: 1, 3, 8, 4>}, {transform_indices = @transform_6, window_bounds = array<i64: 1, 1, 8>}, {pipeline_mode = #tpu.pipeline_mode<synchronous>, transform_indices = @transform_7, window_bounds = array<i64: 2, 33, 96>}, {pipeline_mode = #tpu.pipeline_mode<synchronous>, transform_indices = @transform_8, window_bounds = array<i64: 2, 32, 2048>}, {pipeline_mode = #tpu.pipeline_mode<synchronous>, transform_indices = @transform_9, window_bounds = array<i64: 2, 1, 2048>}, {pipeline_mode = #tpu.pipeline_mode<synchronous>, transform_indices = @transform_10, window_bounds = array<i64: 2, 2048, 32>}, {pipeline_mode = #tpu.pipeline_mode<synchronous>, transform_indices = @transform_11, window_bounds = array<i64: 2, 65, 128>}, {pipeline_mode = #tpu.pipeline_mode<synchronous>, transform_indices = @transform_12, window_bounds = array<i64: 160, 32>}, {pipeline_mode = #tpu.pipeline_mode<synchronous>, transform_indices = @transform_13, window_bounds = array<i64: 24, 32>}, {transform_indices = @transform_14, window_bounds = array<i64: 1, 8, 32>}]} {
    %c0 = arith.constant 0 : index
    %c0_0 = arith.constant 0 : index
    %c0_1 = arith.constant 0 : index
    %0 = vector.load %arg1[%c0, %c0_0, %c0_1] : memref<1x8x32xf32, #tpu.memory_space<vmem>>, vector<1x8x32xf32>
    %1 = vector.shape_cast %0 : vector<1x8x32xf32> to vector<8x32xf32>
    %c0_2 = arith.constant 0 : index
    %c0_3 = arith.constant 0 : index
    %c0_4 = arith.constant 0 : index
    %2 = vector.load %arg2[%c0_2, %c0_3, %c0_4] : memref<1x5x8xf32, #tpu.memory_space<vmem>>, vector<1x5x8xf32>
    %3 = vector.shape_cast %2 : vector<1x5x8xf32> to vector<5x8xf32>
    %cst = arith.constant dense<0.000000e+00> : vector<5x32xf32>
    %4 = tpu.matmul %3, %1, %cst {dimension_numbers = #tpu.dot_dimension_numbers<[1], [0], [0], [1], [0, 0, 1, 1], [], []>} : vector<5x8xf32>, vector<8x32xf32>, vector<5x32xf32> -> vector<5x32xf32>
    %c0_5 = arith.constant 0 : index
    %c0_6 = arith.constant 0 : index
    %c0_7 = arith.constant 0 : index
    %5 = vector.load %arg3[%c0_5, %c0_6, %c0_7] : memref<1x8x5xf32, #tpu.memory_space<vmem>>, vector<1x8x5xf32>
    %6 = vector.shape_cast %5 : vector<1x8x5xf32> to vector<8x5xf32>
    %cst_8 = arith.constant dense<0.000000e+00> : vector<8x32xf32>
    %7 = tpu.matmul %6, %4, %cst_8 {dimension_numbers = #tpu.dot_dimension_numbers<[1], [0], [0], [1], [0, 0, 1, 1], [], []>} : vector<8x5xf32>, vector<5x32xf32>, vector<8x32xf32> -> vector<8x32xf32>
    %8 = arith.addf %7, %1 : vector<8x32xf32>
    %c0_9 = arith.constant 0 : index
    %c0_10 = arith.constant 0 : index
    %c0_11 = arith.constant 0 : index
    %9 = vector.load %arg8[%c0_9, %c0_10, %c0_11] : memref<2x33x96xf32, #tpu.memory_space<vmem>>, vector<1x32x96xf32>
    %10 = vector.shape_cast %9 : vector<1x32x96xf32> to vector<32x96xf32>
    %c0_12 = arith.constant 0 : index
    %c32 = arith.constant 32 : index
    %c0_13 = arith.constant 0 : index
    %11 = vector.load %arg8[%c0_12, %c32, %c0_13] : memref<2x33x96xf32, #tpu.memory_space<vmem>>, vector<1x1x96xf32>
    %12 = vector.shape_cast %11 : vector<1x1x96xf32> to vector<1x96xf32>
    %cst_14 = arith.constant dense<0.000000e+00> : vector<8x96xf32>
    %13 = tpu.matmul %8, %10, %cst_14 {dimension_numbers = #tpu.dot_dimension_numbers<[1], [0], [0], [1], [0, 0, 1, 1], [], []>} : vector<8x32xf32>, vector<32x96xf32>, vector<8x96xf32> -> vector<8x96xf32>
    %14 = vector.broadcast %12 : vector<1x96xf32> to vector<8x96xf32>
    %15 = arith.addf %13, %14 : vector<8x96xf32>
    %c0_15 = arith.constant 0 : index
    %c0_16 = arith.constant 0 : index
    %16 = vector.load %arg14[%c0_15, %c0_16] : memref<24x32xf32, #tpu.memory_space<vmem>>, vector<1x32xf32>
    %c1 = arith.constant 1 : index
    %c0_17 = arith.constant 0 : index
    %17 = vector.load %arg14[%c1, %c0_17] : memref<24x32xf32, #tpu.memory_space<vmem>>, vector<1x32xf32>
    %c2 = arith.constant 2 : index
    %c0_18 = arith.constant 0 : index
    %18 = vector.load %arg14[%c2, %c0_18] : memref<24x32xf32, #tpu.memory_space<vmem>>, vector<1x32xf32>
    %c3 = arith.constant 3 : index
    %c0_19 = arith.constant 0 : index
    %19 = vector.load %arg14[%c3, %c0_19] : memref<24x32xf32, #tpu.memory_space<vmem>>, vector<1x32xf32>
    %c4 = arith.constant 4 : index
    %c0_20 = arith.constant 0 : index
    %20 = vector.load %arg14[%c4, %c0_20] : memref<24x32xf32, #tpu.memory_space<vmem>>, vector<1x32xf32>
    %c5 = arith.constant 5 : index
    %c0_21 = arith.constant 0 : index
    %21 = vector.load %arg14[%c5, %c0_21] : memref<24x32xf32, #tpu.memory_space<vmem>>, vector<1x32xf32>
    %cst_22 = arith.constant 0.000000e+00 : f32
    %22 = vector.broadcast %cst_22 : f32 to vector<8x32xf32>
    %23 = vector.extract_strided_slice %15 {offsets = [0, 0], sizes = [8, 8], strides = [1, 1]} : vector<8x96xf32> to vector<8x8xf32>
    %24 = vector.extract_strided_slice %15 {offsets = [0, 32], sizes = [8, 8], strides = [1, 1]} : vector<8x96xf32> to vector<8x8xf32>
    %25 = vector.extract_strided_slice %15 {offsets = [0, 64], sizes = [8, 8], strides = [1, 1]} : vector<8x96xf32> to vector<8x8xf32>
    %cst_23 = arith.constant dense<0.000000e+00> : vector<8x8xf32>
    %26 = tpu.matmul %23, %24, %cst_23 {dimension_numbers = #tpu.dot_dimension_numbers<[1], [1], [0], [0], [0, 0, 1, 0], [], []>} : vector<8x8xf32>, vector<8x8xf32>, vector<8x8xf32> -> vector<8x8xf32>
    %cst_24 = arith.constant 0.353553385 : f32
    %27 = vector.broadcast %cst_24 : f32 to vector<8x8xf32>
    %28 = arith.mulf %26, %27 : vector<8x8xf32>
    %cst_25 = arith.constant dense<0xFF800000> : vector<8xf32>
    %29 = vector.multi_reduction <maximumf>, %28, %cst_25 [1] : vector<8x8xf32> to vector<8xf32>
    %30 = vector.shape_cast %29 : vector<8xf32> to vector<8x1xf32>
    %31 = vector.broadcast %30 : vector<8x1xf32> to vector<8x8xf32>
    %32 = arith.subf %28, %31 : vector<8x8xf32>
    %33 = math.exp %32 : vector<8x8xf32>
    %cst_26 = arith.constant dense<0.000000e+00> : vector<8xf32>
    %34 = vector.multi_reduction <add>, %33, %cst_26 [1] : vector<8x8xf32> to vector<8xf32>
    %35 = vector.shape_cast %34 : vector<8xf32> to vector<8x1xf32>
    %36 = tpu.reciprocal %35 {approx = true} : vector<8x1xf32> -> vector<8x1xf32>
    %37 = vector.broadcast %36 : vector<8x1xf32> to vector<8x8xf32>
    %38 = arith.mulf %33, %37 : vector<8x8xf32>
    %cst_27 = arith.constant dense<0.000000e+00> : vector<8x8xf32>
    %39 = tpu.matmul %38, %25, %cst_27 {dimension_numbers = #tpu.dot_dimension_numbers<[1], [0], [0], [1], [0, 0, 1, 1], [], []>} : vector<8x8xf32>, vector<8x8xf32>, vector<8x8xf32> -> vector<8x8xf32>
    %c0_28 = arith.constant 0 : index
    %c0_29 = arith.constant 0 : index
    %40 = vector.load %arg13[%c0_28, %c0_29] : memref<160x32xf32, #tpu.memory_space<vmem>>, vector<8x32xf32>
    %cst_30 = arith.constant dense<0.000000e+00> : vector<8x32xf32>
    %41 = tpu.matmul %39, %40, %cst_30 {dimension_numbers = #tpu.dot_dimension_numbers<[1], [0], [0], [1], [0, 0, 1, 1], [], []>} : vector<8x8xf32>, vector<8x32xf32>, vector<8x32xf32> -> vector<8x32xf32>
    %42 = arith.addf %22, %41 : vector<8x32xf32>
    %43 = vector.extract_strided_slice %15 {offsets = [0, 8], sizes = [8, 8], strides = [1, 1]} : vector<8x96xf32> to vector<8x8xf32>
    %44 = vector.extract_strided_slice %15 {offsets = [0, 40], sizes = [8, 8], strides = [1, 1]} : vector<8x96xf32> to vector<8x8xf32>
    %45 = vector.extract_strided_slice %15 {offsets = [0, 72], sizes = [8, 8], strides = [1, 1]} : vector<8x96xf32> to vector<8x8xf32>
    %cst_31 = arith.constant dense<0.000000e+00> : vector<8x8xf32>
    %46 = tpu.matmul %43, %44, %cst_31 {dimension_numbers = #tpu.dot_dimension_numbers<[1], [1], [0], [0], [0, 0, 1, 0], [], []>} : vector<8x8xf32>, vector<8x8xf32>, vector<8x8xf32> -> vector<8x8xf32>
    %cst_32 = arith.constant 0.353553385 : f32
    %47 = vector.broadcast %cst_32 : f32 to vector<8x8xf32>
    %48 = arith.mulf %46, %47 : vector<8x8xf32>
    %cst_33 = arith.constant dense<0xFF800000> : vector<8xf32>
    %49 = vector.multi_reduction <maximumf>, %48, %cst_33 [1] : vector<8x8xf32> to vector<8xf32>
    %50 = vector.shape_cast %49 : vector<8xf32> to vector<8x1xf32>
    %51 = vector.broadcast %50 : vector<8x1xf32> to vector<8x8xf32>
    %52 = arith.subf %48, %51 : vector<8x8xf32>
    %53 = math.exp %52 : vector<8x8xf32>
    %cst_34 = arith.constant dense<0.000000e+00> : vector<8xf32>
    %54 = vector.multi_reduction <add>, %53, %cst_34 [1] : vector<8x8xf32> to vector<8xf32>
    %55 = vector.shape_cast %54 : vector<8xf32> to vector<8x1xf32>
    %56 = tpu.reciprocal %55 {approx = true} : vector<8x1xf32> -> vector<8x1xf32>
    %57 = vector.broadcast %56 : vector<8x1xf32> to vector<8x8xf32>
    %58 = arith.mulf %53, %57 : vector<8x8xf32>
    %cst_35 = arith.constant dense<0.000000e+00> : vector<8x8xf32>
    %59 = tpu.matmul %58, %45, %cst_35 {dimension_numbers = #tpu.dot_dimension_numbers<[1], [0], [0], [1], [0, 0, 1, 1], [], []>} : vector<8x8xf32>, vector<8x8xf32>, vector<8x8xf32> -> vector<8x8xf32>
    %c8 = arith.constant 8 : index
    %c0_36 = arith.constant 0 : index
    %60 = vector.load %arg13[%c8, %c0_36] : memref<160x32xf32, #tpu.memory_space<vmem>>, vector<8x32xf32>
    %cst_37 = arith.constant dense<0.000000e+00> : vector<8x32xf32>
    %61 = tpu.matmul %59, %60, %cst_37 {dimension_numbers = #tpu.dot_dimension_numbers<[1], [0], [0], [1], [0, 0, 1, 1], [], []>} : vector<8x8xf32>, vector<8x32xf32>, vector<8x32xf32> -> vector<8x32xf32>
    %62 = arith.addf %42, %61 : vector<8x32xf32>
    %63 = vector.extract_strided_slice %15 {offsets = [0, 16], sizes = [8, 8], strides = [1, 1]} : vector<8x96xf32> to vector<8x8xf32>
    %64 = vector.extract_strided_slice %15 {offsets = [0, 48], sizes = [8, 8], strides = [1, 1]} : vector<8x96xf32> to vector<8x8xf32>
    %65 = vector.extract_strided_slice %15 {offsets = [0, 80], sizes = [8, 8], strides = [1, 1]} : vector<8x96xf32> to vector<8x8xf32>
    %cst_38 = arith.constant dense<0.000000e+00> : vector<8x8xf32>
    %66 = tpu.matmul %63, %64, %cst_38 {dimension_numbers = #tpu.dot_dimension_numbers<[1], [1], [0], [0], [0, 0, 1, 0], [], []>} : vector<8x8xf32>, vector<8x8xf32>, vector<8x8xf32> -> vector<8x8xf32>
    %cst_39 = arith.constant 0.353553385 : f32
    %67 = vector.broadcast %cst_39 : f32 to vector<8x8xf32>
    %68 = arith.mulf %66, %67 : vector<8x8xf32>
    %cst_40 = arith.constant dense<0xFF800000> : vector<8xf32>
    %69 = vector.multi_reduction <maximumf>, %68, %cst_40 [1] : vector<8x8xf32> to vector<8xf32>
    %70 = vector.shape_cast %69 : vector<8xf32> to vector<8x1xf32>
    %71 = vector.broadcast %70 : vector<8x1xf32> to vector<8x8xf32>
    %72 = arith.subf %68, %71 : vector<8x8xf32>
    %73 = math.exp %72 : vector<8x8xf32>
    %cst_41 = arith.constant dense<0.000000e+00> : vector<8xf32>
    %74 = vector.multi_reduction <add>, %73, %cst_41 [1] : vector<8x8xf32> to vector<8xf32>
    %75 = vector.shape_cast %74 : vector<8xf32> to vector<8x1xf32>
    %76 = tpu.reciprocal %75 {approx = true} : vector<8x1xf32> -> vector<8x1xf32>
    %77 = vector.broadcast %76 : vector<8x1xf32> to vector<8x8xf32>
    %78 = arith.mulf %73, %77 : vector<8x8xf32>
    %cst_42 = arith.constant dense<0.000000e+00> : vector<8x8xf32>
    %79 = tpu.matmul %78, %65, %cst_42 {dimension_numbers = #tpu.dot_dimension_numbers<[1], [0], [0], [1], [0, 0, 1, 1], [], []>} : vector<8x8xf32>, vector<8x8xf32>, vector<8x8xf32> -> vector<8x8xf32>
    %c16 = arith.constant 16 : index
    %c0_43 = arith.constant 0 : index
    %80 = vector.load %arg13[%c16, %c0_43] : memref<160x32xf32, #tpu.memory_space<vmem>>, vector<8x32xf32>
    %cst_44 = arith.constant dense<0.000000e+00> : vector<8x32xf32>
    %81 = tpu.matmul %79, %80, %cst_44 {dimension_numbers = #tpu.dot_dimension_numbers<[1], [0], [0], [1], [0, 0, 1, 1], [], []>} : vector<8x8xf32>, vector<8x32xf32>, vector<8x32xf32> -> vector<8x32xf32>
    %82 = arith.addf %62, %81 : vector<8x32xf32>
    %83 = vector.extract_strided_slice %15 {offsets = [0, 24], sizes = [8, 8], strides = [1, 1]} : vector<8x96xf32> to vector<8x8xf32>
    %84 = vector.extract_strided_slice %15 {offsets = [0, 56], sizes = [8, 8], strides = [1, 1]} : vector<8x96xf32> to vector<8x8xf32>
    %85 = vector.extract_strided_slice %15 {offsets = [0, 88], sizes = [8, 8], strides = [1, 1]} : vector<8x96xf32> to vector<8x8xf32>
    %cst_45 = arith.constant dense<0.000000e+00> : vector<8x8xf32>
    %86 = tpu.matmul %83, %84, %cst_45 {dimension_numbers = #tpu.dot_dimension_numbers<[1], [1], [0], [0], [0, 0, 1, 0], [], []>} : vector<8x8xf32>, vector<8x8xf32>, vector<8x8xf32> -> vector<8x8xf32>
    %cst_46 = arith.constant 0.353553385 : f32
    %87 = vector.broadcast %cst_46 : f32 to vector<8x8xf32>
    %88 = arith.mulf %86, %87 : vector<8x8xf32>
    %cst_47 = arith.constant dense<0xFF800000> : vector<8xf32>
    %89 = vector.multi_reduction <maximumf>, %88, %cst_47 [1] : vector<8x8xf32> to vector<8xf32>
    %90 = vector.shape_cast %89 : vector<8xf32> to vector<8x1xf32>
    %91 = vector.broadcast %90 : vector<8x1xf32> to vector<8x8xf32>
    %92 = arith.subf %88, %91 : vector<8x8xf32>
    %93 = math.exp %92 : vector<8x8xf32>
    %cst_48 = arith.constant dense<0.000000e+00> : vector<8xf32>
    %94 = vector.multi_reduction <add>, %93, %cst_48 [1] : vector<8x8xf32> to vector<8xf32>
    %95 = vector.shape_cast %94 : vector<8xf32> to vector<8x1xf32>
    %96 = tpu.reciprocal %95 {approx = true} : vector<8x1xf32> -> vector<8x1xf32>
    %97 = vector.broadcast %96 : vector<8x1xf32> to vector<8x8xf32>
    %98 = arith.mulf %93, %97 : vector<8x8xf32>
    %cst_49 = arith.constant dense<0.000000e+00> : vector<8x8xf32>
    %99 = tpu.matmul %98, %85, %cst_49 {dimension_numbers = #tpu.dot_dimension_numbers<[1], [0], [0], [1], [0, 0, 1, 1], [], []>} : vector<8x8xf32>, vector<8x8xf32>, vector<8x8xf32> -> vector<8x8xf32>
    %c24 = arith.constant 24 : index
    %c0_50 = arith.constant 0 : index
    %100 = vector.load %arg13[%c24, %c0_50] : memref<160x32xf32, #tpu.memory_space<vmem>>, vector<8x32xf32>
    %cst_51 = arith.constant dense<0.000000e+00> : vector<8x32xf32>
    %101 = tpu.matmul %99, %100, %cst_51 {dimension_numbers = #tpu.dot_dimension_numbers<[1], [0], [0], [1], [0, 0, 1, 1], [], []>} : vector<8x8xf32>, vector<8x32xf32>, vector<8x32xf32> -> vector<8x32xf32>
    %102 = arith.addf %82, %101 : vector<8x32xf32>
    %103 = vector.broadcast %16 : vector<1x32xf32> to vector<8x32xf32>
    %104 = arith.addf %102, %103 : vector<8x32xf32>
    %105 = arith.addf %8, %104 : vector<8x32xf32>
    %cst_52 = arith.constant dense<0.000000e+00> : vector<8xf32>
    %106 = vector.multi_reduction <add>, %105, %cst_52 [1] : vector<8x32xf32> to vector<8xf32>
    %107 = vector.shape_cast %106 : vector<8xf32> to vector<8x1xf32>
    %cst_53 = arith.constant 3.200000e+01 : f32
    %108 = vector.broadcast %cst_53 : f32 to vector<8x1xf32>
    %109 = arith.divf %107, %108 : vector<8x1xf32>
    %110 = vector.broadcast %109 : vector<8x1xf32> to vector<8x32xf32>
    %111 = arith.subf %105, %110 : vector<8x32xf32>
    %112 = arith.mulf %111, %111 : vector<8x32xf32>
    %cst_54 = arith.constant dense<0.000000e+00> : vector<8xf32>
    %113 = vector.multi_reduction <add>, %112, %cst_54 [1] : vector<8x32xf32> to vector<8xf32>
    %114 = vector.shape_cast %113 : vector<8xf32> to vector<8x1xf32>
    %cst_55 = arith.constant 3.200000e+01 : f32
    %115 = vector.broadcast %cst_55 : f32 to vector<8x1xf32>
    %116 = arith.divf %114, %115 : vector<8x1xf32>
    %117 = vector.broadcast %109 : vector<8x1xf32> to vector<8x32xf32>
    %118 = arith.subf %105, %117 : vector<8x32xf32>
    %cst_56 = arith.constant 9.99999974E-6 : f32
    %119 = vector.broadcast %cst_56 : f32 to vector<8x1xf32>
    %120 = arith.addf %116, %119 : vector<8x1xf32>
    %121 = math.rsqrt %120 : vector<8x1xf32>
    %122 = vector.broadcast %121 : vector<8x1xf32> to vector<8x32xf32>
    %123 = arith.mulf %118, %122 : vector<8x32xf32>
    %124 = vector.broadcast %17 : vector<1x32xf32> to vector<8x32xf32>
    %125 = arith.mulf %123, %124 : vector<8x32xf32>
    %126 = vector.broadcast %18 : vector<1x32xf32> to vector<8x32xf32>
    %127 = arith.addf %125, %126 : vector<8x32xf32>
    %128 = arith.truncf %127 : vector<8x32xf32> to vector<8x32xbf16>
    %c0_57 = arith.constant 0 : index
    %c0_58 = arith.constant 0 : index
    %c0_59 = arith.constant 0 : index
    %129 = vector.load %arg9[%c0_57, %c0_58, %c0_59] : memref<2x32x2048xbf16, #tpu.memory_space<vmem>>, vector<1x32x2048xbf16>
    %130 = vector.shape_cast %129 : vector<1x32x2048xbf16> to vector<32x2048xbf16>
    %cst_60 = arith.constant dense<0.000000e+00> : vector<8x2048xf32>
    %131 = tpu.matmul %128, %130, %cst_60 {dimension_numbers = #tpu.dot_dimension_numbers<[1], [0], [0], [1], [0, 0, 1, 1], [], []>} : vector<8x32xbf16>, vector<32x2048xbf16>, vector<8x2048xf32> -> vector<8x2048xf32>
    %c0_61 = arith.constant 0 : index
    %c0_62 = arith.constant 0 : index
    %c0_63 = arith.constant 0 : index
    %132 = vector.load %arg10[%c0_61, %c0_62, %c0_63] : memref<2x1x2048xf32, #tpu.memory_space<vmem>>, vector<1x1x2048xf32>
    %133 = vector.shape_cast %132 : vector<1x1x2048xf32> to vector<1x2048xf32>
    %134 = vector.broadcast %133 : vector<1x2048xf32> to vector<8x2048xf32>
    %135 = arith.addf %131, %134 : vector<8x2048xf32>
    %cst_64 = arith.constant 0.000000e+00 : f32
    %136 = vector.broadcast %cst_64 : f32 to vector<8x2048xf32>
    %137 = arith.maximumf %135, %136 : vector<8x2048xf32>
    %138 = arith.truncf %137 : vector<8x2048xf32> to vector<8x2048xbf16>
    %c0_65 = arith.constant 0 : index
    %c0_66 = arith.constant 0 : index
    %c0_67 = arith.constant 0 : index
    %139 = vector.load %arg11[%c0_65, %c0_66, %c0_67] : memref<2x2048x32xbf16, #tpu.memory_space<vmem>>, vector<1x2048x32xbf16>
    %140 = vector.shape_cast %139 : vector<1x2048x32xbf16> to vector<2048x32xbf16>
    %cst_68 = arith.constant dense<0.000000e+00> : vector<8x32xf32>
    %141 = tpu.matmul %138, %140, %cst_68 {dimension_numbers = #tpu.dot_dimension_numbers<[1], [0], [0], [1], [0, 0, 1, 1], [], []>} : vector<8x2048xbf16>, vector<2048x32xbf16>, vector<8x32xf32> -> vector<8x32xf32>
    %142 = vector.broadcast %19 : vector<1x32xf32> to vector<8x32xf32>
    %143 = arith.addf %141, %142 : vector<8x32xf32>
    %144 = arith.addf %127, %143 : vector<8x32xf32>
    %cst_69 = arith.constant dense<0.000000e+00> : vector<8xf32>
    %145 = vector.multi_reduction <add>, %144, %cst_69 [1] : vector<8x32xf32> to vector<8xf32>
    %146 = vector.shape_cast %145 : vector<8xf32> to vector<8x1xf32>
    %cst_70 = arith.constant 3.200000e+01 : f32
    %147 = vector.broadcast %cst_70 : f32 to vector<8x1xf32>
    %148 = arith.divf %146, %147 : vector<8x1xf32>
    %149 = vector.broadcast %148 : vector<8x1xf32> to vector<8x32xf32>
    %150 = arith.subf %144, %149 : vector<8x32xf32>
    %151 = arith.mulf %150, %150 : vector<8x32xf32>
    %cst_71 = arith.constant dense<0.000000e+00> : vector<8xf32>
    %152 = vector.multi_reduction <add>, %151, %cst_71 [1] : vector<8x32xf32> to vector<8xf32>
    %153 = vector.shape_cast %152 : vector<8xf32> to vector<8x1xf32>
    %cst_72 = arith.constant 3.200000e+01 : f32
    %154 = vector.broadcast %cst_72 : f32 to vector<8x1xf32>
    %155 = arith.divf %153, %154 : vector<8x1xf32>
    %156 = vector.broadcast %148 : vector<8x1xf32> to vector<8x32xf32>
    %157 = arith.subf %144, %156 : vector<8x32xf32>
    %cst_73 = arith.constant 9.99999974E-6 : f32
    %158 = vector.broadcast %cst_73 : f32 to vector<8x1xf32>
    %159 = arith.addf %155, %158 : vector<8x1xf32>
    %160 = math.rsqrt %159 : vector<8x1xf32>
    %161 = vector.broadcast %160 : vector<8x1xf32> to vector<8x32xf32>
    %162 = arith.mulf %157, %161 : vector<8x32xf32>
    %163 = vector.broadcast %20 : vector<1x32xf32> to vector<8x32xf32>
    %164 = arith.mulf %162, %163 : vector<8x32xf32>
    %165 = vector.broadcast %21 : vector<1x32xf32> to vector<8x32xf32>
    %166 = arith.addf %164, %165 : vector<8x32xf32>
    %c0_74 = arith.constant 0 : index
    %c0_75 = arith.constant 0 : index
    %c0_76 = arith.constant 0 : index
    %167 = vector.load %arg5[%c0_74, %c0_75, %c0_76] : memref<1x4x1xf32, #tpu.memory_space<vmem>>, vector<1x4x1xf32>
    %168 = vector.shape_cast %167 : vector<1x4x1xf32> to vector<4x1xf32>
    %c64 = arith.constant 64 : index
    %c0_77 = arith.constant 0 : index
    %169 = vector.load %arg13[%c64, %c0_77] : memref<160x32xf32, #tpu.memory_space<vmem>>, vector<32x32xf32>
    %c96 = arith.constant 96 : index
    %c0_78 = arith.constant 0 : index
    %170 = vector.load %arg13[%c96, %c0_78] : memref<160x32xf32, #tpu.memory_space<vmem>>, vector<64x32xf32>
    %c16_79 = arith.constant 16 : index
    %c0_80 = arith.constant 0 : index
    %171 = vector.load %arg14[%c16_79, %c0_80] : memref<24x32xf32, #tpu.memory_space<vmem>>, vector<1x32xf32>
    %c17 = arith.constant 17 : index
    %c0_81 = arith.constant 0 : index
    %172 = vector.load %arg14[%c17, %c0_81] : memref<24x32xf32, #tpu.memory_space<vmem>>, vector<1x32xf32>
    %c0_82 = arith.constant 0 : index
    %c0_83 = arith.constant 0 : index
    %c0_84 = arith.constant 0 : index
    %c0_85 = arith.constant 0 : index
    %173 = vector.load %arg4[%c0_82, %c0_83, %c0_84, %c0_85] : memref<1x3x4x8xf32, #tpu.memory_space<vmem>>, vector<1x1x4x8xf32>
    %174 = vector.shape_cast %173 : vector<1x1x4x8xf32> to vector<4x8xf32>
    %cst_86 = arith.constant dense<0.000000e+00> : vector<4x32xf32>
    %175 = tpu.matmul %174, %166, %cst_86 {dimension_numbers = #tpu.dot_dimension_numbers<[1], [0], [0], [1], [0, 0, 1, 1], [], []>} : vector<4x8xf32>, vector<8x32xf32>, vector<4x32xf32> -> vector<4x32xf32>
    %cst_87 = arith.constant dense<0.000000e+00> : vector<4x32xf32>
    %176 = tpu.matmul %175, %169, %cst_87 {dimension_numbers = #tpu.dot_dimension_numbers<[1], [0], [0], [1], [0, 0, 1, 1], [], []>} : vector<4x32xf32>, vector<32x32xf32>, vector<4x32xf32> -> vector<4x32xf32>
    %177 = vector.broadcast %171 : vector<1x32xf32> to vector<4x32xf32>
    %178 = arith.addf %176, %177 : vector<4x32xf32>
    %179 = math.tanh %178 : vector<4x32xf32>
    %c0_88 = arith.constant 0 : index
    %c1_89 = arith.constant 1 : index
    %c0_90 = arith.constant 0 : index
    %c0_91 = arith.constant 0 : index
    %180 = vector.load %arg4[%c0_88, %c1_89, %c0_90, %c0_91] : memref<1x3x4x8xf32, #tpu.memory_space<vmem>>, vector<1x1x4x8xf32>
    %181 = vector.shape_cast %180 : vector<1x1x4x8xf32> to vector<4x8xf32>
    %cst_92 = arith.constant dense<0.000000e+00> : vector<4x32xf32>
    %182 = tpu.matmul %181, %166, %cst_92 {dimension_numbers = #tpu.dot_dimension_numbers<[1], [0], [0], [1], [0, 0, 1, 1], [], []>} : vector<4x8xf32>, vector<8x32xf32>, vector<4x32xf32> -> vector<4x32xf32>
    %cst_93 = arith.constant dense<0.000000e+00> : vector<4x32xf32>
    %183 = tpu.matmul %182, %169, %cst_93 {dimension_numbers = #tpu.dot_dimension_numbers<[1], [0], [0], [1], [0, 0, 1, 1], [], []>} : vector<4x32xf32>, vector<32x32xf32>, vector<4x32xf32> -> vector<4x32xf32>
    %184 = vector.broadcast %171 : vector<1x32xf32> to vector<4x32xf32>
    %185 = arith.addf %183, %184 : vector<4x32xf32>
    %186 = math.tanh %185 : vector<4x32xf32>
    %c0_94 = arith.constant 0 : index
    %c2_95 = arith.constant 2 : index
    %c0_96 = arith.constant 0 : index
    %c0_97 = arith.constant 0 : index
    %187 = vector.load %arg4[%c0_94, %c2_95, %c0_96, %c0_97] : memref<1x3x4x8xf32, #tpu.memory_space<vmem>>, vector<1x1x4x8xf32>
    %188 = vector.shape_cast %187 : vector<1x1x4x8xf32> to vector<4x8xf32>
    %cst_98 = arith.constant dense<0.000000e+00> : vector<4x32xf32>
    %189 = tpu.matmul %188, %166, %cst_98 {dimension_numbers = #tpu.dot_dimension_numbers<[1], [0], [0], [1], [0, 0, 1, 1], [], []>} : vector<4x8xf32>, vector<8x32xf32>, vector<4x32xf32> -> vector<4x32xf32>
    %cst_99 = arith.constant dense<0.000000e+00> : vector<4x32xf32>
    %190 = tpu.matmul %189, %169, %cst_99 {dimension_numbers = #tpu.dot_dimension_numbers<[1], [0], [0], [1], [0, 0, 1, 1], [], []>} : vector<4x32xf32>, vector<32x32xf32>, vector<4x32xf32> -> vector<4x32xf32>
    %191 = vector.broadcast %171 : vector<1x32xf32> to vector<4x32xf32>
    %192 = arith.addf %190, %191 : vector<4x32xf32>
    %193 = math.tanh %192 : vector<4x32xf32>
    %c0_100 = arith.constant 0 : index
    %c0_101 = arith.constant 0 : index
    %c0_102 = arith.constant 0 : index
    %194 = vector.load %arg12[%c0_100, %c0_101, %c0_102] : memref<2x65x128xf32, #tpu.memory_space<vmem>>, vector<1x64x128xf32>
    %195 = vector.shape_cast %194 : vector<1x64x128xf32> to vector<64x128xf32>
    %c0_103 = arith.constant 0 : index
    %c64_104 = arith.constant 64 : index
    %c0_105 = arith.constant 0 : index
    %196 = vector.load %arg12[%c0_103, %c64_104, %c0_105] : memref<2x65x128xf32, #tpu.memory_space<vmem>>, vector<1x1x128xf32>
    %197 = vector.shape_cast %196 : vector<1x1x128xf32> to vector<1x128xf32>
    %c1_106 = arith.constant 1 : index
    %c0_107 = arith.constant 0 : index
    %c0_108 = arith.constant 0 : index
    %198 = vector.load %arg12[%c1_106, %c0_107, %c0_108] : memref<2x65x128xf32, #tpu.memory_space<vmem>>, vector<1x64x128xf32>
    %199 = vector.shape_cast %198 : vector<1x64x128xf32> to vector<64x128xf32>
    %c1_109 = arith.constant 1 : index
    %c64_110 = arith.constant 64 : index
    %c0_111 = arith.constant 0 : index
    %200 = vector.load %arg12[%c1_109, %c64_110, %c0_111] : memref<2x65x128xf32, #tpu.memory_space<vmem>>, vector<1x1x128xf32>
    %201 = vector.shape_cast %200 : vector<1x1x128xf32> to vector<1x128xf32>
    %cst_112 = arith.constant 0.000000e+00 : f32
    %202 = vector.broadcast %cst_112 : f32 to vector<4x32xf32>
    %cst_113 = arith.constant 0.000000e+00 : f32
    %203 = vector.broadcast %cst_113 : f32 to vector<4x1xf32>
    %204 = arith.cmpf ogt, %168, %203 : vector<4x1xf32>
    %205 = arith.extui %204 : vector<4x1xi1> to vector<4x1xi32>
    %206 = arith.sitofp %205 : vector<4x1xi32> to vector<4x1xf32>
    %207 = tpu.concatenate %179, %202 in 1 : vector<4x32xf32>, vector<4x32xf32> -> vector<4x64xf32>
    %cst_114 = arith.constant dense<0.000000e+00> : vector<4x128xf32>
    %208 = tpu.matmul %207, %195, %cst_114 {dimension_numbers = #tpu.dot_dimension_numbers<[1], [0], [0], [1], [0, 0, 1, 1], [], []>} : vector<4x64xf32>, vector<64x128xf32>, vector<4x128xf32> -> vector<4x128xf32>
    %209 = vector.broadcast %197 : vector<1x128xf32> to vector<4x128xf32>
    %210 = arith.addf %208, %209 : vector<4x128xf32>
    %211 = vector.extract_strided_slice %210 {offsets = [0, 0], sizes = [4, 32], strides = [1, 1]} : vector<4x128xf32> to vector<4x32xf32>
    %212 = arith.negf %211 : vector<4x32xf32>
    %213 = math.exp %212 : vector<4x32xf32>
    %cst_115 = arith.constant 1.000000e+00 : f32
    %214 = vector.broadcast %cst_115 : f32 to vector<4x32xf32>
    %215 = arith.addf %214, %213 : vector<4x32xf32>
    %216 = arith.divf %214, %215 : vector<4x32xf32>
    %217 = vector.extract_strided_slice %210 {offsets = [0, 32], sizes = [4, 32], strides = [1, 1]} : vector<4x128xf32> to vector<4x32xf32>
    %218 = arith.negf %217 : vector<4x32xf32>
    %219 = math.exp %218 : vector<4x32xf32>
    %cst_116 = arith.constant 1.000000e+00 : f32
    %220 = vector.broadcast %cst_116 : f32 to vector<4x32xf32>
    %221 = arith.addf %220, %219 : vector<4x32xf32>
    %222 = arith.divf %220, %221 : vector<4x32xf32>
    %223 = vector.extract_strided_slice %210 {offsets = [0, 64], sizes = [4, 32], strides = [1, 1]} : vector<4x128xf32> to vector<4x32xf32>
    %224 = math.tanh %223 : vector<4x32xf32>
    %225 = vector.extract_strided_slice %210 {offsets = [0, 96], sizes = [4, 32], strides = [1, 1]} : vector<4x128xf32> to vector<4x32xf32>
    %226 = arith.negf %225 : vector<4x32xf32>
    %227 = math.exp %226 : vector<4x32xf32>
    %cst_117 = arith.constant 1.000000e+00 : f32
    %228 = vector.broadcast %cst_117 : f32 to vector<4x32xf32>
    %229 = arith.addf %228, %227 : vector<4x32xf32>
    %230 = arith.divf %228, %229 : vector<4x32xf32>
    %231 = arith.mulf %222, %202 : vector<4x32xf32>
    %232 = arith.mulf %216, %224 : vector<4x32xf32>
    %233 = arith.addf %231, %232 : vector<4x32xf32>
    %234 = math.tanh %233 : vector<4x32xf32>
    %235 = arith.mulf %230, %234 : vector<4x32xf32>
    %236 = vector.broadcast %206 : vector<4x1xf32> to vector<4x32xf32>
    %237 = arith.mulf %236, %235 : vector<4x32xf32>
    %cst_118 = arith.constant 1.000000e+00 : f32
    %238 = vector.broadcast %cst_118 : f32 to vector<4x1xf32>
    %239 = arith.subf %238, %206 : vector<4x1xf32>
    %240 = vector.broadcast %239 : vector<4x1xf32> to vector<4x32xf32>
    %241 = arith.mulf %240, %202 : vector<4x32xf32>
    %242 = arith.addf %237, %241 : vector<4x32xf32>
    %243 = vector.broadcast %206 : vector<4x1xf32> to vector<4x32xf32>
    %244 = arith.mulf %243, %233 : vector<4x32xf32>
    %cst_119 = arith.constant 1.000000e+00 : f32
    %245 = vector.broadcast %cst_119 : f32 to vector<4x1xf32>
    %246 = arith.subf %245, %206 : vector<4x1xf32>
    %247 = vector.broadcast %246 : vector<4x1xf32> to vector<4x32xf32>
    %248 = arith.mulf %247, %202 : vector<4x32xf32>
    %249 = arith.addf %244, %248 : vector<4x32xf32>
    %250 = vector.broadcast %206 : vector<4x1xf32> to vector<4x32xf32>
    %251 = arith.mulf %250, %242 : vector<4x32xf32>
    %cst_120 = arith.constant 1.000000e+00 : f32
    %252 = vector.broadcast %cst_120 : f32 to vector<4x1xf32>
    %253 = arith.cmpf ogt, %168, %252 : vector<4x1xf32>
    %254 = arith.extui %253 : vector<4x1xi1> to vector<4x1xi32>
    %255 = arith.sitofp %254 : vector<4x1xi32> to vector<4x1xf32>
    %256 = tpu.concatenate %186, %242 in 1 : vector<4x32xf32>, vector<4x32xf32> -> vector<4x64xf32>
    %cst_121 = arith.constant dense<0.000000e+00> : vector<4x128xf32>
    %257 = tpu.matmul %256, %195, %cst_121 {dimension_numbers = #tpu.dot_dimension_numbers<[1], [0], [0], [1], [0, 0, 1, 1], [], []>} : vector<4x64xf32>, vector<64x128xf32>, vector<4x128xf32> -> vector<4x128xf32>
    %258 = vector.broadcast %197 : vector<1x128xf32> to vector<4x128xf32>
    %259 = arith.addf %257, %258 : vector<4x128xf32>
    %260 = vector.extract_strided_slice %259 {offsets = [0, 0], sizes = [4, 32], strides = [1, 1]} : vector<4x128xf32> to vector<4x32xf32>
    %261 = arith.negf %260 : vector<4x32xf32>
    %262 = math.exp %261 : vector<4x32xf32>
    %cst_122 = arith.constant 1.000000e+00 : f32
    %263 = vector.broadcast %cst_122 : f32 to vector<4x32xf32>
    %264 = arith.addf %263, %262 : vector<4x32xf32>
    %265 = arith.divf %263, %264 : vector<4x32xf32>
    %266 = vector.extract_strided_slice %259 {offsets = [0, 32], sizes = [4, 32], strides = [1, 1]} : vector<4x128xf32> to vector<4x32xf32>
    %267 = arith.negf %266 : vector<4x32xf32>
    %268 = math.exp %267 : vector<4x32xf32>
    %cst_123 = arith.constant 1.000000e+00 : f32
    %269 = vector.broadcast %cst_123 : f32 to vector<4x32xf32>
    %270 = arith.addf %269, %268 : vector<4x32xf32>
    %271 = arith.divf %269, %270 : vector<4x32xf32>
    %272 = vector.extract_strided_slice %259 {offsets = [0, 64], sizes = [4, 32], strides = [1, 1]} : vector<4x128xf32> to vector<4x32xf32>
    %273 = math.tanh %272 : vector<4x32xf32>
    %274 = vector.extract_strided_slice %259 {offsets = [0, 96], sizes = [4, 32], strides = [1, 1]} : vector<4x128xf32> to vector<4x32xf32>
    %275 = arith.negf %274 : vector<4x32xf32>
    %276 = math.exp %275 : vector<4x32xf32>
    %cst_124 = arith.constant 1.000000e+00 : f32
    %277 = vector.broadcast %cst_124 : f32 to vector<4x32xf32>
    %278 = arith.addf %277, %276 : vector<4x32xf32>
    %279 = arith.divf %277, %278 : vector<4x32xf32>
    %280 = arith.mulf %271, %249 : vector<4x32xf32>
    %281 = arith.mulf %265, %273 : vector<4x32xf32>
    %282 = arith.addf %280, %281 : vector<4x32xf32>
    %283 = math.tanh %282 : vector<4x32xf32>
    %284 = arith.mulf %279, %283 : vector<4x32xf32>
    %285 = vector.broadcast %255 : vector<4x1xf32> to vector<4x32xf32>
    %286 = arith.mulf %285, %284 : vector<4x32xf32>
    %cst_125 = arith.constant 1.000000e+00 : f32
    %287 = vector.broadcast %cst_125 : f32 to vector<4x1xf32>
    %288 = arith.subf %287, %255 : vector<4x1xf32>
    %289 = vector.broadcast %288 : vector<4x1xf32> to vector<4x32xf32>
    %290 = arith.mulf %289, %242 : vector<4x32xf32>
    %291 = arith.addf %286, %290 : vector<4x32xf32>
    %292 = vector.broadcast %255 : vector<4x1xf32> to vector<4x32xf32>
    %293 = arith.mulf %292, %282 : vector<4x32xf32>
    %cst_126 = arith.constant 1.000000e+00 : f32
    %294 = vector.broadcast %cst_126 : f32 to vector<4x1xf32>
    %295 = arith.subf %294, %255 : vector<4x1xf32>
    %296 = vector.broadcast %295 : vector<4x1xf32> to vector<4x32xf32>
    %297 = arith.mulf %296, %249 : vector<4x32xf32>
    %298 = arith.addf %293, %297 : vector<4x32xf32>
    %299 = vector.broadcast %255 : vector<4x1xf32> to vector<4x32xf32>
    %300 = arith.mulf %299, %291 : vector<4x32xf32>
    %cst_127 = arith.constant 2.000000e+00 : f32
    %301 = vector.broadcast %cst_127 : f32 to vector<4x1xf32>
    %302 = arith.cmpf ogt, %168, %301 : vector<4x1xf32>
    %303 = arith.extui %302 : vector<4x1xi1> to vector<4x1xi32>
    %304 = arith.sitofp %303 : vector<4x1xi32> to vector<4x1xf32>
    %305 = tpu.concatenate %193, %291 in 1 : vector<4x32xf32>, vector<4x32xf32> -> vector<4x64xf32>
    %cst_128 = arith.constant dense<0.000000e+00> : vector<4x128xf32>
    %306 = tpu.matmul %305, %195, %cst_128 {dimension_numbers = #tpu.dot_dimension_numbers<[1], [0], [0], [1], [0, 0, 1, 1], [], []>} : vector<4x64xf32>, vector<64x128xf32>, vector<4x128xf32> -> vector<4x128xf32>
    %307 = vector.broadcast %197 : vector<1x128xf32> to vector<4x128xf32>
    %308 = arith.addf %306, %307 : vector<4x128xf32>
    %309 = vector.extract_strided_slice %308 {offsets = [0, 0], sizes = [4, 32], strides = [1, 1]} : vector<4x128xf32> to vector<4x32xf32>
    %310 = arith.negf %309 : vector<4x32xf32>
    %311 = math.exp %310 : vector<4x32xf32>
    %cst_129 = arith.constant 1.000000e+00 : f32
    %312 = vector.broadcast %cst_129 : f32 to vector<4x32xf32>
    %313 = arith.addf %312, %311 : vector<4x32xf32>
    %314 = arith.divf %312, %313 : vector<4x32xf32>
    %315 = vector.extract_strided_slice %308 {offsets = [0, 32], sizes = [4, 32], strides = [1, 1]} : vector<4x128xf32> to vector<4x32xf32>
    %316 = arith.negf %315 : vector<4x32xf32>
    %317 = math.exp %316 : vector<4x32xf32>
    %cst_130 = arith.constant 1.000000e+00 : f32
    %318 = vector.broadcast %cst_130 : f32 to vector<4x32xf32>
    %319 = arith.addf %318, %317 : vector<4x32xf32>
    %320 = arith.divf %318, %319 : vector<4x32xf32>
    %321 = vector.extract_strided_slice %308 {offsets = [0, 64], sizes = [4, 32], strides = [1, 1]} : vector<4x128xf32> to vector<4x32xf32>
    %322 = math.tanh %321 : vector<4x32xf32>
    %323 = vector.extract_strided_slice %308 {offsets = [0, 96], sizes = [4, 32], strides = [1, 1]} : vector<4x128xf32> to vector<4x32xf32>
    %324 = arith.negf %323 : vector<4x32xf32>
    %325 = math.exp %324 : vector<4x32xf32>
    %cst_131 = arith.constant 1.000000e+00 : f32
    %326 = vector.broadcast %cst_131 : f32 to vector<4x32xf32>
    %327 = arith.addf %326, %325 : vector<4x32xf32>
    %328 = arith.divf %326, %327 : vector<4x32xf32>
    %329 = arith.mulf %320, %298 : vector<4x32xf32>
    %330 = arith.mulf %314, %322 : vector<4x32xf32>
    %331 = arith.addf %329, %330 : vector<4x32xf32>
    %332 = math.tanh %331 : vector<4x32xf32>
    %333 = arith.mulf %328, %332 : vector<4x32xf32>
    %334 = vector.broadcast %304 : vector<4x1xf32> to vector<4x32xf32>
    %335 = arith.mulf %334, %333 : vector<4x32xf32>
    %cst_132 = arith.constant 1.000000e+00 : f32
    %336 = vector.broadcast %cst_132 : f32 to vector<4x1xf32>
    %337 = arith.subf %336, %304 : vector<4x1xf32>
    %338 = vector.broadcast %337 : vector<4x1xf32> to vector<4x32xf32>
    %339 = arith.mulf %338, %291 : vector<4x32xf32>
    %340 = arith.addf %335, %339 : vector<4x32xf32>
    %341 = vector.broadcast %304 : vector<4x1xf32> to vector<4x32xf32>
    %342 = arith.mulf %341, %340 : vector<4x32xf32>
    %cst_133 = arith.constant 2.000000e+00 : f32
    %343 = vector.broadcast %cst_133 : f32 to vector<4x1xf32>
    %344 = arith.cmpf ogt, %168, %343 : vector<4x1xf32>
    %345 = arith.extui %344 : vector<4x1xi1> to vector<4x1xi32>
    %346 = arith.sitofp %345 : vector<4x1xi32> to vector<4x1xf32>
    %347 = tpu.concatenate %193, %202 in 1 : vector<4x32xf32>, vector<4x32xf32> -> vector<4x64xf32>
    %cst_134 = arith.constant dense<0.000000e+00> : vector<4x128xf32>
    %348 = tpu.matmul %347, %199, %cst_134 {dimension_numbers = #tpu.dot_dimension_numbers<[1], [0], [0], [1], [0, 0, 1, 1], [], []>} : vector<4x64xf32>, vector<64x128xf32>, vector<4x128xf32> -> vector<4x128xf32>
    %349 = vector.broadcast %201 : vector<1x128xf32> to vector<4x128xf32>
    %350 = arith.addf %348, %349 : vector<4x128xf32>
    %351 = vector.extract_strided_slice %350 {offsets = [0, 0], sizes = [4, 32], strides = [1, 1]} : vector<4x128xf32> to vector<4x32xf32>
    %352 = arith.negf %351 : vector<4x32xf32>
    %353 = math.exp %352 : vector<4x32xf32>
    %cst_135 = arith.constant 1.000000e+00 : f32
    %354 = vector.broadcast %cst_135 : f32 to vector<4x32xf32>
    %355 = arith.addf %354, %353 : vector<4x32xf32>
    %356 = arith.divf %354, %355 : vector<4x32xf32>
    %357 = vector.extract_strided_slice %350 {offsets = [0, 32], sizes = [4, 32], strides = [1, 1]} : vector<4x128xf32> to vector<4x32xf32>
    %358 = arith.negf %357 : vector<4x32xf32>
    %359 = math.exp %358 : vector<4x32xf32>
    %cst_136 = arith.constant 1.000000e+00 : f32
    %360 = vector.broadcast %cst_136 : f32 to vector<4x32xf32>
    %361 = arith.addf %360, %359 : vector<4x32xf32>
    %362 = arith.divf %360, %361 : vector<4x32xf32>
    %363 = vector.extract_strided_slice %350 {offsets = [0, 64], sizes = [4, 32], strides = [1, 1]} : vector<4x128xf32> to vector<4x32xf32>
    %364 = math.tanh %363 : vector<4x32xf32>
    %365 = vector.extract_strided_slice %350 {offsets = [0, 96], sizes = [4, 32], strides = [1, 1]} : vector<4x128xf32> to vector<4x32xf32>
    %366 = arith.negf %365 : vector<4x32xf32>
    %367 = math.exp %366 : vector<4x32xf32>
    %cst_137 = arith.constant 1.000000e+00 : f32
    %368 = vector.broadcast %cst_137 : f32 to vector<4x32xf32>
    %369 = arith.addf %368, %367 : vector<4x32xf32>
    %370 = arith.divf %368, %369 : vector<4x32xf32>
    %371 = arith.mulf %362, %202 : vector<4x32xf32>
    %372 = arith.mulf %356, %364 : vector<4x32xf32>
    %373 = arith.addf %371, %372 : vector<4x32xf32>
    %374 = math.tanh %373 : vector<4x32xf32>
    %375 = arith.mulf %370, %374 : vector<4x32xf32>
    %376 = vector.broadcast %346 : vector<4x1xf32> to vector<4x32xf32>
    %377 = arith.mulf %376, %375 : vector<4x32xf32>
    %cst_138 = arith.constant 1.000000e+00 : f32
    %378 = vector.broadcast %cst_138 : f32 to vector<4x1xf32>
    %379 = arith.subf %378, %346 : vector<4x1xf32>
    %380 = vector.broadcast %379 : vector<4x1xf32> to vector<4x32xf32>
    %381 = arith.mulf %380, %202 : vector<4x32xf32>
    %382 = arith.addf %377, %381 : vector<4x32xf32>
    %383 = vector.broadcast %346 : vector<4x1xf32> to vector<4x32xf32>
    %384 = arith.mulf %383, %373 : vector<4x32xf32>
    %cst_139 = arith.constant 1.000000e+00 : f32
    %385 = vector.broadcast %cst_139 : f32 to vector<4x1xf32>
    %386 = arith.subf %385, %346 : vector<4x1xf32>
    %387 = vector.broadcast %386 : vector<4x1xf32> to vector<4x32xf32>
    %388 = arith.mulf %387, %202 : vector<4x32xf32>
    %389 = arith.addf %384, %388 : vector<4x32xf32>
    %390 = vector.broadcast %346 : vector<4x1xf32> to vector<4x32xf32>
    %391 = arith.mulf %390, %382 : vector<4x32xf32>
    %cst_140 = arith.constant 1.000000e+00 : f32
    %392 = vector.broadcast %cst_140 : f32 to vector<4x1xf32>
    %393 = arith.cmpf ogt, %168, %392 : vector<4x1xf32>
    %394 = arith.extui %393 : vector<4x1xi1> to vector<4x1xi32>
    %395 = arith.sitofp %394 : vector<4x1xi32> to vector<4x1xf32>
    %396 = tpu.concatenate %186, %382 in 1 : vector<4x32xf32>, vector<4x32xf32> -> vector<4x64xf32>
    %cst_141 = arith.constant dense<0.000000e+00> : vector<4x128xf32>
    %397 = tpu.matmul %396, %199, %cst_141 {dimension_numbers = #tpu.dot_dimension_numbers<[1], [0], [0], [1], [0, 0, 1, 1], [], []>} : vector<4x64xf32>, vector<64x128xf32>, vector<4x128xf32> -> vector<4x128xf32>
    %398 = vector.broadcast %201 : vector<1x128xf32> to vector<4x128xf32>
    %399 = arith.addf %397, %398 : vector<4x128xf32>
    %400 = vector.extract_strided_slice %399 {offsets = [0, 0], sizes = [4, 32], strides = [1, 1]} : vector<4x128xf32> to vector<4x32xf32>
    %401 = arith.negf %400 : vector<4x32xf32>
    %402 = math.exp %401 : vector<4x32xf32>
    %cst_142 = arith.constant 1.000000e+00 : f32
    %403 = vector.broadcast %cst_142 : f32 to vector<4x32xf32>
    %404 = arith.addf %403, %402 : vector<4x32xf32>
    %405 = arith.divf %403, %404 : vector<4x32xf32>
    %406 = vector.extract_strided_slice %399 {offsets = [0, 32], sizes = [4, 32], strides = [1, 1]} : vector<4x128xf32> to vector<4x32xf32>
    %407 = arith.negf %406 : vector<4x32xf32>
    %408 = math.exp %407 : vector<4x32xf32>
    %cst_143 = arith.constant 1.000000e+00 : f32
    %409 = vector.broadcast %cst_143 : f32 to vector<4x32xf32>
    %410 = arith.addf %409, %408 : vector<4x32xf32>
    %411 = arith.divf %409, %410 : vector<4x32xf32>
    %412 = vector.extract_strided_slice %399 {offsets = [0, 64], sizes = [4, 32], strides = [1, 1]} : vector<4x128xf32> to vector<4x32xf32>
    %413 = math.tanh %412 : vector<4x32xf32>
    %414 = vector.extract_strided_slice %399 {offsets = [0, 96], sizes = [4, 32], strides = [1, 1]} : vector<4x128xf32> to vector<4x32xf32>
    %415 = arith.negf %414 : vector<4x32xf32>
    %416 = math.exp %415 : vector<4x32xf32>
    %cst_144 = arith.constant 1.000000e+00 : f32
    %417 = vector.broadcast %cst_144 : f32 to vector<4x32xf32>
    %418 = arith.addf %417, %416 : vector<4x32xf32>
    %419 = arith.divf %417, %418 : vector<4x32xf32>
    %420 = arith.mulf %411, %389 : vector<4x32xf32>
    %421 = arith.mulf %405, %413 : vector<4x32xf32>
    %422 = arith.addf %420, %421 : vector<4x32xf32>
    %423 = math.tanh %422 : vector<4x32xf32>
    %424 = arith.mulf %419, %423 : vector<4x32xf32>
    %425 = vector.broadcast %395 : vector<4x1xf32> to vector<4x32xf32>
    %426 = arith.mulf %425, %424 : vector<4x32xf32>
    %cst_145 = arith.constant 1.000000e+00 : f32
    %427 = vector.broadcast %cst_145 : f32 to vector<4x1xf32>
    %428 = arith.subf %427, %395 : vector<4x1xf32>
    %429 = vector.broadcast %428 : vector<4x1xf32> to vector<4x32xf32>
    %430 = arith.mulf %429, %382 : vector<4x32xf32>
    %431 = arith.addf %426, %430 : vector<4x32xf32>
    %432 = vector.broadcast %395 : vector<4x1xf32> to vector<4x32xf32>
    %433 = arith.mulf %432, %422 : vector<4x32xf32>
    %cst_146 = arith.constant 1.000000e+00 : f32
    %434 = vector.broadcast %cst_146 : f32 to vector<4x1xf32>
    %435 = arith.subf %434, %395 : vector<4x1xf32>
    %436 = vector.broadcast %435 : vector<4x1xf32> to vector<4x32xf32>
    %437 = arith.mulf %436, %389 : vector<4x32xf32>
    %438 = arith.addf %433, %437 : vector<4x32xf32>
    %439 = vector.broadcast %395 : vector<4x1xf32> to vector<4x32xf32>
    %440 = arith.mulf %439, %431 : vector<4x32xf32>
    %cst_147 = arith.constant 0.000000e+00 : f32
    %441 = vector.broadcast %cst_147 : f32 to vector<4x1xf32>
    %442 = arith.cmpf ogt, %168, %441 : vector<4x1xf32>
    %443 = arith.extui %442 : vector<4x1xi1> to vector<4x1xi32>
    %444 = arith.sitofp %443 : vector<4x1xi32> to vector<4x1xf32>
    %445 = tpu.concatenate %179, %431 in 1 : vector<4x32xf32>, vector<4x32xf32> -> vector<4x64xf32>
    %cst_148 = arith.constant dense<0.000000e+00> : vector<4x128xf32>
    %446 = tpu.matmul %445, %199, %cst_148 {dimension_numbers = #tpu.dot_dimension_numbers<[1], [0], [0], [1], [0, 0, 1, 1], [], []>} : vector<4x64xf32>, vector<64x128xf32>, vector<4x128xf32> -> vector<4x128xf32>
    %447 = vector.broadcast %201 : vector<1x128xf32> to vector<4x128xf32>
    %448 = arith.addf %446, %447 : vector<4x128xf32>
    %449 = vector.extract_strided_slice %448 {offsets = [0, 0], sizes = [4, 32], strides = [1, 1]} : vector<4x128xf32> to vector<4x32xf32>
    %450 = arith.negf %449 : vector<4x32xf32>
    %451 = math.exp %450 : vector<4x32xf32>
    %cst_149 = arith.constant 1.000000e+00 : f32
    %452 = vector.broadcast %cst_149 : f32 to vector<4x32xf32>
    %453 = arith.addf %452, %451 : vector<4x32xf32>
    %454 = arith.divf %452, %453 : vector<4x32xf32>
    %455 = vector.extract_strided_slice %448 {offsets = [0, 32], sizes = [4, 32], strides = [1, 1]} : vector<4x128xf32> to vector<4x32xf32>
    %456 = arith.negf %455 : vector<4x32xf32>
    %457 = math.exp %456 : vector<4x32xf32>
    %cst_150 = arith.constant 1.000000e+00 : f32
    %458 = vector.broadcast %cst_150 : f32 to vector<4x32xf32>
    %459 = arith.addf %458, %457 : vector<4x32xf32>
    %460 = arith.divf %458, %459 : vector<4x32xf32>
    %461 = vector.extract_strided_slice %448 {offsets = [0, 64], sizes = [4, 32], strides = [1, 1]} : vector<4x128xf32> to vector<4x32xf32>
    %462 = math.tanh %461 : vector<4x32xf32>
    %463 = vector.extract_strided_slice %448 {offsets = [0, 96], sizes = [4, 32], strides = [1, 1]} : vector<4x128xf32> to vector<4x32xf32>
    %464 = arith.negf %463 : vector<4x32xf32>
    %465 = math.exp %464 : vector<4x32xf32>
    %cst_151 = arith.constant 1.000000e+00 : f32
    %466 = vector.broadcast %cst_151 : f32 to vector<4x32xf32>
    %467 = arith.addf %466, %465 : vector<4x32xf32>
    %468 = arith.divf %466, %467 : vector<4x32xf32>
    %469 = arith.mulf %460, %438 : vector<4x32xf32>
    %470 = arith.mulf %454, %462 : vector<4x32xf32>
    %471 = arith.addf %469, %470 : vector<4x32xf32>
    %472 = math.tanh %471 : vector<4x32xf32>
    %473 = arith.mulf %468, %472 : vector<4x32xf32>
    %474 = vector.broadcast %444 : vector<4x1xf32> to vector<4x32xf32>
    %475 = arith.mulf %474, %473 : vector<4x32xf32>
    %cst_152 = arith.constant 1.000000e+00 : f32
    %476 = vector.broadcast %cst_152 : f32 to vector<4x1xf32>
    %477 = arith.subf %476, %444 : vector<4x1xf32>
    %478 = vector.broadcast %477 : vector<4x1xf32> to vector<4x32xf32>
    %479 = arith.mulf %478, %431 : vector<4x32xf32>
    %480 = arith.addf %475, %479 : vector<4x32xf32>
    %481 = vector.broadcast %444 : vector<4x1xf32> to vector<4x32xf32>
    %482 = arith.mulf %481, %480 : vector<4x32xf32>
    %cst_153 = arith.constant 0.000000e+00 : f32
    %483 = vector.broadcast %cst_153 : f32 to vector<8x32xf32>
    %484 = tpu.concatenate %251, %482 in 1 : vector<4x32xf32>, vector<4x32xf32> -> vector<4x64xf32>
    %cst_154 = arith.constant dense<0.000000e+00> : vector<4x32xf32>
    %485 = tpu.matmul %484, %170, %cst_154 {dimension_numbers = #tpu.dot_dimension_numbers<[1], [0], [0], [1], [0, 0, 1, 1], [], []>} : vector<4x64xf32>, vector<64x32xf32>, vector<4x32xf32> -> vector<4x32xf32>
    %486 = vector.broadcast %172 : vector<1x32xf32> to vector<4x32xf32>
    %487 = arith.addf %485, %486 : vector<4x32xf32>
    %c0_155 = arith.constant 0 : index
    %c0_156 = arith.constant 0 : index
    %c0_157 = arith.constant 0 : index
    %c0_158 = arith.constant 0 : index
    %488 = vector.load %arg6[%c0_155, %c0_156, %c0_157, %c0_158] : memref<1x3x8x4xf32, #tpu.memory_space<vmem>>, vector<1x1x8x4xf32>
    %489 = vector.shape_cast %488 : vector<1x1x8x4xf32> to vector<8x4xf32>
    %cst_159 = arith.constant dense<0.000000e+00> : vector<8x32xf32>
    %490 = tpu.matmul %489, %487, %cst_159 {dimension_numbers = #tpu.dot_dimension_numbers<[1], [0], [0], [1], [0, 0, 1, 1], [], []>} : vector<8x4xf32>, vector<4x32xf32>, vector<8x32xf32> -> vector<8x32xf32>
    %491 = arith.addf %483, %490 : vector<8x32xf32>
    %492 = tpu.concatenate %300, %440 in 1 : vector<4x32xf32>, vector<4x32xf32> -> vector<4x64xf32>
    %cst_160 = arith.constant dense<0.000000e+00> : vector<4x32xf32>
    %493 = tpu.matmul %492, %170, %cst_160 {dimension_numbers = #tpu.dot_dimension_numbers<[1], [0], [0], [1], [0, 0, 1, 1], [], []>} : vector<4x64xf32>, vector<64x32xf32>, vector<4x32xf32> -> vector<4x32xf32>
    %494 = vector.broadcast %172 : vector<1x32xf32> to vector<4x32xf32>
    %495 = arith.addf %493, %494 : vector<4x32xf32>
    %c0_161 = arith.constant 0 : index
    %c1_162 = arith.constant 1 : index
    %c0_163 = arith.constant 0 : index
    %c0_164 = arith.constant 0 : index
    %496 = vector.load %arg6[%c0_161, %c1_162, %c0_163, %c0_164] : memref<1x3x8x4xf32, #tpu.memory_space<vmem>>, vector<1x1x8x4xf32>
    %497 = vector.shape_cast %496 : vector<1x1x8x4xf32> to vector<8x4xf32>
    %cst_165 = arith.constant dense<0.000000e+00> : vector<8x32xf32>
    %498 = tpu.matmul %497, %495, %cst_165 {dimension_numbers = #tpu.dot_dimension_numbers<[1], [0], [0], [1], [0, 0, 1, 1], [], []>} : vector<8x4xf32>, vector<4x32xf32>, vector<8x32xf32> -> vector<8x32xf32>
    %499 = arith.addf %491, %498 : vector<8x32xf32>
    %500 = tpu.concatenate %342, %391 in 1 : vector<4x32xf32>, vector<4x32xf32> -> vector<4x64xf32>
    %cst_166 = arith.constant dense<0.000000e+00> : vector<4x32xf32>
    %501 = tpu.matmul %500, %170, %cst_166 {dimension_numbers = #tpu.dot_dimension_numbers<[1], [0], [0], [1], [0, 0, 1, 1], [], []>} : vector<4x64xf32>, vector<64x32xf32>, vector<4x32xf32> -> vector<4x32xf32>
    %502 = vector.broadcast %172 : vector<1x32xf32> to vector<4x32xf32>
    %503 = arith.addf %501, %502 : vector<4x32xf32>
    %c0_167 = arith.constant 0 : index
    %c2_168 = arith.constant 2 : index
    %c0_169 = arith.constant 0 : index
    %c0_170 = arith.constant 0 : index
    %504 = vector.load %arg6[%c0_167, %c2_168, %c0_169, %c0_170] : memref<1x3x8x4xf32, #tpu.memory_space<vmem>>, vector<1x1x8x4xf32>
    %505 = vector.shape_cast %504 : vector<1x1x8x4xf32> to vector<8x4xf32>
    %cst_171 = arith.constant dense<0.000000e+00> : vector<8x32xf32>
    %506 = tpu.matmul %505, %503, %cst_171 {dimension_numbers = #tpu.dot_dimension_numbers<[1], [0], [0], [1], [0, 0, 1, 1], [], []>} : vector<8x4xf32>, vector<4x32xf32>, vector<8x32xf32> -> vector<8x32xf32>
    %507 = arith.addf %499, %506 : vector<8x32xf32>
    %c0_172 = arith.constant 0 : index
    %c0_173 = arith.constant 0 : index
    %c0_174 = arith.constant 0 : index
    %508 = vector.load %arg7[%c0_172, %c0_173, %c0_174] : memref<1x1x8xf32, #tpu.memory_space<vmem>>, vector<1x1x8xf32>
    %509 = vector.shape_cast %508 : vector<1x1x8xf32> to vector<1x8xf32>
    %cst_175 = arith.constant 1.000000e+09 : f32
    %510 = vector.broadcast %cst_175 : f32 to vector<1x8xf32>
    %511 = arith.mulf %509, %510 : vector<1x8xf32>
    %512 = arith.addf %166, %507 : vector<8x32xf32>
    %c1_176 = arith.constant 1 : index
    %c0_177 = arith.constant 0 : index
    %c0_178 = arith.constant 0 : index
    %513 = vector.load %arg8[%c1_176, %c0_177, %c0_178] : memref<2x33x96xf32, #tpu.memory_space<vmem>>, vector<1x32x96xf32>
    %514 = vector.shape_cast %513 : vector<1x32x96xf32> to vector<32x96xf32>
    %c1_179 = arith.constant 1 : index
    %c32_180 = arith.constant 32 : index
    %c0_181 = arith.constant 0 : index
    %515 = vector.load %arg8[%c1_179, %c32_180, %c0_181] : memref<2x33x96xf32, #tpu.memory_space<vmem>>, vector<1x1x96xf32>
    %516 = vector.shape_cast %515 : vector<1x1x96xf32> to vector<1x96xf32>
    %cst_182 = arith.constant dense<0.000000e+00> : vector<8x96xf32>
    %517 = tpu.matmul %512, %514, %cst_182 {dimension_numbers = #tpu.dot_dimension_numbers<[1], [0], [0], [1], [0, 0, 1, 1], [], []>} : vector<8x32xf32>, vector<32x96xf32>, vector<8x96xf32> -> vector<8x96xf32>
    %518 = vector.broadcast %516 : vector<1x96xf32> to vector<8x96xf32>
    %519 = arith.addf %517, %518 : vector<8x96xf32>
    %c8_183 = arith.constant 8 : index
    %c0_184 = arith.constant 0 : index
    %520 = vector.load %arg14[%c8_183, %c0_184] : memref<24x32xf32, #tpu.memory_space<vmem>>, vector<1x32xf32>
    %c9 = arith.constant 9 : index
    %c0_185 = arith.constant 0 : index
    %521 = vector.load %arg14[%c9, %c0_185] : memref<24x32xf32, #tpu.memory_space<vmem>>, vector<1x32xf32>
    %c10 = arith.constant 10 : index
    %c0_186 = arith.constant 0 : index
    %522 = vector.load %arg14[%c10, %c0_186] : memref<24x32xf32, #tpu.memory_space<vmem>>, vector<1x32xf32>
    %c11 = arith.constant 11 : index
    %c0_187 = arith.constant 0 : index
    %523 = vector.load %arg14[%c11, %c0_187] : memref<24x32xf32, #tpu.memory_space<vmem>>, vector<1x32xf32>
    %c12 = arith.constant 12 : index
    %c0_188 = arith.constant 0 : index
    %524 = vector.load %arg14[%c12, %c0_188] : memref<24x32xf32, #tpu.memory_space<vmem>>, vector<1x32xf32>
    %c13 = arith.constant 13 : index
    %c0_189 = arith.constant 0 : index
    %525 = vector.load %arg14[%c13, %c0_189] : memref<24x32xf32, #tpu.memory_space<vmem>>, vector<1x32xf32>
    %cst_190 = arith.constant 0.000000e+00 : f32
    %526 = vector.broadcast %cst_190 : f32 to vector<8x32xf32>
    %527 = vector.extract_strided_slice %519 {offsets = [0, 0], sizes = [8, 8], strides = [1, 1]} : vector<8x96xf32> to vector<8x8xf32>
    %528 = vector.extract_strided_slice %519 {offsets = [0, 32], sizes = [8, 8], strides = [1, 1]} : vector<8x96xf32> to vector<8x8xf32>
    %529 = vector.extract_strided_slice %519 {offsets = [0, 64], sizes = [8, 8], strides = [1, 1]} : vector<8x96xf32> to vector<8x8xf32>
    %cst_191 = arith.constant dense<0.000000e+00> : vector<8x8xf32>
    %530 = tpu.matmul %527, %528, %cst_191 {dimension_numbers = #tpu.dot_dimension_numbers<[1], [1], [0], [0], [0, 0, 1, 0], [], []>} : vector<8x8xf32>, vector<8x8xf32>, vector<8x8xf32> -> vector<8x8xf32>
    %cst_192 = arith.constant 0.353553385 : f32
    %531 = vector.broadcast %cst_192 : f32 to vector<8x8xf32>
    %532 = arith.mulf %530, %531 : vector<8x8xf32>
    %533 = vector.broadcast %511 : vector<1x8xf32> to vector<8x8xf32>
    %534 = arith.subf %532, %533 : vector<8x8xf32>
    %cst_193 = arith.constant dense<0xFF800000> : vector<8xf32>
    %535 = vector.multi_reduction <maximumf>, %534, %cst_193 [1] : vector<8x8xf32> to vector<8xf32>
    %536 = vector.shape_cast %535 : vector<8xf32> to vector<8x1xf32>
    %537 = vector.broadcast %536 : vector<8x1xf32> to vector<8x8xf32>
    %538 = arith.subf %534, %537 : vector<8x8xf32>
    %539 = math.exp %538 : vector<8x8xf32>
    %cst_194 = arith.constant dense<0.000000e+00> : vector<8xf32>
    %540 = vector.multi_reduction <add>, %539, %cst_194 [1] : vector<8x8xf32> to vector<8xf32>
    %541 = vector.shape_cast %540 : vector<8xf32> to vector<8x1xf32>
    %542 = tpu.reciprocal %541 {approx = true} : vector<8x1xf32> -> vector<8x1xf32>
    %543 = vector.broadcast %542 : vector<8x1xf32> to vector<8x8xf32>
    %544 = arith.mulf %539, %543 : vector<8x8xf32>
    %cst_195 = arith.constant dense<0.000000e+00> : vector<8x8xf32>
    %545 = tpu.matmul %544, %529, %cst_195 {dimension_numbers = #tpu.dot_dimension_numbers<[1], [0], [0], [1], [0, 0, 1, 1], [], []>} : vector<8x8xf32>, vector<8x8xf32>, vector<8x8xf32> -> vector<8x8xf32>
    %c32_196 = arith.constant 32 : index
    %c0_197 = arith.constant 0 : index
    %546 = vector.load %arg13[%c32_196, %c0_197] : memref<160x32xf32, #tpu.memory_space<vmem>>, vector<8x32xf32>
    %cst_198 = arith.constant dense<0.000000e+00> : vector<8x32xf32>
    %547 = tpu.matmul %545, %546, %cst_198 {dimension_numbers = #tpu.dot_dimension_numbers<[1], [0], [0], [1], [0, 0, 1, 1], [], []>} : vector<8x8xf32>, vector<8x32xf32>, vector<8x32xf32> -> vector<8x32xf32>
    %548 = arith.addf %526, %547 : vector<8x32xf32>
    %549 = vector.extract_strided_slice %519 {offsets = [0, 8], sizes = [8, 8], strides = [1, 1]} : vector<8x96xf32> to vector<8x8xf32>
    %550 = vector.extract_strided_slice %519 {offsets = [0, 40], sizes = [8, 8], strides = [1, 1]} : vector<8x96xf32> to vector<8x8xf32>
    %551 = vector.extract_strided_slice %519 {offsets = [0, 72], sizes = [8, 8], strides = [1, 1]} : vector<8x96xf32> to vector<8x8xf32>
    %cst_199 = arith.constant dense<0.000000e+00> : vector<8x8xf32>
    %552 = tpu.matmul %549, %550, %cst_199 {dimension_numbers = #tpu.dot_dimension_numbers<[1], [1], [0], [0], [0, 0, 1, 0], [], []>} : vector<8x8xf32>, vector<8x8xf32>, vector<8x8xf32> -> vector<8x8xf32>
    %cst_200 = arith.constant 0.353553385 : f32
    %553 = vector.broadcast %cst_200 : f32 to vector<8x8xf32>
    %554 = arith.mulf %552, %553 : vector<8x8xf32>
    %555 = vector.broadcast %511 : vector<1x8xf32> to vector<8x8xf32>
    %556 = arith.subf %554, %555 : vector<8x8xf32>
    %cst_201 = arith.constant dense<0xFF800000> : vector<8xf32>
    %557 = vector.multi_reduction <maximumf>, %556, %cst_201 [1] : vector<8x8xf32> to vector<8xf32>
    %558 = vector.shape_cast %557 : vector<8xf32> to vector<8x1xf32>
    %559 = vector.broadcast %558 : vector<8x1xf32> to vector<8x8xf32>
    %560 = arith.subf %556, %559 : vector<8x8xf32>
    %561 = math.exp %560 : vector<8x8xf32>
    %cst_202 = arith.constant dense<0.000000e+00> : vector<8xf32>
    %562 = vector.multi_reduction <add>, %561, %cst_202 [1] : vector<8x8xf32> to vector<8xf32>
    %563 = vector.shape_cast %562 : vector<8xf32> to vector<8x1xf32>
    %564 = tpu.reciprocal %563 {approx = true} : vector<8x1xf32> -> vector<8x1xf32>
    %565 = vector.broadcast %564 : vector<8x1xf32> to vector<8x8xf32>
    %566 = arith.mulf %561, %565 : vector<8x8xf32>
    %cst_203 = arith.constant dense<0.000000e+00> : vector<8x8xf32>
    %567 = tpu.matmul %566, %551, %cst_203 {dimension_numbers = #tpu.dot_dimension_numbers<[1], [0], [0], [1], [0, 0, 1, 1], [], []>} : vector<8x8xf32>, vector<8x8xf32>, vector<8x8xf32> -> vector<8x8xf32>
    %c40 = arith.constant 40 : index
    %c0_204 = arith.constant 0 : index
    %568 = vector.load %arg13[%c40, %c0_204] : memref<160x32xf32, #tpu.memory_space<vmem>>, vector<8x32xf32>
    %cst_205 = arith.constant dense<0.000000e+00> : vector<8x32xf32>
    %569 = tpu.matmul %567, %568, %cst_205 {dimension_numbers = #tpu.dot_dimension_numbers<[1], [0], [0], [1], [0, 0, 1, 1], [], []>} : vector<8x8xf32>, vector<8x32xf32>, vector<8x32xf32> -> vector<8x32xf32>
    %570 = arith.addf %548, %569 : vector<8x32xf32>
    %571 = vector.extract_strided_slice %519 {offsets = [0, 16], sizes = [8, 8], strides = [1, 1]} : vector<8x96xf32> to vector<8x8xf32>
    %572 = vector.extract_strided_slice %519 {offsets = [0, 48], sizes = [8, 8], strides = [1, 1]} : vector<8x96xf32> to vector<8x8xf32>
    %573 = vector.extract_strided_slice %519 {offsets = [0, 80], sizes = [8, 8], strides = [1, 1]} : vector<8x96xf32> to vector<8x8xf32>
    %cst_206 = arith.constant dense<0.000000e+00> : vector<8x8xf32>
    %574 = tpu.matmul %571, %572, %cst_206 {dimension_numbers = #tpu.dot_dimension_numbers<[1], [1], [0], [0], [0, 0, 1, 0], [], []>} : vector<8x8xf32>, vector<8x8xf32>, vector<8x8xf32> -> vector<8x8xf32>
    %cst_207 = arith.constant 0.353553385 : f32
    %575 = vector.broadcast %cst_207 : f32 to vector<8x8xf32>
    %576 = arith.mulf %574, %575 : vector<8x8xf32>
    %577 = vector.broadcast %511 : vector<1x8xf32> to vector<8x8xf32>
    %578 = arith.subf %576, %577 : vector<8x8xf32>
    %cst_208 = arith.constant dense<0xFF800000> : vector<8xf32>
    %579 = vector.multi_reduction <maximumf>, %578, %cst_208 [1] : vector<8x8xf32> to vector<8xf32>
    %580 = vector.shape_cast %579 : vector<8xf32> to vector<8x1xf32>
    %581 = vector.broadcast %580 : vector<8x1xf32> to vector<8x8xf32>
    %582 = arith.subf %578, %581 : vector<8x8xf32>
    %583 = math.exp %582 : vector<8x8xf32>
    %cst_209 = arith.constant dense<0.000000e+00> : vector<8xf32>
    %584 = vector.multi_reduction <add>, %583, %cst_209 [1] : vector<8x8xf32> to vector<8xf32>
    %585 = vector.shape_cast %584 : vector<8xf32> to vector<8x1xf32>
    %586 = tpu.reciprocal %585 {approx = true} : vector<8x1xf32> -> vector<8x1xf32>
    %587 = vector.broadcast %586 : vector<8x1xf32> to vector<8x8xf32>
    %588 = arith.mulf %583, %587 : vector<8x8xf32>
    %cst_210 = arith.constant dense<0.000000e+00> : vector<8x8xf32>
    %589 = tpu.matmul %588, %573, %cst_210 {dimension_numbers = #tpu.dot_dimension_numbers<[1], [0], [0], [1], [0, 0, 1, 1], [], []>} : vector<8x8xf32>, vector<8x8xf32>, vector<8x8xf32> -> vector<8x8xf32>
    %c48 = arith.constant 48 : index
    %c0_211 = arith.constant 0 : index
    %590 = vector.load %arg13[%c48, %c0_211] : memref<160x32xf32, #tpu.memory_space<vmem>>, vector<8x32xf32>
    %cst_212 = arith.constant dense<0.000000e+00> : vector<8x32xf32>
    %591 = tpu.matmul %589, %590, %cst_212 {dimension_numbers = #tpu.dot_dimension_numbers<[1], [0], [0], [1], [0, 0, 1, 1], [], []>} : vector<8x8xf32>, vector<8x32xf32>, vector<8x32xf32> -> vector<8x32xf32>
    %592 = arith.addf %570, %591 : vector<8x32xf32>
    %593 = vector.extract_strided_slice %519 {offsets = [0, 24], sizes = [8, 8], strides = [1, 1]} : vector<8x96xf32> to vector<8x8xf32>
    %594 = vector.extract_strided_slice %519 {offsets = [0, 56], sizes = [8, 8], strides = [1, 1]} : vector<8x96xf32> to vector<8x8xf32>
    %595 = vector.extract_strided_slice %519 {offsets = [0, 88], sizes = [8, 8], strides = [1, 1]} : vector<8x96xf32> to vector<8x8xf32>
    %cst_213 = arith.constant dense<0.000000e+00> : vector<8x8xf32>
    %596 = tpu.matmul %593, %594, %cst_213 {dimension_numbers = #tpu.dot_dimension_numbers<[1], [1], [0], [0], [0, 0, 1, 0], [], []>} : vector<8x8xf32>, vector<8x8xf32>, vector<8x8xf32> -> vector<8x8xf32>
    %cst_214 = arith.constant 0.353553385 : f32
    %597 = vector.broadcast %cst_214 : f32 to vector<8x8xf32>
    %598 = arith.mulf %596, %597 : vector<8x8xf32>
    %599 = vector.broadcast %511 : vector<1x8xf32> to vector<8x8xf32>
    %600 = arith.subf %598, %599 : vector<8x8xf32>
    %cst_215 = arith.constant dense<0xFF800000> : vector<8xf32>
    %601 = vector.multi_reduction <maximumf>, %600, %cst_215 [1] : vector<8x8xf32> to vector<8xf32>
    %602 = vector.shape_cast %601 : vector<8xf32> to vector<8x1xf32>
    %603 = vector.broadcast %602 : vector<8x1xf32> to vector<8x8xf32>
    %604 = arith.subf %600, %603 : vector<8x8xf32>
    %605 = math.exp %604 : vector<8x8xf32>
    %cst_216 = arith.constant dense<0.000000e+00> : vector<8xf32>
    %606 = vector.multi_reduction <add>, %605, %cst_216 [1] : vector<8x8xf32> to vector<8xf32>
    %607 = vector.shape_cast %606 : vector<8xf32> to vector<8x1xf32>
    %608 = tpu.reciprocal %607 {approx = true} : vector<8x1xf32> -> vector<8x1xf32>
    %609 = vector.broadcast %608 : vector<8x1xf32> to vector<8x8xf32>
    %610 = arith.mulf %605, %609 : vector<8x8xf32>
    %cst_217 = arith.constant dense<0.000000e+00> : vector<8x8xf32>
    %611 = tpu.matmul %610, %595, %cst_217 {dimension_numbers = #tpu.dot_dimension_numbers<[1], [0], [0], [1], [0, 0, 1, 1], [], []>} : vector<8x8xf32>, vector<8x8xf32>, vector<8x8xf32> -> vector<8x8xf32>
    %c56 = arith.constant 56 : index
    %c0_218 = arith.constant 0 : index
    %612 = vector.load %arg13[%c56, %c0_218] : memref<160x32xf32, #tpu.memory_space<vmem>>, vector<8x32xf32>
    %cst_219 = arith.constant dense<0.000000e+00> : vector<8x32xf32>
    %613 = tpu.matmul %611, %612, %cst_219 {dimension_numbers = #tpu.dot_dimension_numbers<[1], [0], [0], [1], [0, 0, 1, 1], [], []>} : vector<8x8xf32>, vector<8x32xf32>, vector<8x32xf32> -> vector<8x32xf32>
    %614 = arith.addf %592, %613 : vector<8x32xf32>
    %615 = vector.broadcast %520 : vector<1x32xf32> to vector<8x32xf32>
    %616 = arith.addf %614, %615 : vector<8x32xf32>
    %617 = arith.addf %512, %616 : vector<8x32xf32>
    %cst_220 = arith.constant dense<0.000000e+00> : vector<8xf32>
    %618 = vector.multi_reduction <add>, %617, %cst_220 [1] : vector<8x32xf32> to vector<8xf32>
    %619 = vector.shape_cast %618 : vector<8xf32> to vector<8x1xf32>
    %cst_221 = arith.constant 3.200000e+01 : f32
    %620 = vector.broadcast %cst_221 : f32 to vector<8x1xf32>
    %621 = arith.divf %619, %620 : vector<8x1xf32>
    %622 = vector.broadcast %621 : vector<8x1xf32> to vector<8x32xf32>
    %623 = arith.subf %617, %622 : vector<8x32xf32>
    %624 = arith.mulf %623, %623 : vector<8x32xf32>
    %cst_222 = arith.constant dense<0.000000e+00> : vector<8xf32>
    %625 = vector.multi_reduction <add>, %624, %cst_222 [1] : vector<8x32xf32> to vector<8xf32>
    %626 = vector.shape_cast %625 : vector<8xf32> to vector<8x1xf32>
    %cst_223 = arith.constant 3.200000e+01 : f32
    %627 = vector.broadcast %cst_223 : f32 to vector<8x1xf32>
    %628 = arith.divf %626, %627 : vector<8x1xf32>
    %629 = vector.broadcast %621 : vector<8x1xf32> to vector<8x32xf32>
    %630 = arith.subf %617, %629 : vector<8x32xf32>
    %cst_224 = arith.constant 9.99999974E-6 : f32
    %631 = vector.broadcast %cst_224 : f32 to vector<8x1xf32>
    %632 = arith.addf %628, %631 : vector<8x1xf32>
    %633 = math.rsqrt %632 : vector<8x1xf32>
    %634 = vector.broadcast %633 : vector<8x1xf32> to vector<8x32xf32>
    %635 = arith.mulf %630, %634 : vector<8x32xf32>
    %636 = vector.broadcast %521 : vector<1x32xf32> to vector<8x32xf32>
    %637 = arith.mulf %635, %636 : vector<8x32xf32>
    %638 = vector.broadcast %522 : vector<1x32xf32> to vector<8x32xf32>
    %639 = arith.addf %637, %638 : vector<8x32xf32>
    %640 = arith.truncf %639 : vector<8x32xf32> to vector<8x32xbf16>
    %c1_225 = arith.constant 1 : index
    %c0_226 = arith.constant 0 : index
    %c0_227 = arith.constant 0 : index
    %641 = vector.load %arg9[%c1_225, %c0_226, %c0_227] : memref<2x32x2048xbf16, #tpu.memory_space<vmem>>, vector<1x32x2048xbf16>
    %642 = vector.shape_cast %641 : vector<1x32x2048xbf16> to vector<32x2048xbf16>
    %cst_228 = arith.constant dense<0.000000e+00> : vector<8x2048xf32>
    %643 = tpu.matmul %640, %642, %cst_228 {dimension_numbers = #tpu.dot_dimension_numbers<[1], [0], [0], [1], [0, 0, 1, 1], [], []>} : vector<8x32xbf16>, vector<32x2048xbf16>, vector<8x2048xf32> -> vector<8x2048xf32>
    %c1_229 = arith.constant 1 : index
    %c0_230 = arith.constant 0 : index
    %c0_231 = arith.constant 0 : index
    %644 = vector.load %arg10[%c1_229, %c0_230, %c0_231] : memref<2x1x2048xf32, #tpu.memory_space<vmem>>, vector<1x1x2048xf32>
    %645 = vector.shape_cast %644 : vector<1x1x2048xf32> to vector<1x2048xf32>
    %646 = vector.broadcast %645 : vector<1x2048xf32> to vector<8x2048xf32>
    %647 = arith.addf %643, %646 : vector<8x2048xf32>
    %cst_232 = arith.constant 0.000000e+00 : f32
    %648 = vector.broadcast %cst_232 : f32 to vector<8x2048xf32>
    %649 = arith.maximumf %647, %648 : vector<8x2048xf32>
    %650 = arith.truncf %649 : vector<8x2048xf32> to vector<8x2048xbf16>
    %c1_233 = arith.constant 1 : index
    %c0_234 = arith.constant 0 : index
    %c0_235 = arith.constant 0 : index
    %651 = vector.load %arg11[%c1_233, %c0_234, %c0_235] : memref<2x2048x32xbf16, #tpu.memory_space<vmem>>, vector<1x2048x32xbf16>
    %652 = vector.shape_cast %651 : vector<1x2048x32xbf16> to vector<2048x32xbf16>
    %cst_236 = arith.constant dense<0.000000e+00> : vector<8x32xf32>
    %653 = tpu.matmul %650, %652, %cst_236 {dimension_numbers = #tpu.dot_dimension_numbers<[1], [0], [0], [1], [0, 0, 1, 1], [], []>} : vector<8x2048xbf16>, vector<2048x32xbf16>, vector<8x32xf32> -> vector<8x32xf32>
    %654 = vector.broadcast %523 : vector<1x32xf32> to vector<8x32xf32>
    %655 = arith.addf %653, %654 : vector<8x32xf32>
    %656 = arith.addf %639, %655 : vector<8x32xf32>
    %cst_237 = arith.constant dense<0.000000e+00> : vector<8xf32>
    %657 = vector.multi_reduction <add>, %656, %cst_237 [1] : vector<8x32xf32> to vector<8xf32>
    %658 = vector.shape_cast %657 : vector<8xf32> to vector<8x1xf32>
    %cst_238 = arith.constant 3.200000e+01 : f32
    %659 = vector.broadcast %cst_238 : f32 to vector<8x1xf32>
    %660 = arith.divf %658, %659 : vector<8x1xf32>
    %661 = vector.broadcast %660 : vector<8x1xf32> to vector<8x32xf32>
    %662 = arith.subf %656, %661 : vector<8x32xf32>
    %663 = arith.mulf %662, %662 : vector<8x32xf32>
    %cst_239 = arith.constant dense<0.000000e+00> : vector<8xf32>
    %664 = vector.multi_reduction <add>, %663, %cst_239 [1] : vector<8x32xf32> to vector<8xf32>
    %665 = vector.shape_cast %664 : vector<8xf32> to vector<8x1xf32>
    %cst_240 = arith.constant 3.200000e+01 : f32
    %666 = vector.broadcast %cst_240 : f32 to vector<8x1xf32>
    %667 = arith.divf %665, %666 : vector<8x1xf32>
    %668 = vector.broadcast %660 : vector<8x1xf32> to vector<8x32xf32>
    %669 = arith.subf %656, %668 : vector<8x32xf32>
    %cst_241 = arith.constant 9.99999974E-6 : f32
    %670 = vector.broadcast %cst_241 : f32 to vector<8x1xf32>
    %671 = arith.addf %667, %670 : vector<8x1xf32>
    %672 = math.rsqrt %671 : vector<8x1xf32>
    %673 = vector.broadcast %672 : vector<8x1xf32> to vector<8x32xf32>
    %674 = arith.mulf %669, %673 : vector<8x32xf32>
    %675 = vector.broadcast %524 : vector<1x32xf32> to vector<8x32xf32>
    %676 = arith.mulf %674, %675 : vector<8x32xf32>
    %677 = vector.broadcast %525 : vector<1x32xf32> to vector<8x32xf32>
    %678 = arith.addf %676, %677 : vector<8x32xf32>
    %c0_242 = arith.constant 0 : index
    %c0_243 = arith.constant 0 : index
    %c0_244 = arith.constant 0 : index
    %679 = vector.load %arg15[%c0_242, %c0_243, %c0_244] : memref<1x8x32xf32, #tpu.memory_space<vmem>>, vector<1x8x32xf32>
    %680 = vector.shape_cast %679 : vector<1x8x32xf32> to vector<8x32xf32>
    %681 = vector.shape_cast %678 : vector<8x32xf32> to vector<1x8x32xf32>
    tpu.vector_store %arg15[%c0_242, %c0_243, %c0_244], %681 {strides = array<i32>} : memref<1x8x32xf32, #tpu.memory_space<vmem>>, vector<1x8x32xf32>,
    return
  }
  func.func @transform_0(%arg0: i32) -> (i32, i32, i32) {
    %c0_i32 = arith.constant 0 : i32
    %c0_i32_0 = arith.constant 0 : i32
    %c0_i32_1 = arith.constant 0 : i32
    return %arg0, %c0_i32, %c0_i32_0 : i32, i32, i32
  }
  func.func @transform_1(%arg0: i32) -> (i32, i32, i32) {
    %c0_i32 = arith.constant 0 : i32
    %c0_i32_0 = arith.constant 0 : i32
    %c0_i32_1 = arith.constant 0 : i32
    return %arg0, %c0_i32, %c0_i32_0 : i32, i32, i32
  }
  func.func @transform_2(%arg0: i32) -> (i32, i32, i32) {
    %c0_i32 = arith.constant 0 : i32
    %c0_i32_0 = arith.constant 0 : i32
    %c0_i32_1 = arith.constant 0 : i32
    return %arg0, %c0_i32, %c0_i32_0 : i32, i32, i32
  }
  func.func @transform_3(%arg0: i32) -> (i32, i32, i32, i32) {
    %c0_i32 = arith.constant 0 : i32
    %c0_i32_0 = arith.constant 0 : i32
    %c0_i32_1 = arith.constant 0 : i32
    %c0_i32_2 = arith.constant 0 : i32
    return %arg0, %c0_i32, %c0_i32_0, %c0_i32_1 : i32, i32, i32, i32
  }
  func.func @transform_4(%arg0: i32) -> (i32, i32, i32) {
    %c0_i32 = arith.constant 0 : i32
    %c0_i32_0 = arith.constant 0 : i32
    %c0_i32_1 = arith.constant 0 : i32
    return %arg0, %c0_i32, %c0_i32_0 : i32, i32, i32
  }
  func.func @transform_5(%arg0: i32) -> (i32, i32, i32, i32) {
    %c0_i32 = arith.constant 0 : i32
    %c0_i32_0 = arith.constant 0 : i32
    %c0_i32_1 = arith.constant 0 : i32
    %c0_i32_2 = arith.constant 0 : i32
    return %arg0, %c0_i32, %c0_i32_0, %c0_i32_1 : i32, i32, i32, i32
  }
  func.func @transform_6(%arg0: i32) -> (i32, i32, i32) {
    %c0_i32 = arith.constant 0 : i32
    %c0_i32_0 = arith.constant 0 : i32
    %c0_i32_1 = arith.constant 0 : i32
    return %arg0, %c0_i32, %c0_i32_0 : i32, i32, i32
  }
  func.func @transform_7(%arg0: i32) -> (i32, i32, i32) {
    %c0_i32 = arith.constant 0 : i32
    %c0_i32_0 = arith.constant 0 : i32
    %c0_i32_1 = arith.constant 0 : i32
    %c0_i32_2 = arith.constant 0 : i32
    return %c0_i32, %c0_i32_0, %c0_i32_1 : i32, i32, i32
  }
  func.func @transform_8(%arg0: i32) -> (i32, i32, i32) {
    %c0_i32 = arith.constant 0 : i32
    %c0_i32_0 = arith.constant 0 : i32
    %c0_i32_1 = arith.constant 0 : i32
    %c0_i32_2 = arith.constant 0 : i32
    return %c0_i32, %c0_i32_0, %c0_i32_1 : i32, i32, i32
  }
  func.func @transform_9(%arg0: i32) -> (i32, i32, i32) {
    %c0_i32 = arith.constant 0 : i32
    %c0_i32_0 = arith.constant 0 : i32
    %c0_i32_1 = arith.constant 0 : i32
    %c0_i32_2 = arith.constant 0 : i32
    return %c0_i32, %c0_i32_0, %c0_i32_1 : i32, i32, i32
  }
  func.func @transform_10(%arg0: i32) -> (i32, i32, i32) {
    %c0_i32 = arith.constant 0 : i32
    %c0_i32_0 = arith.constant 0 : i32
    %c0_i32_1 = arith.constant 0 : i32
    %c0_i32_2 = arith.constant 0 : i32
    return %c0_i32, %c0_i32_0, %c0_i32_1 : i32, i32, i32
  }
  func.func @transform_11(%arg0: i32) -> (i32, i32, i32) {
    %c0_i32 = arith.constant 0 : i32
    %c0_i32_0 = arith.constant 0 : i32
    %c0_i32_1 = arith.constant 0 : i32
    %c0_i32_2 = arith.constant 0 : i32
    return %c0_i32, %c0_i32_0, %c0_i32_1 : i32, i32, i32
  }
  func.func @transform_12(%arg0: i32) -> (i32, i32) {
    %c0_i32 = arith.constant 0 : i32
    %c0_i32_0 = arith.constant 0 : i32
    %c0_i32_1 = arith.constant 0 : i32
    return %c0_i32, %c0_i32_0 : i32, i32
  }
  func.func @transform_13(%arg0: i32) -> (i32, i32) {
    %c0_i32 = arith.constant 0 : i32
    %c0_i32_0 = arith.constant 0 : i32
    %c0_i32_1 = arith.constant 0 : i32
    return %c0_i32, %c0_i32_0 : i32, i32
  }
  func.func @transform_14(%arg0: i32) -> (i32, i32, i32) {
    %c0_i32 = arith.constant 0 : i32
    %c0_i32_0 = arith.constant 0 : i32
    %c0_i32_1 = arith.constant 0 : i32
    return %arg0, %c0_i32, %c0_i32_0 : i32, i32, i32
  }
}

</mosaic_0001>

<llo_original>
// kernel: _forward_core.1
$region0: #{_forward_core.1}
  #allocation0 [shape = 'u32[]', space=smem, size = 0x4, offset = 0x4, fixed_abs, tag = 'smem constant byte address 0x4 - core index']
  #allocation1 [shape = 'u32[144,128]{1,0:T(1,128)}', space=vmem, size = 0x12000, scoped, tag = 'internal scratch']
  %s0 = inlined_call_operand.vmem [shape: f32[2,8,32], index: 0, kind: input, shape index: {}]
  %s1 = inlined_call_operand.vmem [shape: f32[2,5,8], index: 1, kind: input, shape index: {}]
  %s2 = inlined_call_operand.vmem [shape: f32[2,8,5], index: 2, kind: input, shape index: {}]
  %s3 = inlined_call_operand.vmem [shape: f32[2,3,4,8], index: 3, kind: input, shape index: {}]
  %s4 = inlined_call_operand.vmem [shape: f32[2,4,1], index: 4, kind: input, shape index: {}]
  %s5 = inlined_call_operand.vmem [shape: f32[2,3,8,4], index: 5, kind: input, shape index: {}]
  %s6 = inlined_call_operand.vmem [shape: f32[2,1,8], index: 6, kind: input, shape index: {}]
  %s7 = inlined_call_operand.vmem [shape: f32[2,33,96], index: 7, kind: input, shape index: {}]
  %s8 = inlined_call_operand.vmem [shape: bf16[2,32,2048], index: 8, kind: input, shape index: {}]
  %s9 = inlined_call_operand.vmem [shape: f32[2,1,2048], index: 9, kind: input, shape index: {}]
  %s10 = inlined_call_operand.vmem [shape: bf16[2,2048,32], index: 10, kind: input, shape index: {}]
  %s11 = inlined_call_operand.vmem [shape: f32[2,65,128], index: 11, kind: input, shape index: {}]
  %s12 = inlined_call_operand.vmem [shape: f32[160,32], index: 12, kind: input, shape index: {}]
  %s13 = inlined_call_operand.vmem [shape: f32[24,32], index: 13, kind: input, shape index: {}]
  %s14 = inlined_call_operand.hbm [shape: f32[2,8,32], index: 14, kind: output, shape index: {}]
  %s15 = sld [smem:[#allocation0]]
  $region89: #{_forward_core.1} parent=0
    _
  %s17 = ssub.s32 1, %s15
  %s18 = scalar_select 0, %s17, %s15
  $region1: #{_forward_core.1} parent=0
    #allocation2 [shape = 'u8[8192]{0}', space=vmem, size = 0x2000, scoped, tag = 'output window, operand 0']
    #allocation3 [shape = 's32[2]{0}', space=sflag, size = 0x8, scoped, tag = 'scoped memory for _forward_core.1']
    %19 = vsyncpa [#allocation3], 0
    %s20 = scalar_lea.sflag [#allocation3], 1
    %21 = vsyncpa %s20, 0
    loop: start=0, step=1, limit=4
    $region2: #{_forward_core.1} parent=1 // loop_pre_header
      _
    $region3: #{_forward_core.1} parent=1 // loop_header
      %s23 = sphi 0, %s27
      %p24 = scmp.ge.s32.totalorder %s23, 4
      %s33 = sphi 0, %s35
      %s36 = sphi 0, %s33
      %s37 = sphi 0, %s36
      %s53 = sphi 0, %s37
      %s59 = sphi 0, %s61
      %s62 = sphi 0, %s59
      %s63 = sphi 0, %s62
      %s79 = sphi 0, %s63
      %s85 = sphi 0, %s87
      %s88 = sphi 0, %s85
      %s89 = sphi 0, %s88
      %s105 = sphi 0, %s89
      %s111 = sphi 0, %s113
      %s114 = sphi 0, %s111
      %s115 = sphi 0, %s114
      %s131 = sphi 0, %s115
      %s137 = sphi 0, %s139
      %s140 = sphi 0, %s137
      %s141 = sphi 0, %s140
      %s157 = sphi 0, %s141
      %s163 = sphi 0, %s165
      %s166 = sphi 0, %s163
      %s167 = sphi 0, %s166
      %s183 = sphi 0, %s167
      %s189 = sphi 0, %s191
      %s192 = sphi 0, %s189
      %s193 = sphi 0, %s192
      %s209 = sphi 0, %s193
      %s213 = sphi 0, %s213
      %s215 = sphi 0, %s213
      %s216 = sphi 0, %s215
      %s230 = sphi 0, %s216
      %s234 = sphi 0, %s234
      %s236 = sphi 0, %s234
      %s237 = sphi 0, %s236
      %s251 = sphi 0, %s237
      %s255 = sphi 0, %s255
      %s257 = sphi 0, %s255
      %s258 = sphi 0, %s257
      %s272 = sphi 0, %s258
      %s276 = sphi 0, %s276
      %s278 = sphi 0, %s276
      %s279 = sphi 0, %s278
      %s293 = sphi 0, %s279
      %s297 = sphi 0, %s297
      %s299 = sphi 0, %s297
      %s300 = sphi 0, %s299
      %s314 = sphi 0, %s300
      %s318 = sphi 0, %s318
      %s320 = sphi 0, %s318
      %s321 = sphi 0, %s320
      %s335 = sphi 0, %s321
      %s339 = sphi 0, %s339
      %s341 = sphi 0, %s339
      %s342 = sphi 0, %s341
      %s356 = sphi 0, %s342
      %s362 = sphi 0, %s364
      %s365 = sphi 0, %s362
      %s366 = sphi 0, %s365
      %s382 = sphi 0, %s366
    $region4: #{_forward_core.1} parent=1 // loop_header_branch
      %26 = sbr.rel (%p24) target = $region8
    $region5: #{_forward_core.1} parent=1 // loop_body
      %s28 = ssub.s32 %s23, 1
      %s29 = ssub.s32 %s23, 2
      %s30 = sadd.s32 %s23, 1
      %s31 = ssub.s32 %s23, %s30
      %p32 = scmp.eq.s32.totalorder %s31, 0
      %s34 = sadd.s32 %s33, 1
      %s35 = scalar_select %p32, %s33, %s34
      %p38 = pneg %p32
      %p39 = scmp.eq.s32.totalorder %s23, 1
      %p40 = por %p38, %p39
      %p41 = scmp.ne.s32.totalorder %s33, %s36
      %p42 = scmp.eq.s32.totalorder %s23, 0
      %p43 = por %p41, %p42
      %p44 = scmp.ne.s32.totalorder %s33, %s36
      %p45 = scmp.eq.s32.totalorder %s28, 1
      %p46 = por %p44, %p45
      %p47 = scmp.ne.s32.totalorder %s36, %s37
      %p48 = scmp.eq.s32.totalorder %s28, 0
      %p49 = por %p47, %p48
      %p50 = scmp.ne.s32.totalorder %s36, %s37
      %p51 = scmp.eq.s32.totalorder %s29, 1
      %p52 = por %p50, %p51
      %p54 = scmp.ne.s32.totalorder %s37, %s53
      %p55 = scmp.eq.s32.totalorder %s29, 0
      %p56 = por %p54, %p55
      %s57 = ssub.s32 %s23, %s30
      %p58 = scmp.eq.s32.totalorder %s57, 0
      %s60 = sadd.s32 %s59, 1
      %s61 = scalar_select %p58, %s59, %s60
      %p64 = pneg %p58
      %p65 = scmp.eq.s32.totalorder %s23, 1
      %p66 = por %p64, %p65
      %p67 = scmp.ne.s32.totalorder %s59, %s62
      %p68 = scmp.eq.s32.totalorder %s23, 0
      %p69 = por %p67, %p68
      %p70 = scmp.ne.s32.totalorder %s59, %s62
      %p71 = scmp.eq.s32.totalorder %s28, 1
      %p72 = por %p70, %p71
      %p73 = scmp.ne.s32.totalorder %s62, %s63
      %p74 = scmp.eq.s32.totalorder %s28, 0
      %p75 = por %p73, %p74
      %p76 = scmp.ne.s32.totalorder %s62, %s63
      %p77 = scmp.eq.s32.totalorder %s29, 1
      %p78 = por %p76, %p77
      %p80 = scmp.ne.s32.totalorder %s63, %s79
      %p81 = scmp.eq.s32.totalorder %s29, 0
      %p82 = por %p80, %p81
      %s83 = ssub.s32 %s23, %s30
      %p84 = scmp.eq.s32.totalorder %s83, 0
      %s86 = sadd.s32 %s85, 1
      %s87 = scalar_select %p84, %s85, %s86
      %p90 = pneg %p84
      %p91 = scmp.eq.s32.totalorder %s23, 1
      %p92 = por %p90, %p91
      %p93 = scmp.ne.s32.totalorder %s85, %s88
      %p94 = scmp.eq.s32.totalorder %s23, 0
      %p95 = por %p93, %p94
      %p96 = scmp.ne.s32.totalorder %s85, %s88
      %p97 = scmp.eq.s32.totalorder %s28, 1
      %p98 = por %p96, %p97
      %p99 = scmp.ne.s32.totalorder %s88, %s89
      %p100 = scmp.eq.s32.totalorder %s28, 0
      %p101 = por %p99, %p100
      %p102 = scmp.ne.s32.totalorder %s88, %s89
      %p103 = scmp.eq.s32.totalorder %s29, 1
      %p104 = por %p102, %p103
      %p106 = scmp.ne.s32.totalorder %s89, %s105
      %p107 = scmp.eq.s32.totalorder %s29, 0
      %p108 = por %p106, %p107
      %s109 = ssub.s32 %s23, %s30
      %p110 = scmp.eq.s32.totalorder %s109, 0
      %s112 = sadd.s32 %s111, 1
      %s113 = scalar_select %p110, %s111, %s112
      %p116 = pneg %p110
      %p117 = scmp.eq.s32.totalorder %s23, 1
      %p118 = por %p116, %p117
      %p119 = scmp.ne.s32.totalorder %s111, %s114
      %p120 = scmp.eq.s32.totalorder %s23, 0
      %p121 = por %p119, %p120
      %p122 = scmp.ne.s32.totalorder %s111, %s114
      %p123 = scmp.eq.s32.totalorder %s28, 1
      %p124 = por %p122, %p123
      %p125 = scmp.ne.s32.totalorder %s114, %s115
      %p126 = scmp.eq.s32.totalorder %s28, 0
      %p127 = por %p125, %p126
      %p128 = scmp.ne.s32.totalorder %s114, %s115
      %p129 = scmp.eq.s32.totalorder %s29, 1
      %p130 = por %p128, %p129
      %p132 = scmp.ne.s32.totalorder %s115, %s131
      %p133 = scmp.eq.s32.totalorder %s29, 0
      %p134 = por %p132, %p133
      %s135 = ssub.s32 %s23, %s30
      %p136 = scmp.eq.s32.totalorder %s135, 0
      %s138 = sadd.s32 %s137, 1
      %s139 = scalar_select %p136, %s137, %s138
      %p142 = pneg %p136
      %p143 = scmp.eq.s32.totalorder %s23, 1
      %p144 = por %p142, %p143
      %p145 = scmp.ne.s32.totalorder %s137, %s140
      %p146 = scmp.eq.s32.totalorder %s23, 0
      %p147 = por %p145, %p146
      %p148 = scmp.ne.s32.totalorder %s137, %s140
      %p149 = scmp.eq.s32.totalorder %s28, 1
      %p150 = por %p148, %p149
      %p151 = scmp.ne.s32.totalorder %s140, %s141
      %p152 = scmp.eq.s32.totalorder %s28, 0
      %p153 = por %p151, %p152
      %p154 = scmp.ne.s32.totalorder %s140, %s141
      %p155 = scmp.eq.s32.totalorder %s29, 1
      %p156 = por %p154, %p155
      %p158 = scmp.ne.s32.totalorder %s141, %s157
      %p159 = scmp.eq.s32.totalorder %s29, 0
      %p160 = por %p158, %p159
      %s161 = ssub.s32 %s23, %s30
      %p162 = scmp.eq.s32.totalorder %s161, 0
      %s164 = sadd.s32 %s163, 1
      %s165 = scalar_select %p162, %s163, %s164
      %p168 = pneg %p162
      %p169 = scmp.eq.s32.totalorder %s23, 1
      %p170 = por %p168, %p169
      %p171 = scmp.ne.s32.totalorder %s163, %s166
      %p172 = scmp.eq.s32.totalorder %s23, 0
      %p173 = por %p171, %p172
      %p174 = scmp.ne.s32.totalorder %s163, %s166
      %p175 = scmp.eq.s32.totalorder %s28, 1
      %p176 = por %p174, %p175
      %p177 = scmp.ne.s32.totalorder %s166, %s167
      %p178 = scmp.eq.s32.totalorder %s28, 0
      %p179 = por %p177, %p178
      %p180 = scmp.ne.s32.totalorder %s166, %s167
      %p181 = scmp.eq.s32.totalorder %s29, 1
      %p182 = por %p180, %p181
      %p184 = scmp.ne.s32.totalorder %s167, %s183
      %p185 = scmp.eq.s32.totalorder %s29, 0
      %p186 = por %p184, %p185
      %s187 = ssub.s32 %s23, %s30
      %p188 = scmp.eq.s32.totalorder %s187, 0
      %s190 = sadd.s32 %s189, 1
      %s191 = scalar_select %p188, %s189, %s190
      %p194 = pneg %p188
      %p195 = scmp.eq.s32.totalorder %s23, 1
      %p196 = por %p194, %p195
      %p197 = scmp.ne.s32.totalorder %s189, %s192
      %p198 = scmp.eq.s32.totalorder %s23, 0
      %p199 = por %p197, %p198
      %p200 = scmp.ne.s32.totalorder %s189, %s192
      %p201 = scmp.eq.s32.totalorder %s28, 1
      %p202 = por %p200, %p201
      %p203 = scmp.ne.s32.totalorder %s192, %s193
      %p204 = scmp.eq.s32.totalorder %s28, 0
      %p205 = por %p203, %p204
      %p206 = scmp.ne.s32.totalorder %s192, %s193
      %p207 = scmp.eq.s32.totalorder %s29, 1
      %p208 = por %p206, %p207
      %p210 = scmp.ne.s32.totalorder %s193, %s209
      %p211 = scmp.eq.s32.totalorder %s29, 0
      %p212 = por %p210, %p211
      %s214 = sadd.s32 %s213, 1
      %p217 = scmp.eq.s32.totalorder %s23, 1
      %p218 = scmp.ne.s32.totalorder %s213, %s215
      %p219 = scmp.eq.s32.totalorder %s23, 0
      %p220 = por %p218, %p219
      %p221 = scmp.ne.s32.totalorder %s213, %s215
      %p222 = scmp.eq.s32.totalorder %s28, 1
      %p223 = por %p221, %p222
      %p224 = scmp.ne.s32.totalorder %s215, %s216
      %p225 = scmp.eq.s32.totalorder %s28, 0
      %p226 = por %p224, %p225
      %p227 = scmp.ne.s32.totalorder %s215, %s216
      %p228 = scmp.eq.s32.totalorder %s29, 1
      %p229 = por %p227, %p228
      %p231 = scmp.ne.s32.totalorder %s216, %s230
      %p232 = scmp.eq.s32.totalorder %s29, 0
      %p233 = por %p231, %p232
      %s235 = sadd.s32 %s234, 1
      %p238 = scmp.eq.s32.totalorder %s23, 1
      %p239 = scmp.ne.s32.totalorder %s234, %s236
      %p240 = scmp.eq.s32.totalorder %s23, 0
      %p241 = por %p239, %p240
      %p242 = scmp.ne.s32.totalorder %s234, %s236
      %p243 = scmp.eq.s32.totalorder %s28, 1
      %p244 = por %p242, %p243
      %p245 = scmp.ne.s32.totalorder %s236, %s237
      %p246 = scmp.eq.s32.totalorder %s28, 0
      %p247 = por %p245, %p246
      %p248 = scmp.ne.s32.totalorder %s236, %s237
      %p249 = scmp.eq.s32.totalorder %s29, 1
      %p250 = por %p248, %p249
      %p252 = scmp.ne.s32.totalorder %s237, %s251
      %p253 = scmp.eq.s32.totalorder %s29, 0
      %p254 = por %p252, %p253
      %s256 = sadd.s32 %s255, 1
      %p259 = scmp.eq.s32.totalorder %s23, 1
      %p260 = scmp.ne.s32.totalorder %s255, %s257
      %p261 = scmp.eq.s32.totalorder %s23, 0
      %p262 = por %p260, %p261
      %p263 = scmp.ne.s32.totalorder %s255, %s257
      %p264 = scmp.eq.s32.totalorder %s28, 1
      %p265 = por %p263, %p264
      %p266 = scmp.ne.s32.totalorder %s257, %s258
      %p267 = scmp.eq.s32.totalorder %s28, 0
      %p268 = por %p266, %p267
      %p269 = scmp.ne.s32.totalorder %s257, %s258
      %p270 = scmp.eq.s32.totalorder %s29, 1
      %p271 = por %p269, %p270
      %p273 = scmp.ne.s32.totalorder %s258, %s272
      %p274 = scmp.eq.s32.totalorder %s29, 0
      %p275 = por %p273, %p274
      %s277 = sadd.s32 %s276, 1
      %p280 = scmp.eq.s32.totalorder %s23, 1
      %p281 = scmp.ne.s32.totalorder %s276, %s278
      %p282 = scmp.eq.s32.totalorder %s23, 0
      %p283 = por %p281, %p282
      %p284 = scmp.ne.s32.totalorder %s276, %s278
      %p285 = scmp.eq.s32.totalorder %s28, 1
      %p286 = por %p284, %p285
      %p287 = scmp.ne.s32.totalorder %s278, %s279
      %p288 = scmp.eq.s32.totalorder %s28, 0
      %p289 = por %p287, %p288
      %p290 = scmp.ne.s32.totalorder %s278, %s279
      %p291 = scmp.eq.s32.totalorder %s29, 1
      %p292 = por %p290, %p291
      %p294 = scmp.ne.s32.totalorder %s279, %s293
      %p295 = scmp.eq.s32.totalorder %s29, 0
      %p296 = por %p294, %p295
      %s298 = sadd.s32 %s297, 1
      %p301 = scmp.eq.s32.totalorder %s23, 1
      %p302 = scmp.ne.s32.totalorder %s297, %s299
      %p303 = scmp.eq.s32.totalorder %s23, 0
      %p304 = por %p302, %p303
      %p305 = scmp.ne.s32.totalorder %s297, %s299
      %p306 = scmp.eq.s32.totalorder %s28, 1
      %p307 = por %p305, %p306
      %p308 = scmp.ne.s32.totalorder %s299, %s300
      %p309 = scmp.eq.s32.totalorder %s28, 0
      %p310 = por %p308, %p309
      %p311 = scmp.ne.s32.totalorder %s299, %s300
      %p312 = scmp.eq.s32.totalorder %s29, 1
      %p313 = por %p311, %p312
      %p315 = scmp.ne.s32.totalorder %s300, %s314
      %p316 = scmp.eq.s32.totalorder %s29, 0
      %p317 = por %p315, %p316
      %s319 = sadd.s32 %s318, 1
      %p322 = scmp.eq.s32.totalorder %s23, 1
      %p323 = scmp.ne.s32.totalorder %s318, %s320
      %p324 = scmp.eq.s32.totalorder %s23, 0
      %p325 = por %p323, %p324
      %p326 = scmp.ne.s32.totalorder %s318, %s320
      %p327 = scmp.eq.s32.totalorder %s28, 1
      %p328 = por %p326, %p327
      %p329 = scmp.ne.s32.totalorder %s320, %s321
      %p330 = scmp.eq.s32.totalorder %s28, 0
      %p331 = por %p329, %p330
      %p332 = scmp.ne.s32.totalorder %s320, %s321
      %p333 = scmp.eq.s32.totalorder %s29, 1
      %p334 = por %p332, %p333
      %p336 = scmp.ne.s32.totalorder %s321, %s335
      %p337 = scmp.eq.s32.totalorder %s29, 0
      %p338 = por %p336, %p337
      %s340 = sadd.s32 %s339, 1
      %p343 = scmp.eq.s32.totalorder %s23, 1
      %p344 = scmp.ne.s32.totalorder %s339, %s341
      %p345 = scmp.eq.s32.totalorder %s23, 0
      %p346 = por %p344, %p345
      %p347 = scmp.ne.s32.totalorder %s339, %s341
      %p348 = scmp.eq.s32.totalorder %s28, 1
      %p349 = por %p347, %p348
      %p350 = scmp.ne.s32.totalorder %s341, %s342
      %p351 = scmp.eq.s32.totalorder %s28, 0
      %p352 = por %p350, %p351
      %p353 = scmp.ne.s32.totalorder %s341, %s342
      %p354 = scmp.eq.s32.totalorder %s29, 1
      %p355 = por %p353, %p354
      %p357 = scmp.ne.s32.totalorder %s342, %s356
      %p358 = scmp.eq.s32.totalorder %s29, 0
      %p359 = por %p357, %p358
      %s360 = ssub.s32 %s23, %s30
      %p361 = scmp.eq.s32.totalorder %s360, 0
      %s363 = sadd.s32 %s362, 1
      %s364 = scalar_select %p361, %s362, %s363
      %p367 = pneg %p361
      %p368 = scmp.eq.s32.totalorder %s23, 1
      %p369 = por %p367, %p368
      %p370 = scmp.ne.s32.totalorder %s362, %s365
      %p371 = scmp.eq.s32.totalorder %s23, 0
      %p372 = por %p370, %p371
      %p373 = scmp.ne.s32.totalorder %s362, %s365
      %p374 = scmp.eq.s32.totalorder %s28, 1
      %p375 = por %p373, %p374
      %p376 = scmp.ne.s32.totalorder %s365, %s366
      %p377 = scmp.eq.s32.totalorder %s28, 0
      %p378 = por %p376, %p377
      %p379 = scmp.ne.s32.totalorder %s365, %s366
      %p380 = scmp.eq.s32.totalorder %s29, 1
      %p381 = por %p379, %p380
      %p383 = scmp.ne.s32.totalorder %s366, %s382
      %p384 = scmp.eq.s32.totalorder %s29, 0
      %p385 = por %p383, %p384
      %p386 = scmp.le.s32.totalorder 1, %s23
      %p387 = scmp.lt.s32.totalorder %s23, 3
      %p388 = pnand %p386, %p387
      %p389 = pneg %p388
      // Predicated region
      $region9: #{_forward_core.1} parent=5 // pred_check
        _
      $region10: #{_forward_core.1} parent=5 // pred_check_branch
        %391 = sbr.rel (%p388) target = $region12
      $region11: #{_forward_core.1} parent=5 // pred_region
        %s392 = ssub.s32 %s23, 1
        // Predicated region
        $region13: #{_forward_core.1} parent=11 // pred_check
          %p393 = pneg %p226
        $region14: #{_forward_core.1} parent=11 // pred_check_branch
          %395 = sbr.rel (%p393) target = $region16
        $region15: #{_forward_core.1} parent=11 // pred_region
          _
        $region16: #{_forward_core.1} parent=11 // pred_fallthru
          _
        // Predicated region
        $region17: #{_forward_core.1} parent=11 // pred_check
          %p396 = pneg %p247
        $region18: #{_forward_core.1} parent=11 // pred_check_branch
          %398 = sbr.rel (%p396) target = $region20
        $region19: #{_forward_core.1} parent=11 // pred_region
          _
        $region20: #{_forward_core.1} parent=11 // pred_fallthru
          _
        // Predicated region
        $region21: #{_forward_core.1} parent=11 // pred_check
          %p399 = pneg %p268
        $region22: #{_forward_core.1} parent=11 // pred_check_branch
          %401 = sbr.rel (%p399) target = $region24
        $region23: #{_forward_core.1} parent=11 // pred_region
          _
        $region24: #{_forward_core.1} parent=11 // pred_fallthru
          _
        // Predicated region
        $region25: #{_forward_core.1} parent=11 // pred_check
          %p402 = pneg %p289
        $region26: #{_forward_core.1} parent=11 // pred_check_branch
          %404 = sbr.rel (%p402) target = $region28
        $region27: #{_forward_core.1} parent=11 // pred_region
          _
        $region28: #{_forward_core.1} parent=11 // pred_fallthru
          _
        // Predicated region
        $region29: #{_forward_core.1} parent=11 // pred_check
          %p405 = pneg %p310
        $region30: #{_forward_core.1} parent=11 // pred_check_branch
          %407 = sbr.rel (%p405) target = $region32
        $region31: #{_forward_core.1} parent=11 // pred_region
          _
        $region32: #{_forward_core.1} parent=11 // pred_fallthru
          _
        // Predicated region
        $region33: #{_forward_core.1} parent=11 // pred_check
          %p408 = pneg %p331
        $region34: #{_forward_core.1} parent=11 // pred_check_branch
          %410 = sbr.rel (%p408) target = $region36
        $region35: #{_forward_core.1} parent=11 // pred_region
          _
        $region36: #{_forward_core.1} parent=11 // pred_fallthru
          _
        // Predicated region
        $region37: #{_forward_core.1} parent=11 // pred_check
          %p411 = pneg %p352
        $region38: #{_forward_core.1} parent=11 // pred_check_branch
          %413 = sbr.rel (%p411) target = $region40
        $region39: #{_forward_core.1} parent=11 // pred_region
          _
        $region40: #{_forward_core.1} parent=11 // pred_fallthru
          _
      $region12: #{_forward_core.1} parent=5 // pred_fallthru
        _
      %p414 = scmp.lt.s32.totalorder %s23, 2
      // Predicated region
      $region41: #{_forward_core.1} parent=5 // pred_check
        %p415 = pneg %p414
      $region42: #{_forward_core.1} parent=5 // pred_check_branch
        %417 = sbr.rel (%p415) target = $region44
      $region43: #{_forward_core.1} parent=5 // pred_region
        // Predicated region
        $region45: #{_forward_core.1} parent=43 // pred_check
          %p418 = pneg %p43
        $region46: #{_forward_core.1} parent=43 // pred_check_branch
          %420 = sbr.rel (%p418) target = $region48
        $region47: #{_forward_core.1} parent=43 // pred_region
          %p421 = scmp.lt.s32.totalorder %s23, 1
          %s422 = scalar_select %p421, %s23, 1
          %s423 = smul.addr %s422, 8
          %s424 = scalar_lea.vmem %s0, %s423
        $region48: #{_forward_core.1} parent=43 // pred_fallthru
          _
        // Predicated region
        $region49: #{_forward_core.1} parent=43 // pred_check
          %p425 = pneg %p69
        $region50: #{_forward_core.1} parent=43 // pred_check_branch
          %427 = sbr.rel (%p425) target = $region52
        $region51: #{_forward_core.1} parent=43 // pred_region
          %p428 = scmp.lt.s32.totalorder %s23, 1
          %s429 = scalar_select %p428, %s23, 1
          %s430 = smul.addr %s429, 8
          %s431 = scalar_lea.vmem %s1, %s430
        $region52: #{_forward_core.1} parent=43 // pred_fallthru
          _
        // Predicated region
        $region53: #{_forward_core.1} parent=43 // pred_check
          %p432 = pneg %p95
        $region54: #{_forward_core.1} parent=43 // pred_check_branch
          %434 = sbr.rel (%p432) target = $region56
        $region55: #{_forward_core.1} parent=43 // pred_region
          %p435 = scmp.lt.s32.totalorder %s23, 1
          %s436 = scalar_select %p435, %s23, 1
          %s437 = smul.addr %s436, 8
          %s438 = scalar_lea.vmem %s2, %s437
        $region56: #{_forward_core.1} parent=43 // pred_fallthru
          _
        // Predicated region
        $region57: #{_forward_core.1} parent=43 // pred_check
          %p439 = pneg %p121
        $region58: #{_forward_core.1} parent=43 // pred_check_branch
          %441 = sbr.rel (%p439) target = $region60
        $region59: #{_forward_core.1} parent=43 // pred_region
          %p442 = scmp.lt.s32.totalorder %s23, 1
          %s443 = scalar_select %p442, %s23, 1
          %s444 = smul.addr %s443, 3
          %s445 = smul.addr %s444, 4
          %s446 = scalar_lea.vmem %s3, %s445
        $region60: #{_forward_core.1} parent=43 // pred_fallthru
          _
        // Predicated region
        $region61: #{_forward_core.1} parent=43 // pred_check
          %p447 = pneg %p147
        $region62: #{_forward_core.1} parent=43 // pred_check_branch
          %449 = sbr.rel (%p447) target = $region64
        $region63: #{_forward_core.1} parent=43 // pred_region
          %p450 = scmp.lt.s32.totalorder %s23, 1
          %s451 = scalar_select %p450, %s23, 1
          %s452 = smul.addr %s451, 4
          %s453 = scalar_lea.vmem %s4, %s452
        $region64: #{_forward_core.1} parent=43 // pred_fallthru
          _
        // Predicated region
        $region65: #{_forward_core.1} parent=43 // pred_check
          %p454 = pneg %p173
        $region66: #{_forward_core.1} parent=43 // pred_check_branch
          %456 = sbr.rel (%p454) target = $region68
        $region67: #{_forward_core.1} parent=43 // pred_region
          %p457 = scmp.lt.s32.totalorder %s23, 1
          %s458 = scalar_select %p457, %s23, 1
          %s459 = smul.addr %s458, 3
          %s460 = smul.addr %s459, 8
          %s461 = scalar_lea.vmem %s5, %s460
        $region68: #{_forward_core.1} parent=43 // pred_fallthru
          _
        // Predicated region
        $region69: #{_forward_core.1} parent=43 // pred_check
          %p462 = pneg %p199
        $region70: #{_forward_core.1} parent=43 // pred_check_branch
          %464 = sbr.rel (%p462) target = $region72
        $region71: #{_forward_core.1} parent=43 // pred_region
          %p465 = scmp.lt.s32.totalorder %s23, 1
          %s466 = scalar_select %p465, %s23, 1
          %s467 = scalar_lea.vmem %s6, %s466
        $region72: #{_forward_core.1} parent=43 // pred_fallthru
          _
      $region44: #{_forward_core.1} parent=5 // pred_fallthru
        _
      %p468 = scmp.le.s32.totalorder 1, %s23
      %p469 = scmp.lt.s32.totalorder %s23, 3
      %p470 = pnand %p468, %p469
      %p471 = pneg %p470
      // Predicated region
      $region73: #{_forward_core.1} parent=5 // pred_check
        _
      $region74: #{_forward_core.1} parent=5 // pred_check_branch
        %473 = sbr.rel (%p470) target = $region76
      $region75: #{_forward_core.1} parent=5 // pred_region
        %s474 = ssub.s32 %s23, 1
        %p475 = scmp.lt.s32.totalorder %s28, 1
        %s476 = scalar_select %p475, %s28, 1
        %s477 = smul.addr %s476, 8
        %s478 = scalar_lea.vmem %s0, %s477
        %p479 = pneg %p49
        %p480 = pneg %p46
        %p481 = scmp.lt.s32.totalorder %s28, 1
        %s482 = scalar_select %p481, %s28, 1
        %s483 = smul.addr %s482, 8
        %s484 = scalar_lea.vmem %s1, %s483
        %p485 = pneg %p75
        %p486 = pneg %p72
        %p487 = scmp.lt.s32.totalorder %s28, 1
        %s488 = scalar_select %p487, %s28, 1
        %s489 = smul.addr %s488, 8
        %s490 = scalar_lea.vmem %s2, %s489
        %p491 = pneg %p101
        %p492 = pneg %p98
        %p493 = scmp.lt.s32.totalorder %s28, 1
        %s494 = scalar_select %p493, %s28, 1
        %s495 = smul.addr %s494, 3
        %s496 = smul.addr %s495, 4
        %s497 = scalar_lea.vmem %s3, %s496
        %p498 = pneg %p127
        %p499 = pneg %p124
        %p500 = scmp.lt.s32.totalorder %s28, 1
        %s501 = scalar_select %p500, %s28, 1
        %s502 = smul.addr %s501, 4
        %s503 = scalar_lea.vmem %s4, %s502
        %p504 = pneg %p153
        %p505 = pneg %p150
        %p506 = scmp.lt.s32.totalorder %s28, 1
        %s507 = scalar_select %p506, %s28, 1
        %s508 = smul.addr %s507, 3
        %s509 = smul.addr %s508, 8
        %s510 = scalar_lea.vmem %s5, %s509
        %p511 = pneg %p179
        %p512 = pneg %p176
        %p513 = scmp.lt.s32.totalorder %s28, 1
        %s514 = scalar_select %p513, %s28, 1
        %s515 = scalar_lea.vmem %s6, %s514
        %p516 = pneg %p205
        %p517 = pneg %p202
        %p518 = pneg %p226
        %p519 = pneg %p223
        %p520 = pneg %p247
        %p521 = pneg %p244
        %p522 = pneg %p268
        %p523 = pneg %p265
        %p524 = pneg %p289
        %p525 = pneg %p286
        %p526 = pneg %p310
        %p527 = pneg %p307
        %p528 = pneg %p331
        %p529 = pneg %p328
        %p530 = pneg %p352
        %p531 = pneg %p349
        %p532 = pneg %p378
        %p533 = pneg %p375
        %s534 = sand.u32 %s365, 1
        %s535 = scalar_lea.sflag [#allocation3], %s534
        %s536 = sand.u32 %s365, 1
        %s537 = smul.addr %s536, 8
        %s538 = scalar_lea.vmem [#allocation2], %s537
        %p539 = scmp.lt.s32.totalorder %s28, 1
        %s540 = scalar_select %p539, %s28, 1
        %s541 = smul.addr %s540, 8
        %s542 = scalar_lea.vmem %s0, %s541
        %p543 = scmp.lt.s32.totalorder %s28, 1
        %s544 = scalar_select %p543, %s28, 1
        %s545 = smul.addr %s544, 8
        %s546 = scalar_lea.vmem %s1, %s545
        %p547 = scmp.lt.s32.totalorder %s28, 1
        %s548 = scalar_select %p547, %s28, 1
        %s549 = smul.addr %s548, 8
        %s550 = scalar_lea.vmem %s2, %s549
        %p551 = scmp.lt.s32.totalorder %s28, 1
        %s552 = scalar_select %p551, %s28, 1
        %s553 = smul.addr %s552, 3
        %s554 = smul.addr %s553, 4
        %s555 = scalar_lea.vmem %s3, %s554
        %p556 = scmp.lt.s32.totalorder %s28, 1
        %s557 = scalar_select %p556, %s28, 1
        %s558 = smul.addr %s557, 4
        %s559 = scalar_lea.vmem %s4, %s558
        %p560 = scmp.lt.s32.totalorder %s28, 1
        %s561 = scalar_select %p560, %s28, 1
        %s562 = smul.addr %s561, 3
        %s563 = smul.addr %s562, 8
        %s564 = scalar_lea.vmem %s5, %s563
        %p565 = scmp.lt.s32.totalorder %s28, 1
        %s566 = scalar_select %p565, %s28, 1
        %s567 = scalar_lea.vmem %s6, %s566
        %v569 = vld [vmem:[%s542] sm:$0xff]
        %v570 = vld [vmem:[%s546] sm:$0x1f]
        %vm571 = vcmask 64512
        %v573 = vsel %vm571, %v570, 0
        %575 = vmatprep.subr.mxu0 0.0
        %576 = vmatpush1.msra.mxu0 %v569
        %577 = vmatprep.subr.mxu0 0.0
        %578 = vmatpush1.msra.mxu0 0.0
        %579 = vmatprep.subr.mxu0 0.0
        %580 = vmatpush1.msra.mxu0 0.0
        %581 = vmatprep.subr.mxu0 0.0
        %582 = vmatpush1.msra.mxu0 0.0
        %583 = vmatprep.subr.mxu0 0.0
        %584 = vmatpush1.msra.mxu0 0.0
        %585 = vmatprep.subr.mxu0 0.0
        %586 = vmatpush1.msra.mxu0 0.0
        %587 = vmatprep.subr.mxu0 0.0
        %588 = vmatpush1.msra.mxu0 0.0
        %589 = vmatprep.subr.mxu0 0.0
        %590 = vmatpush1.msra.mxu0 0.0
        %591 = vmatprep.subr.mxu0 0.0
        %592 = vmatpush1.msra.mxu0 0.0
        %593 = vmatprep.subr.mxu0 0.0
        %594 = vmatpush1.msra.mxu0 0.0
        %595 = vmatprep.subr.mxu0 0.0
        %596 = vmatpush1.msra.mxu0 0.0
        %597 = vmatprep.subr.mxu0 0.0
        %598 = vmatpush1.msra.mxu0 0.0
        %599 = vmatprep.subr.mxu0 0.0
        %600 = vmatpush1.msra.mxu0 0.0
        %601 = vmatprep.subr.mxu0 0.0
        %602 = vmatpush1.msra.mxu0 0.0
        %603 = vmatprep.subr.mxu0 0.0
        %604 = vmatpush1.msra.mxu0 0.0
        %605 = vmatprep.subr.mxu0 0.0
        %606 = vmatpush1.msra.mxu0 0.0
        %607 = vmatprep.subr.mxu0 0.0
        %608 = vmatpush1.msra.mxu0 0.0
        %609 = vmatprep.subr.mxu0 0.0
        %610 = vmatpush1.msra.mxu0 0.0
        %611 = vmatprep.subr.mxu0 0.0
        %612 = vmatpush1.msra.mxu0 0.0
        %613 = vmatprep.subr.mxu0 0.0
        %614 = vmatpush1.msra.mxu0 0.0
        %615 = vmatprep.subr.mxu0 0.0
        %616 = vmatpush1.msra.mxu0 0.0
        %617 = vmatprep.subr.mxu0 0.0
        %618 = vmatpush1.msra.mxu0 0.0
        %619 = vmatprep.subr.mxu0 0.0
        %620 = vmatpush1.msra.mxu0 0.0
        %621 = vmatprep.subr.mxu0 0.0
        %622 = vmatpush1.msra.mxu0 0.0
        %623 = vmatprep.subr.mxu0 0.0
        %624 = vmatpush1.msra.mxu0 0.0
        %625 = vmatprep.subr.mxu0 0.0
        %626 = vmatpush1.msra.mxu0 0.0
        %627 = vmatprep.subr.mxu0 0.0
        %628 = vmatpush1.msra.mxu0 0.0
        %629 = vmatprep.subr.mxu0 0.0
        %630 = vmatpush1.msra.mxu0 0.0
        %631 = vmatprep.subr.mxu0 0.0
        %632 = vmatpush1.msra.mxu0 0.0
        %633 = vmatprep.subr.mxu0 0.0
        %634 = vmatpush1.msra.mxu0 0.0
        %635 = vmatprep.subr.mxu0 0.0
        %636 = vmatpush1.msra.mxu0 0.0
        %637 = vmatprep.subr.mxu0 0.0
        %638 = vmatpush1.msra.mxu0 0.0
        %639 = vmatprep.mubr.f32.mxu0 0.0
        %640 = vmatmul.mubr.f32.gmra.mrb[0].mxu0 %v573
        %v641 = vpop.f32.mrb[0].mxu0
        %v642 = vadd.f32 0.0, %v641
        %v643 = vpop.f32.mrb[0].mxu0
        %644 = vdwg.mxu0
        %v645 = vld [vmem:[%s550] sm:$0xff]
        %vm646 = vcmask 39936
        %v648 = vsel %vm646, %v645, 0
        %vm650 = vcmask 1044480
        %v652 = vsel %vm650, %v642, 0
        %654 = vmatprep.subr.mxu0 0.0
        %655 = vmatpush1.msra.mxu0 %v652
        %656 = vmatprep.subr.mxu0 0.0
        %657 = vmatpush1.msra.mxu0 0.0
        %658 = vmatprep.subr.mxu0 0.0
        %659 = vmatpush1.msra.mxu0 0.0
        %660 = vmatprep.subr.mxu0 0.0
        %661 = vmatpush1.msra.mxu0 0.0
        %662 = vmatprep.subr.mxu0 0.0
        %663 = vmatpush1.msra.mxu0 0.0
        %664 = vmatprep.subr.mxu0 0.0
        %665 = vmatpush1.msra.mxu0 0.0
        %666 = vmatprep.subr.mxu0 0.0
        %667 = vmatpush1.msra.mxu0 0.0
        %668 = vmatprep.subr.mxu0 0.0
        %669 = vmatpush1.msra.mxu0 0.0
        %670 = vmatprep.subr.mxu0 0.0
        %671 = vmatpush1.msra.mxu0 0.0
        %672 = vmatprep.subr.mxu0 0.0
        %673 = vmatpush1.msra.mxu0 0.0
        %674 = vmatprep.subr.mxu0 0.0
        %675 = vmatpush1.msra.mxu0 0.0
        %676 = vmatprep.subr.mxu0 0.0
        %677 = vmatpush1.msra.mxu0 0.0
        %678 = vmatprep.subr.mxu0 0.0
        %679 = vmatpush1.msra.mxu0 0.0
        %680 = vmatprep.subr.mxu0 0.0
        %681 = vmatpush1.msra.mxu0 0.0
        %682 = vmatprep.subr.mxu0 0.0
        %683 = vmatpush1.msra.mxu0 0.0
        %684 = vmatprep.subr.mxu0 0.0
        %685 = vmatpush1.msra.mxu0 0.0
        %686 = vmatprep.subr.mxu0 0.0
        %687 = vmatpush1.msra.mxu0 0.0
        %688 = vmatprep.subr.mxu0 0.0
        %689 = vmatpush1.msra.mxu0 0.0
        %690 = vmatprep.subr.mxu0 0.0
        %691 = vmatpush1.msra.mxu0 0.0
        %692 = vmatprep.subr.mxu0 0.0
        %693 = vmatpush1.msra.mxu0 0.0
        %694 = vmatprep.subr.mxu0 0.0
        %695 = vmatpush1.msra.mxu0 0.0
        %696 = vmatprep.subr.mxu0 0.0
        %697 = vmatpush1.msra.mxu0 0.0
        %698 = vmatprep.subr.mxu0 0.0
        %699 = vmatpush1.msra.mxu0 0.0
        %700 = vmatprep.subr.mxu0 0.0
        %701 = vmatpush1.msra.mxu0 0.0
        %702 = vmatprep.subr.mxu0 0.0
        %703 = vmatpush1.msra.mxu0 0.0
        %704 = vmatprep.subr.mxu0 0.0
        %705 = vmatpush1.msra.mxu0 0.0
        %706 = vmatprep.subr.mxu0 0.0
        %707 = vmatpush1.msra.mxu0 0.0
        %708 = vmatprep.subr.mxu0 0.0
        %709 = vmatpush1.msra.mxu0 0.0
        %710 = vmatprep.subr.mxu0 0.0
        %711 = vmatpush1.msra.mxu0 0.0
        %712 = vmatprep.subr.mxu0 0.0
        %713 = vmatpush1.msra.mxu0 0.0
        %714 = vmatprep.subr.mxu0 0.0
        %715 = vmatpush1.msra.mxu0 0.0
        %716 = vmatprep.subr.mxu0 0.0
        %717 = vmatpush1.msra.mxu0 0.0
        %718 = vmatprep.mubr.f32.mxu0 0.0
        %719 = vmatmul.mubr.f32.gmra.mrb[0].mxu0 %v648
        %v720 = vpop.f32.mrb[0].mxu0
        %v721 = vadd.f32 %v569, %v720
        %v722 = vpop.f32.mrb[0].mxu0
        %723 = vdwg.mxu0
        %v724 = vld [vmem:[%s7] sm:$0xff]
        %v725 = vld [vmem:[%s7 + $0x8] sm:$0xff]
        %v726 = vld [vmem:[%s7 + $0x10] sm:$0xff]
        %v727 = vld [vmem:[%s7 + $0x18] sm:$0xff]
        %v728 = vld [vmem:[%s7 + $0x20] sm:$0x1]
        %v729 = vlaneseq
        %v730 = vshrl.u32 %v729, 7
        %v731 = vsub.s32 0, %v730
        %v732 = vrot.slane %v728, %v731
        %vm733 = vcmask 261120
        %v735 = vsel %vm733, %v721, 0
        %737 = vmatprep.subr.mxu0 0.0
        %738 = vmatpush1.msra.mxu0 %v724
        %739 = vmatprep.subr.mxu0 0.0
        %740 = vmatpush1.msra.mxu0 %v725
        %741 = vmatprep.subr.mxu0 0.0
        %742 = vmatpush1.msra.mxu0 %v726
        %743 = vmatprep.subr.mxu0 0.0
        %744 = vmatpush1.msra.mxu0 %v727
        %745 = vmatprep.subr.mxu0 0.0
        %746 = vmatpush1.msra.mxu0 0.0
        %747 = vmatprep.subr.mxu0 0.0
        %748 = vmatpush1.msra.mxu0 0.0
        %749 = vmatprep.subr.mxu0 0.0
        %750 = vmatpush1.msra.mxu0 0.0
        %751 = vmatprep.subr.mxu0 0.0
        %752 = vmatpush1.msra.mxu0 0.0
        %753 = vmatprep.subr.mxu0 0.0
        %754 = vmatpush1.msra.mxu0 0.0
        %755 = vmatprep.subr.mxu0 0.0
        %756 = vmatpush1.msra.mxu0 0.0
        %757 = vmatprep.subr.mxu0 0.0
        %758 = vmatpush1.msra.mxu0 0.0
        %759 = vmatprep.subr.mxu0 0.0
        %760 = vmatpush1.msra.mxu0 0.0
        %761 = vmatprep.subr.mxu0 0.0
        %762 = vmatpush1.msra.mxu0 0.0
        %763 = vmatprep.subr.mxu0 0.0
        %764 = vmatpush1.msra.mxu0 0.0
        %765 = vmatprep.subr.mxu0 0.0
        %766 = vmatpush1.msra.mxu0 0.0
        %767 = vmatprep.subr.mxu0 0.0
        %768 = vmatpush1.msra.mxu0 0.0
        %769 = vmatprep.subr.mxu0 0.0
        %770 = vmatpush1.msra.mxu0 0.0
        %771 = vmatprep.subr.mxu0 0.0
        %772 = vmatpush1.msra.mxu0 0.0
        %773 = vmatprep.subr.mxu0 0.0
        %774 = vmatpush1.msra.mxu0 0.0
        %775 = vmatprep.subr.mxu0 0.0
        %776 = vmatpush1.msra.mxu0 0.0
        %777 = vmatprep.subr.mxu0 0.0
        %778 = vmatpush1.msra.mxu0 0.0
        %779 = vmatprep.subr.mxu0 0.0
        %780 = vmatpush1.msra.mxu0 0.0
        %781 = vmatprep.subr.mxu0 0.0
        %782 = vmatpush1.msra.mxu0 0.0
        %783 = vmatprep.subr.mxu0 0.0
        %784 = vmatpush1.msra.mxu0 0.0
        %785 = vmatprep.subr.mxu0 0.0
        %786 = vmatpush1.msra.mxu0 0.0
        %787 = vmatprep.subr.mxu0 0.0
        %788 = vmatpush1.msra.mxu0 0.0
        %789 = vmatprep.subr.mxu0 0.0
        %790 = vmatpush1.msra.mxu0 0.0
        %791 = vmatprep.subr.mxu0 0.0
        %792 = vmatpush1.msra.mxu0 0.0
        %793 = vmatprep.subr.mxu0 0.0
        %794 = vmatpush1.msra.mxu0 0.0
        %795 = vmatprep.subr.mxu0 0.0
        %796 = vmatpush1.msra.mxu0 0.0
        %797 = vmatprep.subr.mxu0 0.0
        %798 = vmatpush1.msra.mxu0 0.0
        %799 = vmatprep.subr.mxu0 0.0
        %800 = vmatpush1.msra.mxu0 0.0
        %801 = vmatprep.mubr.f32.mxu0 0.0
        %802 = vmatmul.mubr.f32.gmra.mrb[0].mxu0 %v735
        %v803 = vpop.f32.mrb[0].mxu0
        %v804 = vadd.f32 %v732, %v803
        %v805 = vpop.f32.mrb[0].mxu0
        %806 = vdwg.mxu0
        %v807 = vld [vmem:[%s13] sm:$0x1]
        %v808 = vld [vmem:[%s13 + $0x1] sm:$0x1]
        %v809 = vld [vmem:[%s13 + $0x2] sm:$0x1]
        %v810 = vld [vmem:[%s13 + $0x3] sm:$0x1]
        %v811 = vld [vmem:[%s13 + $0x4] sm:$0x1]
        %v812 = vld [vmem:[%s13 + $0x5] sm:$0x1]
        %814 = vrot.lane.b32.xlu0 %v804, 96
        %v815 = vpop.permute.xlu0 %814
        %v816 = vsel %vm571, %v804, 0
        %v818 = vsel %vm571, %v815, 0
        %820 = vmatprep.subr.mxu0 0.0
        %821 = vmatpush1.xpose.msra.mxu0 %v818
        %822 = vmatprep.subr.mxu0 0.0
        %823 = vmatpush1.xpose.msra.mxu0 0.0
        %824 = vmatprep.subr.mxu0 0.0
        %825 = vmatpush1.xpose.msra.mxu0 0.0
        %826 = vmatprep.subr.mxu0 0.0
        %827 = vmatpush1.xpose.msra.mxu0 0.0
        %828 = vmatprep.subr.mxu0 0.0
        %829 = vmatpush1.xpose.msra.mxu0 0.0
        %830 = vmatprep.subr.mxu0 0.0
        %831 = vmatpush1.xpose.msra.mxu0 0.0
        %832 = vmatprep.subr.mxu0 0.0
        %833 = vmatpush1.xpose.msra.mxu0 0.0
        %834 = vmatprep.subr.mxu0 0.0
        %835 = vmatpush1.xpose.msra.mxu0 0.0
        %836 = vmatprep.subr.mxu0 0.0
        %837 = vmatpush1.xpose.msra.mxu0 0.0
        %838 = vmatprep.subr.mxu0 0.0
        %839 = vmatpush1.xpose.msra.mxu0 0.0
        %840 = vmatprep.subr.mxu0 0.0
        %841 = vmatpush1.xpose.msra.mxu0 0.0
        %842 = vmatprep.subr.mxu0 0.0
        %843 = vmatpush1.xpose.msra.mxu0 0.0
        %844 = vmatprep.subr.mxu0 0.0
        %845 = vmatpush1.xpose.msra.mxu0 0.0
        %846 = vmatprep.subr.mxu0 0.0
        %847 = vmatpush1.xpose.msra.mxu0 0.0
        %848 = vmatprep.subr.mxu0 0.0
        %849 = vmatpush1.xpose.msra.mxu0 0.0
        %850 = vmatprep.subr.mxu0 0.0
        %851 = vmatpush1.xpose.msra.mxu0 0.0
        %852 = vmatprep.subr.mxu0 0.0
        %853 = vmatpush1.xpose.msra.mxu0 0.0
        %854 = vmatprep.subr.mxu0 0.0
        %855 = vmatpush1.xpose.msra.mxu0 0.0
        %856 = vmatprep.subr.mxu0 0.0
        %857 = vmatpush1.xpose.msra.mxu0 0.0
        %858 = vmatprep.subr.mxu0 0.0
        %859 = vmatpush1.xpose.msra.mxu0 0.0
        %860 = vmatprep.subr.mxu0 0.0
        %861 = vmatpush1.xpose.msra.mxu0 0.0
        %862 = vmatprep.subr.mxu0 0.0
        %863 = vmatpush1.xpose.msra.mxu0 0.0
        %864 = vmatprep.subr.mxu0 0.0
        %865 = vmatpush1.xpose.msra.mxu0 0.0
        %866 = vmatprep.subr.mxu0 0.0
        %867 = vmatpush1.xpose.msra.mxu0 0.0
        %868 = vmatprep.subr.mxu0 0.0
        %869 = vmatpush1.xpose.msra.mxu0 0.0
        %870 = vmatprep.subr.mxu0 0.0
        %871 = vmatpush1.xpose.msra.mxu0 0.0
        %872 = vmatprep.subr.mxu0 0.0
        %873 = vmatpush1.xpose.msra.mxu0 0.0
        %874 = vmatprep.subr.mxu0 0.0
        %875 = vmatpush1.xpose.msra.mxu0 0.0
        %876 = vmatprep.subr.mxu0 0.0
        %877 = vmatpush1.xpose.msra.mxu0 0.0
        %878 = vmatprep.subr.mxu0 0.0
        %879 = vmatpush1.xpose.msra.mxu0 0.0
        %880 = vmatprep.subr.mxu0 0.0
        %881 = vmatpush1.xpose.msra.mxu0 0.0
        %882 = vmatprep.subr.mxu0 0.0
        %883 = vmatpush1.xpose.msra.mxu0 0.0
        %884 = vmatprep.mubr.f32.mxu0 0.0
        %885 = vmatmul.mubr.f32.gmra.mrb[0].mxu0 %v816
        %v886 = vpop.f32.mrb[0].mxu0
        %v887 = vadd.f32 0.0, %v886
        %v888 = vpop.f32.mrb[0].mxu0
        %889 = vdwg.mxu0
        %v890 = vmul.f32 %v887, 0.35355338
        %v891 = vsel %vm571, %v890, -inf
        %892 = vmax.xlane.f32.xlu0 %v891
        %v893 = vpop.xlane.xlu0 %892
        %v894 = vsub.f32 %v890, %v893
        %v895 = vmul.f32 %v894, 1.442695
        %v896 = vpow.pop %v895
        %v897 = vsel %vm571, %v896, 0.0
        %898 = vadd.xlane.f32.xlu0 %v897
        %v899 = vpop.xlane.xlu0 %898
        %v900 = vrcp.pop %v899
        %v901 = vmul.f32 %v896, %v900
        %902 = vrot.lane.b32.xlu0 %v804, 64
        %v903 = vpop.permute.xlu0 %902
        %v906 = vsel %vm571, %v901, 0
        %908 = vmatprep.subr.mxu0 0.0
        %909 = vmatpush1.msra.mxu0 %v903
        %910 = vmatprep.subr.mxu0 0.0
        %911 = vmatpush1.msra.mxu0 0.0
        %912 = vmatprep.subr.mxu0 0.0
        %913 = vmatpush1.msra.mxu0 0.0
        %914 = vmatprep.subr.mxu0 0.0
        %915 = vmatpush1.msra.mxu0 0.0
        %916 = vmatprep.subr.mxu0 0.0
        %917 = vmatpush1.msra.mxu0 0.0
        %918 = vmatprep.subr.mxu0 0.0
        %919 = vmatpush1.msra.mxu0 0.0
        %920 = vmatprep.subr.mxu0 0.0
        %921 = vmatpush1.msra.mxu0 0.0
        %922 = vmatprep.subr.mxu0 0.0
        %923 = vmatpush1.msra.mxu0 0.0
        %924 = vmatprep.subr.mxu0 0.0
        %925 = vmatpush1.msra.mxu0 0.0
        %926 = vmatprep.subr.mxu0 0.0
        %927 = vmatpush1.msra.mxu0 0.0
        %928 = vmatprep.subr.mxu0 0.0
        %929 = vmatpush1.msra.mxu0 0.0
        %930 = vmatprep.subr.mxu0 0.0
        %931 = vmatpush1.msra.mxu0 0.0
        %932 = vmatprep.subr.mxu0 0.0
        %933 = vmatpush1.msra.mxu0 0.0
        %934 = vmatprep.subr.mxu0 0.0
        %935 = vmatpush1.msra.mxu0 0.0
        %936 = vmatprep.subr.mxu0 0.0
        %937 = vmatpush1.msra.mxu0 0.0
        %938 = vmatprep.subr.mxu0 0.0
        %939 = vmatpush1.msra.mxu0 0.0
        %940 = vmatprep.subr.mxu0 0.0
        %941 = vmatpush1.msra.mxu0 0.0
        %942 = vmatprep.subr.mxu0 0.0
        %943 = vmatpush1.msra.mxu0 0.0
        %944 = vmatprep.subr.mxu0 0.0
        %945 = vmatpush1.msra.mxu0 0.0
        %946 = vmatprep.subr.mxu0 0.0
        %947 = vmatpush1.msra.mxu0 0.0
        %948 = vmatprep.subr.mxu0 0.0
        %949 = vmatpush1.msra.mxu0 0.0
        %950 = vmatprep.subr.mxu0 0.0
        %951 = vmatpush1.msra.mxu0 0.0
        %952 = vmatprep.subr.mxu0 0.0
        %953 = vmatpush1.msra.mxu0 0.0
        %954 = vmatprep.subr.mxu0 0.0
        %955 = vmatpush1.msra.mxu0 0.0
        %956 = vmatprep.subr.mxu0 0.0
        %957 = vmatpush1.msra.mxu0 0.0
        %958 = vmatprep.subr.mxu0 0.0
        %959 = vmatpush1.msra.mxu0 0.0
        %960 = vmatprep.subr.mxu0 0.0
        %961 = vmatpush1.msra.mxu0 0.0
        %962 = vmatprep.subr.mxu0 0.0
        %963 = vmatpush1.msra.mxu0 0.0
        %964 = vmatprep.subr.mxu0 0.0
        %965 = vmatpush1.msra.mxu0 0.0
        %966 = vmatprep.subr.mxu0 0.0
        %967 = vmatpush1.msra.mxu0 0.0
        %968 = vmatprep.subr.mxu0 0.0
        %969 = vmatpush1.msra.mxu0 0.0
        %970 = vmatprep.subr.mxu0 0.0
        %971 = vmatpush1.msra.mxu0 0.0
        %972 = vmatprep.mubr.f32.mxu0 0.0
        %973 = vmatmul.mubr.f32.gmra.mrb[0].mxu0 %v906
        %v974 = vpop.f32.mrb[0].mxu0
        %v975 = vadd.f32 0.0, %v974
        %v976 = vpop.f32.mrb[0].mxu0
        %977 = vdwg.mxu0
        %v978 = vld [vmem:[%s12] sm:$0xff]
        %979 = vrot.lane.b32.xlu0 %v804, 120
        %v980 = vpop.permute.xlu0 %979
        %981 = vrot.lane.b32.xlu0 %v804, 88
        %v982 = vpop.permute.xlu0 %981
        %v983 = vsel %vm571, %v980, 0
        %v985 = vsel %vm571, %v982, 0
        %987 = vmatprep.subr.mxu0 0.0
        %988 = vmatpush1.xpose.msra.mxu0 %v985
        %989 = vmatprep.subr.mxu0 0.0
        %990 = vmatpush1.xpose.msra.mxu0 0.0
        %991 = vmatprep.subr.mxu0 0.0
        %992 = vmatpush1.xpose.msra.mxu0 0.0
        %993 = vmatprep.subr.mxu0 0.0
        %994 = vmatpush1.xpose.msra.mxu0 0.0
        %995 = vmatprep.subr.mxu0 0.0
        %996 = vmatpush1.xpose.msra.mxu0 0.0
        %997 = vmatprep.subr.mxu0 0.0
        %998 = vmatpush1.xpose.msra.mxu0 0.0
        %999 = vmatprep.subr.mxu0 0.0
        %1000 = vmatpush1.xpose.msra.mxu0 0.0
        %1001 = vmatprep.subr.mxu0 0.0
        %1002 = vmatpush1.xpose.msra.mxu0 0.0
        %1003 = vmatprep.subr.mxu0 0.0
        %1004 = vmatpush1.xpose.msra.mxu0 0.0
        %1005 = vmatprep.subr.mxu0 0.0
        %1006 = vmatpush1.xpose.msra.mxu0 0.0
        %1007 = vmatprep.subr.mxu0 0.0
        %1008 = vmatpush1.xpose.msra.mxu0 0.0
        %1009 = vmatprep.subr.mxu0 0.0
        %1010 = vmatpush1.xpose.msra.mxu0 0.0
        %1011 = vmatprep.subr.mxu0 0.0
        %1012 = vmatpush1.xpose.msra.mxu0 0.0
        %1013 = vmatprep.subr.mxu0 0.0
        %1014 = vmatpush1.xpose.msra.mxu0 0.0
        %1015 = vmatprep.subr.mxu0 0.0
        %1016 = vmatpush1.xpose.msra.mxu0 0.0
        %1017 = vmatprep.subr.mxu0 0.0
        %1018 = vmatpush1.xpose.msra.mxu0 0.0
        %1019 = vmatprep.subr.mxu0 0.0
        %1020 = vmatpush1.xpose.msra.mxu0 0.0
        %1021 = vmatprep.subr.mxu0 0.0
        %1022 = vmatpush1.xpose.msra.mxu0 0.0
        %1023 = vmatprep.subr.mxu0 0.0
        %1024 = vmatpush1.xpose.msra.mxu0 0.0
        %1025 = vmatprep.subr.mxu0 0.0
        %1026 = vmatpush1.xpose.msra.mxu0 0.0
        %1027 = vmatprep.subr.mxu0 0.0
        %1028 = vmatpush1.xpose.msra.mxu0 0.0
        %1029 = vmatprep.subr.mxu0 0.0
        %1030 = vmatpush1.xpose.msra.mxu0 0.0
        %1031 = vmatprep.subr.mxu0 0.0
        %1032 = vmatpush1.xpose.msra.mxu0 0.0
        %1033 = vmatprep.subr.mxu0 0.0
        %1034 = vmatpush1.xpose.msra.mxu0 0.0
        %1035 = vmatprep.subr.mxu0 0.0
        %1036 = vmatpush1.xpose.msra.mxu0 0.0
        %1037 = vmatprep.subr.mxu0 0.0
        %1038 = vmatpush1.xpose.msra.mxu0 0.0
        %1039 = vmatprep.subr.mxu0 0.0
        %1040 = vmatpush1.xpose.msra.mxu0 0.0
        %1041 = vmatprep.subr.mxu0 0.0
        %1042 = vmatpush1.xpose.msra.mxu0 0.0
        %1043 = vmatprep.subr.mxu0 0.0
        %1044 = vmatpush1.xpose.msra.mxu0 0.0
        %1045 = vmatprep.subr.mxu0 0.0
        %1046 = vmatpush1.xpose.msra.mxu0 0.0
        %1047 = vmatprep.subr.mxu0 0.0
        %1048 = vmatpush1.xpose.msra.mxu0 0.0
        %1049 = vmatprep.subr.mxu0 0.0
        %1050 = vmatpush1.xpose.msra.mxu0 0.0
        %1051 = vmatprep.mubr.f32.mxu0 0.0
        %1052 = vmatmul.mubr.f32.gmra.mrb[0].mxu0 %v983
        %v1053 = vpop.f32.mrb[0].mxu0
        %v1054 = vadd.f32 0.0, %v1053
        %v1055 = vpop.f32.mrb[0].mxu0
        %1056 = vdwg.mxu0
        %v1057 = vmul.f32 %v1054, 0.35355338
        %v1058 = vsel %vm571, %v1057, -inf
        %1059 = vmax.xlane.f32.xlu0 %v1058
        %v1060 = vpop.xlane.xlu0 %1059
        %v1061 = vsub.f32 %v1057, %v1060
        %v1062 = vmul.f32 %v1061, 1.442695
        %v1063 = vpow.pop %v1062
        %v1064 = vsel %vm571, %v1063, 0.0
        %1065 = vadd.xlane.f32.xlu0 %v1064
        %v1066 = vpop.xlane.xlu0 %1065
        %v1067 = vrcp.pop %v1066
        %v1068 = vmul.f32 %v1063, %v1067
        %1069 = vrot.lane.b32.xlu0 %v804, 56
        %v1070 = vpop.permute.xlu0 %1069
        %v1073 = vsel %vm571, %v1068, 0
        %1075 = vmatprep.subr.mxu0 0.0
        %1076 = vmatpush1.msra.mxu0 %v1070
        %1077 = vmatprep.subr.mxu0 0.0
        %1078 = vmatpush1.msra.mxu0 0.0
        %1079 = vmatprep.subr.mxu0 0.0
        %1080 = vmatpush1.msra.mxu0 0.0
        %1081 = vmatprep.subr.mxu0 0.0
        %1082 = vmatpush1.msra.mxu0 0.0
        %1083 = vmatprep.subr.mxu0 0.0
        %1084 = vmatpush1.msra.mxu0 0.0
        %1085 = vmatprep.subr.mxu0 0.0
        %1086 = vmatpush1.msra.mxu0 0.0
        %1087 = vmatprep.subr.mxu0 0.0
        %1088 = vmatpush1.msra.mxu0 0.0
        %1089 = vmatprep.subr.mxu0 0.0
        %1090 = vmatpush1.msra.mxu0 0.0
        %1091 = vmatprep.subr.mxu0 0.0
        %1092 = vmatpush1.msra.mxu0 0.0
        %1093 = vmatprep.subr.mxu0 0.0
        %1094 = vmatpush1.msra.mxu0 0.0
        %1095 = vmatprep.subr.mxu0 0.0
        %1096 = vmatpush1.msra.mxu0 0.0
        %1097 = vmatprep.subr.mxu0 0.0
        %1098 = vmatpush1.msra.mxu0 0.0
        %1099 = vmatprep.subr.mxu0 0.0
        %1100 = vmatpush1.msra.mxu0 0.0
        %1101 = vmatprep.subr.mxu0 0.0
        %1102 = vmatpush1.msra.mxu0 0.0
        %1103 = vmatprep.subr.mxu0 0.0
        %1104 = vmatpush1.msra.mxu0 0.0
        %1105 = vmatprep.subr.mxu0 0.0
        %1106 = vmatpush1.msra.mxu0 0.0
        %1107 = vmatprep.subr.mxu0 0.0
        %1108 = vmatpush1.msra.mxu0 0.0
        %1109 = vmatprep.subr.mxu0 0.0
        %1110 = vmatpush1.msra.mxu0 0.0
        %1111 = vmatprep.subr.mxu0 0.0
        %1112 = vmatpush1.msra.mxu0 0.0
        %1113 = vmatprep.subr.mxu0 0.0
        %1114 = vmatpush1.msra.mxu0 0.0
        %1115 = vmatprep.subr.mxu0 0.0
        %1116 = vmatpush1.msra.mxu0 0.0
        %1117 = vmatprep.subr.mxu0 0.0
        %1118 = vmatpush1.msra.mxu0 0.0
        %1119 = vmatprep.subr.mxu0 0.0
        %1120 = vmatpush1.msra.mxu0 0.0
        %1121 = vmatprep.subr.mxu0 0.0
        %1122 = vmatpush1.msra.mxu0 0.0
        %1123 = vmatprep.subr.mxu0 0.0
        %1124 = vmatpush1.msra.mxu0 0.0
        %1125 = vmatprep.subr.mxu0 0.0
        %1126 = vmatpush1.msra.mxu0 0.0
        %1127 = vmatprep.subr.mxu0 0.0
        %1128 = vmatpush1.msra.mxu0 0.0
        %1129 = vmatprep.subr.mxu0 0.0
        %1130 = vmatpush1.msra.mxu0 0.0
        %1131 = vmatprep.subr.mxu0 0.0
        %1132 = vmatpush1.msra.mxu0 0.0
        %1133 = vmatprep.subr.mxu0 0.0
        %1134 = vmatpush1.msra.mxu0 0.0
        %1135 = vmatprep.subr.mxu0 0.0
        %1136 = vmatpush1.msra.mxu0 0.0
        %1137 = vmatprep.subr.mxu0 0.0
        %1138 = vmatpush1.msra.mxu0 0.0
        %1139 = vmatprep.mubr.f32.mxu0 0.0
        %1140 = vmatmul.mubr.f32.gmra.mrb[0].mxu0 %v1073
        %v1141 = vpop.f32.mrb[0].mxu0
        %v1142 = vadd.f32 0.0, %v1141
        %v1143 = vpop.f32.mrb[0].mxu0
        %1144 = vdwg.mxu0
        %v1145 = vld [vmem:[%s12 + $0x8] sm:$0xff]
        %v1147 = vsel %vm571, %v1142, 0
        %1149 = vmatprep.subr.mxu0 0.0
        %1150 = vmatpush1.msra.mxu0 %v1145
        %1151 = vmatprep.subr.mxu0 0.0
        %1152 = vmatpush1.msra.mxu0 0.0
        %1153 = vmatprep.subr.mxu0 0.0
        %1154 = vmatpush1.msra.mxu0 0.0
        %1155 = vmatprep.subr.mxu0 0.0
        %1156 = vmatpush1.msra.mxu0 0.0
        %1157 = vmatprep.subr.mxu0 0.0
        %1158 = vmatpush1.msra.mxu0 0.0
        %1159 = vmatprep.subr.mxu0 0.0
        %1160 = vmatpush1.msra.mxu0 0.0
        %1161 = vmatprep.subr.mxu0 0.0
        %1162 = vmatpush1.msra.mxu0 0.0
        %1163 = vmatprep.subr.mxu0 0.0
        %1164 = vmatpush1.msra.mxu0 0.0
        %1165 = vmatprep.subr.mxu0 0.0
        %1166 = vmatpush1.msra.mxu0 0.0
        %1167 = vmatprep.subr.mxu0 0.0
        %1168 = vmatpush1.msra.mxu0 0.0
        %1169 = vmatprep.subr.mxu0 0.0
        %1170 = vmatpush1.msra.mxu0 0.0
        %1171 = vmatprep.subr.mxu0 0.0
        %1172 = vmatpush1.msra.mxu0 0.0
        %1173 = vmatprep.subr.mxu0 0.0
        %1174 = vmatpush1.msra.mxu0 0.0
        %1175 = vmatprep.subr.mxu0 0.0
        %1176 = vmatpush1.msra.mxu0 0.0
        %1177 = vmatprep.subr.mxu0 0.0
        %1178 = vmatpush1.msra.mxu0 0.0
        %1179 = vmatprep.subr.mxu0 0.0
        %1180 = vmatpush1.msra.mxu0 0.0
        %1181 = vmatprep.subr.mxu0 0.0
        %1182 = vmatpush1.msra.mxu0 0.0
        %1183 = vmatprep.subr.mxu0 0.0
        %1184 = vmatpush1.msra.mxu0 0.0
        %1185 = vmatprep.subr.mxu0 0.0
        %1186 = vmatpush1.msra.mxu0 0.0
        %1187 = vmatprep.subr.mxu0 0.0
        %1188 = vmatpush1.msra.mxu0 0.0
        %1189 = vmatprep.subr.mxu0 0.0
        %1190 = vmatpush1.msra.mxu0 0.0
        %1191 = vmatprep.subr.mxu0 0.0
        %1192 = vmatpush1.msra.mxu0 0.0
        %1193 = vmatprep.subr.mxu0 0.0
        %1194 = vmatpush1.msra.mxu0 0.0
        %1195 = vmatprep.subr.mxu0 0.0
        %1196 = vmatpush1.msra.mxu0 0.0
        %1197 = vmatprep.subr.mxu0 0.0
        %1198 = vmatpush1.msra.mxu0 0.0
        %1199 = vmatprep.subr.mxu0 0.0
        %1200 = vmatpush1.msra.mxu0 0.0
        %1201 = vmatprep.subr.mxu0 0.0
        %1202 = vmatpush1.msra.mxu0 0.0
        %1203 = vmatprep.subr.mxu0 0.0
        %1204 = vmatpush1.msra.mxu0 0.0
        %1205 = vmatprep.subr.mxu0 0.0
        %1206 = vmatpush1.msra.mxu0 0.0
        %1207 = vmatprep.subr.mxu0 0.0
        %1208 = vmatpush1.msra.mxu0 0.0
        %1209 = vmatprep.subr.mxu0 0.0
        %1210 = vmatpush1.msra.mxu0 0.0
        %1211 = vmatprep.subr.mxu0 0.0
        %1212 = vmatpush1.msra.mxu0 0.0
        %1213 = vmatprep.mubr.f32.mxu0 0.0
        %1214 = vmatmul.mubr.f32.gmra.mrb[0].mxu0 %v1147
        %v1215 = vpop.f32.mrb[0].mxu0
        %v1216 = vadd.f32 0.0, %v1215
        %v1217 = vpop.f32.mrb[0].mxu0
        %1218 = vdwg.mxu0
        %v1220 = vsel %vm571, %v975, 0
        %1222 = vmatprep.subr.mxu0 0.0
        %1223 = vmatpush1.msra.mxu0 %v978
        %1224 = vmatprep.subr.mxu0 0.0
        %1225 = vmatpush1.msra.mxu0 0.0
        %1226 = vmatprep.subr.mxu0 0.0
        %1227 = vmatpush1.msra.mxu0 0.0
        %1228 = vmatprep.subr.mxu0 0.0
        %1229 = vmatpush1.msra.mxu0 0.0
        %1230 = vmatprep.subr.mxu0 0.0
        %1231 = vmatpush1.msra.mxu0 0.0
        %1232 = vmatprep.subr.mxu0 0.0
        %1233 = vmatpush1.msra.mxu0 0.0
        %1234 = vmatprep.subr.mxu0 0.0
        %1235 = vmatpush1.msra.mxu0 0.0
        %1236 = vmatprep.subr.mxu0 0.0
        %1237 = vmatpush1.msra.mxu0 0.0
        %1238 = vmatprep.subr.mxu0 0.0
        %1239 = vmatpush1.msra.mxu0 0.0
        %1240 = vmatprep.subr.mxu0 0.0
        %1241 = vmatpush1.msra.mxu0 0.0
        %1242 = vmatprep.subr.mxu0 0.0
        %1243 = vmatpush1.msra.mxu0 0.0
        %1244 = vmatprep.subr.mxu0 0.0
        %1245 = vmatpush1.msra.mxu0 0.0
        %1246 = vmatprep.subr.mxu0 0.0
        %1247 = vmatpush1.msra.mxu0 0.0
        %1248 = vmatprep.subr.mxu0 0.0
        %1249 = vmatpush1.msra.mxu0 0.0
        %1250 = vmatprep.subr.mxu0 0.0
        %1251 = vmatpush1.msra.mxu0 0.0
        %1252 = vmatprep.subr.mxu0 0.0
        %1253 = vmatpush1.msra.mxu0 0.0
        %1254 = vmatprep.subr.mxu0 0.0
        %1255 = vmatpush1.msra.mxu0 0.0
        %1256 = vmatprep.subr.mxu0 0.0
        %1257 = vmatpush1.msra.mxu0 0.0
        %1258 = vmatprep.subr.mxu0 0.0
        %1259 = vmatpush1.msra.mxu0 0.0
        %1260 = vmatprep.subr.mxu0 0.0
        %1261 = vmatpush1.msra.mxu0 0.0
        %1262 = vmatprep.subr.mxu0 0.0
        %1263 = vmatpush1.msra.mxu0 0.0
        %1264 = vmatprep.subr.mxu0 0.0
        %1265 = vmatpush1.msra.mxu0 0.0
        %1266 = vmatprep.subr.mxu0 0.0
        %1267 = vmatpush1.msra.mxu0 0.0
        %1268 = vmatprep.subr.mxu0 0.0
        %1269 = vmatpush1.msra.mxu0 0.0
        %1270 = vmatprep.subr.mxu0 0.0
        %1271 = vmatpush1.msra.mxu0 0.0
        %1272 = vmatprep.subr.mxu0 0.0
        %1273 = vmatpush1.msra.mxu0 0.0
        %1274 = vmatprep.subr.mxu0 0.0
        %1275 = vmatpush1.msra.mxu0 0.0
        %1276 = vmatprep.subr.mxu0 0.0
        %1277 = vmatpush1.msra.mxu0 0.0
        %1278 = vmatprep.subr.mxu0 0.0
        %1279 = vmatpush1.msra.mxu0 0.0
        %1280 = vmatprep.subr.mxu0 0.0
        %1281 = vmatpush1.msra.mxu0 0.0
        %1282 = vmatprep.subr.mxu0 0.0
        %1283 = vmatpush1.msra.mxu0 0.0
        %1284 = vmatprep.subr.mxu0 0.0
        %1285 = vmatpush1.msra.mxu0 0.0
        %1286 = vmatprep.mubr.f32.mxu0 0.0
        %1287 = vmatmul.mubr.f32.gmra.mrb[0].mxu0 %v1220
        %v1288 = vpop.f32.mrb[0].mxu0
        %v1289 = vadd.f32 %v1216, %v1288
        %v1290 = vpop.f32.mrb[0].mxu0
        %1291 = vdwg.mxu0
        %1292 = vrot.lane.b32.xlu0 %v804, 112
        %v1293 = vpop.permute.xlu0 %1292
        %1294 = vrot.lane.b32.xlu0 %v804, 80
        %v1295 = vpop.permute.xlu0 %1294
        %v1296 = vsel %vm571, %v1293, 0
        %v1298 = vsel %vm571, %v1295, 0
        %1300 = vmatprep.subr.mxu0 0.0
        %1301 = vmatpush1.xpose.msra.mxu0 %v1298
        %1302 = vmatprep.subr.mxu0 0.0
        %1303 = vmatpush1.xpose.msra.mxu0 0.0
        %1304 = vmatprep.subr.mxu0 0.0
        %1305 = vmatpush1.xpose.msra.mxu0 0.0
        %1306 = vmatprep.subr.mxu0 0.0
        %1307 = vmatpush1.xpose.msra.mxu0 0.0
        %1308 = vmatprep.subr.mxu0 0.0
        %1309 = vmatpush1.xpose.msra.mxu0 0.0
        %1310 = vmatprep.subr.mxu0 0.0
        %1311 = vmatpush1.xpose.msra.mxu0 0.0
        %1312 = vmatprep.subr.mxu0 0.0
        %1313 = vmatpush1.xpose.msra.mxu0 0.0
        %1314 = vmatprep.subr.mxu0 0.0
        %1315 = vmatpush1.xpose.msra.mxu0 0.0
        %1316 = vmatprep.subr.mxu0 0.0
        %1317 = vmatpush1.xpose.msra.mxu0 0.0
        %1318 = vmatprep.subr.mxu0 0.0
        %1319 = vmatpush1.xpose.msra.mxu0 0.0
        %1320 = vmatprep.subr.mxu0 0.0
        %1321 = vmatpush1.xpose.msra.mxu0 0.0
        %1322 = vmatprep.subr.mxu0 0.0
        %1323 = vmatpush1.xpose.msra.mxu0 0.0
        %1324 = vmatprep.subr.mxu0 0.0
        %1325 = vmatpush1.xpose.msra.mxu0 0.0
        %1326 = vmatprep.subr.mxu0 0.0
        %1327 = vmatpush1.xpose.msra.mxu0 0.0
        %1328 = vmatprep.subr.mxu0 0.0
        %1329 = vmatpush1.xpose.msra.mxu0 0.0
        %1330 = vmatprep.subr.mxu0 0.0
        %1331 = vmatpush1.xpose.msra.mxu0 0.0
        %1332 = vmatprep.subr.mxu0 0.0
        %1333 = vmatpush1.xpose.msra.mxu0 0.0
        %1334 = vmatprep.subr.mxu0 0.0
        %1335 = vmatpush1.xpose.msra.mxu0 0.0
        %1336 = vmatprep.subr.mxu0 0.0
        %1337 = vmatpush1.xpose.msra.mxu0 0.0
        %1338 = vmatprep.subr.mxu0 0.0
        %1339 = vmatpush1.xpose.msra.mxu0 0.0
        %1340 = vmatprep.subr.mxu0 0.0
        %1341 = vmatpush1.xpose.msra.mxu0 0.0
        %1342 = vmatprep.subr.mxu0 0.0
        %1343 = vmatpush1.xpose.msra.mxu0 0.0
        %1344 = vmatprep.subr.mxu0 0.0
        %1345 = vmatpush1.xpose.msra.mxu0 0.0
        %1346 = vmatprep.subr.mxu0 0.0
        %1347 = vmatpush1.xpose.msra.mxu0 0.0
        %1348 = vmatprep.subr.mxu0 0.0
        %1349 = vmatpush1.xpose.msra.mxu0 0.0
        %1350 = vmatprep.subr.mxu0 0.0
        %1351 = vmatpush1.xpose.msra.mxu0 0.0
        %1352 = vmatprep.subr.mxu0 0.0
        %1353 = vmatpush1.xpose.msra.mxu0 0.0
        %1354 = vmatprep.subr.mxu0 0.0
        %1355 = vmatpush1.xpose.msra.mxu0 0.0
        %1356 = vmatprep.subr.mxu0 0.0
        %1357 = vmatpush1.xpose.msra.mxu0 0.0
        %1358 = vmatprep.subr.mxu0 0.0
        %1359 = vmatpush1.xpose.msra.mxu0 0.0
        %1360 = vmatprep.subr.mxu0 0.0
        %1361 = vmatpush1.xpose.msra.mxu0 0.0
        %1362 = vmatprep.subr.mxu0 0.0
        %1363 = vmatpush1.xpose.msra.mxu0 0.0
        %1364 = vmatprep.mubr.f32.mxu0 0.0
        %1365 = vmatmul.mubr.f32.gmra.mrb[0].mxu0 %v1296
        %v1366 = vpop.f32.mrb[0].mxu0
        %v1367 = vadd.f32 0.0, %v1366
        %v1368 = vpop.f32.mrb[0].mxu0
        %1369 = vdwg.mxu0
        %v1370 = vmul.f32 %v1367, 0.35355338
        %v1371 = vsel %vm571, %v1370, -inf
        %1372 = vmax.xlane.f32.xlu0 %v1371
        %v1373 = vpop.xlane.xlu0 %1372
        %v1374 = vsub.f32 %v1370, %v1373
        %v1375 = vmul.f32 %v1374, 1.442695
        %v1376 = vpow.pop %v1375
        %v1377 = vsel %vm571, %v1376, 0.0
        %1378 = vadd.xlane.f32.xlu0 %v1377
        %v1379 = vpop.xlane.xlu0 %1378
        %v1380 = vrcp.pop %v1379
        %v1381 = vmul.f32 %v1376, %v1380
        %1382 = vrot.lane.b32.xlu0 %v804, 48
        %v1383 = vpop.permute.xlu0 %1382
        %v1386 = vsel %vm571, %v1381, 0
        %1388 = vmatprep.subr.mxu0 0.0
        %1389 = vmatpush1.msra.mxu0 %v1383
        %1390 = vmatprep.subr.mxu0 0.0
        %1391 = vmatpush1.msra.mxu0 0.0
        %1392 = vmatprep.subr.mxu0 0.0
        %1393 = vmatpush1.msra.mxu0 0.0
        %1394 = vmatprep.subr.mxu0 0.0
        %1395 = vmatpush1.msra.mxu0 0.0
        %1396 = vmatprep.subr.mxu0 0.0
        %1397 = vmatpush1.msra.mxu0 0.0
        %1398 = vmatprep.subr.mxu0 0.0
        %1399 = vmatpush1.msra.mxu0 0.0
        %1400 = vmatprep.subr.mxu0 0.0
        %1401 = vmatpush1.msra.mxu0 0.0
        %1402 = vmatprep.subr.mxu0 0.0
        %1403 = vmatpush1.msra.mxu0 0.0
        %1404 = vmatprep.subr.mxu0 0.0
        %1405 = vmatpush1.msra.mxu0 0.0
        %1406 = vmatprep.subr.mxu0 0.0
        %1407 = vmatpush1.msra.mxu0 0.0
        %1408 = vmatprep.subr.mxu0 0.0
        %1409 = vmatpush1.msra.mxu0 0.0
        %1410 = vmatprep.subr.mxu0 0.0
        %1411 = vmatpush1.msra.mxu0 0.0
        %1412 = vmatprep.subr.mxu0 0.0
        %1413 = vmatpush1.msra.mxu0 0.0
        %1414 = vmatprep.subr.mxu0 0.0
        %1415 = vmatpush1.msra.mxu0 0.0
        %1416 = vmatprep.subr.mxu0 0.0
        %1417 = vmatpush1.msra.mxu0 0.0
        %1418 = vmatprep.subr.mxu0 0.0
        %1419 = vmatpush1.msra.mxu0 0.0
        %1420 = vmatprep.subr.mxu0 0.0
        %1421 = vmatpush1.msra.mxu0 0.0
        %1422 = vmatprep.subr.mxu0 0.0
        %1423 = vmatpush1.msra.mxu0 0.0
        %1424 = vmatprep.subr.mxu0 0.0
        %1425 = vmatpush1.msra.mxu0 0.0
        %1426 = vmatprep.subr.mxu0 0.0
        %1427 = vmatpush1.msra.mxu0 0.0
        %1428 = vmatprep.subr.mxu0 0.0
        %1429 = vmatpush1.msra.mxu0 0.0
        %1430 = vmatprep.subr.mxu0 0.0
        %1431 = vmatpush1.msra.mxu0 0.0
        %1432 = vmatprep.subr.mxu0 0.0
        %1433 = vmatpush1.msra.mxu0 0.0
        %1434 = vmatprep.subr.mxu0 0.0
        %1435 = vmatpush1.msra.mxu0 0.0
        %1436 = vmatprep.subr.mxu0 0.0
        %1437 = vmatpush1.msra.mxu0 0.0
        %1438 = vmatprep.subr.mxu0 0.0
        %1439 = vmatpush1.msra.mxu0 0.0
        %1440 = vmatprep.subr.mxu0 0.0
        %1441 = vmatpush1.msra.mxu0 0.0
        %1442 = vmatprep.subr.mxu0 0.0
        %1443 = vmatpush1.msra.mxu0 0.0
        %1444 = vmatprep.subr.mxu0 0.0
        %1445 = vmatpush1.msra.mxu0 0.0
        %1446 = vmatprep.subr.mxu0 0.0
        %1447 = vmatpush1.msra.mxu0 0.0
        %1448 = vmatprep.subr.mxu0 0.0
        %1449 = vmatpush1.msra.mxu0 0.0
        %1450 = vmatprep.subr.mxu0 0.0
        %1451 = vmatpush1.msra.mxu0 0.0
        %1452 = vmatprep.mubr.f32.mxu0 0.0
        %1453 = vmatmul.mubr.f32.gmra.mrb[0].mxu0 %v1386
        %v1454 = vpop.f32.mrb[0].mxu0
        %v1455 = vadd.f32 0.0, %v1454
        %v1456 = vpop.f32.mrb[0].mxu0
        %1457 = vdwg.mxu0
        %v1458 = vld [vmem:[%s12 + $0x10] sm:$0xff]
        %v1460 = vsel %vm571, %v1455, 0
        %1462 = vmatprep.subr.mxu0 0.0
        %1463 = vmatpush1.msra.mxu0 %v1458
        %1464 = vmatprep.subr.mxu0 0.0
        %1465 = vmatpush1.msra.mxu0 0.0
        %1466 = vmatprep.subr.mxu0 0.0
        %1467 = vmatpush1.msra.mxu0 0.0
        %1468 = vmatprep.subr.mxu0 0.0
        %1469 = vmatpush1.msra.mxu0 0.0
        %1470 = vmatprep.subr.mxu0 0.0
        %1471 = vmatpush1.msra.mxu0 0.0
        %1472 = vmatprep.subr.mxu0 0.0
        %1473 = vmatpush1.msra.mxu0 0.0
        %1474 = vmatprep.subr.mxu0 0.0
        %1475 = vmatpush1.msra.mxu0 0.0
        %1476 = vmatprep.subr.mxu0 0.0
        %1477 = vmatpush1.msra.mxu0 0.0
        %1478 = vmatprep.subr.mxu0 0.0
        %1479 = vmatpush1.msra.mxu0 0.0
        %1480 = vmatprep.subr.mxu0 0.0
        %1481 = vmatpush1.msra.mxu0 0.0
        %1482 = vmatprep.subr.mxu0 0.0
        %1483 = vmatpush1.msra.mxu0 0.0
        %1484 = vmatprep.subr.mxu0 0.0
        %1485 = vmatpush1.msra.mxu0 0.0
        %1486 = vmatprep.subr.mxu0 0.0
        %1487 = vmatpush1.msra.mxu0 0.0
        %1488 = vmatprep.subr.mxu0 0.0
        %1489 = vmatpush1.msra.mxu0 0.0
        %1490 = vmatprep.subr.mxu0 0.0
        %1491 = vmatpush1.msra.mxu0 0.0
        %1492 = vmatprep.subr.mxu0 0.0
        %1493 = vmatpush1.msra.mxu0 0.0
        %1494 = vmatprep.subr.mxu0 0.0
        %1495 = vmatpush1.msra.mxu0 0.0
        %1496 = vmatprep.subr.mxu0 0.0
        %1497 = vmatpush1.msra.mxu0 0.0
        %1498 = vmatprep.subr.mxu0 0.0
        %1499 = vmatpush1.msra.mxu0 0.0
        %1500 = vmatprep.subr.mxu0 0.0
        %1501 = vmatpush1.msra.mxu0 0.0
        %1502 = vmatprep.subr.mxu0 0.0
        %1503 = vmatpush1.msra.mxu0 0.0
        %1504 = vmatprep.subr.mxu0 0.0
        %1505 = vmatpush1.msra.mxu0 0.0
        %1506 = vmatprep.subr.mxu0 0.0
        %1507 = vmatpush1.msra.mxu0 0.0
        %1508 = vmatprep.subr.mxu0 0.0
        %1509 = vmatpush1.msra.mxu0 0.0
        %1510 = vmatprep.subr.mxu0 0.0
        %1511 = vmatpush1.msra.mxu0 0.0
        %1512 = vmatprep.subr.mxu0 0.0
        %1513 = vmatpush1.msra.mxu0 0.0
        %1514 = vmatprep.subr.mxu0 0.0
        %1515 = vmatpush1.msra.mxu0 0.0
        %1516 = vmatprep.subr.mxu0 0.0
        %1517 = vmatpush1.msra.mxu0 0.0
        %1518 = vmatprep.subr.mxu0 0.0
        %1519 = vmatpush1.msra.mxu0 0.0
        %1520 = vmatprep.subr.mxu0 0.0
        %1521 = vmatpush1.msra.mxu0 0.0
        %1522 = vmatprep.subr.mxu0 0.0
        %1523 = vmatpush1.msra.mxu0 0.0
        %1524 = vmatprep.subr.mxu0 0.0
        %1525 = vmatpush1.msra.mxu0 0.0
        %1526 = vmatprep.mubr.f32.mxu0 0.0
        %1527 = vmatmul.mubr.f32.gmra.mrb[0].mxu0 %v1460
        %v1528 = vpop.f32.mrb[0].mxu0
        %v1529 = vadd.f32 0.0, %v1528
        %v1530 = vpop.f32.mrb[0].mxu0
        %1531 = vdwg.mxu0
        %v1532 = vadd.f32 %v1289, %v1529
        %1533 = vrot.lane.b32.xlu0 %v804, 104
        %v1534 = vpop.permute.xlu0 %1533
        %1535 = vrot.lane.b32.xlu0 %v804, 72
        %v1536 = vpop.permute.xlu0 %1535
        %v1537 = vsel %vm571, %v1534, 0
        %v1539 = vsel %vm571, %v1536, 0
        %1541 = vmatprep.subr.mxu0 0.0
        %1542 = vmatpush1.xpose.msra.mxu0 %v1539
        %1543 = vmatprep.subr.mxu0 0.0
        %1544 = vmatpush1.xpose.msra.mxu0 0.0
        %1545 = vmatprep.subr.mxu0 0.0
        %1546 = vmatpush1.xpose.msra.mxu0 0.0
        %1547 = vmatprep.subr.mxu0 0.0
        %1548 = vmatpush1.xpose.msra.mxu0 0.0
        %1549 = vmatprep.subr.mxu0 0.0
        %1550 = vmatpush1.xpose.msra.mxu0 0.0
        %1551 = vmatprep.subr.mxu0 0.0
        %1552 = vmatpush1.xpose.msra.mxu0 0.0
        %1553 = vmatprep.subr.mxu0 0.0
        %1554 = vmatpush1.xpose.msra.mxu0 0.0
        %1555 = vmatprep.subr.mxu0 0.0
        %1556 = vmatpush1.xpose.msra.mxu0 0.0
        %1557 = vmatprep.subr.mxu0 0.0
        %1558 = vmatpush1.xpose.msra.mxu0 0.0
        %1559 = vmatprep.subr.mxu0 0.0
        %1560 = vmatpush1.xpose.msra.mxu0 0.0
        %1561 = vmatprep.subr.mxu0 0.0
        %1562 = vmatpush1.xpose.msra.mxu0 0.0
        %1563 = vmatprep.subr.mxu0 0.0
        %1564 = vmatpush1.xpose.msra.mxu0 0.0
        %1565 = vmatprep.subr.mxu0 0.0
        %1566 = vmatpush1.xpose.msra.mxu0 0.0
        %1567 = vmatprep.subr.mxu0 0.0
        %1568 = vmatpush1.xpose.msra.mxu0 0.0
        %1569 = vmatprep.subr.mxu0 0.0
        %1570 = vmatpush1.xpose.msra.mxu0 0.0
        %1571 = vmatprep.subr.mxu0 0.0
        %1572 = vmatpush1.xpose.msra.mxu0 0.0
        %1573 = vmatprep.subr.mxu0 0.0
        %1574 = vmatpush1.xpose.msra.mxu0 0.0
        %1575 = vmatprep.subr.mxu0 0.0
        %1576 = vmatpush1.xpose.msra.mxu0 0.0
        %1577 = vmatprep.subr.mxu0 0.0
        %1578 = vmatpush1.xpose.msra.mxu0 0.0
        %1579 = vmatprep.subr.mxu0 0.0
        %1580 = vmatpush1.xpose.msra.mxu0 0.0
        %1581 = vmatprep.subr.mxu0 0.0
        %1582 = vmatpush1.xpose.msra.mxu0 0.0
        %1583 = vmatprep.subr.mxu0 0.0
        %1584 = vmatpush1.xpose.msra.mxu0 0.0
        %1585 = vmatprep.subr.mxu0 0.0
        %1586 = vmatpush1.xpose.msra.mxu0 0.0
        %1587 = vmatprep.subr.mxu0 0.0
        %1588 = vmatpush1.xpose.msra.mxu0 0.0
        %1589 = vmatprep.subr.mxu0 0.0
        %1590 = vmatpush1.xpose.msra.mxu0 0.0
        %1591 = vmatprep.subr.mxu0 0.0
        %1592 = vmatpush1.xpose.msra.mxu0 0.0
        %1593 = vmatprep.subr.mxu0 0.0
        %1594 = vmatpush1.xpose.msra.mxu0 0.0
        %1595 = vmatprep.subr.mxu0 0.0
        %1596 = vmatpush1.xpose.msra.mxu0 0.0
        %1597 = vmatprep.subr.mxu0 0.0
        %1598 = vmatpush1.xpose.msra.mxu0 0.0
        %1599 = vmatprep.subr.mxu0 0.0
        %1600 = vmatpush1.xpose.msra.mxu0 0.0
        %1601 = vmatprep.subr.mxu0 0.0
        %1602 = vmatpush1.xpose.msra.mxu0 0.0
        %1603 = vmatprep.subr.mxu0 0.0
        %1604 = vmatpush1.xpose.msra.mxu0 0.0
        %1605 = vmatprep.mubr.f32.mxu0 0.0
        %1606 = vmatmul.mubr.f32.gmra.mrb[0].mxu0 %v1537
        %v1607 = vpop.f32.mrb[0].mxu0
        %v1608 = vadd.f32 0.0, %v1607
        %v1609 = vpop.f32.mrb[0].mxu0
        %1610 = vdwg.mxu0
        %v1611 = vmul.f32 %v1608, 0.35355338
        %v1612 = vsel %vm571, %v1611, -inf
        %1613 = vmax.xlane.f32.xlu0 %v1612
        %v1614 = vpop.xlane.xlu0 %1613
        %v1615 = vsub.f32 %v1611, %v1614
        %v1616 = vmul.f32 %v1615, 1.442695
        %v1617 = vpow.pop %v1616
        %v1618 = vsel %vm571, %v1617, 0.0
        %1619 = vadd.xlane.f32.xlu0 %v1618
        %v1620 = vpop.xlane.xlu0 %1619
        %v1621 = vrcp.pop %v1620
        %v1622 = vmul.f32 %v1617, %v1621
        %1623 = vrot.lane.b32.xlu0 %v804, 40
        %v1624 = vpop.permute.xlu0 %1623
        %v1627 = vsel %vm571, %v1622, 0
        %1629 = vmatprep.subr.mxu0 0.0
        %1630 = vmatpush1.msra.mxu0 %v1624
        %1631 = vmatprep.subr.mxu0 0.0
        %1632 = vmatpush1.msra.mxu0 0.0
        %1633 = vmatprep.subr.mxu0 0.0
        %1634 = vmatpush1.msra.mxu0 0.0
        %1635 = vmatprep.subr.mxu0 0.0
        %1636 = vmatpush1.msra.mxu0 0.0
        %1637 = vmatprep.subr.mxu0 0.0
        %1638 = vmatpush1.msra.mxu0 0.0
        %1639 = vmatprep.subr.mxu0 0.0
        %1640 = vmatpush1.msra.mxu0 0.0
        %1641 = vmatprep.subr.mxu0 0.0
        %1642 = vmatpush1.msra.mxu0 0.0
        %1643 = vmatprep.subr.mxu0 0.0
        %1644 = vmatpush1.msra.mxu0 0.0
        %1645 = vmatprep.subr.mxu0 0.0
        %1646 = vmatpush1.msra.mxu0 0.0
        %1647 = vmatprep.subr.mxu0 0.0
        %1648 = vmatpush1.msra.mxu0 0.0
        %1649 = vmatprep.subr.mxu0 0.0
        %1650 = vmatpush1.msra.mxu0 0.0
        %1651 = vmatprep.subr.mxu0 0.0
        %1652 = vmatpush1.msra.mxu0 0.0
        %1653 = vmatprep.subr.mxu0 0.0
        %1654 = vmatpush1.msra.mxu0 0.0
        %1655 = vmatprep.subr.mxu0 0.0
        %1656 = vmatpush1.msra.mxu0 0.0
        %1657 = vmatprep.subr.mxu0 0.0
        %1658 = vmatpush1.msra.mxu0 0.0
        %1659 = vmatprep.subr.mxu0 0.0
        %1660 = vmatpush1.msra.mxu0 0.0
        %1661 = vmatprep.subr.mxu0 0.0
        %1662 = vmatpush1.msra.mxu0 0.0
        %1663 = vmatprep.subr.mxu0 0.0
        %1664 = vmatpush1.msra.mxu0 0.0
        %1665 = vmatprep.subr.mxu0 0.0
        %1666 = vmatpush1.msra.mxu0 0.0
        %1667 = vmatprep.subr.mxu0 0.0
        %1668 = vmatpush1.msra.mxu0 0.0
        %1669 = vmatprep.subr.mxu0 0.0
        %1670 = vmatpush1.msra.mxu0 0.0
        %1671 = vmatprep.subr.mxu0 0.0
        %1672 = vmatpush1.msra.mxu0 0.0
        %1673 = vmatprep.subr.mxu0 0.0
        %1674 = vmatpush1.msra.mxu0 0.0
        %1675 = vmatprep.subr.mxu0 0.0
        %1676 = vmatpush1.msra.mxu0 0.0
        %1677 = vmatprep.subr.mxu0 0.0
        %1678 = vmatpush1.msra.mxu0 0.0
        %1679 = vmatprep.subr.mxu0 0.0
        %1680 = vmatpush1.msra.mxu0 0.0
        %1681 = vmatprep.subr.mxu0 0.0
        %1682 = vmatpush1.msra.mxu0 0.0
        %1683 = vmatprep.subr.mxu0 0.0
        %1684 = vmatpush1.msra.mxu0 0.0
        %1685 = vmatprep.subr.mxu0 0.0
        %1686 = vmatpush1.msra.mxu0 0.0
        %1687 = vmatprep.subr.mxu0 0.0
        %1688 = vmatpush1.msra.mxu0 0.0
        %1689 = vmatprep.subr.mxu0 0.0
        %1690 = vmatpush1.msra.mxu0 0.0
        %1691 = vmatprep.subr.mxu0 0.0
        %1692 = vmatpush1.msra.mxu0 0.0
        %1693 = vmatprep.mubr.f32.mxu0 0.0
        %1694 = vmatmul.mubr.f32.gmra.mrb[0].mxu0 %v1627
        %v1695 = vpop.f32.mrb[0].mxu0
        %v1696 = vadd.f32 0.0, %v1695
        %v1697 = vpop.f32.mrb[0].mxu0
        %1698 = vdwg.mxu0
        %v1699 = vld [vmem:[%s12 + $0x18] sm:$0xff]
        %v1701 = vsel %vm571, %v1696, 0
        %1703 = vmatprep.subr.mxu0 0.0
        %1704 = vmatpush1.msra.mxu0 %v1699
        %1705 = vmatprep.subr.mxu0 0.0
        %1706 = vmatpush1.msra.mxu0 0.0
        %1707 = vmatprep.subr.mxu0 0.0
        %1708 = vmatpush1.msra.mxu0 0.0
        %1709 = vmatprep.subr.mxu0 0.0
        %1710 = vmatpush1.msra.mxu0 0.0
        %1711 = vmatprep.subr.mxu0 0.0
        %1712 = vmatpush1.msra.mxu0 0.0
        %1713 = vmatprep.subr.mxu0 0.0
        %1714 = vmatpush1.msra.mxu0 0.0
        %1715 = vmatprep.subr.mxu0 0.0
        %1716 = vmatpush1.msra.mxu0 0.0
        %1717 = vmatprep.subr.mxu0 0.0
        %1718 = vmatpush1.msra.mxu0 0.0
        %1719 = vmatprep.subr.mxu0 0.0
        %1720 = vmatpush1.msra.mxu0 0.0
        %1721 = vmatprep.subr.mxu0 0.0
        %1722 = vmatpush1.msra.mxu0 0.0
        %1723 = vmatprep.subr.mxu0 0.0
        %1724 = vmatpush1.msra.mxu0 0.0
        %1725 = vmatprep.subr.mxu0 0.0
        %1726 = vmatpush1.msra.mxu0 0.0
        %1727 = vmatprep.subr.mxu0 0.0
        %1728 = vmatpush1.msra.mxu0 0.0
        %1729 = vmatprep.subr.mxu0 0.0
        %1730 = vmatpush1.msra.mxu0 0.0
        %1731 = vmatprep.subr.mxu0 0.0
        %1732 = vmatpush1.msra.mxu0 0.0
        %1733 = vmatprep.subr.mxu0 0.0
        %1734 = vmatpush1.msra.mxu0 0.0
        %1735 = vmatprep.subr.mxu0 0.0
        %1736 = vmatpush1.msra.mxu0 0.0
        %1737 = vmatprep.subr.mxu0 0.0
        %1738 = vmatpush1.msra.mxu0 0.0
        %1739 = vmatprep.subr.mxu0 0.0
        %1740 = vmatpush1.msra.mxu0 0.0
        %1741 = vmatprep.subr.mxu0 0.0
        %1742 = vmatpush1.msra.mxu0 0.0
        %1743 = vmatprep.subr.mxu0 0.0
        %1744 = vmatpush1.msra.mxu0 0.0
        %1745 = vmatprep.subr.mxu0 0.0
        %1746 = vmatpush1.msra.mxu0 0.0
        %1747 = vmatprep.subr.mxu0 0.0
        %1748 = vmatpush1.msra.mxu0 0.0
        %1749 = vmatprep.subr.mxu0 0.0
        %1750 = vmatpush1.msra.mxu0 0.0
        %1751 = vmatprep.subr.mxu0 0.0
        %1752 = vmatpush1.msra.mxu0 0.0
        %1753 = vmatprep.subr.mxu0 0.0
        %1754 = vmatpush1.msra.mxu0 0.0
        %1755 = vmatprep.subr.mxu0 0.0
        %1756 = vmatpush1.msra.mxu0 0.0
        %1757 = vmatprep.subr.mxu0 0.0
        %1758 = vmatpush1.msra.mxu0 0.0
        %1759 = vmatprep.subr.mxu0 0.0
        %1760 = vmatpush1.msra.mxu0 0.0
        %1761 = vmatprep.subr.mxu0 0.0
        %1762 = vmatpush1.msra.mxu0 0.0
        %1763 = vmatprep.subr.mxu0 0.0
        %1764 = vmatpush1.msra.mxu0 0.0
        %1765 = vmatprep.subr.mxu0 0.0
        %1766 = vmatpush1.msra.mxu0 0.0
        %1767 = vmatprep.mubr.f32.mxu0 0.0
        %1768 = vmatmul.mubr.f32.gmra.mrb[0].mxu0 %v1701
        %v1769 = vpop.f32.mrb[0].mxu0
        %v1770 = vadd.f32 0.0, %v1769
        %v1771 = vpop.f32.mrb[0].mxu0
        %1772 = vdwg.mxu0
        %v1773 = vadd.f32 %v1532, %v1770
        %v1774 = vlaneseq
        %v1775 = vshrl.u32 %v1774, 7
        %v1776 = vsub.s32 0, %v1775
        %v1777 = vrot.slane %v807, %v1776
        %v1778 = vadd.f32 %v1773, %v1777
        %v1779 = vadd.f32 %v721, %v1778
        %v1780 = vsel %vm733, %v1779, 0.0
        %1781 = vadd.xlane.f32.xlu0 %v1780
        %v1782 = vpop.xlane.xlu0 %1781
        %v1783 = vrcp.pop 32.0
        %v1784 = vmul.f32 %v1782, %v1783
        %v1785 = vsub.f32 %v1779, %v1784
        %v1786 = vmul.f32 %v1785, %v1785
        %v1787 = vsel %vm733, %v1786, 0.0
        %1788 = vadd.xlane.f32.xlu0 %v1787
        %v1789 = vpop.xlane.xlu0 %1788
        %v1790 = vmul.f32 %v1789, %v1783
        %v1791 = vadd.f32 %v1790, 1e-05
        %v1792 = vrsqrt.pop %v1791
        %v1793 = vmul.f32 %v1785, %v1792
        %v1794 = vlaneseq
        %v1795 = vshrl.u32 %v1794, 7
        %v1796 = vsub.s32 0, %v1795
        %v1797 = vrot.slane %v808, %v1796
        %v1798 = vmul.f32 %v1793, %v1797
        %v1799 = vlaneseq
        %v1800 = vshrl.u32 %v1799, 7
        %v1801 = vsub.s32 0, %v1800
        %v1802 = vrot.slane %v809, %v1801
        %v1803 = vadd.f32 %v1798, %v1802
        %v1804 = vpack.c.bf16 %v1803, %v1803
        %v1805 = vld [vmem:[%s8] sm:$0xff]
        %v1806 = vld [vmem:[%s8 + $0x8] sm:$0xff]
        %v1807 = vld [vmem:[%s8 + $0x10] sm:$0xff]
        %v1808 = vld [vmem:[%s8 + $0x18] sm:$0xff]
        %v1809 = vld [vmem:[%s8 + $0x20] sm:$0xff]
        %v1810 = vld [vmem:[%s8 + $0x28] sm:$0xff]
        %v1811 = vld [vmem:[%s8 + $0x30] sm:$0xff]
        %v1812 = vld [vmem:[%s8 + $0x38] sm:$0xff]
        %v1813 = vld [vmem:[%s8 + $0x40] sm:$0xff]
        %v1814 = vld [vmem:[%s8 + $0x48] sm:$0xff]
        %v1815 = vld [vmem:[%s8 + $0x50] sm:$0xff]
        %v1816 = vld [vmem:[%s8 + $0x58] sm:$0xff]
        %v1817 = vld [vmem:[%s8 + $0x60] sm:$0xff]
        %v1818 = vld [vmem:[%s8 + $0x68] sm:$0xff]
        %v1819 = vld [vmem:[%s8 + $0x70] sm:$0xff]
        %v1820 = vld [vmem:[%s8 + $0x78] sm:$0xff]
        %v1821 = vld [vmem:[%s8 + $0x80] sm:$0xff]
        %v1822 = vld [vmem:[%s8 + $0x88] sm:$0xff]
        %v1823 = vld [vmem:[%s8 + $0x90] sm:$0xff]
        %v1824 = vld [vmem:[%s8 + $0x98] sm:$0xff]
        %v1825 = vld [vmem:[%s8 + $0xa0] sm:$0xff]
        %v1826 = vld [vmem:[%s8 + $0xa8] sm:$0xff]
        %v1827 = vld [vmem:[%s8 + $0xb0] sm:$0xff]
        %v1828 = vld [vmem:[%s8 + $0xb8] sm:$0xff]
        %v1829 = vld [vmem:[%s8 + $0xc0] sm:$0xff]
        %v1830 = vld [vmem:[%s8 + $0xc8] sm:$0xff]
        %v1831 = vld [vmem:[%s8 + $0xd0] sm:$0xff]
        %v1832 = vld [vmem:[%s8 + $0xd8] sm:$0xff]
        %v1833 = vld [vmem:[%s8 + $0xe0] sm:$0xff]
        %v1834 = vld [vmem:[%s8 + $0xe8] sm:$0xff]
        %v1835 = vld [vmem:[%s8 + $0xf0] sm:$0xff]
        %v1836 = vld [vmem:[%s8 + $0xf8] sm:$0xff]
        %v1837 = vld [vmem:[%s9] sm:$0xff]
        %v1838 = vld [vmem:[%s9 + $0x8] sm:$0xff]
        %v1841 = vlaneseq
        %v1842 = vshrl.u32 %v1841, 7
        %v1843 = vsub.s32 0, %v1842
        %v1844 = vrot.slane %v1837, %v1843
        %v1845 = vlaneseq
        %v1846 = vshrl.u32 %v1845, 7
        %v1847 = vsub.s32 1, %v1846
        %v1848 = vrot.slane %v1837, %v1847
        %v1849 = vlaneseq
        %v1850 = vshrl.u32 %v1849, 7
        %v1851 = vsub.s32 2, %v1850
        %v1852 = vrot.slane %v1837, %v1851
        %v1853 = vlaneseq
        %v1854 = vshrl.u32 %v1853, 7
        %v1855 = vsub.s32 3, %v1854
        %v1856 = vrot.slane %v1837, %v1855
        %v1857 = vlaneseq
        %v1858 = vshrl.u32 %v1857, 7
        %v1859 = vsub.s32 4, %v1858
        %v1860 = vrot.slane %v1837, %v1859
        %v1861 = vlaneseq
        %v1862 = vshrl.u32 %v1861, 7
        %v1863 = vsub.s32 5, %v1862
        %v1864 = vrot.slane %v1837, %v1863
        %v1865 = vlaneseq
        %v1866 = vshrl.u32 %v1865, 7
        %v1867 = vsub.s32 6, %v1866
        %v1868 = vrot.slane %v1837, %v1867
        %v1869 = vlaneseq
        %v1870 = vshrl.u32 %v1869, 7
        %v1871 = vsub.s32 7, %v1870
        %v1872 = vrot.slane %v1837, %v1871
        %v1873 = vlaneseq
        %v1874 = vshrl.u32 %v1873, 7
        %v1875 = vsub.s32 0, %v1874
        %v1876 = vrot.slane %v1838, %v1875
        %v1877 = vlaneseq
        %v1878 = vshrl.u32 %v1877, 7
        %v1879 = vsub.s32 1, %v1878
        %v1880 = vrot.slane %v1838, %v1879
        %v1881 = vlaneseq
        %v1882 = vshrl.u32 %v1881, 7
        %v1883 = vsub.s32 2, %v1882
        %v1884 = vrot.slane %v1838, %v1883
        %v1885 = vlaneseq
        %v1886 = vshrl.u32 %v1885, 7
        %v1887 = vsub.s32 3, %v1886
        %v1888 = vrot.slane %v1838, %v1887
        %v1889 = vlaneseq
        %v1890 = vshrl.u32 %v1889, 7
        %v1891 = vsub.s32 4, %v1890
        %v1892 = vrot.slane %v1838, %v1891
        %v1893 = vlaneseq
        %v1894 = vshrl.u32 %v1893, 7
        %v1895 = vsub.s32 5, %v1894
        %v1896 = vrot.slane %v1838, %v1895
        %v1897 = vlaneseq
        %v1898 = vshrl.u32 %v1897, 7
        %v1899 = vsub.s32 6, %v1898
        %v1900 = vrot.slane %v1838, %v1899
        %v1901 = vlaneseq
        %v1902 = vshrl.u32 %v1901, 7
        %v1903 = vsub.s32 7, %v1902
        %v1904 = vrot.slane %v1838, %v1903
        %v1953 = vunpack.c.l.b16 %v1805
        %v1954 = vunpack.c.h.b16 %v1805
        %v1955 = vunpack.c.l.b16 %v1806
        %v1956 = vunpack.c.h.b16 %v1806
        %v1957 = vunpack.c.l.b16 %v1807
        %v1958 = vunpack.c.h.b16 %v1807
        %v1959 = vunpack.c.l.b16 %v1808
        %v1960 = vunpack.c.h.b16 %v1808
        %v1961 = vunpack.c.l.b16 %v1809
        %v1962 = vunpack.c.h.b16 %v1809
        %v1963 = vunpack.c.l.b16 %v1810
        %v1964 = vunpack.c.h.b16 %v1810
        %v1965 = vunpack.c.l.b16 %v1811
        %v1966 = vunpack.c.h.b16 %v1811
        %v1967 = vunpack.c.l.b16 %v1812
        %v1968 = vunpack.c.h.b16 %v1812
        %v1969 = vunpack.c.l.b16 %v1813
        %v1970 = vunpack.c.h.b16 %v1813
        %v1971 = vunpack.c.l.b16 %v1814
        %v1972 = vunpack.c.h.b16 %v1814
        %v1973 = vunpack.c.l.b16 %v1815
        %v1974 = vunpack.c.h.b16 %v1815
        %v1975 = vunpack.c.l.b16 %v1816
        %v1976 = vunpack.c.h.b16 %v1816
        %v1977 = vunpack.c.l.b16 %v1817
        %v1978 = vunpack.c.h.b16 %v1817
        %v1979 = vunpack.c.l.b16 %v1818
        %v1980 = vunpack.c.h.b16 %v1818
        %v1981 = vunpack.c.l.b16 %v1819
        %v1982 = vunpack.c.h.b16 %v1819
        %v1983 = vunpack.c.l.b16 %v1820
        %v1984 = vunpack.c.h.b16 %v1820
        %v1985 = vunpack.c.l.b16 %v1821
        %v1986 = vunpack.c.h.b16 %v1821
        %v1987 = vunpack.c.l.b16 %v1822
        %v1988 = vunpack.c.h.b16 %v1822
        %v1989 = vunpack.c.l.b16 %v1823
        %v1990 = vunpack.c.h.b16 %v1823
        %v1991 = vunpack.c.l.b16 %v1824
        %v1992 = vunpack.c.h.b16 %v1824
        %v1993 = vunpack.c.l.b16 %v1825
        %v1994 = vunpack.c.h.b16 %v1825
        %v1995 = vunpack.c.l.b16 %v1826
        %v1996 = vunpack.c.h.b16 %v1826
        %v1997 = vunpack.c.l.b16 %v1827
        %v1998 = vunpack.c.h.b16 %v1827
        %v1999 = vunpack.c.l.b16 %v1828
        %v2000 = vunpack.c.h.b16 %v1828
        %v2001 = vunpack.c.l.b16 %v1829
        %v2002 = vunpack.c.h.b16 %v1829
        %v2003 = vunpack.c.l.b16 %v1830
        %v2004 = vunpack.c.h.b16 %v1830
        %v2005 = vunpack.c.l.b16 %v1831
        %v2006 = vunpack.c.h.b16 %v1831
        %v2007 = vunpack.c.l.b16 %v1832
        %v2008 = vunpack.c.h.b16 %v1832
        %v2009 = vunpack.c.l.b16 %v1833
        %v2010 = vunpack.c.h.b16 %v1833
        %v2011 = vunpack.c.l.b16 %v1834
        %v2012 = vunpack.c.h.b16 %v1834
        %v2013 = vunpack.c.l.b16 %v1835
        %v2014 = vunpack.c.h.b16 %v1835
        %v2015 = vunpack.c.l.b16 %v1836
        %v2016 = vunpack.c.h.b16 %v1836
        %v2017 = vpack.c.b16 %v1969, %v1953
        %v2018 = vpack.c.b16 %v1970, %v1954
        %v2019 = vpack.c.b16 %v1971, %v1955
        %v2020 = vpack.c.b16 %v1972, %v1956
        %v2021 = vpack.c.b16 %v1973, %v1957
        %v2022 = vpack.c.b16 %v1974, %v1958
        %v2023 = vpack.c.b16 %v1975, %v1959
        %v2024 = vpack.c.b16 %v1976, %v1960
        %v2025 = vpack.c.b16 %v1977, %v1961
        %v2026 = vpack.c.b16 %v1978, %v1962
        %v2027 = vpack.c.b16 %v1979, %v1963
        %v2028 = vpack.c.b16 %v1980, %v1964
        %v2029 = vpack.c.b16 %v1981, %v1965
        %v2030 = vpack.c.b16 %v1982, %v1966
        %v2031 = vpack.c.b16 %v1983, %v1967
        %v2032 = vpack.c.b16 %v1984, %v1968
        %v2033 = vpack.c.b16 %v2001, %v1985
        %v2034 = vpack.c.b16 %v2002, %v1986
        %v2035 = vpack.c.b16 %v2003, %v1987
        %v2036 = vpack.c.b16 %v2004, %v1988
        %v2037 = vpack.c.b16 %v2005, %v1989
        %v2038 = vpack.c.b16 %v2006, %v1990
        %v2039 = vpack.c.b16 %v2007, %v1991
        %v2040 = vpack.c.b16 %v2008, %v1992
        %v2041 = vpack.c.b16 %v2009, %v1993
        %v2042 = vpack.c.b16 %v2010, %v1994
        %v2043 = vpack.c.b16 %v2011, %v1995
        %v2044 = vpack.c.b16 %v2012, %v1996
        %v2045 = vpack.c.b16 %v2013, %v1997
        %v2046 = vpack.c.b16 %v2014, %v1998
        %v2047 = vpack.c.b16 %v2015, %v1999
        %v2048 = vpack.c.b16 %v2016, %v2000
        %v2082 = vsel %vm733, %v1804, 0
        %2084 = vmatprep.subr.bf16.mxu0 %v2018
        %2085 = vmatpush1.bf16.msra.mxu0 %v2017
        %2086 = vmatprep.subr.bf16.mxu0 %v2034
        %2087 = vmatpush1.bf16.msra.mxu0 %v2033
        %2088 = vmatprep.subr.bf16.mxu0 0
        %2089 = vmatpush1.bf16.msra.mxu0 0
        %2090 = vmatprep.subr.bf16.mxu0 0
        %2091 = vmatpush1.bf16.msra.mxu0 0
        %2092 = vmatprep.subr.bf16.mxu0 0
        %2093 = vmatpush1.bf16.msra.mxu0 0
        %2094 = vmatprep.subr.bf16.mxu0 0
        %2095 = vmatpush1.bf16.msra.mxu0 0
        %2096 = vmatprep.subr.bf16.mxu0 0
        %2097 = vmatpush1.bf16.msra.mxu0 0
        %2098 = vmatprep.subr.bf16.mxu0 0
        %2099 = vmatpush1.bf16.msra.mxu0 0
        %2100 = vmatprep.subr.bf16.mxu0 0
        %2101 = vmatpush1.bf16.msra.mxu0 0
        %2102 = vmatprep.subr.bf16.mxu0 0
        %2103 = vmatpush1.bf16.msra.mxu0 0
        %2104 = vmatprep.subr.bf16.mxu0 0
        %2105 = vmatpush1.bf16.msra.mxu0 0
        %2106 = vmatprep.subr.bf16.mxu0 0
        %2107 = vmatpush1.bf16.msra.mxu0 0
        %2108 = vmatprep.subr.bf16.mxu0 0
        %2109 = vmatpush1.bf16.msra.mxu0 0
        %2110 = vmatprep.subr.bf16.mxu0 0
        %2111 = vmatpush1.bf16.msra.mxu0 0
        %2112 = vmatprep.subr.bf16.mxu0 0
        %2113 = vmatpush1.bf16.msra.mxu0 0
        %2114 = vmatprep.subr.bf16.mxu0 0
        %2115 = vmatpush1.bf16.msra.mxu0 0
        %2116 = vmatprep.mubr.bf16.mxu0 0
        %2117 = vmatmul.mubr.bf16.gmra.mrb[0].mxu0 %v2082
        %v2118 = vpop.f32.mrb[0].mxu0
        %v2119 = vadd.f32 %v1844, %v2118
        %v2120 = vpop.f32.mrb[0].mxu0
        %v2121 = vadd.f32 %v1848, %v2120
        %v2122 = vpop.f32.mrb[0].mxu0
        %v2123 = vpop.f32.mrb[0].mxu0
        %2124 = vdwg.mxu0
        %2125 = vmatprep.subr.bf16.mxu0 %v2020
        %2126 = vmatpush1.bf16.msra.mxu0 %v2019
        %2127 = vmatprep.subr.bf16.mxu0 %v2036
        %2128 = vmatpush1.bf16.msra.mxu0 %v2035
        %2129 = vmatprep.subr.bf16.mxu0 0
        %2130 = vmatpush1.bf16.msra.mxu0 0
        %2131 = vmatprep.subr.bf16.mxu0 0
        %2132 = vmatpush1.bf16.msra.mxu0 0
        %2133 = vmatprep.subr.bf16.mxu0 0
        %2134 = vmatpush1.bf16.msra.mxu0 0
        %2135 = vmatprep.subr.bf16.mxu0 0
        %2136 = vmatpush1.bf16.msra.mxu0 0
        %2137 = vmatprep.subr.bf16.mxu0 0
        %2138 = vmatpush1.bf16.msra.mxu0 0
        %2139 = vmatprep.subr.bf16.mxu0 0
        %2140 = vmatpush1.bf16.msra.mxu0 0
        %2141 = vmatprep.subr.bf16.mxu0 0
        %2142 = vmatpush1.bf16.msra.mxu0 0
        %2143 = vmatprep.subr.bf16.mxu0 0
        %2144 = vmatpush1.bf16.msra.mxu0 0
        %2145 = vmatprep.subr.bf16.mxu0 0
        %2146 = vmatpush1.bf16.msra.mxu0 0
        %2147 = vmatprep.subr.bf16.mxu0 0
        %2148 = vmatpush1.bf16.msra.mxu0 0
        %2149 = vmatprep.subr.bf16.mxu0 0
        %2150 = vmatpush1.bf16.msra.mxu0 0
        %2151 = vmatprep.subr.bf16.mxu0 0
        %2152 = vmatpush1.bf16.msra.mxu0 0
        %2153 = vmatprep.subr.bf16.mxu0 0
        %2154 = vmatpush1.bf16.msra.mxu0 0
        %2155 = vmatprep.subr.bf16.mxu0 0
        %2156 = vmatpush1.bf16.msra.mxu0 0
        %2157 = vmatprep.mubr.bf16.mxu0 0
        %2158 = vmatmul.mubr.bf16.gmra.mrb[0].mxu0 %v2082
        %v2159 = vpop.f32.mrb[0].mxu0
        %v2160 = vadd.f32 %v1852, %v2159
        %v2161 = vpop.f32.mrb[0].mxu0
        %v2162 = vadd.f32 %v1856, %v2161
        %v2163 = vpop.f32.mrb[0].mxu0
        %v2164 = vpop.f32.mrb[0].mxu0
        %2165 = vdwg.mxu0
        %2166 = vmatprep.subr.bf16.mxu0 %v2022
        %2167 = vmatpush1.bf16.msra.mxu0 %v2021
        %2168 = vmatprep.subr.bf16.mxu0 %v2038
        %2169 = vmatpush1.bf16.msra.mxu0 %v2037
        %2170 = vmatprep.subr.bf16.mxu0 0
        %2171 = vmatpush1.bf16.msra.mxu0 0
        %2172 = vmatprep.subr.bf16.mxu0 0
        %2173 = vmatpush1.bf16.msra.mxu0 0
        %2174 = vmatprep.subr.bf16.mxu0 0
        %2175 = vmatpush1.bf16.msra.mxu0 0
        %2176 = vmatprep.subr.bf16.mxu0 0
        %2177 = vmatpush1.bf16.msra.mxu0 0
        %2178 = vmatprep.subr.bf16.mxu0 0
        %2179 = vmatpush1.bf16.msra.mxu0 0
        %2180 = vmatprep.subr.bf16.mxu0 0
        %2181 = vmatpush1.bf16.msra.mxu0 0
        %2182 = vmatprep.subr.bf16.mxu0 0
        %2183 = vmatpush1.bf16.msra.mxu0 0
        %2184 = vmatprep.subr.bf16.mxu0 0
        %2185 = vmatpush1.bf16.msra.mxu0 0
        %2186 = vmatprep.subr.bf16.mxu0 0
        %2187 = vmatpush1.bf16.msra.mxu0 0
        %2188 = vmatprep.subr.bf16.mxu0 0
        %2189 = vmatpush1.bf16.msra.mxu0 0
        %2190 = vmatprep.subr.bf16.mxu0 0
        %2191 = vmatpush1.bf16.msra.mxu0 0
        %2192 = vmatprep.subr.bf16.mxu0 0
        %2193 = vmatpush1.bf16.msra.mxu0 0
        %2194 = vmatprep.subr.bf16.mxu0 0
        %2195 = vmatpush1.bf16.msra.mxu0 0
        %2196 = vmatprep.subr.bf16.mxu0 0
        %2197 = vmatpush1.bf16.msra.mxu0 0
        %2198 = vmatprep.mubr.bf16.mxu0 0
        %2199 = vmatmul.mubr.bf16.gmra.mrb[0].mxu0 %v2082
        %v2200 = vpop.f32.mrb[0].mxu0
        %v2201 = vadd.f32 %v1860, %v2200
        %v2202 = vpop.f32.mrb[0].mxu0
        %v2203 = vadd.f32 %v1864, %v2202
        %v2204 = vpop.f32.mrb[0].mxu0
        %v2205 = vpop.f32.mrb[0].mxu0
        %2206 = vdwg.mxu0
        %2207 = vmatprep.subr.bf16.mxu0 %v2024
        %2208 = vmatpush1.bf16.msra.mxu0 %v2023
        %2209 = vmatprep.subr.bf16.mxu0 %v2040
        %2210 = vmatpush1.bf16.msra.mxu0 %v2039
        %2211 = vmatprep.subr.bf16.mxu0 0
        %2212 = vmatpush1.bf16.msra.mxu0 0
        %2213 = vmatprep.subr.bf16.mxu0 0
        %2214 = vmatpush1.bf16.msra.mxu0 0
        %2215 = vmatprep.subr.bf16.mxu0 0
        %2216 = vmatpush1.bf16.msra.mxu0 0
        %2217 = vmatprep.subr.bf16.mxu0 0
        %2218 = vmatpush1.bf16.msra.mxu0 0
        %2219 = vmatprep.subr.bf16.mxu0 0
        %2220 = vmatpush1.bf16.msra.mxu0 0
        %2221 = vmatprep.subr.bf16.mxu0 0
        %2222 = vmatpush1.bf16.msra.mxu0 0
        %2223 = vmatprep.subr.bf16.mxu0 0
        %2224 = vmatpush1.bf16.msra.mxu0 0
        %2225 = vmatprep.subr.bf16.mxu0 0
        %2226 = vmatpush1.bf16.msra.mxu0 0
        %2227 = vmatprep.subr.bf16.mxu0 0
        %2228 = vmatpush1.bf16.msra.mxu0 0
        %2229 = vmatprep.subr.bf16.mxu0 0
        %2230 = vmatpush1.bf16.msra.mxu0 0
        %2231 = vmatprep.subr.bf16.mxu0 0
        %2232 = vmatpush1.bf16.msra.mxu0 0
        %2233 = vmatprep.subr.bf16.mxu0 0
        %2234 = vmatpush1.bf16.msra.mxu0 0
        %2235 = vmatprep.subr.bf16.mxu0 0
        %2236 = vmatpush1.bf16.msra.mxu0 0
        %2237 = vmatprep.subr.bf16.mxu0 0
        %2238 = vmatpush1.bf16.msra.mxu0 0
        %2239 = vmatprep.mubr.bf16.mxu0 0
        %2240 = vmatmul.mubr.bf16.gmra.mrb[0].mxu0 %v2082
        %v2241 = vpop.f32.mrb[0].mxu0
        %v2242 = vadd.f32 %v1868, %v2241
        %v2243 = vpop.f32.mrb[0].mxu0
        %v2244 = vadd.f32 %v1872, %v2243
        %v2245 = vpop.f32.mrb[0].mxu0
        %v2246 = vpop.f32.mrb[0].mxu0
        %2247 = vdwg.mxu0
        %2248 = vmatprep.subr.bf16.mxu0 %v2026
        %2249 = vmatpush1.bf16.msra.mxu0 %v2025
        %2250 = vmatprep.subr.bf16.mxu0 %v2042
        %2251 = vmatpush1.bf16.msra.mxu0 %v2041
        %2252 = vmatprep.subr.bf16.mxu0 0
        %2253 = vmatpush1.bf16.msra.mxu0 0
        %2254 = vmatprep.subr.bf16.mxu0 0
        %2255 = vmatpush1.bf16.msra.mxu0 0
        %2256 = vmatprep.subr.bf16.mxu0 0
        %2257 = vmatpush1.bf16.msra.mxu0 0
        %2258 = vmatprep.subr.bf16.mxu0 0
        %2259 = vmatpush1.bf16.msra.mxu0 0
        %2260 = vmatprep.subr.bf16.mxu0 0
        %2261 = vmatpush1.bf16.msra.mxu0 0
        %2262 = vmatprep.subr.bf16.mxu0 0
        %2263 = vmatpush1.bf16.msra.mxu0 0
        %2264 = vmatprep.subr.bf16.mxu0 0
        %2265 = vmatpush1.bf16.msra.mxu0 0
        %2266 = vmatprep.subr.bf16.mxu0 0
        %2267 = vmatpush1.bf16.msra.mxu0 0
        %2268 = vmatprep.subr.bf16.mxu0 0
        %2269 = vmatpush1.bf16.msra.mxu0 0
        %2270 = vmatprep.subr.bf16.mxu0 0
        %2271 = vmatpush1.bf16.msra.mxu0 0
        %2272 = vmatprep.subr.bf16.mxu0 0
        %2273 = vmatpush1.bf16.msra.mxu0 0
        %2274 = vmatprep.subr.bf16.mxu0 0
        %2275 = vmatpush1.bf16.msra.mxu0 0
        %2276 = vmatprep.subr.bf16.mxu0 0
        %2277 = vmatpush1.bf16.msra.mxu0 0
        %2278 = vmatprep.subr.bf16.mxu0 0
        %2279 = vmatpush1.bf16.msra.mxu0 0
        %2280 = vmatprep.mubr.bf16.mxu0 0
        %2281 = vmatmul.mubr.bf16.gmra.mrb[0].mxu0 %v2082
        %v2282 = vpop.f32.mrb[0].mxu0
        %v2283 = vadd.f32 %v1876, %v2282
        %v2284 = vpop.f32.mrb[0].mxu0
        %v2285 = vadd.f32 %v1880, %v2284
        %v2286 = vpop.f32.mrb[0].mxu0
        %v2287 = vpop.f32.mrb[0].mxu0
        %2288 = vdwg.mxu0
        %2289 = vmatprep.subr.bf16.mxu0 %v2028
        %2290 = vmatpush1.bf16.msra.mxu0 %v2027
        %2291 = vmatprep.subr.bf16.mxu0 %v2044
        %2292 = vmatpush1.bf16.msra.mxu0 %v2043
        %2293 = vmatprep.subr.bf16.mxu0 0
        %2294 = vmatpush1.bf16.msra.mxu0 0
        %2295 = vmatprep.subr.bf16.mxu0 0
        %2296 = vmatpush1.bf16.msra.mxu0 0
        %2297 = vmatprep.subr.bf16.mxu0 0
        %2298 = vmatpush1.bf16.msra.mxu0 0
        %2299 = vmatprep.subr.bf16.mxu0 0
        %2300 = vmatpush1.bf16.msra.mxu0 0
        %2301 = vmatprep.subr.bf16.mxu0 0
        %2302 = vmatpush1.bf16.msra.mxu0 0
        %2303 = vmatprep.subr.bf16.mxu0 0
        %2304 = vmatpush1.bf16.msra.mxu0 0
        %2305 = vmatprep.subr.bf16.mxu0 0
        %2306 = vmatpush1.bf16.msra.mxu0 0
        %2307 = vmatprep.subr.bf16.mxu0 0
        %2308 = vmatpush1.bf16.msra.mxu0 0
        %2309 = vmatprep.subr.bf16.mxu0 0
        %2310 = vmatpush1.bf16.msra.mxu0 0
        %2311 = vmatprep.subr.bf16.mxu0 0
        %2312 = vmatpush1.bf16.msra.mxu0 0
        %2313 = vmatprep.subr.bf16.mxu0 0
        %2314 = vmatpush1.bf16.msra.mxu0 0
        %2315 = vmatprep.subr.bf16.mxu0 0
        %2316 = vmatpush1.bf16.msra.mxu0 0
        %2317 = vmatprep.subr.bf16.mxu0 0
        %2318 = vmatpush1.bf16.msra.mxu0 0
        %2319 = vmatprep.subr.bf16.mxu0 0
        %2320 = vmatpush1.bf16.msra.mxu0 0
        %2321 = vmatprep.mubr.bf16.mxu0 0
        %2322 = vmatmul.mubr.bf16.gmra.mrb[0].mxu0 %v2082
        %v2323 = vpop.f32.mrb[0].mxu0
        %v2324 = vadd.f32 %v1884, %v2323
        %v2325 = vpop.f32.mrb[0].mxu0
        %v2326 = vadd.f32 %v1888, %v2325
        %v2327 = vpop.f32.mrb[0].mxu0
        %v2328 = vpop.f32.mrb[0].mxu0
        %2329 = vdwg.mxu0
        %2330 = vmatprep.subr.bf16.mxu0 %v2030
        %2331 = vmatpush1.bf16.msra.mxu0 %v2029
        %2332 = vmatprep.subr.bf16.mxu0 %v2046
        %2333 = vmatpush1.bf16.msra.mxu0 %v2045
        %2334 = vmatprep.subr.bf16.mxu0 0
        %2335 = vmatpush1.bf16.msra.mxu0 0
        %2336 = vmatprep.subr.bf16.mxu0 0
        %2337 = vmatpush1.bf16.msra.mxu0 0
        %2338 = vmatprep.subr.bf16.mxu0 0
        %2339 = vmatpush1.bf16.msra.mxu0 0
        %2340 = vmatprep.subr.bf16.mxu0 0
        %2341 = vmatpush1.bf16.msra.mxu0 0
        %2342 = vmatprep.subr.bf16.mxu0 0
        %2343 = vmatpush1.bf16.msra.mxu0 0
        %2344 = vmatprep.subr.bf16.mxu0 0
        %2345 = vmatpush1.bf16.msra.mxu0 0
        %2346 = vmatprep.subr.bf16.mxu0 0
        %2347 = vmatpush1.bf16.msra.mxu0 0
        %2348 = vmatprep.subr.bf16.mxu0 0
        %2349 = vmatpush1.bf16.msra.mxu0 0
        %2350 = vmatprep.subr.bf16.mxu0 0
        %2351 = vmatpush1.bf16.msra.mxu0 0
        %2352 = vmatprep.subr.bf16.mxu0 0
        %2353 = vmatpush1.bf16.msra.mxu0 0
        %2354 = vmatprep.subr.bf16.mxu0 0
        %2355 = vmatpush1.bf16.msra.mxu0 0
        %2356 = vmatprep.subr.bf16.mxu0 0
        %2357 = vmatpush1.bf16.msra.mxu0 0
        %2358 = vmatprep.subr.bf16.mxu0 0
        %2359 = vmatpush1.bf16.msra.mxu0 0
        %2360 = vmatprep.subr.bf16.mxu0 0
        %2361 = vmatpush1.bf16.msra.mxu0 0
        %2362 = vmatprep.mubr.bf16.mxu0 0
        %2363 = vmatmul.mubr.bf16.gmra.mrb[0].mxu0 %v2082
        %v2364 = vpop.f32.mrb[0].mxu0
        %v2365 = vadd.f32 %v1892, %v2364
        %v2366 = vpop.f32.mrb[0].mxu0
        %v2367 = vadd.f32 %v1896, %v2366
        %v2368 = vpop.f32.mrb[0].mxu0
        %v2369 = vpop.f32.mrb[0].mxu0
        %2370 = vdwg.mxu0
        %2371 = vmatprep.subr.bf16.mxu0 %v2032
        %2372 = vmatpush1.bf16.msra.mxu0 %v2031
        %2373 = vmatprep.subr.bf16.mxu0 %v2048
        %2374 = vmatpush1.bf16.msra.mxu0 %v2047
        %2375 = vmatprep.subr.bf16.mxu0 0
        %2376 = vmatpush1.bf16.msra.mxu0 0
        %2377 = vmatprep.subr.bf16.mxu0 0
        %2378 = vmatpush1.bf16.msra.mxu0 0
        %2379 = vmatprep.subr.bf16.mxu0 0
        %2380 = vmatpush1.bf16.msra.mxu0 0
        %2381 = vmatprep.subr.bf16.mxu0 0
        %2382 = vmatpush1.bf16.msra.mxu0 0
        %2383 = vmatprep.subr.bf16.mxu0 0
        %2384 = vmatpush1.bf16.msra.mxu0 0
        %2385 = vmatprep.subr.bf16.mxu0 0
        %2386 = vmatpush1.bf16.msra.mxu0 0
        %2387 = vmatprep.subr.bf16.mxu0 0
        %2388 = vmatpush1.bf16.msra.mxu0 0
        %2389 = vmatprep.subr.bf16.mxu0 0
        %2390 = vmatpush1.bf16.msra.mxu0 0
        %2391 = vmatprep.subr.bf16.mxu0 0
        %2392 = vmatpush1.bf16.msra.mxu0 0
        %2393 = vmatprep.subr.bf16.mxu0 0
        %2394 = vmatpush1.bf16.msra.mxu0 0
        %2395 = vmatprep.subr.bf16.mxu0 0
        %2396 = vmatpush1.bf16.msra.mxu0 0
        %2397 = vmatprep.subr.bf16.mxu0 0
        %2398 = vmatpush1.bf16.msra.mxu0 0
        %2399 = vmatprep.subr.bf16.mxu0 0
        %2400 = vmatpush1.bf16.msra.mxu0 0
        %2401 = vmatprep.subr.bf16.mxu0 0
        %2402 = vmatpush1.bf16.msra.mxu0 0
        %2403 = vmatprep.mubr.bf16.mxu0 0
        %2404 = vmatmul.mubr.bf16.gmra.mrb[0].mxu0 %v2082
        %v2405 = vpop.f32.mrb[0].mxu0
        %v2406 = vadd.f32 %v1900, %v2405
        %v2407 = vpop.f32.mrb[0].mxu0
        %v2408 = vadd.f32 %v1904, %v2407
        %v2409 = vpop.f32.mrb[0].mxu0
        %v2410 = vpop.f32.mrb[0].mxu0
        %2411 = vdwg.mxu0
        %v2412 = vmax.f32 %v2119, 0.0
        %v2413 = vmax.f32 %v2121, 0.0
        %v2414 = vmax.f32 %v2160, 0.0
        %v2415 = vmax.f32 %v2162, 0.0
        %v2416 = vmax.f32 %v2201, 0.0
        %v2417 = vmax.f32 %v2203, 0.0
        %v2418 = vmax.f32 %v2242, 0.0
        %v2419 = vmax.f32 %v2244, 0.0
        %v2420 = vmax.f32 %v2283, 0.0
        %v2421 = vmax.f32 %v2285, 0.0
        %v2422 = vmax.f32 %v2324, 0.0
        %v2423 = vmax.f32 %v2326, 0.0
        %v2424 = vmax.f32 %v2365, 0.0
        %v2425 = vmax.f32 %v2367, 0.0
        %v2426 = vmax.f32 %v2406, 0.0
        %v2427 = vmax.f32 %v2408, 0.0
        %v2428 = vpack.c.bf16 %v2412, %v2412
        %v2429 = vpack.c.bf16 %v2413, %v2413
        %v2430 = vpack.c.bf16 %v2414, %v2414
        %v2431 = vpack.c.bf16 %v2415, %v2415
        %v2432 = vpack.c.bf16 %v2416, %v2416
        %v2433 = vpack.c.bf16 %v2417, %v2417
        %v2434 = vpack.c.bf16 %v2418, %v2418
        %v2435 = vpack.c.bf16 %v2419, %v2419
        %v2436 = vpack.c.bf16 %v2420, %v2420
        %v2437 = vpack.c.bf16 %v2421, %v2421
        %v2438 = vpack.c.bf16 %v2422, %v2422
        %v2439 = vpack.c.bf16 %v2423, %v2423
        %v2440 = vpack.c.bf16 %v2424, %v2424
        %v2441 = vpack.c.bf16 %v2425, %v2425
        %v2442 = vpack.c.bf16 %v2426, %v2426
        %v2443 = vpack.c.bf16 %v2427, %v2427
        %v2444 = vld [vmem:[%s10] sm:$0xf]
        %v2445 = vld [vmem:[%s10 + $0x4] sm:$0xf]
        %v2446 = vld [vmem:[%s10 + $0x8] sm:$0xf]
        %v2447 = vld [vmem:[%s10 + $0xc] sm:$0xf]
        %v2448 = vld [vmem:[%s10 + $0x10] sm:$0xf]
        %v2449 = vld [vmem:[%s10 + $0x14] sm:$0xf]
        %v2450 = vld [vmem:[%s10 + $0x18] sm:$0xf]
        %v2451 = vld [vmem:[%s10 + $0x1c] sm:$0xf]
        %v2452 = vld [vmem:[%s10 + $0x20] sm:$0xf]
        %v2453 = vld [vmem:[%s10 + $0x24] sm:$0xf]
        %v2454 = vld [vmem:[%s10 + $0x28] sm:$0xf]
        %v2455 = vld [vmem:[%s10 + $0x2c] sm:$0xf]
        %v2456 = vld [vmem:[%s10 + $0x30] sm:$0xf]
        %v2457 = vld [vmem:[%s10 + $0x34] sm:$0xf]
        %v2458 = vld [vmem:[%s10 + $0x38] sm:$0xf]
        %v2459 = vld [vmem:[%s10 + $0x3c] sm:$0xf]
        %v2460 = vld [vmem:[%s10 + $0x40] sm:$0xf]
        %v2461 = vld [vmem:[%s10 + $0x44] sm:$0xf]
        %v2462 = vld [vmem:[%s10 + $0x48] sm:$0xf]
        %v2463 = vld [vmem:[%s10 + $0x4c] sm:$0xf]
        %v2464 = vld [vmem:[%s10 + $0x50] sm:$0xf]
        %v2465 = vld [vmem:[%s10 + $0x54] sm:$0xf]
        %v2466 = vld [vmem:[%s10 + $0x58] sm:$0xf]
        %v2467 = vld [vmem:[%s10 + $0x5c] sm:$0xf]
        %v2468 = vld [vmem:[%s10 + $0x60] sm:$0xf]
        %v2469 = vld [vmem:[%s10 + $0x64] sm:$0xf]
        %v2470 = vld [vmem:[%s10 + $0x68] sm:$0xf]
        %v2471 = vld [vmem:[%s10 + $0x6c] sm:$0xf]
        %v2472 = vld [vmem:[%s10 + $0x70] sm:$0xf]
        %v2473 = vld [vmem:[%s10 + $0x74] sm:$0xf]
        %v2474 = vld [vmem:[%s10 + $0x78] sm:$0xf]
        %v2475 = vld [vmem:[%s10 + $0x7c] sm:$0xf]
        %v2476 = vld [vmem:[%s10 + $0x80] sm:$0xf]
        %v2477 = vld [vmem:[%s10 + $0x84] sm:$0xf]
        %v2478 = vld [vmem:[%s10 + $0x88] sm:$0xf]
        %v2479 = vld [vmem:[%s10 + $0x8c] sm:$0xf]
        %v2480 = vld [vmem:[%s10 + $0x90] sm:$0xf]
        %v2481 = vld [vmem:[%s10 + $0x94] sm:$0xf]
        %v2482 = vld [vmem:[%s10 + $0x98] sm:$0xf]
        %v2483 = vld [vmem:[%s10 + $0x9c] sm:$0xf]
        %v2484 = vld [vmem:[%s10 + $0xa0] sm:$0xf]
        %v2485 = vld [vmem:[%s10 + $0xa4] sm:$0xf]
        %v2486 = vld [vmem:[%s10 + $0xa8] sm:$0xf]
        %v2487 = vld [vmem:[%s10 + $0xac] sm:$0xf]
        %v2488 = vld [vmem:[%s10 + $0xb0] sm:$0xf]
        %v2489 = vld [vmem:[%s10 + $0xb4] sm:$0xf]
        %v2490 = vld [vmem:[%s10 + $0xb8] sm:$0xf]
        %v2491 = vld [vmem:[%s10 + $0xbc] sm:$0xf]
        %v2492 = vld [vmem:[%s10 + $0xc0] sm:$0xf]
        %v2493 = vld [vmem:[%s10 + $0xc4] sm:$0xf]
        %v2494 = vld [vmem:[%s10 + $0xc8] sm:$0xf]
        %v2495 = vld [vmem:[%s10 + $0xcc] sm:$0xf]
        %v2496 = vld [vmem:[%s10 + $0xd0] sm:$0xf]
        %v2497 = vld [vmem:[%s10 + $0xd4] sm:$0xf]
        %v2498 = vld [vmem:[%s10 + $0xd8] sm:$0xf]
        %v2499 = vld [vmem:[%s10 + $0xdc] sm:$0xf]
        %v2500 = vld [vmem:[%s10 + $0xe0] sm:$0xf]
        %v2501 = vld [vmem:[%s10 + $0xe4] sm:$0xf]
        %v2502 = vld [vmem:[%s10 + $0xe8] sm:$0xf]
        %v2503 = vld [vmem:[%s10 + $0xec] sm:$0xf]
        %v2504 = vld [vmem:[%s10 + $0xf0] sm:$0xf]
        %v2505 = vld [vmem:[%s10 + $0xf4] sm:$0xf]
        %v2506 = vld [vmem:[%s10 + $0xf8] sm:$0xf]
        %v2507 = vld [vmem:[%s10 + $0xfc] sm:$0xf]
        %v2508 = vld [vmem:[%s10 + $0x100] sm:$0xf]
        %v2509 = vld [vmem:[%s10 + $0x104] sm:$0xf]
        %v2510 = vld [vmem:[%s10 + $0x108] sm:$0xf]
        %v2511 = vld [vmem:[%s10 + $0x10c] sm:$0xf]
        %v2512 = vld [vmem:[%s10 + $0x110] sm:$0xf]
        %v2513 = vld [vmem:[%s10 + $0x114] sm:$0xf]
        %v2514 = vld [vmem:[%s10 + $0x118] sm:$0xf]
        %v2515 = vld [vmem:[%s10 + $0x11c] sm:$0xf]
        %v2516 = vld [vmem:[%s10 + $0x120] sm:$0xf]
        %v2517 = vld [vmem:[%s10 + $0x124] sm:$0xf]
        %v2518 = vld [vmem:[%s10 + $0x128] sm:$0xf]
        %v2519 = vld [vmem:[%s10 + $0x12c] sm:$0xf]
        %v2520 = vld [vmem:[%s10 + $0x130] sm:$0xf]
        %v2521 = vld [vmem:[%s10 + $0x134] sm:$0xf]
        %v2522 = vld [vmem:[%s10 + $0x138] sm:$0xf]
        %v2523 = vld [vmem:[%s10 + $0x13c] sm:$0xf]
        %v2524 = vld [vmem:[%s10 + $0x140] sm:$0xf]
        %v2525 = vld [vmem:[%s10 + $0x144] sm:$0xf]
        %v2526 = vld [vmem:[%s10 + $0x148] sm:$0xf]
        %v2527 = vld [vmem:[%s10 + $0x14c] sm:$0xf]
        %v2528 = vld [vmem:[%s10 + $0x150] sm:$0xf]
        %v2529 = vld [vmem:[%s10 + $0x154] sm:$0xf]
        %v2530 = vld [vmem:[%s10 + $0x158] sm:$0xf]
        %v2531 = vld [vmem:[%s10 + $0x15c] sm:$0xf]
        %v2532 = vld [vmem:[%s10 + $0x160] sm:$0xf]
        %v2533 = vld [vmem:[%s10 + $0x164] sm:$0xf]
        %v2534 = vld [vmem:[%s10 + $0x168] sm:$0xf]
        %v2535 = vld [vmem:[%s10 + $0x16c] sm:$0xf]
        %v2536 = vld [vmem:[%s10 + $0x170] sm:$0xf]
        %v2537 = vld [vmem:[%s10 + $0x174] sm:$0xf]
        %v2538 = vld [vmem:[%s10 + $0x178] sm:$0xf]
        %v2539 = vld [vmem:[%s10 + $0x17c] sm:$0xf]
        %v2540 = vld [vmem:[%s10 + $0x180] sm:$0xf]
        %v2541 = vld [vmem:[%s10 + $0x184] sm:$0xf]
        %v2542 = vld [vmem:[%s10 + $0x188] sm:$0xf]
        %v2543 = vld [vmem:[%s10 + $0x18c] sm:$0xf]
        %v2544 = vld [vmem:[%s10 + $0x190] sm:$0xf]
        %v2545 = vld [vmem:[%s10 + $0x194] sm:$0xf]
        %v2546 = vld [vmem:[%s10 + $0x198] sm:$0xf]
        %v2547 = vld [vmem:[%s10 + $0x19c] sm:$0xf]
        %v2548 = vld [vmem:[%s10 + $0x1a0] sm:$0xf]
        %v2549 = vld [vmem:[%s10 + $0x1a4] sm:$0xf]
        %v2550 = vld [vmem:[%s10 + $0x1a8] sm:$0xf]
        %v2551 = vld [vmem:[%s10 + $0x1ac] sm:$0xf]
        %v2552 = vld [vmem:[%s10 + $0x1b0] sm:$0xf]
        %v2553 = vld [vmem:[%s10 + $0x1b4] sm:$0xf]
        %v2554 = vld [vmem:[%s10 + $0x1b8] sm:$0xf]
        %v2555 = vld [vmem:[%s10 + $0x1bc] sm:$0xf]
        %v2556 = vld [vmem:[%s10 + $0x1c0] sm:$0xf]
        %v2557 = vld [vmem:[%s10 + $0x1c4] sm:$0xf]
        %v2558 = vld [vmem:[%s10 + $0x1c8] sm:$0xf]
        %v2559 = vld [vmem:[%s10 + $0x1cc] sm:$0xf]
        %v2560 = vld [vmem:[%s10 + $0x1d0] sm:$0xf]
        %v2561 = vld [vmem:[%s10 + $0x1d4] sm:$0xf]
        %v2562 = vld [vmem:[%s10 + $0x1d8] sm:$0xf]
        %v2563 = vld [vmem:[%s10 + $0x1dc] sm:$0xf]
        %v2564 = vld [vmem:[%s10 + $0x1e0] sm:$0xf]
        %v2565 = vld [vmem:[%s10 + $0x1e4] sm:$0xf]
        %v2566 = vld [vmem:[%s10 + $0x1e8] sm:$0xf]
        %v2567 = vld [vmem:[%s10 + $0x1ec] sm:$0xf]
        %v2568 = vld [vmem:[%s10 + $0x1f0] sm:$0xf]
        %v2569 = vld [vmem:[%s10 + $0x1f4] sm:$0xf]
        %v2570 = vld [vmem:[%s10 + $0x1f8] sm:$0xf]
        %v2571 = vld [vmem:[%s10 + $0x1fc] sm:$0xf]
        %v2572 = vld [vmem:[%s10 + $0x200] sm:$0xf]
        %v2573 = vld [vmem:[%s10 + $0x204] sm:$0xf]
        %v2574 = vld [vmem:[%s10 + $0x208] sm:$0xf]
        %v2575 = vld [vmem:[%s10 + $0x20c] sm:$0xf]
        %v2576 = vld [vmem:[%s10 + $0x210] sm:$0xf]
        %v2577 = vld [vmem:[%s10 + $0x214] sm:$0xf]
        %v2578 = vld [vmem:[%s10 + $0x218] sm:$0xf]
        %v2579 = vld [vmem:[%s10 + $0x21c] sm:$0xf]
        %v2580 = vld [vmem:[%s10 + $0x220] sm:$0xf]
        %v2581 = vld [vmem:[%s10 + $0x224] sm:$0xf]
        %v2582 = vld [vmem:[%s10 + $0x228] sm:$0xf]
        %v2583 = vld [vmem:[%s10 + $0x22c] sm:$0xf]
        %v2584 = vld [vmem:[%s10 + $0x230] sm:$0xf]
        %v2585 = vld [vmem:[%s10 + $0x234] sm:$0xf]
        %v2586 = vld [vmem:[%s10 + $0x238] sm:$0xf]
        %v2587 = vld [vmem:[%s10 + $0x23c] sm:$0xf]
        %v2588 = vld [vmem:[%s10 + $0x240] sm:$0xf]
        %v2589 = vld [vmem:[%s10 + $0x244] sm:$0xf]
        %v2590 = vld [vmem:[%s10 + $0x248] sm:$0xf]
        %v2591 = vld [vmem:[%s10 + $0x24c] sm:$0xf]
        %v2592 = vld [vmem:[%s10 + $0x250] sm:$0xf]
        %v2593 = vld [vmem:[%s10 + $0x254] sm:$0xf]
        %v2594 = vld [vmem:[%s10 + $0x258] sm:$0xf]
        %v2595 = vld [vmem:[%s10 + $0x25c] sm:$0xf]
        %v2596 = vld [vmem:[%s10 + $0x260] sm:$0xf]
        %v2597 = vld [vmem:[%s10 + $0x264] sm:$0xf]
        %v2598 = vld [vmem:[%s10 + $0x268] sm:$0xf]
        %v2599 = vld [vmem:[%s10 + $0x26c] sm:$0xf]
        %v2600 = vld [vmem:[%s10 + $0x270] sm:$0xf]
        %v2601 = vld [vmem:[%s10 + $0x274] sm:$0xf]
        %v2602 = vld [vmem:[%s10 + $0x278] sm:$0xf]
        %v2603 = vld [vmem:[%s10 + $0x27c] sm:$0xf]
        %v2604 = vld [vmem:[%s10 + $0x280] sm:$0xf]
        %v2605 = vld [vmem:[%s10 + $0x284] sm:$0xf]
        %v2606 = vld [vmem:[%s10 + $0x288] sm:$0xf]
        %v2607 = vld [vmem:[%s10 + $0x28c] sm:$0xf]
        %v2608 = vld [vmem:[%s10 + $0x290] sm:$0xf]
        %v2609 = vld [vmem:[%s10 + $0x294] sm:$0xf]
        %v2610 = vld [vmem:[%s10 + $0x298] sm:$0xf]
        %v2611 = vld [vmem:[%s10 + $0x29c] sm:$0xf]
        %v2612 = vld [vmem:[%s10 + $0x2a0] sm:$0xf]
        %v2613 = vld [vmem:[%s10 + $0x2a4] sm:$0xf]
        %v2614 = vld [vmem:[%s10 + $0x2a8] sm:$0xf]
        %v2615 = vld [vmem:[%s10 + $0x2ac] sm:$0xf]
        %v2616 = vld [vmem:[%s10 + $0x2b0] sm:$0xf]
        %v2617 = vld [vmem:[%s10 + $0x2b4] sm:$0xf]
        %v2618 = vld [vmem:[%s10 + $0x2b8] sm:$0xf]
        %v2619 = vld [vmem:[%s10 + $0x2bc] sm:$0xf]
        %v2620 = vld [vmem:[%s10 + $0x2c0] sm:$0xf]
        %v2621 = vld [vmem:[%s10 + $0x2c4] sm:$0xf]
        %v2622 = vld [vmem:[%s10 + $0x2c8] sm:$0xf]
        %v2623 = vld [vmem:[%s10 + $0x2cc] sm:$0xf]
        %v2624 = vld [vmem:[%s10 + $0x2d0] sm:$0xf]
        %v2625 = vld [vmem:[%s10 + $0x2d4] sm:$0xf]
        %v2626 = vld [vmem:[%s10 + $0x2d8] sm:$0xf]
        %v2627 = vld [vmem:[%s10 + $0x2dc] sm:$0xf]
        %v2628 = vld [vmem:[%s10 + $0x2e0] sm:$0xf]
        %v2629 = vld [vmem:[%s10 + $0x2e4] sm:$0xf]
        %v2630 = vld [vmem:[%s10 + $0x2e8] sm:$0xf]
        %v2631 = vld [vmem:[%s10 + $0x2ec] sm:$0xf]
        %v2632 = vld [vmem:[%s10 + $0x2f0] sm:$0xf]
        %v2633 = vld [vmem:[%s10 + $0x2f4] sm:$0xf]
        %v2634 = vld [vmem:[%s10 + $0x2f8] sm:$0xf]
        %v2635 = vld [vmem:[%s10 + $0x2fc] sm:$0xf]
        %v2636 = vld [vmem:[%s10 + $0x300] sm:$0xf]
        %v2637 = vld [vmem:[%s10 + $0x304] sm:$0xf]
        %v2638 = vld [vmem:[%s10 + $0x308] sm:$0xf]
        %v2639 = vld [vmem:[%s10 + $0x30c] sm:$0xf]
        %v2640 = vld [vmem:[%s10 + $0x310] sm:$0xf]
        %v2641 = vld [vmem:[%s10 + $0x314] sm:$0xf]
        %v2642 = vld [vmem:[%s10 + $0x318] sm:$0xf]
        %v2643 = vld [vmem:[%s10 + $0x31c] sm:$0xf]
        %v2644 = vld [vmem:[%s10 + $0x320] sm:$0xf]
        %v2645 = vld [vmem:[%s10 + $0x324] sm:$0xf]
        %v2646 = vld [vmem:[%s10 + $0x328] sm:$0xf]
        %v2647 = vld [vmem:[%s10 + $0x32c] sm:$0xf]
        %v2648 = vld [vmem:[%s10 + $0x330] sm:$0xf]
        %v2649 = vld [vmem:[%s10 + $0x334] sm:$0xf]
        %v2650 = vld [vmem:[%s10 + $0x338] sm:$0xf]
        %v2651 = vld [vmem:[%s10 + $0x33c] sm:$0xf]
        %v2652 = vld [vmem:[%s10 + $0x340] sm:$0xf]
        %v2653 = vld [vmem:[%s10 + $0x344] sm:$0xf]
        %v2654 = vld [vmem:[%s10 + $0x348] sm:$0xf]
        %v2655 = vld [vmem:[%s10 + $0x34c] sm:$0xf]
        %v2656 = vld [vmem:[%s10 + $0x350] sm:$0xf]
        %v2657 = vld [vmem:[%s10 + $0x354] sm:$0xf]
        %v2658 = vld [vmem:[%s10 + $0x358] sm:$0xf]
        %v2659 = vld [vmem:[%s10 + $0x35c] sm:$0xf]
        %v2660 = vld [vmem:[%s10 + $0x360] sm:$0xf]
        %v2661 = vld [vmem:[%s10 + $0x364] sm:$0xf]
        %v2662 = vld [vmem:[%s10 + $0x368] sm:$0xf]
        %v2663 = vld [vmem:[%s10 + $0x36c] sm:$0xf]
        %v2664 = vld [vmem:[%s10 + $0x370] sm:$0xf]
        %v2665 = vld [vmem:[%s10 + $0x374] sm:$0xf]
        %v2666 = vld [vmem:[%s10 + $0x378] sm:$0xf]
        %v2667 = vld [vmem:[%s10 + $0x37c] sm:$0xf]
        %v2668 = vld [vmem:[%s10 + $0x380] sm:$0xf]
        %v2669 = vld [vmem:[%s10 + $0x384] sm:$0xf]
        %v2670 = vld [vmem:[%s10 + $0x388] sm:$0xf]
        %v2671 = vld [vmem:[%s10 + $0x38c] sm:$0xf]
        %v2672 = vld [vmem:[%s10 + $0x390] sm:$0xf]
        %v2673 = vld [vmem:[%s10 + $0x394] sm:$0xf]
        %v2674 = vld [vmem:[%s10 + $0x398] sm:$0xf]
        %v2675 = vld [vmem:[%s10 + $0x39c] sm:$0xf]
        %v2676 = vld [vmem:[%s10 + $0x3a0] sm:$0xf]
        %v2677 = vld [vmem:[%s10 + $0x3a4] sm:$0xf]
        %v2678 = vld [vmem:[%s10 + $0x3a8] sm:$0xf]
        %v2679 = vld [vmem:[%s10 + $0x3ac] sm:$0xf]
        %v2680 = vld [vmem:[%s10 + $0x3b0] sm:$0xf]
        %v2681 = vld [vmem:[%s10 + $0x3b4] sm:$0xf]
        %v2682 = vld [vmem:[%s10 + $0x3b8] sm:$0xf]
        %v2683 = vld [vmem:[%s10 + $0x3bc] sm:$0xf]
        %v2684 = vld [vmem:[%s10 + $0x3c0] sm:$0xf]
        %v2685 = vld [vmem:[%s10 + $0x3c4] sm:$0xf]
        %v2686 = vld [vmem:[%s10 + $0x3c8] sm:$0xf]
        %v2687 = vld [vmem:[%s10 + $0x3cc] sm:$0xf]
        %v2688 = vld [vmem:[%s10 + $0x3d0] sm:$0xf]
        %v2689 = vld [vmem:[%s10 + $0x3d4] sm:$0xf]
        %v2690 = vld [vmem:[%s10 + $0x3d8] sm:$0xf]
        %v2691 = vld [vmem:[%s10 + $0x3dc] sm:$0xf]
        %v2692 = vld [vmem:[%s10 + $0x3e0] sm:$0xf]
        %v2693 = vld [vmem:[%s10 + $0x3e4] sm:$0xf]
        %v2694 = vld [vmem:[%s10 + $0x3e8] sm:$0xf]
        %v2695 = vld [vmem:[%s10 + $0x3ec] sm:$0xf]
        %v2696 = vld [vmem:[%s10 + $0x3f0] sm:$0xf]
        %v2697 = vld [vmem:[%s10 + $0x3f4] sm:$0xf]
        %v2698 = vld [vmem:[%s10 + $0x3f8] sm:$0xf]
        %v2699 = vld [vmem:[%s10 + $0x3fc] sm:$0xf]
        %v2700 = vlaneseq
        %v2701 = vshrl.u32 %v2700, 7
        %v2702 = vsub.s32 0, %v2701
        %v2703 = vrot.slane %v810, %v2702
        %v2960 = vunpack.c.l.b16 %v2444
        %v2961 = vunpack.c.l.b16 %v2445
        %v2962 = vunpack.c.l.b16 %v2446
        %v2963 = vunpack.c.l.b16 %v2447
        %v2964 = vunpack.c.l.b16 %v2448
        %v2965 = vunpack.c.l.b16 %v2449
        %v2966 = vunpack.c.l.b16 %v2450
        %v2967 = vunpack.c.l.b16 %v2451
        %v2968 = vunpack.c.l.b16 %v2452
        %v2969 = vunpack.c.l.b16 %v2453
        %v2970 = vunpack.c.l.b16 %v2454
        %v2971 = vunpack.c.l.b16 %v2455
        %v2972 = vunpack.c.l.b16 %v2456
        %v2973 = vunpack.c.l.b16 %v2457
        %v2974 = vunpack.c.l.b16 %v2458
        %v2975 = vunpack.c.l.b16 %v2459
        %v2976 = vunpack.c.l.b16 %v2460
        %v2977 = vunpack.c.l.b16 %v2461
        %v2978 = vunpack.c.l.b16 %v2462
        %v2979 = vunpack.c.l.b16 %v2463
        %v2980 = vunpack.c.l.b16 %v2464
        %v2981 = vunpack.c.l.b16 %v2465
        %v2982 = vunpack.c.l.b16 %v2466
        %v2983 = vunpack.c.l.b16 %v2467
        %v2984 = vunpack.c.l.b16 %v2468
        %v2985 = vunpack.c.l.b16 %v2469
        %v2986 = vunpack.c.l.b16 %v2470
        %v2987 = vunpack.c.l.b16 %v2471
        %v2988 = vunpack.c.l.b16 %v2472
        %v2989 = vunpack.c.l.b16 %v2473
        %v2990 = vunpack.c.l.b16 %v2474
        %v2991 = vunpack.c.l.b16 %v2475
        %v2992 = vunpack.c.l.b16 %v2476
        %v2993 = vunpack.c.l.b16 %v2477
        %v2994 = vunpack.c.l.b16 %v2478
        %v2995 = vunpack.c.l.b16 %v2479
        %v2996 = vunpack.c.l.b16 %v2480
        %v2997 = vunpack.c.l.b16 %v2481
        %v2998 = vunpack.c.l.b16 %v2482
        %v2999 = vunpack.c.l.b16 %v2483
        %v3000 = vunpack.c.l.b16 %v2484
        %v3001 = vunpack.c.l.b16 %v2485
        %v3002 = vunpack.c.l.b16 %v2486
        %v3003 = vunpack.c.l.b16 %v2487
        %v3004 = vunpack.c.l.b16 %v2488
        %v3005 = vunpack.c.l.b16 %v2489
        %v3006 = vunpack.c.l.b16 %v2490
        %v3007 = vunpack.c.l.b16 %v2491
        %v3008 = vunpack.c.l.b16 %v2492
        %v3009 = vunpack.c.l.b16 %v2493
        %v3010 = vunpack.c.l.b16 %v2494
        %v3011 = vunpack.c.l.b16 %v2495
        %v3012 = vunpack.c.l.b16 %v2496
        %v3013 = vunpack.c.l.b16 %v2497
        %v3014 = vunpack.c.l.b16 %v2498
        %v3015 = vunpack.c.l.b16 %v2499
        %v3016 = vunpack.c.l.b16 %v2500
        %v3017 = vunpack.c.l.b16 %v2501
        %v3018 = vunpack.c.l.b16 %v2502
        %v3019 = vunpack.c.l.b16 %v2503
        %v3020 = vunpack.c.l.b16 %v2504
        %v3021 = vunpack.c.l.b16 %v2505
        %v3022 = vunpack.c.l.b16 %v2506
        %v3023 = vunpack.c.l.b16 %v2507
        %v3024 = vunpack.c.l.b16 %v2508
        %v3025 = vunpack.c.l.b16 %v2509
        %v3026 = vunpack.c.l.b16 %v2510
        %v3027 = vunpack.c.l.b16 %v2511
        %v3028 = vunpack.c.l.b16 %v2512
        %v3029 = vunpack.c.l.b16 %v2513
        %v3030 = vunpack.c.l.b16 %v2514
        %v3031 = vunpack.c.l.b16 %v2515
        %v3032 = vunpack.c.l.b16 %v2516
        %v3033 = vunpack.c.l.b16 %v2517
        %v3034 = vunpack.c.l.b16 %v2518
        %v3035 = vunpack.c.l.b16 %v2519
        %v3036 = vunpack.c.l.b16 %v2520
        %v3037 = vunpack.c.l.b16 %v2521
        %v3038 = vunpack.c.l.b16 %v2522
        %v3039 = vunpack.c.l.b16 %v2523
        %v3040 = vunpack.c.l.b16 %v2524
        %v3041 = vunpack.c.l.b16 %v2525
        %v3042 = vunpack.c.l.b16 %v2526
        %v3043 = vunpack.c.l.b16 %v2527
        %v3044 = vunpack.c.l.b16 %v2528
        %v3045 = vunpack.c.l.b16 %v2529
        %v3046 = vunpack.c.l.b16 %v2530
        %v3047 = vunpack.c.l.b16 %v2531
        %v3048 = vunpack.c.l.b16 %v2532
        %v3049 = vunpack.c.l.b16 %v2533
        %v3050 = vunpack.c.l.b16 %v2534
        %v3051 = vunpack.c.l.b16 %v2535
        %v3052 = vunpack.c.l.b16 %v2536
        %v3053 = vunpack.c.l.b16 %v2537
        %v3054 = vunpack.c.l.b16 %v2538
        %v3055 = vunpack.c.l.b16 %v2539
        %v3056 = vunpack.c.l.b16 %v2540
        %v3057 = vunpack.c.l.b16 %v2541
        %v3058 = vunpack.c.l.b16 %v2542
        %v3059 = vunpack.c.l.b16 %v2543
        %v3060 = vunpack.c.l.b16 %v2544
        %v3061 = vunpack.c.l.b16 %v2545
        %v3062 = vunpack.c.l.b16 %v2546
        %v3063 = vunpack.c.l.b16 %v2547
        %v3064 = vunpack.c.l.b16 %v2548
        %v3065 = vunpack.c.l.b16 %v2549
        %v3066 = vunpack.c.l.b16 %v2550
        %v3067 = vunpack.c.l.b16 %v2551
        %v3068 = vunpack.c.l.b16 %v2552
        %v3069 = vunpack.c.l.b16 %v2553
        %v3070 = vunpack.c.l.b16 %v2554
        %v3071 = vunpack.c.l.b16 %v2555
        %v3072 = vunpack.c.l.b16 %v2556
        %v3073 = vunpack.c.l.b16 %v2557
        %v3074 = vunpack.c.l.b16 %v2558
        %v3075 = vunpack.c.l.b16 %v2559
        %v3076 = vunpack.c.l.b16 %v2560
        %v3077 = vunpack.c.l.b16 %v2561
        %v3078 = vunpack.c.l.b16 %v2562
        %v3079 = vunpack.c.l.b16 %v2563
        %v3080 = vunpack.c.l.b16 %v2564
        %v3081 = vunpack.c.l.b16 %v2565
        %v3082 = vunpack.c.l.b16 %v2566
        %v3083 = vunpack.c.l.b16 %v2567
        %v3084 = vunpack.c.l.b16 %v2568
        %v3085 = vunpack.c.l.b16 %v2569
        %v3086 = vunpack.c.l.b16 %v2570
        %v3087 = vunpack.c.l.b16 %v2571
        %v3088 = vunpack.c.l.b16 %v2572
        %v3089 = vunpack.c.l.b16 %v2573
        %v3090 = vunpack.c.l.b16 %v2574
        %v3091 = vunpack.c.l.b16 %v2575
        %v3092 = vunpack.c.l.b16 %v2576
        %v3093 = vunpack.c.l.b16 %v2577
        %v3094 = vunpack.c.l.b16 %v2578
        %v3095 = vunpack.c.l.b16 %v2579
        %v3096 = vunpack.c.l.b16 %v2580
        %v3097 = vunpack.c.l.b16 %v2581
        %v3098 = vunpack.c.l.b16 %v2582
        %v3099 = vunpack.c.l.b16 %v2583
        %v3100 = vunpack.c.l.b16 %v2584
        %v3101 = vunpack.c.l.b16 %v2585
        %v3102 = vunpack.c.l.b16 %v2586
        %v3103 = vunpack.c.l.b16 %v2587
        %v3104 = vunpack.c.l.b16 %v2588
        %v3105 = vunpack.c.l.b16 %v2589
        %v3106 = vunpack.c.l.b16 %v2590
        %v3107 = vunpack.c.l.b16 %v2591
        %v3108 = vunpack.c.l.b16 %v2592
        %v3109 = vunpack.c.l.b16 %v2593
        %v3110 = vunpack.c.l.b16 %v2594
        %v3111 = vunpack.c.l.b16 %v2595
        %v3112 = vunpack.c.l.b16 %v2596
        %v3113 = vunpack.c.l.b16 %v2597
        %v3114 = vunpack.c.l.b16 %v2598
        %v3115 = vunpack.c.l.b16 %v2599
        %v3116 = vunpack.c.l.b16 %v2600
        %v3117 = vunpack.c.l.b16 %v2601
        %v3118 = vunpack.c.l.b16 %v2602
        %v3119 = vunpack.c.l.b16 %v2603
        %v3120 = vunpack.c.l.b16 %v2604
        %v3121 = vunpack.c.l.b16 %v2605
        %v3122 = vunpack.c.l.b16 %v2606
        %v3123 = vunpack.c.l.b16 %v2607
        %v3124 = vunpack.c.l.b16 %v2608
        %v3125 = vunpack.c.l.b16 %v2609
        %v3126 = vunpack.c.l.b16 %v2610
        %v3127 = vunpack.c.l.b16 %v2611
        %v3128 = vunpack.c.l.b16 %v2612
        %v3129 = vunpack.c.l.b16 %v2613
        %v3130 = vunpack.c.l.b16 %v2614
        %v3131 = vunpack.c.l.b16 %v2615
        %v3132 = vunpack.c.l.b16 %v2616
        %v3133 = vunpack.c.l.b16 %v2617
        %v3134 = vunpack.c.l.b16 %v2618
        %v3135 = vunpack.c.l.b16 %v2619
        %v3136 = vunpack.c.l.b16 %v2620
        %v3137 = vunpack.c.l.b16 %v2621
        %v3138 = vunpack.c.l.b16 %v2622
        %v3139 = vunpack.c.l.b16 %v2623
        %v3140 = vunpack.c.l.b16 %v2624
        %v3141 = vunpack.c.l.b16 %v2625
        %v3142 = vunpack.c.l.b16 %v2626
        %v3143 = vunpack.c.l.b16 %v2627
        %v3144 = vunpack.c.l.b16 %v2628
        %v3145 = vunpack.c.l.b16 %v2629
        %v3146 = vunpack.c.l.b16 %v2630
        %v3147 = vunpack.c.l.b16 %v2631
        %v3148 = vunpack.c.l.b16 %v2632
        %v3149 = vunpack.c.l.b16 %v2633
        %v3150 = vunpack.c.l.b16 %v2634
        %v3151 = vunpack.c.l.b16 %v2635
        %v3152 = vunpack.c.l.b16 %v2636
        %v3153 = vunpack.c.l.b16 %v2637
        %v3154 = vunpack.c.l.b16 %v2638
        %v3155 = vunpack.c.l.b16 %v2639
        %v3156 = vunpack.c.l.b16 %v2640
        %v3157 = vunpack.c.l.b16 %v2641
        %v3158 = vunpack.c.l.b16 %v2642
        %v3159 = vunpack.c.l.b16 %v2643
        %v3160 = vunpack.c.l.b16 %v2644
        %v3161 = vunpack.c.l.b16 %v2645
        %v3162 = vunpack.c.l.b16 %v2646
        %v3163 = vunpack.c.l.b16 %v2647
        %v3164 = vunpack.c.l.b16 %v2648
        %v3165 = vunpack.c.l.b16 %v2649
        %v3166 = vunpack.c.l.b16 %v2650
        %v3167 = vunpack.c.l.b16 %v2651
        %v3168 = vunpack.c.l.b16 %v2652
        %v3169 = vunpack.c.l.b16 %v2653
        %v3170 = vunpack.c.l.b16 %v2654
        %v3171 = vunpack.c.l.b16 %v2655
        %v3172 = vunpack.c.l.b16 %v2656
        %v3173 = vunpack.c.l.b16 %v2657
        %v3174 = vunpack.c.l.b16 %v2658
        %v3175 = vunpack.c.l.b16 %v2659
        %v3176 = vunpack.c.l.b16 %v2660
        %v3177 = vunpack.c.l.b16 %v2661
        %v3178 = vunpack.c.l.b16 %v2662
        %v3179 = vunpack.c.l.b16 %v2663
        %v3180 = vunpack.c.l.b16 %v2664
        %v3181 = vunpack.c.l.b16 %v2665
        %v3182 = vunpack.c.l.b16 %v2666
        %v3183 = vunpack.c.l.b16 %v2667
        %v3184 = vunpack.c.l.b16 %v2668
        %v3185 = vunpack.c.l.b16 %v2669
        %v3186 = vunpack.c.l.b16 %v2670
        %v3187 = vunpack.c.l.b16 %v2671
        %v3188 = vunpack.c.l.b16 %v2672
        %v3189 = vunpack.c.l.b16 %v2673
        %v3190 = vunpack.c.l.b16 %v2674
        %v3191 = vunpack.c.l.b16 %v2675
        %v3192 = vunpack.c.l.b16 %v2676
        %v3193 = vunpack.c.l.b16 %v2677
        %v3194 = vunpack.c.l.b16 %v2678
        %v3195 = vunpack.c.l.b16 %v2679
        %v3196 = vunpack.c.l.b16 %v2680
        %v3197 = vunpack.c.l.b16 %v2681
        %v3198 = vunpack.c.l.b16 %v2682
        %v3199 = vunpack.c.l.b16 %v2683
        %v3200 = vunpack.c.l.b16 %v2684
        %v3201 = vunpack.c.l.b16 %v2685
        %v3202 = vunpack.c.l.b16 %v2686
        %v3203 = vunpack.c.l.b16 %v2687
        %v3204 = vunpack.c.l.b16 %v2688
        %v3205 = vunpack.c.l.b16 %v2689
        %v3206 = vunpack.c.l.b16 %v2690
        %v3207 = vunpack.c.l.b16 %v2691
        %v3208 = vunpack.c.l.b16 %v2692
        %v3209 = vunpack.c.l.b16 %v2693
        %v3210 = vunpack.c.l.b16 %v2694
        %v3211 = vunpack.c.l.b16 %v2695
        %v3212 = vunpack.c.l.b16 %v2696
        %v3213 = vunpack.c.l.b16 %v2697
        %v3214 = vunpack.c.l.b16 %v2698
        %v3215 = vunpack.c.l.b16 %v2699
        %v3216 = vpack.c.b16 %v2961, %v2960
        %v3217 = vpack.c.b16 %v2963, %v2962
        %v3218 = vpack.c.b16 %v2965, %v2964
        %v3219 = vpack.c.b16 %v2967, %v2966
        %v3220 = vpack.c.b16 %v2969, %v2968
        %v3221 = vpack.c.b16 %v2971, %v2970
        %v3222 = vpack.c.b16 %v2973, %v2972
        %v3223 = vpack.c.b16 %v2975, %v2974
        %v3224 = vpack.c.b16 %v2977, %v2976
        %v3225 = vpack.c.b16 %v2979, %v2978
        %v3226 = vpack.c.b16 %v2981, %v2980
        %v3227 = vpack.c.b16 %v2983, %v2982
        %v3228 = vpack.c.b16 %v2985, %v2984
        %v3229 = vpack.c.b16 %v2987, %v2986
        %v3230 = vpack.c.b16 %v2989, %v2988
        %v3231 = vpack.c.b16 %v2991, %v2990
        %v3232 = vpack.c.b16 %v2993, %v2992
        %v3233 = vpack.c.b16 %v2995, %v2994
        %v3234 = vpack.c.b16 %v2997, %v2996
        %v3235 = vpack.c.b16 %v2999, %v2998
        %v3236 = vpack.c.b16 %v3001, %v3000
        %v3237 = vpack.c.b16 %v3003, %v3002
        %v3238 = vpack.c.b16 %v3005, %v3004
        %v3239 = vpack.c.b16 %v3007, %v3006
        %v3240 = vpack.c.b16 %v3009, %v3008
        %v3241 = vpack.c.b16 %v3011, %v3010
        %v3242 = vpack.c.b16 %v3013, %v3012
        %v3243 = vpack.c.b16 %v3015, %v3014
        %v3244 = vpack.c.b16 %v3017, %v3016
        %v3245 = vpack.c.b16 %v3019, %v3018
        %v3246 = vpack.c.b16 %v3021, %v3020
        %v3247 = vpack.c.b16 %v3023, %v3022
        %v3248 = vpack.c.b16 %v3025, %v3024
        %v3249 = vpack.c.b16 %v3027, %v3026
        %v3250 = vpack.c.b16 %v3029, %v3028
        %v3251 = vpack.c.b16 %v3031, %v3030
        %v3252 = vpack.c.b16 %v3033, %v3032
        %v3253 = vpack.c.b16 %v3035, %v3034
        %v3254 = vpack.c.b16 %v3037, %v3036
        %v3255 = vpack.c.b16 %v3039, %v3038
        %v3256 = vpack.c.b16 %v3041, %v3040
        %v3257 = vpack.c.b16 %v3043, %v3042
        %v3258 = vpack.c.b16 %v3045, %v3044
        %v3259 = vpack.c.b16 %v3047, %v3046
        %v3260 = vpack.c.b16 %v3049, %v3048
        %v3261 = vpack.c.b16 %v3051, %v3050
        %v3262 = vpack.c.b16 %v3053, %v3052
        %v3263 = vpack.c.b16 %v3055, %v3054
        %v3264 = vpack.c.b16 %v3057, %v3056
        %v3265 = vpack.c.b16 %v3059, %v3058
        %v3266 = vpack.c.b16 %v3061, %v3060
        %v3267 = vpack.c.b16 %v3063, %v3062
        %v3268 = vpack.c.b16 %v3065, %v3064
        %v3269 = vpack.c.b16 %v3067, %v3066
        %v3270 = vpack.c.b16 %v3069, %v3068
        %v3271 = vpack.c.b16 %v3071, %v3070
        %v3272 = vpack.c.b16 %v3073, %v3072
        %v3273 = vpack.c.b16 %v3075, %v3074
        %v3274 = vpack.c.b16 %v3077, %v3076
        %v3275 = vpack.c.b16 %v3079, %v3078
        %v3276 = vpack.c.b16 %v3081, %v3080
        %v3277 = vpack.c.b16 %v3083, %v3082
        %v3278 = vpack.c.b16 %v3085, %v3084
        %v3279 = vpack.c.b16 %v3087, %v3086
        %v3280 = vpack.c.b16 %v3089, %v3088
        %v3281 = vpack.c.b16 %v3091, %v3090
        %v3282 = vpack.c.b16 %v3093, %v3092
        %v3283 = vpack.c.b16 %v3095, %v3094
        %v3284 = vpack.c.b16 %v3097, %v3096
        %v3285 = vpack.c.b16 %v3099, %v3098
        %v3286 = vpack.c.b16 %v3101, %v3100
        %v3287 = vpack.c.b16 %v3103, %v3102
        %v3288 = vpack.c.b16 %v3105, %v3104
        %v3289 = vpack.c.b16 %v3107, %v3106
        %v3290 = vpack.c.b16 %v3109, %v3108
        %v3291 = vpack.c.b16 %v3111, %v3110
        %v3292 = vpack.c.b16 %v3113, %v3112
        %v3293 = vpack.c.b16 %v3115, %v3114
        %v3294 = vpack.c.b16 %v3117, %v3116
        %v3295 = vpack.c.b16 %v3119, %v3118
        %v3296 = vpack.c.b16 %v3121, %v3120
        %v3297 = vpack.c.b16 %v3123, %v3122
        %v3298 = vpack.c.b16 %v3125, %v3124
        %v3299 = vpack.c.b16 %v3127, %v3126
        %v3300 = vpack.c.b16 %v3129, %v3128
        %v3301 = vpack.c.b16 %v3131, %v3130
        %v3302 = vpack.c.b16 %v3133, %v3132
        %v3303 = vpack.c.b16 %v3135, %v3134
        %v3304 = vpack.c.b16 %v3137, %v3136
        %v3305 = vpack.c.b16 %v3139, %v3138
        %v3306 = vpack.c.b16 %v3141, %v3140
        %v3307 = vpack.c.b16 %v3143, %v3142
        %v3308 = vpack.c.b16 %v3145, %v3144
        %v3309 = vpack.c.b16 %v3147, %v3146
        %v3310 = vpack.c.b16 %v3149, %v3148
        %v3311 = vpack.c.b16 %v3151, %v3150
        %v3312 = vpack.c.b16 %v3153, %v3152
        %v3313 = vpack.c.b16 %v3155, %v3154
        %v3314 = vpack.c.b16 %v3157, %v3156
        %v3315 = vpack.c.b16 %v3159, %v3158
        %v3316 = vpack.c.b16 %v3161, %v3160
        %v3317 = vpack.c.b16 %v3163, %v3162
        %v3318 = vpack.c.b16 %v3165, %v3164
        %v3319 = vpack.c.b16 %v3167, %v3166
        %v3320 = vpack.c.b16 %v3169, %v3168
        %v3321 = vpack.c.b16 %v3171, %v3170
        %v3322 = vpack.c.b16 %v3173, %v3172
        %v3323 = vpack.c.b16 %v3175, %v3174
        %v3324 = vpack.c.b16 %v3177, %v3176
        %v3325 = vpack.c.b16 %v3179, %v3178
        %v3326 = vpack.c.b16 %v3181, %v3180
        %v3327 = vpack.c.b16 %v3183, %v3182
        %v3328 = vpack.c.b16 %v3185, %v3184
        %v3329 = vpack.c.b16 %v3187, %v3186
        %v3330 = vpack.c.b16 %v3189, %v3188
        %v3331 = vpack.c.b16 %v3191, %v3190
        %v3332 = vpack.c.b16 %v3193, %v3192
        %v3333 = vpack.c.b16 %v3195, %v3194
        %v3334 = vpack.c.b16 %v3197, %v3196
        %v3335 = vpack.c.b16 %v3199, %v3198
        %v3336 = vpack.c.b16 %v3201, %v3200
        %v3337 = vpack.c.b16 %v3203, %v3202
        %v3338 = vpack.c.b16 %v3205, %v3204
        %v3339 = vpack.c.b16 %v3207, %v3206
        %v3340 = vpack.c.b16 %v3209, %v3208
        %v3341 = vpack.c.b16 %v3211, %v3210
        %v3342 = vpack.c.b16 %v3213, %v3212
        %v3343 = vpack.c.b16 %v3215, %v3214
        %3472 = vmatprep.subr.bf16.mxu0 0
        %3473 = vmatpush1.bf16.msra.mxu0 %v3216
        %3474 = vmatprep.subr.bf16.mxu0 0
        %3475 = vmatpush1.bf16.msra.mxu0 %v3217
        %3476 = vmatprep.subr.bf16.mxu0 0
        %3477 = vmatpush1.bf16.msra.mxu0 %v3218
        %3478 = vmatprep.subr.bf16.mxu0 0
        %3479 = vmatpush1.bf16.msra.mxu0 %v3219
        %3480 = vmatprep.subr.bf16.mxu0 0
        %3481 = vmatpush1.bf16.msra.mxu0 %v3220
        %3482 = vmatprep.subr.bf16.mxu0 0
        %3483 = vmatpush1.bf16.msra.mxu0 %v3221
        %3484 = vmatprep.subr.bf16.mxu0 0
        %3485 = vmatpush1.bf16.msra.mxu0 %v3222
        %3486 = vmatprep.subr.bf16.mxu0 0
        %3487 = vmatpush1.bf16.msra.mxu0 %v3223
        %3488 = vmatprep.subr.bf16.mxu0 0
        %3489 = vmatpush1.bf16.msra.mxu0 %v3224
        %3490 = vmatprep.subr.bf16.mxu0 0
        %3491 = vmatpush1.bf16.msra.mxu0 %v3225
        %3492 = vmatprep.subr.bf16.mxu0 0
        %3493 = vmatpush1.bf16.msra.mxu0 %v3226
        %3494 = vmatprep.subr.bf16.mxu0 0
        %3495 = vmatpush1.bf16.msra.mxu0 %v3227
        %3496 = vmatprep.subr.bf16.mxu0 0
        %3497 = vmatpush1.bf16.msra.mxu0 %v3228
        %3498 = vmatprep.subr.bf16.mxu0 0
        %3499 = vmatpush1.bf16.msra.mxu0 %v3229
        %3500 = vmatprep.subr.bf16.mxu0 0
        %3501 = vmatpush1.bf16.msra.mxu0 %v3230
        %3502 = vmatprep.subr.bf16.mxu0 0
        %3503 = vmatpush1.bf16.msra.mxu0 %v3231
        %3504 = vmatprep.mubr.bf16.mxu0 %v2429
        %3505 = vmatmul.mubr.bf16.gmra.mrb[0].mxu0 %v2428
        %v3506 = vpop.f32.mrb[0].mxu0
        %v3507 = vadd.f32 %v2703, %v3506
        %v3508 = vpop.f32.mrb[0].mxu0
        %v3509 = vpop.f32.mrb[0].mxu0
        %v3510 = vpop.f32.mrb[0].mxu0
        %3511 = vdwg.mxu0
        %3512 = vmatprep.subr.bf16.mxu0 0
        %3513 = vmatpush1.bf16.msra.mxu0 %v3232
        %3514 = vmatprep.subr.bf16.mxu0 0
        %3515 = vmatpush1.bf16.msra.mxu0 %v3233
        %3516 = vmatprep.subr.bf16.mxu0 0
        %3517 = vmatpush1.bf16.msra.mxu0 %v3234
        %3518 = vmatprep.subr.bf16.mxu0 0
        %3519 = vmatpush1.bf16.msra.mxu0 %v3235
        %3520 = vmatprep.subr.bf16.mxu0 0
        %3521 = vmatpush1.bf16.msra.mxu0 %v3236
        %3522 = vmatprep.subr.bf16.mxu0 0
        %3523 = vmatpush1.bf16.msra.mxu0 %v3237
        %3524 = vmatprep.subr.bf16.mxu0 0
        %3525 = vmatpush1.bf16.msra.mxu0 %v3238
        %3526 = vmatprep.subr.bf16.mxu0 0
        %3527 = vmatpush1.bf16.msra.mxu0 %v3239
        %3528 = vmatprep.subr.bf16.mxu0 0
        %3529 = vmatpush1.bf16.msra.mxu0 %v3240
        %3530 = vmatprep.subr.bf16.mxu0 0
        %3531 = vmatpush1.bf16.msra.mxu0 %v3241
        %3532 = vmatprep.subr.bf16.mxu0 0
        %3533 = vmatpush1.bf16.msra.mxu0 %v3242
        %3534 = vmatprep.subr.bf16.mxu0 0
        %3535 = vmatpush1.bf16.msra.mxu0 %v3243
        %3536 = vmatprep.subr.bf16.mxu0 0
        %3537 = vmatpush1.bf16.msra.mxu0 %v3244
        %3538 = vmatprep.subr.bf16.mxu0 0
        %3539 = vmatpush1.bf16.msra.mxu0 %v3245
        %3540 = vmatprep.subr.bf16.mxu0 0
        %3541 = vmatpush1.bf16.msra.mxu0 %v3246
        %3542 = vmatprep.subr.bf16.mxu0 0
        %3543 = vmatpush1.bf16.msra.mxu0 %v3247
        %3544 = vmatprep.mubr.bf16.mxu0 %v2431
        %3545 = vmatmul.mubr.bf16.gmra.mrb[0].mxu0 %v2430
        %v3546 = vpop.f32.mrb[0].mxu0
        %v3547 = vadd.f32 %v3507, %v3546
        %v3548 = vpop.f32.mrb[0].mxu0
        %v3549 = vpop.f32.mrb[0].mxu0
        %v3550 = vpop.f32.mrb[0].mxu0
        %3551 = vdwg.mxu0
        %3552 = vmatprep.subr.bf16.mxu0 0
        %3553 = vmatpush1.bf16.msra.mxu0 %v3248
        %3554 = vmatprep.subr.bf16.mxu0 0
        %3555 = vmatpush1.bf16.msra.mxu0 %v3249
        %3556 = vmatprep.subr.bf16.mxu0 0
        %3557 = vmatpush1.bf16.msra.mxu0 %v3250
        %3558 = vmatprep.subr.bf16.mxu0 0
        %3559 = vmatpush1.bf16.msra.mxu0 %v3251
        %3560 = vmatprep.subr.bf16.mxu0 0
        %3561 = vmatpush1.bf16.msra.mxu0 %v3252
        %3562 = vmatprep.subr.bf16.mxu0 0
        %3563 = vmatpush1.bf16.msra.mxu0 %v3253
        %3564 = vmatprep.subr.bf16.mxu0 0
        %3565 = vmatpush1.bf16.msra.mxu0 %v3254
        %3566 = vmatprep.subr.bf16.mxu0 0
        %3567 = vmatpush1.bf16.msra.mxu0 %v3255
        %3568 = vmatprep.subr.bf16.mxu0 0
        %3569 = vmatpush1.bf16.msra.mxu0 %v3256
        %3570 = vmatprep.subr.bf16.mxu0 0
        %3571 = vmatpush1.bf16.msra.mxu0 %v3257
        %3572 = vmatprep.subr.bf16.mxu0 0
        %3573 = vmatpush1.bf16.msra.mxu0 %v3258
        %3574 = vmatprep.subr.bf16.mxu0 0
        %3575 = vmatpush1.bf16.msra.mxu0 %v3259
        %3576 = vmatprep.subr.bf16.mxu0 0
        %3577 = vmatpush1.bf16.msra.mxu0 %v3260
        %3578 = vmatprep.subr.bf16.mxu0 0
        %3579 = vmatpush1.bf16.msra.mxu0 %v3261
        %3580 = vmatprep.subr.bf16.mxu0 0
        %3581 = vmatpush1.bf16.msra.mxu0 %v3262
        %3582 = vmatprep.subr.bf16.mxu0 0
        %3583 = vmatpush1.bf16.msra.mxu0 %v3263
        %3584 = vmatprep.mubr.bf16.mxu0 %v2433
        %3585 = vmatmul.mubr.bf16.gmra.mrb[0].mxu0 %v2432
        %v3586 = vpop.f32.mrb[0].mxu0
        %v3587 = vadd.f32 %v3547, %v3586
        %v3588 = vpop.f32.mrb[0].mxu0
        %v3589 = vpop.f32.mrb[0].mxu0
        %v3590 = vpop.f32.mrb[0].mxu0
        %3591 = vdwg.mxu0
        %3592 = vmatprep.subr.bf16.mxu0 0
        %3593 = vmatpush1.bf16.msra.mxu0 %v3264
        %3594 = vmatprep.subr.bf16.mxu0 0
        %3595 = vmatpush1.bf16.msra.mxu0 %v3265
        %3596 = vmatprep.subr.bf16.mxu0 0
        %3597 = vmatpush1.bf16.msra.mxu0 %v3266
        %3598 = vmatprep.subr.bf16.mxu0 0
        %3599 = vmatpush1.bf16.msra.mxu0 %v3267
        %3600 = vmatprep.subr.bf16.mxu0 0
        %3601 = vmatpush1.bf16.msra.mxu0 %v3268
        %3602 = vmatprep.subr.bf16.mxu0 0
        %3603 = vmatpush1.bf16.msra.mxu0 %v3269
        %3604 = vmatprep.subr.bf16.mxu0 0
        %3605 = vmatpush1.bf16.msra.mxu0 %v3270
        %3606 = vmatprep.subr.bf16.mxu0 0
        %3607 = vmatpush1.bf16.msra.mxu0 %v3271
        %3608 = vmatprep.subr.bf16.mxu0 0
        %3609 = vmatpush1.bf16.msra.mxu0 %v3272
        %3610 = vmatprep.subr.bf16.mxu0 0
        %3611 = vmatpush1.bf16.msra.mxu0 %v3273
        %3612 = vmatprep.subr.bf16.mxu0 0
        %3613 = vmatpush1.bf16.msra.mxu0 %v3274
        %3614 = vmatprep.subr.bf16.mxu0 0
        %3615 = vmatpush1.bf16.msra.mxu0 %v3275
        %3616 = vmatprep.subr.bf16.mxu0 0
        %3617 = vmatpush1.bf16.msra.mxu0 %v3276
        %3618 = vmatprep.subr.bf16.mxu0 0
        %3619 = vmatpush1.bf16.msra.mxu0 %v3277
        %3620 = vmatprep.subr.bf16.mxu0 0
        %3621 = vmatpush1.bf16.msra.mxu0 %v3278
        %3622 = vmatprep.subr.bf16.mxu0 0
        %3623 = vmatpush1.bf16.msra.mxu0 %v3279
        %3624 = vmatprep.mubr.bf16.mxu0 %v2435
        %3625 = vmatmul.mubr.bf16.gmra.mrb[0].mxu0 %v2434
        %v3626 = vpop.f32.mrb[0].mxu0
        %v3627 = vadd.f32 %v3587, %v3626
        %v3628 = vpop.f32.mrb[0].mxu0
        %v3629 = vpop.f32.mrb[0].mxu0
        %v3630 = vpop.f32.mrb[0].mxu0
        %3631 = vdwg.mxu0
        %3632 = vmatprep.subr.bf16.mxu0 0
        %3633 = vmatpush1.bf16.msra.mxu0 %v3280
        %3634 = vmatprep.subr.bf16.mxu0 0
        %3635 = vmatpush1.bf16.msra.mxu0 %v3281
        %3636 = vmatprep.subr.bf16.mxu0 0
        %3637 = vmatpush1.bf16.msra.mxu0 %v3282
        %3638 = vmatprep.subr.bf16.mxu0 0
        %3639 = vmatpush1.bf16.msra.mxu0 %v3283
        %3640 = vmatprep.subr.bf16.mxu0 0
        %3641 = vmatpush1.bf16.msra.mxu0 %v3284
        %3642 = vmatprep.subr.bf16.mxu0 0
        %3643 = vmatpush1.bf16.msra.mxu0 %v3285
        %3644 = vmatprep.subr.bf16.mxu0 0
        %3645 = vmatpush1.bf16.msra.mxu0 %v3286
        %3646 = vmatprep.subr.bf16.mxu0 0
        %3647 = vmatpush1.bf16.msra.mxu0 %v3287
        %3648 = vmatprep.subr.bf16.mxu0 0
        %3649 = vmatpush1.bf16.msra.mxu0 %v3288
        %3650 = vmatprep.subr.bf16.mxu0 0
        %3651 = vmatpush1.bf16.msra.mxu0 %v3289
        %3652 = vmatprep.subr.bf16.mxu0 0
        %3653 = vmatpush1.bf16.msra.mxu0 %v3290
        %3654 = vmatprep.subr.bf16.mxu0 0
        %3655 = vmatpush1.bf16.msra.mxu0 %v3291
        %3656 = vmatprep.subr.bf16.mxu0 0
        %3657 = vmatpush1.bf16.msra.mxu0 %v3292
        %3658 = vmatprep.subr.bf16.mxu0 0
        %3659 = vmatpush1.bf16.msra.mxu0 %v3293
        %3660 = vmatprep.subr.bf16.mxu0 0
        %3661 = vmatpush1.bf16.msra.mxu0 %v3294
        %3662 = vmatprep.subr.bf16.mxu0 0
        %3663 = vmatpush1.bf16.msra.mxu0 %v3295
        %3664 = vmatprep.mubr.bf16.mxu0 %v2437
        %3665 = vmatmul.mubr.bf16.gmra.mrb[0].mxu0 %v2436
        %v3666 = vpop.f32.mrb[0].mxu0
        %v3667 = vadd.f32 %v3627, %v3666
        %v3668 = vpop.f32.mrb[0].mxu0
        %v3669 = vpop.f32.mrb[0].mxu0
        %v3670 = vpop.f32.mrb[0].mxu0
        %3671 = vdwg.mxu0
        %3672 = vmatprep.subr.bf16.mxu0 0
        %3673 = vmatpush1.bf16.msra.mxu0 %v3296
        %3674 = vmatprep.subr.bf16.mxu0 0
        %3675 = vmatpush1.bf16.msra.mxu0 %v3297
        %3676 = vmatprep.subr.bf16.mxu0 0
        %3677 = vmatpush1.bf16.msra.mxu0 %v3298
        %3678 = vmatprep.subr.bf16.mxu0 0
        %3679 = vmatpush1.bf16.msra.mxu0 %v3299
        %3680 = vmatprep.subr.bf16.mxu0 0
        %3681 = vmatpush1.bf16.msra.mxu0 %v3300
        %3682 = vmatprep.subr.bf16.mxu0 0
        %3683 = vmatpush1.bf16.msra.mxu0 %v3301
        %3684 = vmatprep.subr.bf16.mxu0 0
        %3685 = vmatpush1.bf16.msra.mxu0 %v3302
        %3686 = vmatprep.subr.bf16.mxu0 0
        %3687 = vmatpush1.bf16.msra.mxu0 %v3303
        %3688 = vmatprep.subr.bf16.mxu0 0
        %3689 = vmatpush1.bf16.msra.mxu0 %v3304
        %3690 = vmatprep.subr.bf16.mxu0 0
        %3691 = vmatpush1.bf16.msra.mxu0 %v3305
        %3692 = vmatprep.subr.bf16.mxu0 0
        %3693 = vmatpush1.bf16.msra.mxu0 %v3306
        %3694 = vmatprep.subr.bf16.mxu0 0
        %3695 = vmatpush1.bf16.msra.mxu0 %v3307
        %3696 = vmatprep.subr.bf16.mxu0 0
        %3697 = vmatpush1.bf16.msra.mxu0 %v3308
        %3698 = vmatprep.subr.bf16.mxu0 0
        %3699 = vmatpush1.bf16.msra.mxu0 %v3309
        %3700 = vmatprep.subr.bf16.mxu0 0
        %3701 = vmatpush1.bf16.msra.mxu0 %v3310
        %3702 = vmatprep.subr.bf16.mxu0 0
        %3703 = vmatpush1.bf16.msra.mxu0 %v3311
        %3704 = vmatprep.mubr.bf16.mxu0 %v2439
        %3705 = vmatmul.mubr.bf16.gmra.mrb[0].mxu0 %v2438
        %v3706 = vpop.f32.mrb[0].mxu0
        %v3707 = vadd.f32 %v3667, %v3706
        %v3708 = vpop.f32.mrb[0].mxu0
        %v3709 = vpop.f32.mrb[0].mxu0
        %v3710 = vpop.f32.mrb[0].mxu0
        %3711 = vdwg.mxu0
        %3712 = vmatprep.subr.bf16.mxu0 0
        %3713 = vmatpush1.bf16.msra.mxu0 %v3312
        %3714 = vmatprep.subr.bf16.mxu0 0
        %3715 = vmatpush1.bf16.msra.mxu0 %v3313
        %3716 = vmatprep.subr.bf16.mxu0 0
        %3717 = vmatpush1.bf16.msra.mxu0 %v3314
        %3718 = vmatprep.subr.bf16.mxu0 0
        %3719 = vmatpush1.bf16.msra.mxu0 %v3315
        %3720 = vmatprep.subr.bf16.mxu0 0
        %3721 = vmatpush1.bf16.msra.mxu0 %v3316
        %3722 = vmatprep.subr.bf16.mxu0 0
        %3723 = vmatpush1.bf16.msra.mxu0 %v3317
        %3724 = vmatprep.subr.bf16.mxu0 0
        %3725 = vmatpush1.bf16.msra.mxu0 %v3318
        %3726 = vmatprep.subr.bf16.mxu0 0
        %3727 = vmatpush1.bf16.msra.mxu0 %v3319
        %3728 = vmatprep.subr.bf16.mxu0 0
        %3729 = vmatpush1.bf16.msra.mxu0 %v3320
        %3730 = vmatprep.subr.bf16.mxu0 0
        %3731 = vmatpush1.bf16.msra.mxu0 %v3321
        %3732 = vmatprep.subr.bf16.mxu0 0
        %3733 = vmatpush1.bf16.msra.mxu0 %v3322
        %3734 = vmatprep.subr.bf16.mxu0 0
        %3735 = vmatpush1.bf16.msra.mxu0 %v3323
        %3736 = vmatprep.subr.bf16.mxu0 0
        %3737 = vmatpush1.bf16.msra.mxu0 %v3324
        %3738 = vmatprep.subr.bf16.mxu0 0
        %3739 = vmatpush1.bf16.msra.mxu0 %v3325
        %3740 = vmatprep.subr.bf16.mxu0 0
        %3741 = vmatpush1.bf16.msra.mxu0 %v3326
        %3742 = vmatprep.subr.bf16.mxu0 0
        %3743 = vmatpush1.bf16.msra.mxu0 %v3327
        %3744 = vmatprep.mubr.bf16.mxu0 %v2441
        %3745 = vmatmul.mubr.bf16.gmra.mrb[0].mxu0 %v2440
        %v3746 = vpop.f32.mrb[0].mxu0
        %v3747 = vadd.f32 %v3707, %v3746
        %v3748 = vpop.f32.mrb[0].mxu0
        %v3749 = vpop.f32.mrb[0].mxu0
        %v3750 = vpop.f32.mrb[0].mxu0
        %3751 = vdwg.mxu0
        %3752 = vmatprep.subr.bf16.mxu0 0
        %3753 = vmatpush1.bf16.msra.mxu0 %v3328
        %3754 = vmatprep.subr.bf16.mxu0 0
        %3755 = vmatpush1.bf16.msra.mxu0 %v3329
        %3756 = vmatprep.subr.bf16.mxu0 0
        %3757 = vmatpush1.bf16.msra.mxu0 %v3330
        %3758 = vmatprep.subr.bf16.mxu0 0
        %3759 = vmatpush1.bf16.msra.mxu0 %v3331
        %3760 = vmatprep.subr.bf16.mxu0 0
        %3761 = vmatpush1.bf16.msra.mxu0 %v3332
        %3762 = vmatprep.subr.bf16.mxu0 0
        %3763 = vmatpush1.bf16.msra.mxu0 %v3333
        %3764 = vmatprep.subr.bf16.mxu0 0
        %3765 = vmatpush1.bf16.msra.mxu0 %v3334
        %3766 = vmatprep.subr.bf16.mxu0 0
        %3767 = vmatpush1.bf16.msra.mxu0 %v3335
        %3768 = vmatprep.subr.bf16.mxu0 0
        %3769 = vmatpush1.bf16.msra.mxu0 %v3336
        %3770 = vmatprep.subr.bf16.mxu0 0
        %3771 = vmatpush1.bf16.msra.mxu0 %v3337
        %3772 = vmatprep.subr.bf16.mxu0 0
        %3773 = vmatpush1.bf16.msra.mxu0 %v3338
        %3774 = vmatprep.subr.bf16.mxu0 0
        %3775 = vmatpush1.bf16.msra.mxu0 %v3339
        %3776 = vmatprep.subr.bf16.mxu0 0
        %3777 = vmatpush1.bf16.msra.mxu0 %v3340
        %3778 = vmatprep.subr.bf16.mxu0 0
        %3779 = vmatpush1.bf16.msra.mxu0 %v3341
        %3780 = vmatprep.subr.bf16.mxu0 0
        %3781 = vmatpush1.bf16.msra.mxu0 %v3342
        %3782 = vmatprep.subr.bf16.mxu0 0
        %3783 = vmatpush1.bf16.msra.mxu0 %v3343
        %3784 = vmatprep.mubr.bf16.mxu0 %v2443
        %3785 = vmatmul.mubr.bf16.gmra.mrb[0].mxu0 %v2442
        %v3786 = vpop.f32.mrb[0].mxu0
        %v3787 = vadd.f32 %v3747, %v3786
        %v3788 = vpop.f32.mrb[0].mxu0
        %v3789 = vpop.f32.mrb[0].mxu0
        %v3790 = vpop.f32.mrb[0].mxu0
        %3791 = vdwg.mxu0
        %v3792 = vadd.f32 %v1803, %v3787
        %v3793 = vsel %vm733, %v3792, 0.0
        %3794 = vadd.xlane.f32.xlu0 %v3793
        %v3795 = vpop.xlane.xlu0 %3794
        %v3796 = vmul.f32 %v3795, %v1783
        %v3797 = vsub.f32 %v3792, %v3796
        %v3798 = vmul.f32 %v3797, %v3797
        %v3799 = vsel %vm733, %v3798, 0.0
        %3800 = vadd.xlane.f32.xlu0 %v3799
        %v3801 = vpop.xlane.xlu0 %3800
        %v3802 = vmul.f32 %v3801, %v1783
        %v3803 = vadd.f32 %v3802, 1e-05
        %v3804 = vrsqrt.pop %v3803
        %v3805 = vmul.f32 %v3797, %v3804
        %v3806 = vlaneseq
        %v3807 = vshrl.u32 %v3806, 7
        %v3808 = vsub.s32 0, %v3807
        %v3809 = vrot.slane %v811, %v3808
        %v3810 = vmul.f32 %v3805, %v3809
        %v3811 = vlaneseq
        %v3812 = vshrl.u32 %v3811, 7
        %v3813 = vsub.s32 0, %v3812
        %v3814 = vrot.slane %v812, %v3813
        %v3815 = vadd.f32 %v3810, %v3814
        %v3816 = vld [vmem:[%s559] sm:$0xf]
        %v3817 = vld [vmem:[%s12 + $0x40] sm:$0xff]
        %v3818 = vld [vmem:[%s12 + $0x48] sm:$0xff]
        %v3819 = vld [vmem:[%s12 + $0x50] sm:$0xff]
        %v3820 = vld [vmem:[%s12 + $0x58] sm:$0xff]
        %v3821 = vld [vmem:[%s12 + $0x60] sm:$0xff]
        %v3822 = vld [vmem:[%s12 + $0x68] sm:$0xff]
        %v3823 = vld [vmem:[%s12 + $0x70] sm:$0xff]
        %v3824 = vld [vmem:[%s12 + $0x78] sm:$0xff]
        %v3825 = vld [vmem:[%s12 + $0x80] sm:$0xff]
        %v3826 = vld [vmem:[%s12 + $0x88] sm:$0xff]
        %v3827 = vld [vmem:[%s12 + $0x90] sm:$0xff]
        %v3828 = vld [vmem:[%s12 + $0x98] sm:$0xff]
        %v3829 = vld [vmem:[%s13 + $0x10] sm:$0x1]
        %v3830 = vld [vmem:[%s13 + $0x11] sm:$0x1]
        %v3831 = vld [vmem:[%s555] sm:$0xf]
        %v3833 = vsel %vm571, %v3831, 0
        %3835 = vmatprep.subr.mxu0 0.0
        %3836 = vmatpush1.msra.mxu0 %v3815
        %3837 = vmatprep.subr.mxu0 0.0
        %3838 = vmatpush1.msra.mxu0 0.0
        %3839 = vmatprep.subr.mxu0 0.0
        %3840 = vmatpush1.msra.mxu0 0.0
        %3841 = vmatprep.subr.mxu0 0.0
        %3842 = vmatpush1.msra.mxu0 0.0
        %3843 = vmatprep.subr.mxu0 0.0
        %3844 = vmatpush1.msra.mxu0 0.0
        %3845 = vmatprep.subr.mxu0 0.0
        %3846 = vmatpush1.msra.mxu0 0.0
        %3847 = vmatprep.subr.mxu0 0.0
        %3848 = vmatpush1.msra.mxu0 0.0
        %3849 = vmatprep.subr.mxu0 0.0
        %3850 = vmatpush1.msra.mxu0 0.0
        %3851 = vmatprep.subr.mxu0 0.0
        %3852 = vmatpush1.msra.mxu0 0.0
        %3853 = vmatprep.subr.mxu0 0.0
        %3854 = vmatpush1.msra.mxu0 0.0
        %3855 = vmatprep.subr.mxu0 0.0
        %3856 = vmatpush1.msra.mxu0 0.0
        %3857 = vmatprep.subr.mxu0 0.0
        %3858 = vmatpush1.msra.mxu0 0.0
        %3859 = vmatprep.subr.mxu0 0.0
        %3860 = vmatpush1.msra.mxu0 0.0
        %3861 = vmatprep.subr.mxu0 0.0
        %3862 = vmatpush1.msra.mxu0 0.0
        %3863 = vmatprep.subr.mxu0 0.0
        %3864 = vmatpush1.msra.mxu0 0.0
        %3865 = vmatprep.subr.mxu0 0.0
        %3866 = vmatpush1.msra.mxu0 0.0
        %3867 = vmatprep.subr.mxu0 0.0
        %3868 = vmatpush1.msra.mxu0 0.0
        %3869 = vmatprep.subr.mxu0 0.0
        %3870 = vmatpush1.msra.mxu0 0.0
        %3871 = vmatprep.subr.mxu0 0.0
        %3872 = vmatpush1.msra.mxu0 0.0
        %3873 = vmatprep.subr.mxu0 0.0
        %3874 = vmatpush1.msra.mxu0 0.0
        %3875 = vmatprep.subr.mxu0 0.0
        %3876 = vmatpush1.msra.mxu0 0.0
        %3877 = vmatprep.subr.mxu0 0.0
        %3878 = vmatpush1.msra.mxu0 0.0
        %3879 = vmatprep.subr.mxu0 0.0
        %3880 = vmatpush1.msra.mxu0 0.0
        %3881 = vmatprep.subr.mxu0 0.0
        %3882 = vmatpush1.msra.mxu0 0.0
        %3883 = vmatprep.subr.mxu0 0.0
        %3884 = vmatpush1.msra.mxu0 0.0
        %3885 = vmatprep.subr.mxu0 0.0
        %3886 = vmatpush1.msra.mxu0 0.0
        %3887 = vmatprep.subr.mxu0 0.0
        %3888 = vmatpush1.msra.mxu0 0.0
        %3889 = vmatprep.subr.mxu0 0.0
        %3890 = vmatpush1.msra.mxu0 0.0
        %3891 = vmatprep.subr.mxu0 0.0
        %3892 = vmatpush1.msra.mxu0 0.0
        %3893 = vmatprep.subr.mxu0 0.0
        %3894 = vmatpush1.msra.mxu0 0.0
        %3895 = vmatprep.subr.mxu0 0.0
        %3896 = vmatpush1.msra.mxu0 0.0
        %3897 = vmatprep.subr.mxu0 0.0
        %3898 = vmatpush1.msra.mxu0 0.0
        %3899 = vmatprep.mubr.f32.mxu0 0.0
        %3900 = vmatmul.mubr.f32.gmra.mrb[0].mxu0 %v3833
        %v3901 = vpop.f32.mrb[0].mxu0
        %v3902 = vadd.f32 0.0, %v3901
        %v3903 = vpop.f32.mrb[0].mxu0
        %3904 = vdwg.mxu0
        %v3905 = vlaneseq
        %v3906 = vshrl.u32 %v3905, 7
        %v3907 = vsub.s32 0, %v3906
        %v3908 = vrot.slane %v3829, %v3907
        %v3910 = vsel %vm733, %v3902, 0
        %3912 = vmatprep.subr.mxu0 0.0
        %3913 = vmatpush1.msra.mxu0 %v3817
        %3914 = vmatprep.subr.mxu0 0.0
        %3915 = vmatpush1.msra.mxu0 %v3818
        %3916 = vmatprep.subr.mxu0 0.0
        %3917 = vmatpush1.msra.mxu0 %v3819
        %3918 = vmatprep.subr.mxu0 0.0
        %3919 = vmatpush1.msra.mxu0 %v3820
        %3920 = vmatprep.subr.mxu0 0.0
        %3921 = vmatpush1.msra.mxu0 0.0
        %3922 = vmatprep.subr.mxu0 0.0
        %3923 = vmatpush1.msra.mxu0 0.0
        %3924 = vmatprep.subr.mxu0 0.0
        %3925 = vmatpush1.msra.mxu0 0.0
        %3926 = vmatprep.subr.mxu0 0.0
        %3927 = vmatpush1.msra.mxu0 0.0
        %3928 = vmatprep.subr.mxu0 0.0
        %3929 = vmatpush1.msra.mxu0 0.0
        %3930 = vmatprep.subr.mxu0 0.0
        %3931 = vmatpush1.msra.mxu0 0.0
        %3932 = vmatprep.subr.mxu0 0.0
        %3933 = vmatpush1.msra.mxu0 0.0
        %3934 = vmatprep.subr.mxu0 0.0
        %3935 = vmatpush1.msra.mxu0 0.0
        %3936 = vmatprep.subr.mxu0 0.0
        %3937 = vmatpush1.msra.mxu0 0.0
        %3938 = vmatprep.subr.mxu0 0.0
        %3939 = vmatpush1.msra.mxu0 0.0
        %3940 = vmatprep.subr.mxu0 0.0
        %3941 = vmatpush1.msra.mxu0 0.0
        %3942 = vmatprep.subr.mxu0 0.0
        %3943 = vmatpush1.msra.mxu0 0.0
        %3944 = vmatprep.subr.mxu0 0.0
        %3945 = vmatpush1.msra.mxu0 0.0
        %3946 = vmatprep.subr.mxu0 0.0
        %3947 = vmatpush1.msra.mxu0 0.0
        %3948 = vmatprep.subr.mxu0 0.0
        %3949 = vmatpush1.msra.mxu0 0.0
        %3950 = vmatprep.subr.mxu0 0.0
        %3951 = vmatpush1.msra.mxu0 0.0
        %3952 = vmatprep.subr.mxu0 0.0
        %3953 = vmatpush1.msra.mxu0 0.0
        %3954 = vmatprep.subr.mxu0 0.0
        %3955 = vmatpush1.msra.mxu0 0.0
        %3956 = vmatprep.subr.mxu0 0.0
        %3957 = vmatpush1.msra.mxu0 0.0
        %3958 = vmatprep.subr.mxu0 0.0
        %3959 = vmatpush1.msra.mxu0 0.0
        %3960 = vmatprep.subr.mxu0 0.0
        %3961 = vmatpush1.msra.mxu0 0.0
        %3962 = vmatprep.subr.mxu0 0.0
        %3963 = vmatpush1.msra.mxu0 0.0
        %3964 = vmatprep.subr.mxu0 0.0
        %3965 = vmatpush1.msra.mxu0 0.0
        %3966 = vmatprep.subr.mxu0 0.0
        %3967 = vmatpush1.msra.mxu0 0.0
        %3968 = vmatprep.subr.mxu0 0.0
        %3969 = vmatpush1.msra.mxu0 0.0
        %3970 = vmatprep.subr.mxu0 0.0
        %3971 = vmatpush1.msra.mxu0 0.0
        %3972 = vmatprep.subr.mxu0 0.0
        %3973 = vmatpush1.msra.mxu0 0.0
        %3974 = vmatprep.subr.mxu0 0.0
        %3975 = vmatpush1.msra.mxu0 0.0
        %3976 = vmatprep.mubr.f32.mxu0 0.0
        %3977 = vmatmul.mubr.f32.gmra.mrb[0].mxu0 %v3910
        %v3978 = vpop.f32.mrb[0].mxu0
        %v3979 = vadd.f32 %v3908, %v3978
        %v3980 = vpop.f32.mrb[0].mxu0
        %3981 = vdwg.mxu0
        %v3982 = vtanh.pop %v3979
        %s3983 = scalar_lea.vmem %s555, 4
        %v3984 = vld [vmem:[%s3983] sm:$0xf]
        %v3986 = vsel %vm571, %v3984, 0
        %3988 = vmatprep.subr.mxu0 0.0
        %3989 = vmatpush1.msra.mxu0 %v3815
        %3990 = vmatprep.subr.mxu0 0.0
        %3991 = vmatpush1.msra.mxu0 0.0
        %3992 = vmatprep.subr.mxu0 0.0
        %3993 = vmatpush1.msra.mxu0 0.0
        %3994 = vmatprep.subr.mxu0 0.0
        %3995 = vmatpush1.msra.mxu0 0.0
        %3996 = vmatprep.subr.mxu0 0.0
        %3997 = vmatpush1.msra.mxu0 0.0
        %3998 = vmatprep.subr.mxu0 0.0
        %3999 = vmatpush1.msra.mxu0 0.0
        %4000 = vmatprep.subr.mxu0 0.0
        %4001 = vmatpush1.msra.mxu0 0.0
        %4002 = vmatprep.subr.mxu0 0.0
        %4003 = vmatpush1.msra.mxu0 0.0
        %4004 = vmatprep.subr.mxu0 0.0
        %4005 = vmatpush1.msra.mxu0 0.0
        %4006 = vmatprep.subr.mxu0 0.0
        %4007 = vmatpush1.msra.mxu0 0.0
        %4008 = vmatprep.subr.mxu0 0.0
        %4009 = vmatpush1.msra.mxu0 0.0
        %4010 = vmatprep.subr.mxu0 0.0
        %4011 = vmatpush1.msra.mxu0 0.0
        %4012 = vmatprep.subr.mxu0 0.0
        %4013 = vmatpush1.msra.mxu0 0.0
        %4014 = vmatprep.subr.mxu0 0.0
        %4015 = vmatpush1.msra.mxu0 0.0
        %4016 = vmatprep.subr.mxu0 0.0
        %4017 = vmatpush1.msra.mxu0 0.0
        %4018 = vmatprep.subr.mxu0 0.0
        %4019 = vmatpush1.msra.mxu0 0.0
        %4020 = vmatprep.subr.mxu0 0.0
        %4021 = vmatpush1.msra.mxu0 0.0
        %4022 = vmatprep.subr.mxu0 0.0
        %4023 = vmatpush1.msra.mxu0 0.0
        %4024 = vmatprep.subr.mxu0 0.0
        %4025 = vmatpush1.msra.mxu0 0.0
        %4026 = vmatprep.subr.mxu0 0.0
        %4027 = vmatpush1.msra.mxu0 0.0
        %4028 = vmatprep.subr.mxu0 0.0
        %4029 = vmatpush1.msra.mxu0 0.0
        %4030 = vmatprep.subr.mxu0 0.0
        %4031 = vmatpush1.msra.mxu0 0.0
        %4032 = vmatprep.subr.mxu0 0.0
        %4033 = vmatpush1.msra.mxu0 0.0
        %4034 = vmatprep.subr.mxu0 0.0
        %4035 = vmatpush1.msra.mxu0 0.0
        %4036 = vmatprep.subr.mxu0 0.0
        %4037 = vmatpush1.msra.mxu0 0.0
        %4038 = vmatprep.subr.mxu0 0.0
        %4039 = vmatpush1.msra.mxu0 0.0
        %4040 = vmatprep.subr.mxu0 0.0
        %4041 = vmatpush1.msra.mxu0 0.0
        %4042 = vmatprep.subr.mxu0 0.0
        %4043 = vmatpush1.msra.mxu0 0.0
        %4044 = vmatprep.subr.mxu0 0.0
        %4045 = vmatpush1.msra.mxu0 0.0
        %4046 = vmatprep.subr.mxu0 0.0
        %4047 = vmatpush1.msra.mxu0 0.0
        %4048 = vmatprep.subr.mxu0 0.0
        %4049 = vmatpush1.msra.mxu0 0.0
        %4050 = vmatprep.subr.mxu0 0.0
        %4051 = vmatpush1.msra.mxu0 0.0
        %4052 = vmatprep.mubr.f32.mxu0 0.0
        %4053 = vmatmul.mubr.f32.gmra.mrb[0].mxu0 %v3986
        %v4054 = vpop.f32.mrb[0].mxu0
        %v4055 = vadd.f32 0.0, %v4054
        %v4056 = vpop.f32.mrb[0].mxu0
        %4057 = vdwg.mxu0
        %v4059 = vsel %vm733, %v4055, 0
        %4061 = vmatprep.subr.mxu0 0.0
        %4062 = vmatpush1.msra.mxu0 %v3817
        %4063 = vmatprep.subr.mxu0 0.0
        %4064 = vmatpush1.msra.mxu0 %v3818
        %4065 = vmatprep.subr.mxu0 0.0
        %4066 = vmatpush1.msra.mxu0 %v3819
        %4067 = vmatprep.subr.mxu0 0.0
        %4068 = vmatpush1.msra.mxu0 %v3820
        %4069 = vmatprep.subr.mxu0 0.0
        %4070 = vmatpush1.msra.mxu0 0.0
        %4071 = vmatprep.subr.mxu0 0.0
        %4072 = vmatpush1.msra.mxu0 0.0
        %4073 = vmatprep.subr.mxu0 0.0
        %4074 = vmatpush1.msra.mxu0 0.0
        %4075 = vmatprep.subr.mxu0 0.0
        %4076 = vmatpush1.msra.mxu0 0.0
        %4077 = vmatprep.subr.mxu0 0.0
        %4078 = vmatpush1.msra.mxu0 0.0
        %4079 = vmatprep.subr.mxu0 0.0
        %4080 = vmatpush1.msra.mxu0 0.0
        %4081 = vmatprep.subr.mxu0 0.0
        %4082 = vmatpush1.msra.mxu0 0.0
        %4083 = vmatprep.subr.mxu0 0.0
        %4084 = vmatpush1.msra.mxu0 0.0
        %4085 = vmatprep.subr.mxu0 0.0
        %4086 = vmatpush1.msra.mxu0 0.0
        %4087 = vmatprep.subr.mxu0 0.0
        %4088 = vmatpush1.msra.mxu0 0.0
        %4089 = vmatprep.subr.mxu0 0.0
        %4090 = vmatpush1.msra.mxu0 0.0
        %4091 = vmatprep.subr.mxu0 0.0
        %4092 = vmatpush1.msra.mxu0 0.0
        %4093 = vmatprep.subr.mxu0 0.0
        %4094 = vmatpush1.msra.mxu0 0.0
        %4095 = vmatprep.subr.mxu0 0.0
        %4096 = vmatpush1.msra.mxu0 0.0
        %4097 = vmatprep.subr.mxu0 0.0
        %4098 = vmatpush1.msra.mxu0 0.0
        %4099 = vmatprep.subr.mxu0 0.0
        %4100 = vmatpush1.msra.mxu0 0.0
        %4101 = vmatprep.subr.mxu0 0.0
        %4102 = vmatpush1.msra.mxu0 0.0
        %4103 = vmatprep.subr.mxu0 0.0
        %4104 = vmatpush1.msra.mxu0 0.0
        %4105 = vmatprep.subr.mxu0 0.0
        %4106 = vmatpush1.msra.mxu0 0.0
        %4107 = vmatprep.subr.mxu0 0.0
        %4108 = vmatpush1.msra.mxu0 0.0
        %4109 = vmatprep.subr.mxu0 0.0
        %4110 = vmatpush1.msra.mxu0 0.0
        %4111 = vmatprep.subr.mxu0 0.0
        %4112 = vmatpush1.msra.mxu0 0.0
        %4113 = vmatprep.subr.mxu0 0.0
        %4114 = vmatpush1.msra.mxu0 0.0
        %4115 = vmatprep.subr.mxu0 0.0
        %4116 = vmatpush1.msra.mxu0 0.0
        %4117 = vmatprep.subr.mxu0 0.0
        %4118 = vmatpush1.msra.mxu0 0.0
        %4119 = vmatprep.subr.mxu0 0.0
        %4120 = vmatpush1.msra.mxu0 0.0
        %4121 = vmatprep.subr.mxu0 0.0
        %4122 = vmatpush1.msra.mxu0 0.0
        %4123 = vmatprep.subr.mxu0 0.0
        %4124 = vmatpush1.msra.mxu0 0.0
        %4125 = vmatprep.mubr.f32.mxu0 0.0
        %4126 = vmatmul.mubr.f32.gmra.mrb[0].mxu0 %v4059
        %v4127 = vpop.f32.mrb[0].mxu0
        %v4128 = vadd.f32 %v3908, %v4127
        %v4129 = vpop.f32.mrb[0].mxu0
        %4130 = vdwg.mxu0
        %v4131 = vtanh.pop %v4128
        %s4132 = scalar_lea.vmem %s555, 8
        %v4133 = vld [vmem:[%s4132] sm:$0xf]
        %v4135 = vsel %vm571, %v4133, 0
        %4137 = vmatprep.subr.mxu0 0.0
        %4138 = vmatpush1.msra.mxu0 %v3815
        %4139 = vmatprep.subr.mxu0 0.0
        %4140 = vmatpush1.msra.mxu0 0.0
        %4141 = vmatprep.subr.mxu0 0.0
        %4142 = vmatpush1.msra.mxu0 0.0
        %4143 = vmatprep.subr.mxu0 0.0
        %4144 = vmatpush1.msra.mxu0 0.0
        %4145 = vmatprep.subr.mxu0 0.0
        %4146 = vmatpush1.msra.mxu0 0.0
        %4147 = vmatprep.subr.mxu0 0.0
        %4148 = vmatpush1.msra.mxu0 0.0
        %4149 = vmatprep.subr.mxu0 0.0
        %4150 = vmatpush1.msra.mxu0 0.0
        %4151 = vmatprep.subr.mxu0 0.0
        %4152 = vmatpush1.msra.mxu0 0.0
        %4153 = vmatprep.subr.mxu0 0.0
        %4154 = vmatpush1.msra.mxu0 0.0
        %4155 = vmatprep.subr.mxu0 0.0
        %4156 = vmatpush1.msra.mxu0 0.0
        %4157 = vmatprep.subr.mxu0 0.0
        %4158 = vmatpush1.msra.mxu0 0.0
        %4159 = vmatprep.subr.mxu0 0.0
        %4160 = vmatpush1.msra.mxu0 0.0
        %4161 = vmatprep.subr.mxu0 0.0
        %4162 = vmatpush1.msra.mxu0 0.0
        %4163 = vmatprep.subr.mxu0 0.0
        %4164 = vmatpush1.msra.mxu0 0.0
        %4165 = vmatprep.subr.mxu0 0.0
        %4166 = vmatpush1.msra.mxu0 0.0
        %4167 = vmatprep.subr.mxu0 0.0
        %4168 = vmatpush1.msra.mxu0 0.0
        %4169 = vmatprep.subr.mxu0 0.0
        %4170 = vmatpush1.msra.mxu0 0.0
        %4171 = vmatprep.subr.mxu0 0.0
        %4172 = vmatpush1.msra.mxu0 0.0
        %4173 = vmatprep.subr.mxu0 0.0
        %4174 = vmatpush1.msra.mxu0 0.0
        %4175 = vmatprep.subr.mxu0 0.0
        %4176 = vmatpush1.msra.mxu0 0.0
        %4177 = vmatprep.subr.mxu0 0.0
        %4178 = vmatpush1.msra.mxu0 0.0
        %4179 = vmatprep.subr.mxu0 0.0
        %4180 = vmatpush1.msra.mxu0 0.0
        %4181 = vmatprep.subr.mxu0 0.0
        %4182 = vmatpush1.msra.mxu0 0.0
        %4183 = vmatprep.subr.mxu0 0.0
        %4184 = vmatpush1.msra.mxu0 0.0
        %4185 = vmatprep.subr.mxu0 0.0
        %4186 = vmatpush1.msra.mxu0 0.0
        %4187 = vmatprep.subr.mxu0 0.0
        %4188 = vmatpush1.msra.mxu0 0.0
        %4189 = vmatprep.subr.mxu0 0.0
        %4190 = vmatpush1.msra.mxu0 0.0
        %4191 = vmatprep.subr.mxu0 0.0
        %4192 = vmatpush1.msra.mxu0 0.0
        %4193 = vmatprep.subr.mxu0 0.0
        %4194 = vmatpush1.msra.mxu0 0.0
        %4195 = vmatprep.subr.mxu0 0.0
        %4196 = vmatpush1.msra.mxu0 0.0
        %4197 = vmatprep.subr.mxu0 0.0
        %4198 = vmatpush1.msra.mxu0 0.0
        %4199 = vmatprep.subr.mxu0 0.0
        %4200 = vmatpush1.msra.mxu0 0.0
        %4201 = vmatprep.mubr.f32.mxu0 0.0
        %4202 = vmatmul.mubr.f32.gmra.mrb[0].mxu0 %v4135
        %v4203 = vpop.f32.mrb[0].mxu0
        %v4204 = vadd.f32 0.0, %v4203
        %v4205 = vpop.f32.mrb[0].mxu0
        %4206 = vdwg.mxu0
        %v4208 = vsel %vm733, %v4204, 0
        %4210 = vmatprep.subr.mxu0 0.0
        %4211 = vmatpush1.msra.mxu0 %v3817
        %4212 = vmatprep.subr.mxu0 0.0
        %4213 = vmatpush1.msra.mxu0 %v3818
        %4214 = vmatprep.subr.mxu0 0.0
        %4215 = vmatpush1.msra.mxu0 %v3819
        %4216 = vmatprep.subr.mxu0 0.0
        %4217 = vmatpush1.msra.mxu0 %v3820
        %4218 = vmatprep.subr.mxu0 0.0
        %4219 = vmatpush1.msra.mxu0 0.0
        %4220 = vmatprep.subr.mxu0 0.0
        %4221 = vmatpush1.msra.mxu0 0.0
        %4222 = vmatprep.subr.mxu0 0.0
        %4223 = vmatpush1.msra.mxu0 0.0
        %4224 = vmatprep.subr.mxu0 0.0
        %4225 = vmatpush1.msra.mxu0 0.0
        %4226 = vmatprep.subr.mxu0 0.0
        %4227 = vmatpush1.msra.mxu0 0.0
        %4228 = vmatprep.subr.mxu0 0.0
        %4229 = vmatpush1.msra.mxu0 0.0
        %4230 = vmatprep.subr.mxu0 0.0
        %4231 = vmatpush1.msra.mxu0 0.0
        %4232 = vmatprep.subr.mxu0 0.0
        %4233 = vmatpush1.msra.mxu0 0.0
        %4234 = vmatprep.subr.mxu0 0.0
        %4235 = vmatpush1.msra.mxu0 0.0
        %4236 = vmatprep.subr.mxu0 0.0
        %4237 = vmatpush1.msra.mxu0 0.0
        %4238 = vmatprep.subr.mxu0 0.0
        %4239 = vmatpush1.msra.mxu0 0.0
        %4240 = vmatprep.subr.mxu0 0.0
        %4241 = vmatpush1.msra.mxu0 0.0
        %4242 = vmatprep.subr.mxu0 0.0
        %4243 = vmatpush1.msra.mxu0 0.0
        %4244 = vmatprep.subr.mxu0 0.0
        %4245 = vmatpush1.msra.mxu0 0.0
        %4246 = vmatprep.subr.mxu0 0.0
        %4247 = vmatpush1.msra.mxu0 0.0
        %4248 = vmatprep.subr.mxu0 0.0
        %4249 = vmatpush1.msra.mxu0 0.0
        %4250 = vmatprep.subr.mxu0 0.0
        %4251 = vmatpush1.msra.mxu0 0.0
        %4252 = vmatprep.subr.mxu0 0.0
        %4253 = vmatpush1.msra.mxu0 0.0
        %4254 = vmatprep.subr.mxu0 0.0
        %4255 = vmatpush1.msra.mxu0 0.0
        %4256 = vmatprep.subr.mxu0 0.0
        %4257 = vmatpush1.msra.mxu0 0.0
        %4258 = vmatprep.subr.mxu0 0.0
        %4259 = vmatpush1.msra.mxu0 0.0
        %4260 = vmatprep.subr.mxu0 0.0
        %4261 = vmatpush1.msra.mxu0 0.0
        %4262 = vmatprep.subr.mxu0 0.0
        %4263 = vmatpush1.msra.mxu0 0.0
        %4264 = vmatprep.subr.mxu0 0.0
        %4265 = vmatpush1.msra.mxu0 0.0
        %4266 = vmatprep.subr.mxu0 0.0
        %4267 = vmatpush1.msra.mxu0 0.0
        %4268 = vmatprep.subr.mxu0 0.0
        %4269 = vmatpush1.msra.mxu0 0.0
        %4270 = vmatprep.subr.mxu0 0.0
        %4271 = vmatpush1.msra.mxu0 0.0
        %4272 = vmatprep.subr.mxu0 0.0
        %4273 = vmatpush1.msra.mxu0 0.0
        %4274 = vmatprep.mubr.f32.mxu0 0.0
        %4275 = vmatmul.mubr.f32.gmra.mrb[0].mxu0 %v4208
        %v4276 = vpop.f32.mrb[0].mxu0
        %v4277 = vadd.f32 %v3908, %v4276
        %v4278 = vpop.f32.mrb[0].mxu0
        %4279 = vdwg.mxu0
        %v4280 = vtanh.pop %v4277
        %v4281 = vld [vmem:[%s11] sm:$0xff]
        %v4282 = vld [vmem:[%s11 + $0x8] sm:$0xff]
        %v4283 = vld [vmem:[%s11 + $0x10] sm:$0xff]
        %v4284 = vld [vmem:[%s11 + $0x18] sm:$0xff]
        %v4285 = vld [vmem:[%s11 + $0x20] sm:$0xff]
        %v4286 = vld [vmem:[%s11 + $0x28] sm:$0xff]
        %v4287 = vld [vmem:[%s11 + $0x30] sm:$0xff]
        %v4288 = vld [vmem:[%s11 + $0x38] sm:$0xff]
        %v4289 = vld [vmem:[%s11 + $0x40] sm:$0x1]
        %s4290 = scalar_lea.vmem %s11, 72
        %v4291 = vld [vmem:[%s4290] sm:$0xff]
        %v4292 = vld [vmem:[%s4290 + $0x8] sm:$0xff]
        %v4293 = vld [vmem:[%s4290 + $0x10] sm:$0xff]
        %v4294 = vld [vmem:[%s4290 + $0x18] sm:$0xff]
        %v4295 = vld [vmem:[%s4290 + $0x20] sm:$0xff]
        %v4296 = vld [vmem:[%s4290 + $0x28] sm:$0xff]
        %v4297 = vld [vmem:[%s4290 + $0x30] sm:$0xff]
        %v4298 = vld [vmem:[%s4290 + $0x38] sm:$0xff]
        %v4299 = vld [vmem:[%s4290 + $0x40] sm:$0x1]
        %vm4300 = vcmp.gt.f32.partialorder %v3816, 0.0
        %v4301 = vsel %vm4300, 1, 0
        %v4302 = vcvt.s32.f32 %v4301
        %v4303 = vsel %vm733, %v3982, 0.0
        %v4304 = vlaneseq
        %v4305 = vshrl.u32 %v4304, 7
        %v4306 = vsub.s32 0, %v4305
        %v4307 = vrot.slane %v4289, %v4306
        %vm4308 = vcmask 523264
        %v4310 = vsel %vm4308, %v4303, 0
        %4312 = vmatprep.subr.mxu0 0.0
        %4313 = vmatpush1.msra.mxu0 %v4281
        %4314 = vmatprep.subr.mxu0 0.0
        %4315 = vmatpush1.msra.mxu0 %v4282
        %4316 = vmatprep.subr.mxu0 0.0
        %4317 = vmatpush1.msra.mxu0 %v4283
        %4318 = vmatprep.subr.mxu0 0.0
        %4319 = vmatpush1.msra.mxu0 %v4284
        %4320 = vmatprep.subr.mxu0 0.0
        %4321 = vmatpush1.msra.mxu0 %v4285
        %4322 = vmatprep.subr.mxu0 0.0
        %4323 = vmatpush1.msra.mxu0 %v4286
        %4324 = vmatprep.subr.mxu0 0.0
        %4325 = vmatpush1.msra.mxu0 %v4287
        %4326 = vmatprep.subr.mxu0 0.0
        %4327 = vmatpush1.msra.mxu0 %v4288
        %4328 = vmatprep.subr.mxu0 0.0
        %4329 = vmatpush1.msra.mxu0 0.0
        %4330 = vmatprep.subr.mxu0 0.0
        %4331 = vmatpush1.msra.mxu0 0.0
        %4332 = vmatprep.subr.mxu0 0.0
        %4333 = vmatpush1.msra.mxu0 0.0
        %4334 = vmatprep.subr.mxu0 0.0
        %4335 = vmatpush1.msra.mxu0 0.0
        %4336 = vmatprep.subr.mxu0 0.0
        %4337 = vmatpush1.msra.mxu0 0.0
        %4338 = vmatprep.subr.mxu0 0.0
        %4339 = vmatpush1.msra.mxu0 0.0
        %4340 = vmatprep.subr.mxu0 0.0
        %4341 = vmatpush1.msra.mxu0 0.0
        %4342 = vmatprep.subr.mxu0 0.0
        %4343 = vmatpush1.msra.mxu0 0.0
        %4344 = vmatprep.subr.mxu0 0.0
        %4345 = vmatpush1.msra.mxu0 0.0
        %4346 = vmatprep.subr.mxu0 0.0
        %4347 = vmatpush1.msra.mxu0 0.0
        %4348 = vmatprep.subr.mxu0 0.0
        %4349 = vmatpush1.msra.mxu0 0.0
        %4350 = vmatprep.subr.mxu0 0.0
        %4351 = vmatpush1.msra.mxu0 0.0
        %4352 = vmatprep.subr.mxu0 0.0
        %4353 = vmatpush1.msra.mxu0 0.0
        %4354 = vmatprep.subr.mxu0 0.0
        %4355 = vmatpush1.msra.mxu0 0.0
        %4356 = vmatprep.subr.mxu0 0.0
        %4357 = vmatpush1.msra.mxu0 0.0
        %4358 = vmatprep.subr.mxu0 0.0
        %4359 = vmatpush1.msra.mxu0 0.0
        %4360 = vmatprep.subr.mxu0 0.0
        %4361 = vmatpush1.msra.mxu0 0.0
        %4362 = vmatprep.subr.mxu0 0.0
        %4363 = vmatpush1.msra.mxu0 0.0
        %4364 = vmatprep.subr.mxu0 0.0
        %4365 = vmatpush1.msra.mxu0 0.0
        %4366 = vmatprep.subr.mxu0 0.0
        %4367 = vmatpush1.msra.mxu0 0.0
        %4368 = vmatprep.subr.mxu0 0.0
        %4369 = vmatpush1.msra.mxu0 0.0
        %4370 = vmatprep.subr.mxu0 0.0
        %4371 = vmatpush1.msra.mxu0 0.0
        %4372 = vmatprep.subr.mxu0 0.0
        %4373 = vmatpush1.msra.mxu0 0.0
        %4374 = vmatprep.subr.mxu0 0.0
        %4375 = vmatpush1.msra.mxu0 0.0
        %4376 = vmatprep.mubr.f32.mxu0 0.0
        %4377 = vmatmul.mubr.f32.gmra.mrb[0].mxu0 %v4310
        %v4378 = vpop.f32.mrb[0].mxu0
        %v4379 = vadd.f32 %v4307, %v4378
        %v4380 = vpop.f32.mrb[0].mxu0
        %4381 = vdwg.mxu0
        %v4382 = vxor.u32 %v4379, 2147483648
        %v4383 = vmul.f32 %v4382, 1.442695
        %v4384 = vpow.pop %v4383
        %v4385 = vadd.f32 %v4384, 1.0
        %v4386 = vrcp.pop %v4385
        %v4387 = vmul.f32 1.0, %v4386
        %v4388 = vtanh.pop %v4379
        %v4389 = vmul.f32 %v4387, 0.0
        %4391 = vrot.lane.b32.xlu0 %v4388, 64
        %v4392 = vpop.permute.xlu0 %4391
        %v4394 = vmul.f32 %v4387, %v4392
        %4396 = vrot.lane.b32.xlu0 %v4394, 32
        %v4397 = vpop.permute.xlu0 %4396
        %v4399 = vadd.f32 %v4389, %v4397
        %v4400 = vtanh.pop %v4399
        %4402 = vrot.lane.b32.xlu0 %v4400, 64
        %v4403 = vpop.permute.xlu0 %4402
        %v4405 = vmul.f32 %v4387, %v4403
        %4407 = vset.pattern.permute.xlu0 0
        %4408 = vperm.xlu0 %4407, %v4302
        %v4409 = vpop.permute.xlu0 %4408
        %v4411 = vmul.f32 %v4409, %v4405
        %v4412 = vsub.f32 1.0, %v4302
        %4414 = vset.pattern.permute.xlu0 0
        %4415 = vperm.xlu0 %4414, %v4412
        %v4416 = vpop.permute.xlu0 %4415
        %v4418 = vmul.f32 %v4416, 0.0
        %v4419 = vadd.f32 %v4411, %v4418
        %v4420 = vmul.f32 %v4409, %v4399
        %v4421 = vadd.f32 %v4420, %v4418
        %v4422 = vmul.f32 %v4409, %v4419
        %vm4423 = vcmp.gt.f32.partialorder %v3816, 1.0
        %v4424 = vsel %vm4423, 1, 0
        %v4425 = vcvt.s32.f32 %v4424
        %4427 = vrot.lane.b32.xlu0 %v4419, 64
        %v4428 = vpop.permute.xlu0 %4427
        %v4430 = vsel %vm733, %v4131, %v4428
        %v4432 = vsel %vm4308, %v4430, 0
        %4434 = vmatprep.subr.mxu0 0.0
        %4435 = vmatpush1.msra.mxu0 %v4281
        %4436 = vmatprep.subr.mxu0 0.0
        %4437 = vmatpush1.msra.mxu0 %v4282
        %4438 = vmatprep.subr.mxu0 0.0
        %4439 = vmatpush1.msra.mxu0 %v4283
        %4440 = vmatprep.subr.mxu0 0.0
        %4441 = vmatpush1.msra.mxu0 %v4284
        %4442 = vmatprep.subr.mxu0 0.0
        %4443 = vmatpush1.msra.mxu0 %v4285
        %4444 = vmatprep.subr.mxu0 0.0
        %4445 = vmatpush1.msra.mxu0 %v4286
        %4446 = vmatprep.subr.mxu0 0.0
        %4447 = vmatpush1.msra.mxu0 %v4287
        %4448 = vmatprep.subr.mxu0 0.0
        %4449 = vmatpush1.msra.mxu0 %v4288
        %4450 = vmatprep.subr.mxu0 0.0
        %4451 = vmatpush1.msra.mxu0 0.0
        %4452 = vmatprep.subr.mxu0 0.0
        %4453 = vmatpush1.msra.mxu0 0.0
        %4454 = vmatprep.subr.mxu0 0.0
        %4455 = vmatpush1.msra.mxu0 0.0
        %4456 = vmatprep.subr.mxu0 0.0
        %4457 = vmatpush1.msra.mxu0 0.0
        %4458 = vmatprep.subr.mxu0 0.0
        %4459 = vmatpush1.msra.mxu0 0.0
        %4460 = vmatprep.subr.mxu0 0.0
        %4461 = vmatpush1.msra.mxu0 0.0
        %4462 = vmatprep.subr.mxu0 0.0
        %4463 = vmatpush1.msra.mxu0 0.0
        %4464 = vmatprep.subr.mxu0 0.0
        %4465 = vmatpush1.msra.mxu0 0.0
        %4466 = vmatprep.subr.mxu0 0.0
        %4467 = vmatpush1.msra.mxu0 0.0
        %4468 = vmatprep.subr.mxu0 0.0
        %4469 = vmatpush1.msra.mxu0 0.0
        %4470 = vmatprep.subr.mxu0 0.0
        %4471 = vmatpush1.msra.mxu0 0.0
        %4472 = vmatprep.subr.mxu0 0.0
        %4473 = vmatpush1.msra.mxu0 0.0
        %4474 = vmatprep.subr.mxu0 0.0
        %4475 = vmatpush1.msra.mxu0 0.0
        %4476 = vmatprep.subr.mxu0 0.0
        %4477 = vmatpush1.msra.mxu0 0.0
        %4478 = vmatprep.subr.mxu0 0.0
        %4479 = vmatpush1.msra.mxu0 0.0
        %4480 = vmatprep.subr.mxu0 0.0
        %4481 = vmatpush1.msra.mxu0 0.0
        %4482 = vmatprep.subr.mxu0 0.0
        %4483 = vmatpush1.msra.mxu0 0.0
        %4484 = vmatprep.subr.mxu0 0.0
        %4485 = vmatpush1.msra.mxu0 0.0
        %4486 = vmatprep.subr.mxu0 0.0
        %4487 = vmatpush1.msra.mxu0 0.0
        %4488 = vmatprep.subr.mxu0 0.0
        %4489 = vmatpush1.msra.mxu0 0.0
        %4490 = vmatprep.subr.mxu0 0.0
        %4491 = vmatpush1.msra.mxu0 0.0
        %4492 = vmatprep.subr.mxu0 0.0
        %4493 = vmatpush1.msra.mxu0 0.0
        %4494 = vmatprep.subr.mxu0 0.0
        %4495 = vmatpush1.msra.mxu0 0.0
        %4496 = vmatprep.subr.mxu0 0.0
        %4497 = vmatpush1.msra.mxu0 0.0
        %4498 = vmatprep.mubr.f32.mxu0 0.0
        %4499 = vmatmul.mubr.f32.gmra.mrb[0].mxu0 %v4432
        %v4500 = vpop.f32.mrb[0].mxu0
        %v4501 = vadd.f32 %v4307, %v4500
        %v4502 = vpop.f32.mrb[0].mxu0
        %4503 = vdwg.mxu0
        %v4504 = vxor.u32 %v4501, 2147483648
        %v4505 = vmul.f32 %v4504, 1.442695
        %v4506 = vpow.pop %v4505
        %v4507 = vadd.f32 %v4506, 1.0
        %v4508 = vrcp.pop %v4507
        %v4509 = vmul.f32 1.0, %v4508
        %v4510 = vtanh.pop %v4501
        %v4511 = vmul.f32 %v4509, %v4421
        %4513 = vrot.lane.b32.xlu0 %v4510, 64
        %v4514 = vpop.permute.xlu0 %4513
        %v4516 = vmul.f32 %v4509, %v4514
        %4518 = vrot.lane.b32.xlu0 %v4516, 32
        %v4519 = vpop.permute.xlu0 %4518
        %v4521 = vadd.f32 %v4511, %v4519
        %v4522 = vtanh.pop %v4521
        %4524 = vrot.lane.b32.xlu0 %v4522, 64
        %v4525 = vpop.permute.xlu0 %4524
        %v4527 = vmul.f32 %v4509, %v4525
        %4529 = vset.pattern.permute.xlu0 0
        %4530 = vperm.xlu0 %4529, %v4425
        %v4531 = vpop.permute.xlu0 %4530
        %v4533 = vmul.f32 %v4531, %v4527
        %v4534 = vsub.f32 1.0, %v4425
        %4536 = vset.pattern.permute.xlu0 0
        %4537 = vperm.xlu0 %4536, %v4534
        %v4538 = vpop.permute.xlu0 %4537
        %v4540 = vmul.f32 %v4538, %v4419
        %v4541 = vadd.f32 %v4533, %v4540
        %v4542 = vmul.f32 %v4531, %v4521
        %v4543 = vmul.f32 %v4538, %v4421
        %v4544 = vadd.f32 %v4542, %v4543
        %v4545 = vmul.f32 %v4531, %v4541
        %vm4546 = vcmp.gt.f32.partialorder %v3816, 2.0
        %v4547 = vsel %vm4546, 1, 0
        %v4548 = vcvt.s32.f32 %v4547
        %4550 = vrot.lane.b32.xlu0 %v4541, 64
        %v4551 = vpop.permute.xlu0 %4550
        %v4553 = vsel %vm733, %v4280, %v4551
        %v4555 = vsel %vm4308, %v4553, 0
        %4557 = vmatprep.subr.mxu0 0.0
        %4558 = vmatpush1.msra.mxu0 %v4281
        %4559 = vmatprep.subr.mxu0 0.0
        %4560 = vmatpush1.msra.mxu0 %v4282
        %4561 = vmatprep.subr.mxu0 0.0
        %4562 = vmatpush1.msra.mxu0 %v4283
        %4563 = vmatprep.subr.mxu0 0.0
        %4564 = vmatpush1.msra.mxu0 %v4284
        %4565 = vmatprep.subr.mxu0 0.0
        %4566 = vmatpush1.msra.mxu0 %v4285
        %4567 = vmatprep.subr.mxu0 0.0
        %4568 = vmatpush1.msra.mxu0 %v4286
        %4569 = vmatprep.subr.mxu0 0.0
        %4570 = vmatpush1.msra.mxu0 %v4287
        %4571 = vmatprep.subr.mxu0 0.0
        %4572 = vmatpush1.msra.mxu0 %v4288
        %4573 = vmatprep.subr.mxu0 0.0
        %4574 = vmatpush1.msra.mxu0 0.0
        %4575 = vmatprep.subr.mxu0 0.0
        %4576 = vmatpush1.msra.mxu0 0.0
        %4577 = vmatprep.subr.mxu0 0.0
        %4578 = vmatpush1.msra.mxu0 0.0
        %4579 = vmatprep.subr.mxu0 0.0
        %4580 = vmatpush1.msra.mxu0 0.0
        %4581 = vmatprep.subr.mxu0 0.0
        %4582 = vmatpush1.msra.mxu0 0.0
        %4583 = vmatprep.subr.mxu0 0.0
        %4584 = vmatpush1.msra.mxu0 0.0
        %4585 = vmatprep.subr.mxu0 0.0
        %4586 = vmatpush1.msra.mxu0 0.0
        %4587 = vmatprep.subr.mxu0 0.0
        %4588 = vmatpush1.msra.mxu0 0.0
        %4589 = vmatprep.subr.mxu0 0.0
        %4590 = vmatpush1.msra.mxu0 0.0
        %4591 = vmatprep.subr.mxu0 0.0
        %4592 = vmatpush1.msra.mxu0 0.0
        %4593 = vmatprep.subr.mxu0 0.0
        %4594 = vmatpush1.msra.mxu0 0.0
        %4595 = vmatprep.subr.mxu0 0.0
        %4596 = vmatpush1.msra.mxu0 0.0
        %4597 = vmatprep.subr.mxu0 0.0
        %4598 = vmatpush1.msra.mxu0 0.0
        %4599 = vmatprep.subr.mxu0 0.0
        %4600 = vmatpush1.msra.mxu0 0.0
        %4601 = vmatprep.subr.mxu0 0.0
        %4602 = vmatpush1.msra.mxu0 0.0
        %4603 = vmatprep.subr.mxu0 0.0
        %4604 = vmatpush1.msra.mxu0 0.0
        %4605 = vmatprep.subr.mxu0 0.0
        %4606 = vmatpush1.msra.mxu0 0.0
        %4607 = vmatprep.subr.mxu0 0.0
        %4608 = vmatpush1.msra.mxu0 0.0
        %4609 = vmatprep.subr.mxu0 0.0
        %4610 = vmatpush1.msra.mxu0 0.0
        %4611 = vmatprep.subr.mxu0 0.0
        %4612 = vmatpush1.msra.mxu0 0.0
        %4613 = vmatprep.subr.mxu0 0.0
        %4614 = vmatpush1.msra.mxu0 0.0
        %4615 = vmatprep.subr.mxu0 0.0
        %4616 = vmatpush1.msra.mxu0 0.0
        %4617 = vmatprep.subr.mxu0 0.0
        %4618 = vmatpush1.msra.mxu0 0.0
        %4619 = vmatprep.subr.mxu0 0.0
        %4620 = vmatpush1.msra.mxu0 0.0
        %4621 = vmatprep.mubr.f32.mxu0 0.0
        %4622 = vmatmul.mubr.f32.gmra.mrb[0].mxu0 %v4555
        %v4623 = vpop.f32.mrb[0].mxu0
        %v4624 = vadd.f32 %v4307, %v4623
        %v4625 = vpop.f32.mrb[0].mxu0
        %4626 = vdwg.mxu0
        %v4627 = vxor.u32 %v4624, 2147483648
        %v4628 = vmul.f32 %v4627, 1.442695
        %v4629 = vpow.pop %v4628
        %v4630 = vadd.f32 %v4629, 1.0
        %v4631 = vrcp.pop %v4630
        %v4632 = vmul.f32 1.0, %v4631
        %v4633 = vtanh.pop %v4624
        %v4634 = vmul.f32 %v4632, %v4544
        %4636 = vrot.lane.b32.xlu0 %v4633, 64
        %v4637 = vpop.permute.xlu0 %4636
        %v4639 = vmul.f32 %v4632, %v4637
        %4641 = vrot.lane.b32.xlu0 %v4639, 32
        %v4642 = vpop.permute.xlu0 %4641
        %v4644 = vadd.f32 %v4634, %v4642
        %v4645 = vtanh.pop %v4644
        %4647 = vrot.lane.b32.xlu0 %v4645, 64
        %v4648 = vpop.permute.xlu0 %4647
        %v4650 = vmul.f32 %v4632, %v4648
        %4652 = vset.pattern.permute.xlu0 0
        %4653 = vperm.xlu0 %4652, %v4548
        %v4654 = vpop.permute.xlu0 %4653
        %v4656 = vmul.f32 %v4654, %v4650
        %v4657 = vsub.f32 1.0, %v4548
        %4659 = vset.pattern.permute.xlu0 0
        %4660 = vperm.xlu0 %4659, %v4657
        %v4661 = vpop.permute.xlu0 %4660
        %v4663 = vmul.f32 %v4661, %v4541
        %v4664 = vadd.f32 %v4656, %v4663
        %v4665 = vmul.f32 %v4654, %v4664
        %v4666 = vsel %vm733, %v4280, 0.0
        %v4667 = vlaneseq
        %v4668 = vshrl.u32 %v4667, 7
        %v4669 = vsub.s32 0, %v4668
        %v4670 = vrot.slane %v4299, %v4669
        %v4672 = vsel %vm4308, %v4666, 0
        %4674 = vmatprep.subr.mxu0 0.0
        %4675 = vmatpush1.msra.mxu0 %v4291
        %4676 = vmatprep.subr.mxu0 0.0
        %4677 = vmatpush1.msra.mxu0 %v4292
        %4678 = vmatprep.subr.mxu0 0.0
        %4679 = vmatpush1.msra.mxu0 %v4293
        %4680 = vmatprep.subr.mxu0 0.0
        %4681 = vmatpush1.msra.mxu0 %v4294
        %4682 = vmatprep.subr.mxu0 0.0
        %4683 = vmatpush1.msra.mxu0 %v4295
        %4684 = vmatprep.subr.mxu0 0.0
        %4685 = vmatpush1.msra.mxu0 %v4296
        %4686 = vmatprep.subr.mxu0 0.0
        %4687 = vmatpush1.msra.mxu0 %v4297
        %4688 = vmatprep.subr.mxu0 0.0
        %4689 = vmatpush1.msra.mxu0 %v4298
        %4690 = vmatprep.subr.mxu0 0.0
        %4691 = vmatpush1.msra.mxu0 0.0
        %4692 = vmatprep.subr.mxu0 0.0
        %4693 = vmatpush1.msra.mxu0 0.0
        %4694 = vmatprep.subr.mxu0 0.0
        %4695 = vmatpush1.msra.mxu0 0.0
        %4696 = vmatprep.subr.mxu0 0.0
        %4697 = vmatpush1.msra.mxu0 0.0
        %4698 = vmatprep.subr.mxu0 0.0
        %4699 = vmatpush1.msra.mxu0 0.0
        %4700 = vmatprep.subr.mxu0 0.0
        %4701 = vmatpush1.msra.mxu0 0.0
        %4702 = vmatprep.subr.mxu0 0.0
        %4703 = vmatpush1.msra.mxu0 0.0
        %4704 = vmatprep.subr.mxu0 0.0
        %4705 = vmatpush1.msra.mxu0 0.0
        %4706 = vmatprep.subr.mxu0 0.0
        %4707 = vmatpush1.msra.mxu0 0.0
        %4708 = vmatprep.subr.mxu0 0.0
        %4709 = vmatpush1.msra.mxu0 0.0
        %4710 = vmatprep.subr.mxu0 0.0
        %4711 = vmatpush1.msra.mxu0 0.0
        %4712 = vmatprep.subr.mxu0 0.0
        %4713 = vmatpush1.msra.mxu0 0.0
        %4714 = vmatprep.subr.mxu0 0.0
        %4715 = vmatpush1.msra.mxu0 0.0
        %4716 = vmatprep.subr.mxu0 0.0
        %4717 = vmatpush1.msra.mxu0 0.0
        %4718 = vmatprep.subr.mxu0 0.0
        %4719 = vmatpush1.msra.mxu0 0.0
        %4720 = vmatprep.subr.mxu0 0.0
        %4721 = vmatpush1.msra.mxu0 0.0
        %4722 = vmatprep.subr.mxu0 0.0
        %4723 = vmatpush1.msra.mxu0 0.0
        %4724 = vmatprep.subr.mxu0 0.0
        %4725 = vmatpush1.msra.mxu0 0.0
        %4726 = vmatprep.subr.mxu0 0.0
        %4727 = vmatpush1.msra.mxu0 0.0
        %4728 = vmatprep.subr.mxu0 0.0
        %4729 = vmatpush1.msra.mxu0 0.0
        %4730 = vmatprep.subr.mxu0 0.0
        %4731 = vmatpush1.msra.mxu0 0.0
        %4732 = vmatprep.subr.mxu0 0.0
        %4733 = vmatpush1.msra.mxu0 0.0
        %4734 = vmatprep.subr.mxu0 0.0
        %4735 = vmatpush1.msra.mxu0 0.0
        %4736 = vmatprep.subr.mxu0 0.0
        %4737 = vmatpush1.msra.mxu0 0.0
        %4738 = vmatprep.mubr.f32.mxu0 0.0
        %4739 = vmatmul.mubr.f32.gmra.mrb[0].mxu0 %v4672
        %v4740 = vpop.f32.mrb[0].mxu0
        %v4741 = vadd.f32 %v4670, %v4740
        %v4742 = vpop.f32.mrb[0].mxu0
        %4743 = vdwg.mxu0
        %v4744 = vxor.u32 %v4741, 2147483648
        %v4745 = vmul.f32 %v4744, 1.442695
        %v4746 = vpow.pop %v4745
        %v4747 = vadd.f32 %v4746, 1.0
        %v4748 = vrcp.pop %v4747
        %v4749 = vmul.f32 1.0, %v4748
        %v4750 = vtanh.pop %v4741
        %v4751 = vmul.f32 %v4749, 0.0
        %4753 = vrot.lane.b32.xlu0 %v4750, 64
        %v4754 = vpop.permute.xlu0 %4753
        %v4756 = vmul.f32 %v4749, %v4754
        %4758 = vrot.lane.b32.xlu0 %v4756, 32
        %v4759 = vpop.permute.xlu0 %4758
        %v4761 = vadd.f32 %v4751, %v4759
        %v4762 = vtanh.pop %v4761
        %4764 = vrot.lane.b32.xlu0 %v4762, 64
        %v4765 = vpop.permute.xlu0 %4764
        %v4767 = vmul.f32 %v4749, %v4765
        %v4768 = vmul.f32 %v4654, %v4767
        %v4769 = vmul.f32 %v4661, 0.0
        %v4770 = vadd.f32 %v4768, %v4769
        %v4771 = vmul.f32 %v4654, %v4761
        %v4772 = vadd.f32 %v4771, %v4769
        %v4773 = vmul.f32 %v4654, %v4770
        %4775 = vrot.lane.b32.xlu0 %v4770, 64
        %v4776 = vpop.permute.xlu0 %4775
        %v4778 = vsel %vm733, %v4131, %v4776
        %v4780 = vsel %vm4308, %v4778, 0
        %4782 = vmatprep.subr.mxu0 0.0
        %4783 = vmatpush1.msra.mxu0 %v4291
        %4784 = vmatprep.subr.mxu0 0.0
        %4785 = vmatpush1.msra.mxu0 %v4292
        %4786 = vmatprep.subr.mxu0 0.0
        %4787 = vmatpush1.msra.mxu0 %v4293
        %4788 = vmatprep.subr.mxu0 0.0
        %4789 = vmatpush1.msra.mxu0 %v4294
        %4790 = vmatprep.subr.mxu0 0.0
        %4791 = vmatpush1.msra.mxu0 %v4295
        %4792 = vmatprep.subr.mxu0 0.0
        %4793 = vmatpush1.msra.mxu0 %v4296
        %4794 = vmatprep.subr.mxu0 0.0
        %4795 = vmatpush1.msra.mxu0 %v4297
        %4796 = vmatprep.subr.mxu0 0.0
        %4797 = vmatpush1.msra.mxu0 %v4298
        %4798 = vmatprep.subr.mxu0 0.0
        %4799 = vmatpush1.msra.mxu0 0.0
        %4800 = vmatprep.subr.mxu0 0.0
        %4801 = vmatpush1.msra.mxu0 0.0
        %4802 = vmatprep.subr.mxu0 0.0
        %4803 = vmatpush1.msra.mxu0 0.0
        %4804 = vmatprep.subr.mxu0 0.0
        %4805 = vmatpush1.msra.mxu0 0.0
        %4806 = vmatprep.subr.mxu0 0.0
        %4807 = vmatpush1.msra.mxu0 0.0
        %4808 = vmatprep.subr.mxu0 0.0
        %4809 = vmatpush1.msra.mxu0 0.0
        %4810 = vmatprep.subr.mxu0 0.0
        %4811 = vmatpush1.msra.mxu0 0.0
        %4812 = vmatprep.subr.mxu0 0.0
        %4813 = vmatpush1.msra.mxu0 0.0
        %4814 = vmatprep.subr.mxu0 0.0
        %4815 = vmatpush1.msra.mxu0 0.0
        %4816 = vmatprep.subr.mxu0 0.0
        %4817 = vmatpush1.msra.mxu0 0.0
        %4818 = vmatprep.subr.mxu0 0.0
        %4819 = vmatpush1.msra.mxu0 0.0
        %4820 = vmatprep.subr.mxu0 0.0
        %4821 = vmatpush1.msra.mxu0 0.0
        %4822 = vmatprep.subr.mxu0 0.0
        %4823 = vmatpush1.msra.mxu0 0.0
        %4824 = vmatprep.subr.mxu0 0.0
        %4825 = vmatpush1.msra.mxu0 0.0
        %4826 = vmatprep.subr.mxu0 0.0
        %4827 = vmatpush1.msra.mxu0 0.0
        %4828 = vmatprep.subr.mxu0 0.0
        %4829 = vmatpush1.msra.mxu0 0.0
        %4830 = vmatprep.subr.mxu0 0.0
        %4831 = vmatpush1.msra.mxu0 0.0
        %4832 = vmatprep.subr.mxu0 0.0
        %4833 = vmatpush1.msra.mxu0 0.0
        %4834 = vmatprep.subr.mxu0 0.0
        %4835 = vmatpush1.msra.mxu0 0.0
        %4836 = vmatprep.subr.mxu0 0.0
        %4837 = vmatpush1.msra.mxu0 0.0
        %4838 = vmatprep.subr.mxu0 0.0
        %4839 = vmatpush1.msra.mxu0 0.0
        %4840 = vmatprep.subr.mxu0 0.0
        %4841 = vmatpush1.msra.mxu0 0.0
        %4842 = vmatprep.subr.mxu0 0.0
        %4843 = vmatpush1.msra.mxu0 0.0
        %4844 = vmatprep.subr.mxu0 0.0
        %4845 = vmatpush1.msra.mxu0 0.0
        %4846 = vmatprep.mubr.f32.mxu0 0.0
        %4847 = vmatmul.mubr.f32.gmra.mrb[0].mxu0 %v4780
        %v4848 = vpop.f32.mrb[0].mxu0
        %v4849 = vadd.f32 %v4670, %v4848
        %v4850 = vpop.f32.mrb[0].mxu0
        %4851 = vdwg.mxu0
        %v4852 = vxor.u32 %v4849, 2147483648
        %v4853 = vmul.f32 %v4852, 1.442695
        %v4854 = vpow.pop %v4853
        %v4855 = vadd.f32 %v4854, 1.0
        %v4856 = vrcp.pop %v4855
        %v4857 = vmul.f32 1.0, %v4856
        %v4858 = vtanh.pop %v4849
        %v4859 = vmul.f32 %v4857, %v4772
        %4861 = vrot.lane.b32.xlu0 %v4858, 64
        %v4862 = vpop.permute.xlu0 %4861
        %v4864 = vmul.f32 %v4857, %v4862
        %4866 = vrot.lane.b32.xlu0 %v4864, 32
        %v4867 = vpop.permute.xlu0 %4866
        %v4869 = vadd.f32 %v4859, %v4867
        %v4870 = vtanh.pop %v4869
        %4872 = vrot.lane.b32.xlu0 %v4870, 64
        %v4873 = vpop.permute.xlu0 %4872
        %v4875 = vmul.f32 %v4857, %v4873
        %v4876 = vmul.f32 %v4531, %v4875
        %v4877 = vmul.f32 %v4538, %v4770
        %v4878 = vadd.f32 %v4876, %v4877
        %v4879 = vmul.f32 %v4531, %v4869
        %v4880 = vmul.f32 %v4538, %v4772
        %v4881 = vadd.f32 %v4879, %v4880
        %v4882 = vmul.f32 %v4531, %v4878
        %4884 = vrot.lane.b32.xlu0 %v4878, 64
        %v4885 = vpop.permute.xlu0 %4884
        %v4887 = vsel %vm733, %v3982, %v4885
        %v4889 = vsel %vm4308, %v4887, 0
        %4891 = vmatprep.subr.mxu0 0.0
        %4892 = vmatpush1.msra.mxu0 %v4291
        %4893 = vmatprep.subr.mxu0 0.0
        %4894 = vmatpush1.msra.mxu0 %v4292
        %4895 = vmatprep.subr.mxu0 0.0
        %4896 = vmatpush1.msra.mxu0 %v4293
        %4897 = vmatprep.subr.mxu0 0.0
        %4898 = vmatpush1.msra.mxu0 %v4294
        %4899 = vmatprep.subr.mxu0 0.0
        %4900 = vmatpush1.msra.mxu0 %v4295
        %4901 = vmatprep.subr.mxu0 0.0
        %4902 = vmatpush1.msra.mxu0 %v4296
        %4903 = vmatprep.subr.mxu0 0.0
        %4904 = vmatpush1.msra.mxu0 %v4297
        %4905 = vmatprep.subr.mxu0 0.0
        %4906 = vmatpush1.msra.mxu0 %v4298
        %4907 = vmatprep.subr.mxu0 0.0
        %4908 = vmatpush1.msra.mxu0 0.0
        %4909 = vmatprep.subr.mxu0 0.0
        %4910 = vmatpush1.msra.mxu0 0.0
        %4911 = vmatprep.subr.mxu0 0.0
        %4912 = vmatpush1.msra.mxu0 0.0
        %4913 = vmatprep.subr.mxu0 0.0
        %4914 = vmatpush1.msra.mxu0 0.0
        %4915 = vmatprep.subr.mxu0 0.0
        %4916 = vmatpush1.msra.mxu0 0.0
        %4917 = vmatprep.subr.mxu0 0.0
        %4918 = vmatpush1.msra.mxu0 0.0
        %4919 = vmatprep.subr.mxu0 0.0
        %4920 = vmatpush1.msra.mxu0 0.0
        %4921 = vmatprep.subr.mxu0 0.0
        %4922 = vmatpush1.msra.mxu0 0.0
        %4923 = vmatprep.subr.mxu0 0.0
        %4924 = vmatpush1.msra.mxu0 0.0
        %4925 = vmatprep.subr.mxu0 0.0
        %4926 = vmatpush1.msra.mxu0 0.0
        %4927 = vmatprep.subr.mxu0 0.0
        %4928 = vmatpush1.msra.mxu0 0.0
        %4929 = vmatprep.subr.mxu0 0.0
        %4930 = vmatpush1.msra.mxu0 0.0
        %4931 = vmatprep.subr.mxu0 0.0
        %4932 = vmatpush1.msra.mxu0 0.0
        %4933 = vmatprep.subr.mxu0 0.0
        %4934 = vmatpush1.msra.mxu0 0.0
        %4935 = vmatprep.subr.mxu0 0.0
        %4936 = vmatpush1.msra.mxu0 0.0
        %4937 = vmatprep.subr.mxu0 0.0
        %4938 = vmatpush1.msra.mxu0 0.0
        %4939 = vmatprep.subr.mxu0 0.0
        %4940 = vmatpush1.msra.mxu0 0.0
        %4941 = vmatprep.subr.mxu0 0.0
        %4942 = vmatpush1.msra.mxu0 0.0
        %4943 = vmatprep.subr.mxu0 0.0
        %4944 = vmatpush1.msra.mxu0 0.0
        %4945 = vmatprep.subr.mxu0 0.0
        %4946 = vmatpush1.msra.mxu0 0.0
        %4947 = vmatprep.subr.mxu0 0.0
        %4948 = vmatpush1.msra.mxu0 0.0
        %4949 = vmatprep.subr.mxu0 0.0
        %4950 = vmatpush1.msra.mxu0 0.0
        %4951 = vmatprep.subr.mxu0 0.0
        %4952 = vmatpush1.msra.mxu0 0.0
        %4953 = vmatprep.subr.mxu0 0.0
        %4954 = vmatpush1.msra.mxu0 0.0
        %4955 = vmatprep.mubr.f32.mxu0 0.0
        %4956 = vmatmul.mubr.f32.gmra.mrb[0].mxu0 %v4889
        %v4957 = vpop.f32.mrb[0].mxu0
        %v4958 = vadd.f32 %v4670, %v4957
        %v4959 = vpop.f32.mrb[0].mxu0
        %4960 = vdwg.mxu0
        %v4961 = vxor.u32 %v4958, 2147483648
        %v4962 = vmul.f32 %v4961, 1.442695
        %v4963 = vpow.pop %v4962
        %v4964 = vadd.f32 %v4963, 1.0
        %v4965 = vrcp.pop %v4964
        %v4966 = vmul.f32 1.0, %v4965
        %v4967 = vtanh.pop %v4958
        %v4968 = vmul.f32 %v4966, %v4881
        %4970 = vrot.lane.b32.xlu0 %v4967, 64
        %v4971 = vpop.permute.xlu0 %4970
        %v4973 = vmul.f32 %v4966, %v4971
        %4975 = vrot.lane.b32.xlu0 %v4973, 32
        %v4976 = vpop.permute.xlu0 %4975
        %v4978 = vadd.f32 %v4968, %v4976
        %v4979 = vtanh.pop %v4978
        %4981 = vrot.lane.b32.xlu0 %v4979, 64
        %v4982 = vpop.permute.xlu0 %4981
        %v4984 = vmul.f32 %v4966, %v4982
        %v4985 = vmul.f32 %v4409, %v4984
        %v4986 = vmul.f32 %v4416, %v4878
        %v4987 = vadd.f32 %v4985, %v4986
        %v4988 = vmul.f32 %v4409, %v4987
        %4990 = vrot.lane.b32.xlu0 %v4422, 32
        %v4991 = vpop.permute.xlu0 %4990
        %4994 = vrot.lane.b32.xlu0 %v4988, 64
        %v4995 = vpop.permute.xlu0 %4994
        %v4997 = vsel %vm733, %v4991, %v4995
        %v4998 = vlaneseq
        %v4999 = vshrl.u32 %v4998, 7
        %v5000 = vsub.s32 0, %v4999
        %v5001 = vrot.slane %v3830, %v5000
        %v5003 = vsel %vm4308, %v4997, 0
        %5005 = vmatprep.subr.mxu0 0.0
        %5006 = vmatpush1.msra.mxu0 %v3821
        %5007 = vmatprep.subr.mxu0 0.0
        %5008 = vmatpush1.msra.mxu0 %v3822
        %5009 = vmatprep.subr.mxu0 0.0
        %5010 = vmatpush1.msra.mxu0 %v3823
        %5011 = vmatprep.subr.mxu0 0.0
        %5012 = vmatpush1.msra.mxu0 %v3824
        %5013 = vmatprep.subr.mxu0 0.0
        %5014 = vmatpush1.msra.mxu0 %v3825
        %5015 = vmatprep.subr.mxu0 0.0
        %5016 = vmatpush1.msra.mxu0 %v3826
        %5017 = vmatprep.subr.mxu0 0.0
        %5018 = vmatpush1.msra.mxu0 %v3827
        %5019 = vmatprep.subr.mxu0 0.0
        %5020 = vmatpush1.msra.mxu0 %v3828
        %5021 = vmatprep.subr.mxu0 0.0
        %5022 = vmatpush1.msra.mxu0 0.0
        %5023 = vmatprep.subr.mxu0 0.0
        %5024 = vmatpush1.msra.mxu0 0.0
        %5025 = vmatprep.subr.mxu0 0.0
        %5026 = vmatpush1.msra.mxu0 0.0
        %5027 = vmatprep.subr.mxu0 0.0
        %5028 = vmatpush1.msra.mxu0 0.0
        %5029 = vmatprep.subr.mxu0 0.0
        %5030 = vmatpush1.msra.mxu0 0.0
        %5031 = vmatprep.subr.mxu0 0.0
        %5032 = vmatpush1.msra.mxu0 0.0
        %5033 = vmatprep.subr.mxu0 0.0
        %5034 = vmatpush1.msra.mxu0 0.0
        %5035 = vmatprep.subr.mxu0 0.0
        %5036 = vmatpush1.msra.mxu0 0.0
        %5037 = vmatprep.subr.mxu0 0.0
        %5038 = vmatpush1.msra.mxu0 0.0
        %5039 = vmatprep.subr.mxu0 0.0
        %5040 = vmatpush1.msra.mxu0 0.0
        %5041 = vmatprep.subr.mxu0 0.0
        %5042 = vmatpush1.msra.mxu0 0.0
        %5043 = vmatprep.subr.mxu0 0.0
        %5044 = vmatpush1.msra.mxu0 0.0
        %5045 = vmatprep.subr.mxu0 0.0
        %5046 = vmatpush1.msra.mxu0 0.0
        %5047 = vmatprep.subr.mxu0 0.0
        %5048 = vmatpush1.msra.mxu0 0.0
        %5049 = vmatprep.subr.mxu0 0.0
        %5050 = vmatpush1.msra.mxu0 0.0
        %5051 = vmatprep.subr.mxu0 0.0
        %5052 = vmatpush1.msra.mxu0 0.0
        %5053 = vmatprep.subr.mxu0 0.0
        %5054 = vmatpush1.msra.mxu0 0.0
        %5055 = vmatprep.subr.mxu0 0.0
        %5056 = vmatpush1.msra.mxu0 0.0
        %5057 = vmatprep.subr.mxu0 0.0
        %5058 = vmatpush1.msra.mxu0 0.0
        %5059 = vmatprep.subr.mxu0 0.0
        %5060 = vmatpush1.msra.mxu0 0.0
        %5061 = vmatprep.subr.mxu0 0.0
        %5062 = vmatpush1.msra.mxu0 0.0
        %5063 = vmatprep.subr.mxu0 0.0
        %5064 = vmatpush1.msra.mxu0 0.0
        %5065 = vmatprep.subr.mxu0 0.0
        %5066 = vmatpush1.msra.mxu0 0.0
        %5067 = vmatprep.subr.mxu0 0.0
        %5068 = vmatpush1.msra.mxu0 0.0
        %5069 = vmatprep.mubr.f32.mxu0 0.0
        %5070 = vmatmul.mubr.f32.gmra.mrb[0].mxu0 %v5003
        %v5071 = vpop.f32.mrb[0].mxu0
        %v5072 = vadd.f32 %v5001, %v5071
        %v5073 = vpop.f32.mrb[0].mxu0
        %5074 = vdwg.mxu0
        %v5075 = vld [vmem:[%s564] sm:$0xff]
        %5077 = vrot.lane.b32.xlu0 %v4545, 32
        %v5078 = vpop.permute.xlu0 %5077
        %5081 = vrot.lane.b32.xlu0 %v4882, 64
        %v5082 = vpop.permute.xlu0 %5081
        %v5084 = vsel %vm733, %v5078, %v5082
        %v5086 = vsel %vm4308, %v5084, 0
        %5088 = vmatprep.subr.mxu0 0.0
        %5089 = vmatpush1.msra.mxu0 %v3821
        %5090 = vmatprep.subr.mxu0 0.0
        %5091 = vmatpush1.msra.mxu0 %v3822
        %5092 = vmatprep.subr.mxu0 0.0
        %5093 = vmatpush1.msra.mxu0 %v3823
        %5094 = vmatprep.subr.mxu0 0.0
        %5095 = vmatpush1.msra.mxu0 %v3824
        %5096 = vmatprep.subr.mxu0 0.0
        %5097 = vmatpush1.msra.mxu0 %v3825
        %5098 = vmatprep.subr.mxu0 0.0
        %5099 = vmatpush1.msra.mxu0 %v3826
        %5100 = vmatprep.subr.mxu0 0.0
        %5101 = vmatpush1.msra.mxu0 %v3827
        %5102 = vmatprep.subr.mxu0 0.0
        %5103 = vmatpush1.msra.mxu0 %v3828
        %5104 = vmatprep.subr.mxu0 0.0
        %5105 = vmatpush1.msra.mxu0 0.0
        %5106 = vmatprep.subr.mxu0 0.0
        %5107 = vmatpush1.msra.mxu0 0.0
        %5108 = vmatprep.subr.mxu0 0.0
        %5109 = vmatpush1.msra.mxu0 0.0
        %5110 = vmatprep.subr.mxu0 0.0
        %5111 = vmatpush1.msra.mxu0 0.0
        %5112 = vmatprep.subr.mxu0 0.0
        %5113 = vmatpush1.msra.mxu0 0.0
        %5114 = vmatprep.subr.mxu0 0.0
        %5115 = vmatpush1.msra.mxu0 0.0
        %5116 = vmatprep.subr.mxu0 0.0
        %5117 = vmatpush1.msra.mxu0 0.0
        %5118 = vmatprep.subr.mxu0 0.0
        %5119 = vmatpush1.msra.mxu0 0.0
        %5120 = vmatprep.subr.mxu0 0.0
        %5121 = vmatpush1.msra.mxu0 0.0
        %5122 = vmatprep.subr.mxu0 0.0
        %5123 = vmatpush1.msra.mxu0 0.0
        %5124 = vmatprep.subr.mxu0 0.0
        %5125 = vmatpush1.msra.mxu0 0.0
        %5126 = vmatprep.subr.mxu0 0.0
        %5127 = vmatpush1.msra.mxu0 0.0
        %5128 = vmatprep.subr.mxu0 0.0
        %5129 = vmatpush1.msra.mxu0 0.0
        %5130 = vmatprep.subr.mxu0 0.0
        %5131 = vmatpush1.msra.mxu0 0.0
        %5132 = vmatprep.subr.mxu0 0.0
        %5133 = vmatpush1.msra.mxu0 0.0
        %5134 = vmatprep.subr.mxu0 0.0
        %5135 = vmatpush1.msra.mxu0 0.0
        %5136 = vmatprep.subr.mxu0 0.0
        %5137 = vmatpush1.msra.mxu0 0.0
        %5138 = vmatprep.subr.mxu0 0.0
        %5139 = vmatpush1.msra.mxu0 0.0
        %5140 = vmatprep.subr.mxu0 0.0
        %5141 = vmatpush1.msra.mxu0 0.0
        %5142 = vmatprep.subr.mxu0 0.0
        %5143 = vmatpush1.msra.mxu0 0.0
        %5144 = vmatprep.subr.mxu0 0.0
        %5145 = vmatpush1.msra.mxu0 0.0
        %5146 = vmatprep.subr.mxu0 0.0
        %5147 = vmatpush1.msra.mxu0 0.0
        %5148 = vmatprep.subr.mxu0 0.0
        %5149 = vmatpush1.msra.mxu0 0.0
        %5150 = vmatprep.subr.mxu0 0.0
        %5151 = vmatpush1.msra.mxu0 0.0
        %5152 = vmatprep.mubr.f32.mxu0 0.0
        %5153 = vmatmul.mubr.f32.gmra.mrb[0].mxu0 %v5086
        %v5154 = vpop.f32.mrb[0].mxu0
        %v5155 = vadd.f32 %v5001, %v5154
        %v5156 = vpop.f32.mrb[0].mxu0
        %5157 = vdwg.mxu0
        %s5158 = scalar_lea.vmem %s564, 8
        %v5159 = vld [vmem:[%s5158] sm:$0xff]
        %vm5160 = vcmask 31744
        %v5162 = vsel %vm5160, %v5159, 0
        %vm5164 = vcmask 1043456
        %v5166 = vsel %vm5164, %v5155, 0
        %5168 = vmatprep.subr.mxu0 0.0
        %5169 = vmatpush1.msra.mxu0 %v5166
        %5170 = vmatprep.subr.mxu0 0.0
        %5171 = vmatpush1.msra.mxu0 0.0
        %5172 = vmatprep.subr.mxu0 0.0
        %5173 = vmatpush1.msra.mxu0 0.0
        %5174 = vmatprep.subr.mxu0 0.0
        %5175 = vmatpush1.msra.mxu0 0.0
        %5176 = vmatprep.subr.mxu0 0.0
        %5177 = vmatpush1.msra.mxu0 0.0
        %5178 = vmatprep.subr.mxu0 0.0
        %5179 = vmatpush1.msra.mxu0 0.0
        %5180 = vmatprep.subr.mxu0 0.0
        %5181 = vmatpush1.msra.mxu0 0.0
        %5182 = vmatprep.subr.mxu0 0.0
        %5183 = vmatpush1.msra.mxu0 0.0
        %5184 = vmatprep.subr.mxu0 0.0
        %5185 = vmatpush1.msra.mxu0 0.0
        %5186 = vmatprep.subr.mxu0 0.0
        %5187 = vmatpush1.msra.mxu0 0.0
        %5188 = vmatprep.subr.mxu0 0.0
        %5189 = vmatpush1.msra.mxu0 0.0
        %5190 = vmatprep.subr.mxu0 0.0
        %5191 = vmatpush1.msra.mxu0 0.0
        %5192 = vmatprep.subr.mxu0 0.0
        %5193 = vmatpush1.msra.mxu0 0.0
        %5194 = vmatprep.subr.mxu0 0.0
        %5195 = vmatpush1.msra.mxu0 0.0
        %5196 = vmatprep.subr.mxu0 0.0
        %5197 = vmatpush1.msra.mxu0 0.0
        %5198 = vmatprep.subr.mxu0 0.0
        %5199 = vmatpush1.msra.mxu0 0.0
        %5200 = vmatprep.subr.mxu0 0.0
        %5201 = vmatpush1.msra.mxu0 0.0
        %5202 = vmatprep.subr.mxu0 0.0
        %5203 = vmatpush1.msra.mxu0 0.0
        %5204 = vmatprep.subr.mxu0 0.0
        %5205 = vmatpush1.msra.mxu0 0.0
        %5206 = vmatprep.subr.mxu0 0.0
        %5207 = vmatpush1.msra.mxu0 0.0
        %5208 = vmatprep.subr.mxu0 0.0
        %5209 = vmatpush1.msra.mxu0 0.0
        %5210 = vmatprep.subr.mxu0 0.0
        %5211 = vmatpush1.msra.mxu0 0.0
        %5212 = vmatprep.subr.mxu0 0.0
        %5213 = vmatpush1.msra.mxu0 0.0
        %5214 = vmatprep.subr.mxu0 0.0
        %5215 = vmatpush1.msra.mxu0 0.0
        %5216 = vmatprep.subr.mxu0 0.0
        %5217 = vmatpush1.msra.mxu0 0.0
        %5218 = vmatprep.subr.mxu0 0.0
        %5219 = vmatpush1.msra.mxu0 0.0
        %5220 = vmatprep.subr.mxu0 0.0
        %5221 = vmatpush1.msra.mxu0 0.0
        %5222 = vmatprep.subr.mxu0 0.0
        %5223 = vmatpush1.msra.mxu0 0.0
        %5224 = vmatprep.subr.mxu0 0.0
        %5225 = vmatpush1.msra.mxu0 0.0
        %5226 = vmatprep.subr.mxu0 0.0
        %5227 = vmatpush1.msra.mxu0 0.0
        %5228 = vmatprep.subr.mxu0 0.0
        %5229 = vmatpush1.msra.mxu0 0.0
        %5230 = vmatprep.subr.mxu0 0.0
        %5231 = vmatpush1.msra.mxu0 0.0
        %5232 = vmatprep.mubr.f32.mxu0 0.0
        %5233 = vmatmul.mubr.f32.gmra.mrb[0].mxu0 %v5162
        %v5234 = vpop.f32.mrb[0].mxu0
        %v5235 = vadd.f32 0.0, %v5234
        %v5236 = vpop.f32.mrb[0].mxu0
        %5237 = vdwg.mxu0
        %v5239 = vsel %vm5160, %v5075, 0
        %v5242 = vsel %vm5164, %v5072, 0
        %5244 = vmatprep.subr.mxu0 0.0
        %5245 = vmatpush1.msra.mxu0 %v5242
        %5246 = vmatprep.subr.mxu0 0.0
        %5247 = vmatpush1.msra.mxu0 0.0
        %5248 = vmatprep.subr.mxu0 0.0
        %5249 = vmatpush1.msra.mxu0 0.0
        %5250 = vmatprep.subr.mxu0 0.0
        %5251 = vmatpush1.msra.mxu0 0.0
        %5252 = vmatprep.subr.mxu0 0.0
        %5253 = vmatpush1.msra.mxu0 0.0
        %5254 = vmatprep.subr.mxu0 0.0
        %5255 = vmatpush1.msra.mxu0 0.0
        %5256 = vmatprep.subr.mxu0 0.0
        %5257 = vmatpush1.msra.mxu0 0.0
        %5258 = vmatprep.subr.mxu0 0.0
        %5259 = vmatpush1.msra.mxu0 0.0
        %5260 = vmatprep.subr.mxu0 0.0
        %5261 = vmatpush1.msra.mxu0 0.0
        %5262 = vmatprep.subr.mxu0 0.0
        %5263 = vmatpush1.msra.mxu0 0.0
        %5264 = vmatprep.subr.mxu0 0.0
        %5265 = vmatpush1.msra.mxu0 0.0
        %5266 = vmatprep.subr.mxu0 0.0
        %5267 = vmatpush1.msra.mxu0 0.0
        %5268 = vmatprep.subr.mxu0 0.0
        %5269 = vmatpush1.msra.mxu0 0.0
        %5270 = vmatprep.subr.mxu0 0.0
        %5271 = vmatpush1.msra.mxu0 0.0
        %5272 = vmatprep.subr.mxu0 0.0
        %5273 = vmatpush1.msra.mxu0 0.0
        %5274 = vmatprep.subr.mxu0 0.0
        %5275 = vmatpush1.msra.mxu0 0.0
        %5276 = vmatprep.subr.mxu0 0.0
        %5277 = vmatpush1.msra.mxu0 0.0
        %5278 = vmatprep.subr.mxu0 0.0
        %5279 = vmatpush1.msra.mxu0 0.0
        %5280 = vmatprep.subr.mxu0 0.0
        %5281 = vmatpush1.msra.mxu0 0.0
        %5282 = vmatprep.subr.mxu0 0.0
        %5283 = vmatpush1.msra.mxu0 0.0
        %5284 = vmatprep.subr.mxu0 0.0
        %5285 = vmatpush1.msra.mxu0 0.0
        %5286 = vmatprep.subr.mxu0 0.0
        %5287 = vmatpush1.msra.mxu0 0.0
        %5288 = vmatprep.subr.mxu0 0.0
        %5289 = vmatpush1.msra.mxu0 0.0
        %5290 = vmatprep.subr.mxu0 0.0
        %5291 = vmatpush1.msra.mxu0 0.0
        %5292 = vmatprep.subr.mxu0 0.0
        %5293 = vmatpush1.msra.mxu0 0.0
        %5294 = vmatprep.subr.mxu0 0.0
        %5295 = vmatpush1.msra.mxu0 0.0
        %5296 = vmatprep.subr.mxu0 0.0
        %5297 = vmatpush1.msra.mxu0 0.0
        %5298 = vmatprep.subr.mxu0 0.0
        %5299 = vmatpush1.msra.mxu0 0.0
        %5300 = vmatprep.subr.mxu0 0.0
        %5301 = vmatpush1.msra.mxu0 0.0
        %5302 = vmatprep.subr.mxu0 0.0
        %5303 = vmatpush1.msra.mxu0 0.0
        %5304 = vmatprep.subr.mxu0 0.0
        %5305 = vmatpush1.msra.mxu0 0.0
        %5306 = vmatprep.subr.mxu0 0.0
        %5307 = vmatpush1.msra.mxu0 0.0
        %5308 = vmatprep.mubr.f32.mxu0 0.0
        %5309 = vmatmul.mubr.f32.gmra.mrb[0].mxu0 %v5239
        %v5310 = vpop.f32.mrb[0].mxu0
        %v5311 = vadd.f32 %v5235, %v5310
        %v5312 = vpop.f32.mrb[0].mxu0
        %5313 = vdwg.mxu0
        %5315 = vrot.lane.b32.xlu0 %v4665, 32
        %v5316 = vpop.permute.xlu0 %5315
        %5319 = vrot.lane.b32.xlu0 %v4773, 64
        %v5320 = vpop.permute.xlu0 %5319
        %v5322 = vsel %vm733, %v5316, %v5320
        %v5324 = vsel %vm4308, %v5322, 0
        %5326 = vmatprep.subr.mxu0 0.0
        %5327 = vmatpush1.msra.mxu0 %v3821
        %5328 = vmatprep.subr.mxu0 0.0
        %5329 = vmatpush1.msra.mxu0 %v3822
        %5330 = vmatprep.subr.mxu0 0.0
        %5331 = vmatpush1.msra.mxu0 %v3823
        %5332 = vmatprep.subr.mxu0 0.0
        %5333 = vmatpush1.msra.mxu0 %v3824
        %5334 = vmatprep.subr.mxu0 0.0
        %5335 = vmatpush1.msra.mxu0 %v3825
        %5336 = vmatprep.subr.mxu0 0.0
        %5337 = vmatpush1.msra.mxu0 %v3826
        %5338 = vmatprep.subr.mxu0 0.0
        %5339 = vmatpush1.msra.mxu0 %v3827
        %5340 = vmatprep.subr.mxu0 0.0
        %5341 = vmatpush1.msra.mxu0 %v3828
        %5342 = vmatprep.subr.mxu0 0.0
        %5343 = vmatpush1.msra.mxu0 0.0
        %5344 = vmatprep.subr.mxu0 0.0
        %5345 = vmatpush1.msra.mxu0 0.0
        %5346 = vmatprep.subr.mxu0 0.0
        %5347 = vmatpush1.msra.mxu0 0.0
        %5348 = vmatprep.subr.mxu0 0.0
        %5349 = vmatpush1.msra.mxu0 0.0
        %5350 = vmatprep.subr.mxu0 0.0
        %5351 = vmatpush1.msra.mxu0 0.0
        %5352 = vmatprep.subr.mxu0 0.0
        %5353 = vmatpush1.msra.mxu0 0.0
        %5354 = vmatprep.subr.mxu0 0.0
        %5355 = vmatpush1.msra.mxu0 0.0
        %5356 = vmatprep.subr.mxu0 0.0
        %5357 = vmatpush1.msra.mxu0 0.0
        %5358 = vmatprep.subr.mxu0 0.0
        %5359 = vmatpush1.msra.mxu0 0.0
        %5360 = vmatprep.subr.mxu0 0.0
        %5361 = vmatpush1.msra.mxu0 0.0
        %5362 = vmatprep.subr.mxu0 0.0
        %5363 = vmatpush1.msra.mxu0 0.0
        %5364 = vmatprep.subr.mxu0 0.0
        %5365 = vmatpush1.msra.mxu0 0.0
        %5366 = vmatprep.subr.mxu0 0.0
        %5367 = vmatpush1.msra.mxu0 0.0
        %5368 = vmatprep.subr.mxu0 0.0
        %5369 = vmatpush1.msra.mxu0 0.0
        %5370 = vmatprep.subr.mxu0 0.0
        %5371 = vmatpush1.msra.mxu0 0.0
        %5372 = vmatprep.subr.mxu0 0.0
        %5373 = vmatpush1.msra.mxu0 0.0
        %5374 = vmatprep.subr.mxu0 0.0
        %5375 = vmatpush1.msra.mxu0 0.0
        %5376 = vmatprep.subr.mxu0 0.0
        %5377 = vmatpush1.msra.mxu0 0.0
        %5378 = vmatprep.subr.mxu0 0.0
        %5379 = vmatpush1.msra.mxu0 0.0
        %5380 = vmatprep.subr.mxu0 0.0
        %5381 = vmatpush1.msra.mxu0 0.0
        %5382 = vmatprep.subr.mxu0 0.0
        %5383 = vmatpush1.msra.mxu0 0.0
        %5384 = vmatprep.subr.mxu0 0.0
        %5385 = vmatpush1.msra.mxu0 0.0
        %5386 = vmatprep.subr.mxu0 0.0
        %5387 = vmatpush1.msra.mxu0 0.0
        %5388 = vmatprep.subr.mxu0 0.0
        %5389 = vmatpush1.msra.mxu0 0.0
        %5390 = vmatprep.mubr.f32.mxu0 0.0
        %5391 = vmatmul.mubr.f32.gmra.mrb[0].mxu0 %v5324
        %v5392 = vpop.f32.mrb[0].mxu0
        %v5393 = vadd.f32 %v5001, %v5392
        %v5394 = vpop.f32.mrb[0].mxu0
        %5395 = vdwg.mxu0
        %s5396 = scalar_lea.vmem %s564, 16
        %v5397 = vld [vmem:[%s5396] sm:$0xff]
        %v5399 = vsel %vm5160, %v5397, 0
        %v5402 = vsel %vm5164, %v5393, 0
        %5404 = vmatprep.subr.mxu0 0.0
        %5405 = vmatpush1.msra.mxu0 %v5402
        %5406 = vmatprep.subr.mxu0 0.0
        %5407 = vmatpush1.msra.mxu0 0.0
        %5408 = vmatprep.subr.mxu0 0.0
        %5409 = vmatpush1.msra.mxu0 0.0
        %5410 = vmatprep.subr.mxu0 0.0
        %5411 = vmatpush1.msra.mxu0 0.0
        %5412 = vmatprep.subr.mxu0 0.0
        %5413 = vmatpush1.msra.mxu0 0.0
        %5414 = vmatprep.subr.mxu0 0.0
        %5415 = vmatpush1.msra.mxu0 0.0
        %5416 = vmatprep.subr.mxu0 0.0
        %5417 = vmatpush1.msra.mxu0 0.0
        %5418 = vmatprep.subr.mxu0 0.0
        %5419 = vmatpush1.msra.mxu0 0.0
        %5420 = vmatprep.subr.mxu0 0.0
        %5421 = vmatpush1.msra.mxu0 0.0
        %5422 = vmatprep.subr.mxu0 0.0
        %5423 = vmatpush1.msra.mxu0 0.0
        %5424 = vmatprep.subr.mxu0 0.0
        %5425 = vmatpush1.msra.mxu0 0.0
        %5426 = vmatprep.subr.mxu0 0.0
        %5427 = vmatpush1.msra.mxu0 0.0
        %5428 = vmatprep.subr.mxu0 0.0
        %5429 = vmatpush1.msra.mxu0 0.0
        %5430 = vmatprep.subr.mxu0 0.0
        %5431 = vmatpush1.msra.mxu0 0.0
        %5432 = vmatprep.subr.mxu0 0.0
        %5433 = vmatpush1.msra.mxu0 0.0
        %5434 = vmatprep.subr.mxu0 0.0
        %5435 = vmatpush1.msra.mxu0 0.0
        %5436 = vmatprep.subr.mxu0 0.0
        %5437 = vmatpush1.msra.mxu0 0.0
        %5438 = vmatprep.subr.mxu0 0.0
        %5439 = vmatpush1.msra.mxu0 0.0
        %5440 = vmatprep.subr.mxu0 0.0
        %5441 = vmatpush1.msra.mxu0 0.0
        %5442 = vmatprep.subr.mxu0 0.0
        %5443 = vmatpush1.msra.mxu0 0.0
        %5444 = vmatprep.subr.mxu0 0.0
        %5445 = vmatpush1.msra.mxu0 0.0
        %5446 = vmatprep.subr.mxu0 0.0
        %5447 = vmatpush1.msra.mxu0 0.0
        %5448 = vmatprep.subr.mxu0 0.0
        %5449 = vmatpush1.msra.mxu0 0.0
        %5450 = vmatprep.subr.mxu0 0.0
        %5451 = vmatpush1.msra.mxu0 0.0
        %5452 = vmatprep.subr.mxu0 0.0
        %5453 = vmatpush1.msra.mxu0 0.0
        %5454 = vmatprep.subr.mxu0 0.0
        %5455 = vmatpush1.msra.mxu0 0.0
        %5456 = vmatprep.subr.mxu0 0.0
        %5457 = vmatpush1.msra.mxu0 0.0
        %5458 = vmatprep.subr.mxu0 0.0
        %5459 = vmatpush1.msra.mxu0 0.0
        %5460 = vmatprep.subr.mxu0 0.0
        %5461 = vmatpush1.msra.mxu0 0.0
        %5462 = vmatprep.subr.mxu0 0.0
        %5463 = vmatpush1.msra.mxu0 0.0
        %5464 = vmatprep.subr.mxu0 0.0
        %5465 = vmatpush1.msra.mxu0 0.0
        %5466 = vmatprep.subr.mxu0 0.0
        %5467 = vmatpush1.msra.mxu0 0.0
        %5468 = vmatprep.mubr.f32.mxu0 0.0
        %5469 = vmatmul.mubr.f32.gmra.mrb[0].mxu0 %v5399
        %v5470 = vpop.f32.mrb[0].mxu0
        %v5471 = vadd.f32 0.0, %v5470
        %v5472 = vpop.f32.mrb[0].mxu0
        %5473 = vdwg.mxu0
        %v5474 = vadd.f32 %v5311, %v5471
        %v5475 = vld [vmem:[%s567] sm:$0x1]
        %v5476 = vmul.f32 %v5475, 1e+09
        %v5477 = vadd.f32 %v3815, %v5474
        %s5478 = scalar_lea.vmem %s7, 40
        %v5479 = vld [vmem:[%s5478] sm:$0xff]
        %v5480 = vld [vmem:[%s5478 + $0x8] sm:$0xff]
        %v5481 = vld [vmem:[%s5478 + $0x10] sm:$0xff]
        %v5482 = vld [vmem:[%s5478 + $0x18] sm:$0xff]
        %v5483 = vld [vmem:[%s5478 + $0x20] sm:$0x1]
        %v5484 = vlaneseq
        %v5485 = vshrl.u32 %v5484, 7
        %v5486 = vsub.s32 0, %v5485
        %v5487 = vrot.slane %v5483, %v5486
        %v5489 = vsel %vm733, %v5477, 0
        %5491 = vmatprep.subr.mxu0 0.0
        %5492 = vmatpush1.msra.mxu0 %v5479
        %5493 = vmatprep.subr.mxu0 0.0
        %5494 = vmatpush1.msra.mxu0 %v5480
        %5495 = vmatprep.subr.mxu0 0.0
        %5496 = vmatpush1.msra.mxu0 %v5481
        %5497 = vmatprep.subr.mxu0 0.0
        %5498 = vmatpush1.msra.mxu0 %v5482
        %5499 = vmatprep.subr.mxu0 0.0
        %5500 = vmatpush1.msra.mxu0 0.0
        %5501 = vmatprep.subr.mxu0 0.0
        %5502 = vmatpush1.msra.mxu0 0.0
        %5503 = vmatprep.subr.mxu0 0.0
        %5504 = vmatpush1.msra.mxu0 0.0
        %5505 = vmatprep.subr.mxu0 0.0
        %5506 = vmatpush1.msra.mxu0 0.0
        %5507 = vmatprep.subr.mxu0 0.0
        %5508 = vmatpush1.msra.mxu0 0.0
        %5509 = vmatprep.subr.mxu0 0.0
        %5510 = vmatpush1.msra.mxu0 0.0
        %5511 = vmatprep.subr.mxu0 0.0
        %5512 = vmatpush1.msra.mxu0 0.0
        %5513 = vmatprep.subr.mxu0 0.0
        %5514 = vmatpush1.msra.mxu0 0.0
        %5515 = vmatprep.subr.mxu0 0.0
        %5516 = vmatpush1.msra.mxu0 0.0
        %5517 = vmatprep.subr.mxu0 0.0
        %5518 = vmatpush1.msra.mxu0 0.0
        %5519 = vmatprep.subr.mxu0 0.0
        %5520 = vmatpush1.msra.mxu0 0.0
        %5521 = vmatprep.subr.mxu0 0.0
        %5522 = vmatpush1.msra.mxu0 0.0
        %5523 = vmatprep.subr.mxu0 0.0
        %5524 = vmatpush1.msra.mxu0 0.0
        %5525 = vmatprep.subr.mxu0 0.0
        %5526 = vmatpush1.msra.mxu0 0.0
        %5527 = vmatprep.subr.mxu0 0.0
        %5528 = vmatpush1.msra.mxu0 0.0
        %5529 = vmatprep.subr.mxu0 0.0
        %5530 = vmatpush1.msra.mxu0 0.0
        %5531 = vmatprep.subr.mxu0 0.0
        %5532 = vmatpush1.msra.mxu0 0.0
        %5533 = vmatprep.subr.mxu0 0.0
        %5534 = vmatpush1.msra.mxu0 0.0
        %5535 = vmatprep.subr.mxu0 0.0
        %5536 = vmatpush1.msra.mxu0 0.0
        %5537 = vmatprep.subr.mxu0 0.0
        %5538 = vmatpush1.msra.mxu0 0.0
        %5539 = vmatprep.subr.mxu0 0.0
        %5540 = vmatpush1.msra.mxu0 0.0
        %5541 = vmatprep.subr.mxu0 0.0
        %5542 = vmatpush1.msra.mxu0 0.0
        %5543 = vmatprep.subr.mxu0 0.0
        %5544 = vmatpush1.msra.mxu0 0.0
        %5545 = vmatprep.subr.mxu0 0.0
        %5546 = vmatpush1.msra.mxu0 0.0
        %5547 = vmatprep.subr.mxu0 0.0
        %5548 = vmatpush1.msra.mxu0 0.0
        %5549 = vmatprep.subr.mxu0 0.0
        %5550 = vmatpush1.msra.mxu0 0.0
        %5551 = vmatprep.subr.mxu0 0.0
        %5552 = vmatpush1.msra.mxu0 0.0
        %5553 = vmatprep.subr.mxu0 0.0
        %5554 = vmatpush1.msra.mxu0 0.0
        %5555 = vmatprep.mubr.f32.mxu0 0.0
        %5556 = vmatmul.mubr.f32.gmra.mrb[0].mxu0 %v5489
        %v5557 = vpop.f32.mrb[0].mxu0
        %v5558 = vadd.f32 %v5487, %v5557
        %v5559 = vpop.f32.mrb[0].mxu0
        %5560 = vdwg.mxu0
        %v5561 = vld [vmem:[%s13 + $0x8] sm:$0x1]
        %v5562 = vld [vmem:[%s13 + $0x9] sm:$0x1]
        %v5563 = vld [vmem:[%s13 + $0xa] sm:$0x1]
        %v5564 = vld [vmem:[%s13 + $0xb] sm:$0x1]
        %v5565 = vld [vmem:[%s13 + $0xc] sm:$0x1]
        %v5566 = vld [vmem:[%s13 + $0xd] sm:$0x1]
        %5568 = vrot.lane.b32.xlu0 %v5558, 96
        %v5569 = vpop.permute.xlu0 %5568
        %v5570 = vsel %vm571, %v5558, 0
        %v5572 = vsel %vm571, %v5569, 0
        %5574 = vmatprep.subr.mxu0 0.0
        %5575 = vmatpush1.xpose.msra.mxu0 %v5572
        %5576 = vmatprep.subr.mxu0 0.0
        %5577 = vmatpush1.xpose.msra.mxu0 0.0
        %5578 = vmatprep.subr.mxu0 0.0
        %5579 = vmatpush1.xpose.msra.mxu0 0.0
        %5580 = vmatprep.subr.mxu0 0.0
        %5581 = vmatpush1.xpose.msra.mxu0 0.0
        %5582 = vmatprep.subr.mxu0 0.0
        %5583 = vmatpush1.xpose.msra.mxu0 0.0
        %5584 = vmatprep.subr.mxu0 0.0
        %5585 = vmatpush1.xpose.msra.mxu0 0.0
        %5586 = vmatprep.subr.mxu0 0.0
        %5587 = vmatpush1.xpose.msra.mxu0 0.0
        %5588 = vmatprep.subr.mxu0 0.0
        %5589 = vmatpush1.xpose.msra.mxu0 0.0
        %5590 = vmatprep.subr.mxu0 0.0
        %5591 = vmatpush1.xpose.msra.mxu0 0.0
        %5592 = vmatprep.subr.mxu0 0.0
        %5593 = vmatpush1.xpose.msra.mxu0 0.0
        %5594 = vmatprep.subr.mxu0 0.0
        %5595 = vmatpush1.xpose.msra.mxu0 0.0
        %5596 = vmatprep.subr.mxu0 0.0
        %5597 = vmatpush1.xpose.msra.mxu0 0.0
        %5598 = vmatprep.subr.mxu0 0.0
        %5599 = vmatpush1.xpose.msra.mxu0 0.0
        %5600 = vmatprep.subr.mxu0 0.0
        %5601 = vmatpush1.xpose.msra.mxu0 0.0
        %5602 = vmatprep.subr.mxu0 0.0
        %5603 = vmatpush1.xpose.msra.mxu0 0.0
        %5604 = vmatprep.subr.mxu0 0.0
        %5605 = vmatpush1.xpose.msra.mxu0 0.0
        %5606 = vmatprep.subr.mxu0 0.0
        %5607 = vmatpush1.xpose.msra.mxu0 0.0
        %5608 = vmatprep.subr.mxu0 0.0
        %5609 = vmatpush1.xpose.msra.mxu0 0.0
        %5610 = vmatprep.subr.mxu0 0.0
        %5611 = vmatpush1.xpose.msra.mxu0 0.0
        %5612 = vmatprep.subr.mxu0 0.0
        %5613 = vmatpush1.xpose.msra.mxu0 0.0
        %5614 = vmatprep.subr.mxu0 0.0
        %5615 = vmatpush1.xpose.msra.mxu0 0.0
        %5616 = vmatprep.subr.mxu0 0.0
        %5617 = vmatpush1.xpose.msra.mxu0 0.0
        %5618 = vmatprep.subr.mxu0 0.0
        %5619 = vmatpush1.xpose.msra.mxu0 0.0
        %5620 = vmatprep.subr.mxu0 0.0
        %5621 = vmatpush1.xpose.msra.mxu0 0.0
        %5622 = vmatprep.subr.mxu0 0.0
        %5623 = vmatpush1.xpose.msra.mxu0 0.0
        %5624 = vmatprep.subr.mxu0 0.0
        %5625 = vmatpush1.xpose.msra.mxu0 0.0
        %5626 = vmatprep.subr.mxu0 0.0
        %5627 = vmatpush1.xpose.msra.mxu0 0.0
        %5628 = vmatprep.subr.mxu0 0.0
        %5629 = vmatpush1.xpose.msra.mxu0 0.0
        %5630 = vmatprep.subr.mxu0 0.0
        %5631 = vmatpush1.xpose.msra.mxu0 0.0
        %5632 = vmatprep.subr.mxu0 0.0
        %5633 = vmatpush1.xpose.msra.mxu0 0.0
        %5634 = vmatprep.subr.mxu0 0.0
        %5635 = vmatpush1.xpose.msra.mxu0 0.0
        %5636 = vmatprep.subr.mxu0 0.0
        %5637 = vmatpush1.xpose.msra.mxu0 0.0
        %5638 = vmatprep.mubr.f32.mxu0 0.0
        %5639 = vmatmul.mubr.f32.gmra.mrb[0].mxu0 %v5570
        %v5640 = vpop.f32.mrb[0].mxu0
        %v5641 = vadd.f32 0.0, %v5640
        %v5642 = vpop.f32.mrb[0].mxu0
        %5643 = vdwg.mxu0
        %v5644 = vmul.f32 %v5641, 0.35355338
        %v5646 = vlaneseq
        %v5647 = vshrl.u32 %v5646, 7
        %v5648 = vsub.s32 0, %v5647
        %v5649 = vrot.slane %v5476, %v5648
        %v5651 = vsub.f32 %v5644, %v5649
        %v5652 = vsel %vm571, %v5651, -inf
        %5653 = vmax.xlane.f32.xlu0 %v5652
        %v5654 = vpop.xlane.xlu0 %5653
        %v5655 = vsub.f32 %v5651, %v5654
        %v5656 = vmul.f32 %v5655, 1.442695
        %v5657 = vpow.pop %v5656
        %v5658 = vsel %vm571, %v5657, 0.0
        %5659 = vadd.xlane.f32.xlu0 %v5658
        %v5660 = vpop.xlane.xlu0 %5659
        %v5661 = vrcp.pop %v5660
        %v5662 = vmul.f32 %v5657, %v5661
        %5663 = vrot.lane.b32.xlu0 %v5558, 64
        %v5664 = vpop.permute.xlu0 %5663
        %v5667 = vsel %vm571, %v5662, 0
        %5669 = vmatprep.subr.mxu0 0.0
        %5670 = vmatpush1.msra.mxu0 %v5664
        %5671 = vmatprep.subr.mxu0 0.0
        %5672 = vmatpush1.msra.mxu0 0.0
        %5673 = vmatprep.subr.mxu0 0.0
        %5674 = vmatpush1.msra.mxu0 0.0
        %5675 = vmatprep.subr.mxu0 0.0
        %5676 = vmatpush1.msra.mxu0 0.0
        %5677 = vmatprep.subr.mxu0 0.0
        %5678 = vmatpush1.msra.mxu0 0.0
        %5679 = vmatprep.subr.mxu0 0.0
        %5680 = vmatpush1.msra.mxu0 0.0
        %5681 = vmatprep.subr.mxu0 0.0
        %5682 = vmatpush1.msra.mxu0 0.0
        %5683 = vmatprep.subr.mxu0 0.0
        %5684 = vmatpush1.msra.mxu0 0.0
        %5685 = vmatprep.subr.mxu0 0.0
        %5686 = vmatpush1.msra.mxu0 0.0
        %5687 = vmatprep.subr.mxu0 0.0
        %5688 = vmatpush1.msra.mxu0 0.0
        %5689 = vmatprep.subr.mxu0 0.0
        %5690 = vmatpush1.msra.mxu0 0.0
        %5691 = vmatprep.subr.mxu0 0.0
        %5692 = vmatpush1.msra.mxu0 0.0
        %5693 = vmatprep.subr.mxu0 0.0
        %5694 = vmatpush1.msra.mxu0 0.0
        %5695 = vmatprep.subr.mxu0 0.0
        %5696 = vmatpush1.msra.mxu0 0.0
        %5697 = vmatprep.subr.mxu0 0.0
        %5698 = vmatpush1.msra.mxu0 0.0
        %5699 = vmatprep.subr.mxu0 0.0
        %5700 = vmatpush1.msra.mxu0 0.0
        %5701 = vmatprep.subr.mxu0 0.0
        %5702 = vmatpush1.msra.mxu0 0.0
        %5703 = vmatprep.subr.mxu0 0.0
        %5704 = vmatpush1.msra.mxu0 0.0
        %5705 = vmatprep.subr.mxu0 0.0
        %5706 = vmatpush1.msra.mxu0 0.0
        %5707 = vmatprep.subr.mxu0 0.0
        %5708 = vmatpush1.msra.mxu0 0.0
        %5709 = vmatprep.subr.mxu0 0.0
        %5710 = vmatpush1.msra.mxu0 0.0
        %5711 = vmatprep.subr.mxu0 0.0
        %5712 = vmatpush1.msra.mxu0 0.0
        %5713 = vmatprep.subr.mxu0 0.0
        %5714 = vmatpush1.msra.mxu0 0.0
        %5715 = vmatprep.subr.mxu0 0.0
        %5716 = vmatpush1.msra.mxu0 0.0
        %5717 = vmatprep.subr.mxu0 0.0
        %5718 = vmatpush1.msra.mxu0 0.0
        %5719 = vmatprep.subr.mxu0 0.0
        %5720 = vmatpush1.msra.mxu0 0.0
        %5721 = vmatprep.subr.mxu0 0.0
        %5722 = vmatpush1.msra.mxu0 0.0
        %5723 = vmatprep.subr.mxu0 0.0
        %5724 = vmatpush1.msra.mxu0 0.0
        %5725 = vmatprep.subr.mxu0 0.0
        %5726 = vmatpush1.msra.mxu0 0.0
        %5727 = vmatprep.subr.mxu0 0.0
        %5728 = vmatpush1.msra.mxu0 0.0
        %5729 = vmatprep.subr.mxu0 0.0
        %5730 = vmatpush1.msra.mxu0 0.0
        %5731 = vmatprep.subr.mxu0 0.0
        %5732 = vmatpush1.msra.mxu0 0.0
        %5733 = vmatprep.mubr.f32.mxu0 0.0
        %5734 = vmatmul.mubr.f32.gmra.mrb[0].mxu0 %v5667
        %v5735 = vpop.f32.mrb[0].mxu0
        %v5736 = vadd.f32 0.0, %v5735
        %v5737 = vpop.f32.mrb[0].mxu0
        %5738 = vdwg.mxu0
        %v5739 = vld [vmem:[%s12 + $0x20] sm:$0xff]
        %5740 = vrot.lane.b32.xlu0 %v5558, 120
        %v5741 = vpop.permute.xlu0 %5740
        %5742 = vrot.lane.b32.xlu0 %v5558, 88
        %v5743 = vpop.permute.xlu0 %5742
        %v5744 = vsel %vm571, %v5741, 0
        %v5746 = vsel %vm571, %v5743, 0
        %5748 = vmatprep.subr.mxu0 0.0
        %5749 = vmatpush1.xpose.msra.mxu0 %v5746
        %5750 = vmatprep.subr.mxu0 0.0
        %5751 = vmatpush1.xpose.msra.mxu0 0.0
        %5752 = vmatprep.subr.mxu0 0.0
        %5753 = vmatpush1.xpose.msra.mxu0 0.0
        %5754 = vmatprep.subr.mxu0 0.0
        %5755 = vmatpush1.xpose.msra.mxu0 0.0
        %5756 = vmatprep.subr.mxu0 0.0
        %5757 = vmatpush1.xpose.msra.mxu0 0.0
        %5758 = vmatprep.subr.mxu0 0.0
        %5759 = vmatpush1.xpose.msra.mxu0 0.0
        %5760 = vmatprep.subr.mxu0 0.0
        %5761 = vmatpush1.xpose.msra.mxu0 0.0
        %5762 = vmatprep.subr.mxu0 0.0
        %5763 = vmatpush1.xpose.msra.mxu0 0.0
        %5764 = vmatprep.subr.mxu0 0.0
        %5765 = vmatpush1.xpose.msra.mxu0 0.0
        %5766 = vmatprep.subr.mxu0 0.0
        %5767 = vmatpush1.xpose.msra.mxu0 0.0
        %5768 = vmatprep.subr.mxu0 0.0
        %5769 = vmatpush1.xpose.msra.mxu0 0.0
        %5770 = vmatprep.subr.mxu0 0.0
        %5771 = vmatpush1.xpose.msra.mxu0 0.0
        %5772 = vmatprep.subr.mxu0 0.0
        %5773 = vmatpush1.xpose.msra.mxu0 0.0
        %5774 = vmatprep.subr.mxu0 0.0
        %5775 = vmatpush1.xpose.msra.mxu0 0.0
        %5776 = vmatprep.subr.mxu0 0.0
        %5777 = vmatpush1.xpose.msra.mxu0 0.0
        %5778 = vmatprep.subr.mxu0 0.0
        %5779 = vmatpush1.xpose.msra.mxu0 0.0
        %5780 = vmatprep.subr.mxu0 0.0
        %5781 = vmatpush1.xpose.msra.mxu0 0.0
        %5782 = vmatprep.subr.mxu0 0.0
        %5783 = vmatpush1.xpose.msra.mxu0 0.0
        %5784 = vmatprep.subr.mxu0 0.0
        %5785 = vmatpush1.xpose.msra.mxu0 0.0
        %5786 = vmatprep.subr.mxu0 0.0
        %5787 = vmatpush1.xpose.msra.mxu0 0.0
        %5788 = vmatprep.subr.mxu0 0.0
        %5789 = vmatpush1.xpose.msra.mxu0 0.0
        %5790 = vmatprep.subr.mxu0 0.0
        %5791 = vmatpush1.xpose.msra.mxu0 0.0
        %5792 = vmatprep.subr.mxu0 0.0
        %5793 = vmatpush1.xpose.msra.mxu0 0.0
        %5794 = vmatprep.subr.mxu0 0.0
        %5795 = vmatpush1.xpose.msra.mxu0 0.0
        %5796 = vmatprep.subr.mxu0 0.0
        %5797 = vmatpush1.xpose.msra.mxu0 0.0
        %5798 = vmatprep.subr.mxu0 0.0
        %5799 = vmatpush1.xpose.msra.mxu0 0.0
        %5800 = vmatprep.subr.mxu0 0.0
        %5801 = vmatpush1.xpose.msra.mxu0 0.0
        %5802 = vmatprep.subr.mxu0 0.0
        %5803 = vmatpush1.xpose.msra.mxu0 0.0
        %5804 = vmatprep.subr.mxu0 0.0
        %5805 = vmatpush1.xpose.msra.mxu0 0.0
        %5806 = vmatprep.subr.mxu0 0.0
        %5807 = vmatpush1.xpose.msra.mxu0 0.0
        %5808 = vmatprep.subr.mxu0 0.0
        %5809 = vmatpush1.xpose.msra.mxu0 0.0
        %5810 = vmatprep.subr.mxu0 0.0
        %5811 = vmatpush1.xpose.msra.mxu0 0.0
        %5812 = vmatprep.mubr.f32.mxu0 0.0
        %5813 = vmatmul.mubr.f32.gmra.mrb[0].mxu0 %v5744
        %v5814 = vpop.f32.mrb[0].mxu0
        %v5815 = vadd.f32 0.0, %v5814
        %v5816 = vpop.f32.mrb[0].mxu0
        %5817 = vdwg.mxu0
        %v5818 = vmul.f32 %v5815, 0.35355338
        %v5819 = vsub.f32 %v5818, %v5649
        %v5820 = vsel %vm571, %v5819, -inf
        %5821 = vmax.xlane.f32.xlu0 %v5820
        %v5822 = vpop.xlane.xlu0 %5821
        %v5823 = vsub.f32 %v5819, %v5822
        %v5824 = vmul.f32 %v5823, 1.442695
        %v5825 = vpow.pop %v5824
        %v5826 = vsel %vm571, %v5825, 0.0
        %5827 = vadd.xlane.f32.xlu0 %v5826
        %v5828 = vpop.xlane.xlu0 %5827
        %v5829 = vrcp.pop %v5828
        %v5830 = vmul.f32 %v5825, %v5829
        %5831 = vrot.lane.b32.xlu0 %v5558, 56
        %v5832 = vpop.permute.xlu0 %5831
        %v5835 = vsel %vm571, %v5830, 0
        %5837 = vmatprep.subr.mxu0 0.0
        %5838 = vmatpush1.msra.mxu0 %v5832
        %5839 = vmatprep.subr.mxu0 0.0
        %5840 = vmatpush1.msra.mxu0 0.0
        %5841 = vmatprep.subr.mxu0 0.0
        %5842 = vmatpush1.msra.mxu0 0.0
        %5843 = vmatprep.subr.mxu0 0.0
        %5844 = vmatpush1.msra.mxu0 0.0
        %5845 = vmatprep.subr.mxu0 0.0
        %5846 = vmatpush1.msra.mxu0 0.0
        %5847 = vmatprep.subr.mxu0 0.0
        %5848 = vmatpush1.msra.mxu0 0.0
        %5849 = vmatprep.subr.mxu0 0.0
        %5850 = vmatpush1.msra.mxu0 0.0
        %5851 = vmatprep.subr.mxu0 0.0
        %5852 = vmatpush1.msra.mxu0 0.0
        %5853 = vmatprep.subr.mxu0 0.0
        %5854 = vmatpush1.msra.mxu0 0.0
        %5855 = vmatprep.subr.mxu0 0.0
        %5856 = vmatpush1.msra.mxu0 0.0
        %5857 = vmatprep.subr.mxu0 0.0
        %5858 = vmatpush1.msra.mxu0 0.0
        %5859 = vmatprep.subr.mxu0 0.0
        %5860 = vmatpush1.msra.mxu0 0.0
        %5861 = vmatprep.subr.mxu0 0.0
        %5862 = vmatpush1.msra.mxu0 0.0
        %5863 = vmatprep.subr.mxu0 0.0
        %5864 = vmatpush1.msra.mxu0 0.0
        %5865 = vmatprep.subr.mxu0 0.0
        %5866 = vmatpush1.msra.mxu0 0.0
        %5867 = vmatprep.subr.mxu0 0.0
        %5868 = vmatpush1.msra.mxu0 0.0
        %5869 = vmatprep.subr.mxu0 0.0
        %5870 = vmatpush1.msra.mxu0 0.0
        %5871 = vmatprep.subr.mxu0 0.0
        %5872 = vmatpush1.msra.mxu0 0.0
        %5873 = vmatprep.subr.mxu0 0.0
        %5874 = vmatpush1.msra.mxu0 0.0
        %5875 = vmatprep.subr.mxu0 0.0
        %5876 = vmatpush1.msra.mxu0 0.0
        %5877 = vmatprep.subr.mxu0 0.0
        %5878 = vmatpush1.msra.mxu0 0.0
        %5879 = vmatprep.subr.mxu0 0.0
        %5880 = vmatpush1.msra.mxu0 0.0
        %5881 = vmatprep.subr.mxu0 0.0
        %5882 = vmatpush1.msra.mxu0 0.0
        %5883 = vmatprep.subr.mxu0 0.0
        %5884 = vmatpush1.msra.mxu0 0.0
        %5885 = vmatprep.subr.mxu0 0.0
        %5886 = vmatpush1.msra.mxu0 0.0
        %5887 = vmatprep.subr.mxu0 0.0
        %5888 = vmatpush1.msra.mxu0 0.0
        %5889 = vmatprep.subr.mxu0 0.0
        %5890 = vmatpush1.msra.mxu0 0.0
        %5891 = vmatprep.subr.mxu0 0.0
        %5892 = vmatpush1.msra.mxu0 0.0
        %5893 = vmatprep.subr.mxu0 0.0
        %5894 = vmatpush1.msra.mxu0 0.0
        %5895 = vmatprep.subr.mxu0 0.0
        %5896 = vmatpush1.msra.mxu0 0.0
        %5897 = vmatprep.subr.mxu0 0.0
        %5898 = vmatpush1.msra.mxu0 0.0
        %5899 = vmatprep.subr.mxu0 0.0
        %5900 = vmatpush1.msra.mxu0 0.0
        %5901 = vmatprep.mubr.f32.mxu0 0.0
        %5902 = vmatmul.mubr.f32.gmra.mrb[0].mxu0 %v5835
        %v5903 = vpop.f32.mrb[0].mxu0
        %v5904 = vadd.f32 0.0, %v5903
        %v5905 = vpop.f32.mrb[0].mxu0
        %5906 = vdwg.mxu0
        %v5907 = vld [vmem:[%s12 + $0x28] sm:$0xff]
        %v5909 = vsel %vm571, %v5904, 0
        %5911 = vmatprep.subr.mxu0 0.0
        %5912 = vmatpush1.msra.mxu0 %v5907
        %5913 = vmatprep.subr.mxu0 0.0
        %5914 = vmatpush1.msra.mxu0 0.0
        %5915 = vmatprep.subr.mxu0 0.0
        %5916 = vmatpush1.msra.mxu0 0.0
        %5917 = vmatprep.subr.mxu0 0.0
        %5918 = vmatpush1.msra.mxu0 0.0
        %5919 = vmatprep.subr.mxu0 0.0
        %5920 = vmatpush1.msra.mxu0 0.0
        %5921 = vmatprep.subr.mxu0 0.0
        %5922 = vmatpush1.msra.mxu0 0.0
        %5923 = vmatprep.subr.mxu0 0.0
        %5924 = vmatpush1.msra.mxu0 0.0
        %5925 = vmatprep.subr.mxu0 0.0
        %5926 = vmatpush1.msra.mxu0 0.0
        %5927 = vmatprep.subr.mxu0 0.0
        %5928 = vmatpush1.msra.mxu0 0.0
        %5929 = vmatprep.subr.mxu0 0.0
        %5930 = vmatpush1.msra.mxu0 0.0
        %5931 = vmatprep.subr.mxu0 0.0
        %5932 = vmatpush1.msra.mxu0 0.0
        %5933 = vmatprep.subr.mxu0 0.0
        %5934 = vmatpush1.msra.mxu0 0.0
        %5935 = vmatprep.subr.mxu0 0.0
        %5936 = vmatpush1.msra.mxu0 0.0
        %5937 = vmatprep.subr.mxu0 0.0
        %5938 = vmatpush1.msra.mxu0 0.0
        %5939 = vmatprep.subr.mxu0 0.0
        %5940 = vmatpush1.msra.mxu0 0.0
        %5941 = vmatprep.subr.mxu0 0.0
        %5942 = vmatpush1.msra.mxu0 0.0
        %5943 = vmatprep.subr.mxu0 0.0
        %5944 = vmatpush1.msra.mxu0 0.0
        %5945 = vmatprep.subr.mxu0 0.0
        %5946 = vmatpush1.msra.mxu0 0.0
        %5947 = vmatprep.subr.mxu0 0.0
        %5948 = vmatpush1.msra.mxu0 0.0
        %5949 = vmatprep.subr.mxu0 0.0
        %5950 = vmatpush1.msra.mxu0 0.0
        %5951 = vmatprep.subr.mxu0 0.0
        %5952 = vmatpush1.msra.mxu0 0.0
        %5953 = vmatprep.subr.mxu0 0.0
        %5954 = vmatpush1.msra.mxu0 0.0
        %5955 = vmatprep.subr.mxu0 0.0
        %5956 = vmatpush1.msra.mxu0 0.0
        %5957 = vmatprep.subr.mxu0 0.0
        %5958 = vmatpush1.msra.mxu0 0.0
        %5959 = vmatprep.subr.mxu0 0.0
        %5960 = vmatpush1.msra.mxu0 0.0
        %5961 = vmatprep.subr.mxu0 0.0
        %5962 = vmatpush1.msra.mxu0 0.0
        %5963 = vmatprep.subr.mxu0 0.0
        %5964 = vmatpush1.msra.mxu0 0.0
        %5965 = vmatprep.subr.mxu0 0.0
        %5966 = vmatpush1.msra.mxu0 0.0
        %5967 = vmatprep.subr.mxu0 0.0
        %5968 = vmatpush1.msra.mxu0 0.0
        %5969 = vmatprep.subr.mxu0 0.0
        %5970 = vmatpush1.msra.mxu0 0.0
        %5971 = vmatprep.subr.mxu0 0.0
        %5972 = vmatpush1.msra.mxu0 0.0
        %5973 = vmatprep.subr.mxu0 0.0
        %5974 = vmatpush1.msra.mxu0 0.0
        %5975 = vmatprep.mubr.f32.mxu0 0.0
        %5976 = vmatmul.mubr.f32.gmra.mrb[0].mxu0 %v5909
        %v5977 = vpop.f32.mrb[0].mxu0
        %v5978 = vadd.f32 0.0, %v5977
        %v5979 = vpop.f32.mrb[0].mxu0
        %5980 = vdwg.mxu0
        %v5982 = vsel %vm571, %v5736, 0
        %5984 = vmatprep.subr.mxu0 0.0
        %5985 = vmatpush1.msra.mxu0 %v5739
        %5986 = vmatprep.subr.mxu0 0.0
        %5987 = vmatpush1.msra.mxu0 0.0
        %5988 = vmatprep.subr.mxu0 0.0
        %5989 = vmatpush1.msra.mxu0 0.0
        %5990 = vmatprep.subr.mxu0 0.0
        %5991 = vmatpush1.msra.mxu0 0.0
        %5992 = vmatprep.subr.mxu0 0.0
        %5993 = vmatpush1.msra.mxu0 0.0
        %5994 = vmatprep.subr.mxu0 0.0
        %5995 = vmatpush1.msra.mxu0 0.0
        %5996 = vmatprep.subr.mxu0 0.0
        %5997 = vmatpush1.msra.mxu0 0.0
        %5998 = vmatprep.subr.mxu0 0.0
        %5999 = vmatpush1.msra.mxu0 0.0
        %6000 = vmatprep.subr.mxu0 0.0
        %6001 = vmatpush1.msra.mxu0 0.0
        %6002 = vmatprep.subr.mxu0 0.0
        %6003 = vmatpush1.msra.mxu0 0.0
        %6004 = vmatprep.subr.mxu0 0.0
        %6005 = vmatpush1.msra.mxu0 0.0
        %6006 = vmatprep.subr.mxu0 0.0
        %6007 = vmatpush1.msra.mxu0 0.0
        %6008 = vmatprep.subr.mxu0 0.0
        %6009 = vmatpush1.msra.mxu0 0.0
        %6010 = vmatprep.subr.mxu0 0.0
        %6011 = vmatpush1.msra.mxu0 0.0
        %6012 = vmatprep.subr.mxu0 0.0
        %6013 = vmatpush1.msra.mxu0 0.0
        %6014 = vmatprep.subr.mxu0 0.0
        %6015 = vmatpush1.msra.mxu0 0.0
        %6016 = vmatprep.subr.mxu0 0.0
        %6017 = vmatpush1.msra.mxu0 0.0
        %6018 = vmatprep.subr.mxu0 0.0
        %6019 = vmatpush1.msra.mxu0 0.0
        %6020 = vmatprep.subr.mxu0 0.0
        %6021 = vmatpush1.msra.mxu0 0.0
        %6022 = vmatprep.subr.mxu0 0.0
        %6023 = vmatpush1.msra.mxu0 0.0
        %6024 = vmatprep.subr.mxu0 0.0
        %6025 = vmatpush1.msra.mxu0 0.0
        %6026 = vmatprep.subr.mxu0 0.0
        %6027 = vmatpush1.msra.mxu0 0.0
        %6028 = vmatprep.subr.mxu0 0.0
        %6029 = vmatpush1.msra.mxu0 0.0
        %6030 = vmatprep.subr.mxu0 0.0
        %6031 = vmatpush1.msra.mxu0 0.0
        %6032 = vmatprep.subr.mxu0 0.0
        %6033 = vmatpush1.msra.mxu0 0.0
        %6034 = vmatprep.subr.mxu0 0.0
        %6035 = vmatpush1.msra.mxu0 0.0
        %6036 = vmatprep.subr.mxu0 0.0
        %6037 = vmatpush1.msra.mxu0 0.0
        %6038 = vmatprep.subr.mxu0 0.0
        %6039 = vmatpush1.msra.mxu0 0.0
        %6040 = vmatprep.subr.mxu0 0.0
        %6041 = vmatpush1.msra.mxu0 0.0
        %6042 = vmatprep.subr.mxu0 0.0
        %6043 = vmatpush1.msra.mxu0 0.0
        %6044 = vmatprep.subr.mxu0 0.0
        %6045 = vmatpush1.msra.mxu0 0.0
        %6046 = vmatprep.subr.mxu0 0.0
        %6047 = vmatpush1.msra.mxu0 0.0
        %6048 = vmatprep.mubr.f32.mxu0 0.0
        %6049 = vmatmul.mubr.f32.gmra.mrb[0].mxu0 %v5982
        %v6050 = vpop.f32.mrb[0].mxu0
        %v6051 = vadd.f32 %v5978, %v6050
        %v6052 = vpop.f32.mrb[0].mxu0
        %6053 = vdwg.mxu0
        %6054 = vrot.lane.b32.xlu0 %v5558, 112
        %v6055 = vpop.permute.xlu0 %6054
        %6056 = vrot.lane.b32.xlu0 %v5558, 80
        %v6057 = vpop.permute.xlu0 %6056
        %v6058 = vsel %vm571, %v6055, 0
        %v6060 = vsel %vm571, %v6057, 0
        %6062 = vmatprep.subr.mxu0 0.0
        %6063 = vmatpush1.xpose.msra.mxu0 %v6060
        %6064 = vmatprep.subr.mxu0 0.0
        %6065 = vmatpush1.xpose.msra.mxu0 0.0
        %6066 = vmatprep.subr.mxu0 0.0
        %6067 = vmatpush1.xpose.msra.mxu0 0.0
        %6068 = vmatprep.subr.mxu0 0.0
        %6069 = vmatpush1.xpose.msra.mxu0 0.0
        %6070 = vmatprep.subr.mxu0 0.0
        %6071 = vmatpush1.xpose.msra.mxu0 0.0
        %6072 = vmatprep.subr.mxu0 0.0
        %6073 = vmatpush1.xpose.msra.mxu0 0.0
        %6074 = vmatprep.subr.mxu0 0.0
        %6075 = vmatpush1.xpose.msra.mxu0 0.0
        %6076 = vmatprep.subr.mxu0 0.0
        %6077 = vmatpush1.xpose.msra.mxu0 0.0
        %6078 = vmatprep.subr.mxu0 0.0
        %6079 = vmatpush1.xpose.msra.mxu0 0.0
        %6080 = vmatprep.subr.mxu0 0.0
        %6081 = vmatpush1.xpose.msra.mxu0 0.0
        %6082 = vmatprep.subr.mxu0 0.0
        %6083 = vmatpush1.xpose.msra.mxu0 0.0
        %6084 = vmatprep.subr.mxu0 0.0
        %6085 = vmatpush1.xpose.msra.mxu0 0.0
        %6086 = vmatprep.subr.mxu0 0.0
        %6087 = vmatpush1.xpose.msra.mxu0 0.0
        %6088 = vmatprep.subr.mxu0 0.0
        %6089 = vmatpush1.xpose.msra.mxu0 0.0
        %6090 = vmatprep.subr.mxu0 0.0
        %6091 = vmatpush1.xpose.msra.mxu0 0.0
        %6092 = vmatprep.subr.mxu0 0.0
        %6093 = vmatpush1.xpose.msra.mxu0 0.0
        %6094 = vmatprep.subr.mxu0 0.0
        %6095 = vmatpush1.xpose.msra.mxu0 0.0
        %6096 = vmatprep.subr.mxu0 0.0
        %6097 = vmatpush1.xpose.msra.mxu0 0.0
        %6098 = vmatprep.subr.mxu0 0.0
        %6099 = vmatpush1.xpose.msra.mxu0 0.0
        %6100 = vmatprep.subr.mxu0 0.0
        %6101 = vmatpush1.xpose.msra.mxu0 0.0
        %6102 = vmatprep.subr.mxu0 0.0
        %6103 = vmatpush1.xpose.msra.mxu0 0.0
        %6104 = vmatprep.subr.mxu0 0.0
        %6105 = vmatpush1.xpose.msra.mxu0 0.0
        %6106 = vmatprep.subr.mxu0 0.0
        %6107 = vmatpush1.xpose.msra.mxu0 0.0
        %6108 = vmatprep.subr.mxu0 0.0
        %6109 = vmatpush1.xpose.msra.mxu0 0.0
        %6110 = vmatprep.subr.mxu0 0.0
        %6111 = vmatpush1.xpose.msra.mxu0 0.0
        %6112 = vmatprep.subr.mxu0 0.0
        %6113 = vmatpush1.xpose.msra.mxu0 0.0
        %6114 = vmatprep.subr.mxu0 0.0
        %6115 = vmatpush1.xpose.msra.mxu0 0.0
        %6116 = vmatprep.subr.mxu0 0.0
        %6117 = vmatpush1.xpose.msra.mxu0 0.0
        %6118 = vmatprep.subr.mxu0 0.0
        %6119 = vmatpush1.xpose.msra.mxu0 0.0
        %6120 = vmatprep.subr.mxu0 0.0
        %6121 = vmatpush1.xpose.msra.mxu0 0.0
        %6122 = vmatprep.subr.mxu0 0.0
        %6123 = vmatpush1.xpose.msra.mxu0 0.0
        %6124 = vmatprep.subr.mxu0 0.0
        %6125 = vmatpush1.xpose.msra.mxu0 0.0
        %6126 = vmatprep.mubr.f32.mxu0 0.0
        %6127 = vmatmul.mubr.f32.gmra.mrb[0].mxu0 %v6058
        %v6128 = vpop.f32.mrb[0].mxu0
        %v6129 = vadd.f32 0.0, %v6128
        %v6130 = vpop.f32.mrb[0].mxu0
        %6131 = vdwg.mxu0
        %v6132 = vmul.f32 %v6129, 0.35355338
        %v6133 = vsub.f32 %v6132, %v5649
        %v6134 = vsel %vm571, %v6133, -inf
        %6135 = vmax.xlane.f32.xlu0 %v6134
        %v6136 = vpop.xlane.xlu0 %6135
        %v6137 = vsub.f32 %v6133, %v6136
        %v6138 = vmul.f32 %v6137, 1.442695
        %v6139 = vpow.pop %v6138
        %v6140 = vsel %vm571, %v6139, 0.0
        %6141 = vadd.xlane.f32.xlu0 %v6140
        %v6142 = vpop.xlane.xlu0 %6141
        %v6143 = vrcp.pop %v6142
        %v6144 = vmul.f32 %v6139, %v6143
        %6145 = vrot.lane.b32.xlu0 %v5558, 48
        %v6146 = vpop.permute.xlu0 %6145
        %v6149 = vsel %vm571, %v6144, 0
        %6151 = vmatprep.subr.mxu0 0.0
        %6152 = vmatpush1.msra.mxu0 %v6146
        %6153 = vmatprep.subr.mxu0 0.0
        %6154 = vmatpush1.msra.mxu0 0.0
        %6155 = vmatprep.subr.mxu0 0.0
        %6156 = vmatpush1.msra.mxu0 0.0
        %6157 = vmatprep.subr.mxu0 0.0
        %6158 = vmatpush1.msra.mxu0 0.0
        %6159 = vmatprep.subr.mxu0 0.0
        %6160 = vmatpush1.msra.mxu0 0.0
        %6161 = vmatprep.subr.mxu0 0.0
        %6162 = vmatpush1.msra.mxu0 0.0
        %6163 = vmatprep.subr.mxu0 0.0
        %6164 = vmatpush1.msra.mxu0 0.0
        %6165 = vmatprep.subr.mxu0 0.0
        %6166 = vmatpush1.msra.mxu0 0.0
        %6167 = vmatprep.subr.mxu0 0.0
        %6168 = vmatpush1.msra.mxu0 0.0
        %6169 = vmatprep.subr.mxu0 0.0
        %6170 = vmatpush1.msra.mxu0 0.0
        %6171 = vmatprep.subr.mxu0 0.0
        %6172 = vmatpush1.msra.mxu0 0.0
        %6173 = vmatprep.subr.mxu0 0.0
        %6174 = vmatpush1.msra.mxu0 0.0
        %6175 = vmatprep.subr.mxu0 0.0
        %6176 = vmatpush1.msra.mxu0 0.0
        %6177 = vmatprep.subr.mxu0 0.0
        %6178 = vmatpush1.msra.mxu0 0.0
        %6179 = vmatprep.subr.mxu0 0.0
        %6180 = vmatpush1.msra.mxu0 0.0
        %6181 = vmatprep.subr.mxu0 0.0
        %6182 = vmatpush1.msra.mxu0 0.0
        %6183 = vmatprep.subr.mxu0 0.0
        %6184 = vmatpush1.msra.mxu0 0.0
        %6185 = vmatprep.subr.mxu0 0.0
        %6186 = vmatpush1.msra.mxu0 0.0
        %6187 = vmatprep.subr.mxu0 0.0
        %6188 = vmatpush1.msra.mxu0 0.0
        %6189 = vmatprep.subr.mxu0 0.0
        %6190 = vmatpush1.msra.mxu0 0.0
        %6191 = vmatprep.subr.mxu0 0.0
        %6192 = vmatpush1.msra.mxu0 0.0
        %6193 = vmatprep.subr.mxu0 0.0
        %6194 = vmatpush1.msra.mxu0 0.0
        %6195 = vmatprep.subr.mxu0 0.0
        %6196 = vmatpush1.msra.mxu0 0.0
        %6197 = vmatprep.subr.mxu0 0.0
        %6198 = vmatpush1.msra.mxu0 0.0
        %6199 = vmatprep.subr.mxu0 0.0
        %6200 = vmatpush1.msra.mxu0 0.0
        %6201 = vmatprep.subr.mxu0 0.0
        %6202 = vmatpush1.msra.mxu0 0.0
        %6203 = vmatprep.subr.mxu0 0.0
        %6204 = vmatpush1.msra.mxu0 0.0
        %6205 = vmatprep.subr.mxu0 0.0
        %6206 = vmatpush1.msra.mxu0 0.0
        %6207 = vmatprep.subr.mxu0 0.0
        %6208 = vmatpush1.msra.mxu0 0.0
        %6209 = vmatprep.subr.mxu0 0.0
        %6210 = vmatpush1.msra.mxu0 0.0
        %6211 = vmatprep.subr.mxu0 0.0
        %6212 = vmatpush1.msra.mxu0 0.0
        %6213 = vmatprep.subr.mxu0 0.0
        %6214 = vmatpush1.msra.mxu0 0.0
        %6215 = vmatprep.mubr.f32.mxu0 0.0
        %6216 = vmatmul.mubr.f32.gmra.mrb[0].mxu0 %v6149
        %v6217 = vpop.f32.mrb[0].mxu0
        %v6218 = vadd.f32 0.0, %v6217
        %v6219 = vpop.f32.mrb[0].mxu0
        %6220 = vdwg.mxu0
        %v6221 = vld [vmem:[%s12 + $0x30] sm:$0xff]
        %v6223 = vsel %vm571, %v6218, 0
        %6225 = vmatprep.subr.mxu0 0.0
        %6226 = vmatpush1.msra.mxu0 %v6221
        %6227 = vmatprep.subr.mxu0 0.0
        %6228 = vmatpush1.msra.mxu0 0.0
        %6229 = vmatprep.subr.mxu0 0.0
        %6230 = vmatpush1.msra.mxu0 0.0
        %6231 = vmatprep.subr.mxu0 0.0
        %6232 = vmatpush1.msra.mxu0 0.0
        %6233 = vmatprep.subr.mxu0 0.0
        %6234 = vmatpush1.msra.mxu0 0.0
        %6235 = vmatprep.subr.mxu0 0.0
        %6236 = vmatpush1.msra.mxu0 0.0
        %6237 = vmatprep.subr.mxu0 0.0
        %6238 = vmatpush1.msra.mxu0 0.0
        %6239 = vmatprep.subr.mxu0 0.0
        %6240 = vmatpush1.msra.mxu0 0.0
        %6241 = vmatprep.subr.mxu0 0.0
        %6242 = vmatpush1.msra.mxu0 0.0
        %6243 = vmatprep.subr.mxu0 0.0
        %6244 = vmatpush1.msra.mxu0 0.0
        %6245 = vmatprep.subr.mxu0 0.0
        %6246 = vmatpush1.msra.mxu0 0.0
        %6247 = vmatprep.subr.mxu0 0.0
        %6248 = vmatpush1.msra.mxu0 0.0
        %6249 = vmatprep.subr.mxu0 0.0
        %6250 = vmatpush1.msra.mxu0 0.0
        %6251 = vmatprep.subr.mxu0 0.0
        %6252 = vmatpush1.msra.mxu0 0.0
        %6253 = vmatprep.subr.mxu0 0.0
        %6254 = vmatpush1.msra.mxu0 0.0
        %6255 = vmatprep.subr.mxu0 0.0
        %6256 = vmatpush1.msra.mxu0 0.0
        %6257 = vmatprep.subr.mxu0 0.0
        %6258 = vmatpush1.msra.mxu0 0.0
        %6259 = vmatprep.subr.mxu0 0.0
        %6260 = vmatpush1.msra.mxu0 0.0
        %6261 = vmatprep.subr.mxu0 0.0
        %6262 = vmatpush1.msra.mxu0 0.0
        %6263 = vmatprep.subr.mxu0 0.0
        %6264 = vmatpush1.msra.mxu0 0.0
        %6265 = vmatprep.subr.mxu0 0.0
        %6266 = vmatpush1.msra.mxu0 0.0
        %6267 = vmatprep.subr.mxu0 0.0
        %6268 = vmatpush1.msra.mxu0 0.0
        %6269 = vmatprep.subr.mxu0 0.0
        %6270 = vmatpush1.msra.mxu0 0.0
        %6271 = vmatprep.subr.mxu0 0.0
        %6272 = vmatpush1.msra.mxu0 0.0
        %6273 = vmatprep.subr.mxu0 0.0
        %6274 = vmatpush1.msra.mxu0 0.0
        %6275 = vmatprep.subr.mxu0 0.0
        %6276 = vmatpush1.msra.mxu0 0.0
        %6277 = vmatprep.subr.mxu0 0.0
        %6278 = vmatpush1.msra.mxu0 0.0
        %6279 = vmatprep.subr.mxu0 0.0
        %6280 = vmatpush1.msra.mxu0 0.0
        %6281 = vmatprep.subr.mxu0 0.0
        %6282 = vmatpush1.msra.mxu0 0.0
        %6283 = vmatprep.subr.mxu0 0.0
        %6284 = vmatpush1.msra.mxu0 0.0
        %6285 = vmatprep.subr.mxu0 0.0
        %6286 = vmatpush1.msra.mxu0 0.0
        %6287 = vmatprep.subr.mxu0 0.0
        %6288 = vmatpush1.msra.mxu0 0.0
        %6289 = vmatprep.mubr.f32.mxu0 0.0
        %6290 = vmatmul.mubr.f32.gmra.mrb[0].mxu0 %v6223
        %v6291 = vpop.f32.mrb[0].mxu0
        %v6292 = vadd.f32 0.0, %v6291
        %v6293 = vpop.f32.mrb[0].mxu0
        %6294 = vdwg.mxu0
        %v6295 = vadd.f32 %v6051, %v6292
        %6296 = vrot.lane.b32.xlu0 %v5558, 104
        %v6297 = vpop.permute.xlu0 %6296
        %6298 = vrot.lane.b32.xlu0 %v5558, 72
        %v6299 = vpop.permute.xlu0 %6298
        %v6300 = vsel %vm571, %v6297, 0
        %v6302 = vsel %vm571, %v6299, 0
        %6304 = vmatprep.subr.mxu0 0.0
        %6305 = vmatpush1.xpose.msra.mxu0 %v6302
        %6306 = vmatprep.subr.mxu0 0.0
        %6307 = vmatpush1.xpose.msra.mxu0 0.0
        %6308 = vmatprep.subr.mxu0 0.0
        %6309 = vmatpush1.xpose.msra.mxu0 0.0
        %6310 = vmatprep.subr.mxu0 0.0
        %6311 = vmatpush1.xpose.msra.mxu0 0.0
        %6312 = vmatprep.subr.mxu0 0.0
        %6313 = vmatpush1.xpose.msra.mxu0 0.0
        %6314 = vmatprep.subr.mxu0 0.0
        %6315 = vmatpush1.xpose.msra.mxu0 0.0
        %6316 = vmatprep.subr.mxu0 0.0
        %6317 = vmatpush1.xpose.msra.mxu0 0.0
        %6318 = vmatprep.subr.mxu0 0.0
        %6319 = vmatpush1.xpose.msra.mxu0 0.0
        %6320 = vmatprep.subr.mxu0 0.0
        %6321 = vmatpush1.xpose.msra.mxu0 0.0
        %6322 = vmatprep.subr.mxu0 0.0
        %6323 = vmatpush1.xpose.msra.mxu0 0.0
        %6324 = vmatprep.subr.mxu0 0.0
        %6325 = vmatpush1.xpose.msra.mxu0 0.0
        %6326 = vmatprep.subr.mxu0 0.0
        %6327 = vmatpush1.xpose.msra.mxu0 0.0
        %6328 = vmatprep.subr.mxu0 0.0
        %6329 = vmatpush1.xpose.msra.mxu0 0.0
        %6330 = vmatprep.subr.mxu0 0.0
        %6331 = vmatpush1.xpose.msra.mxu0 0.0
        %6332 = vmatprep.subr.mxu0 0.0
        %6333 = vmatpush1.xpose.msra.mxu0 0.0
        %6334 = vmatprep.subr.mxu0 0.0
        %6335 = vmatpush1.xpose.msra.mxu0 0.0
        %6336 = vmatprep.subr.mxu0 0.0
        %6337 = vmatpush1.xpose.msra.mxu0 0.0
        %6338 = vmatprep.subr.mxu0 0.0
        %6339 = vmatpush1.xpose.msra.mxu0 0.0
        %6340 = vmatprep.subr.mxu0 0.0
        %6341 = vmatpush1.xpose.msra.mxu0 0.0
        %6342 = vmatprep.subr.mxu0 0.0
        %6343 = vmatpush1.xpose.msra.mxu0 0.0
        %6344 = vmatprep.subr.mxu0 0.0
        %6345 = vmatpush1.xpose.msra.mxu0 0.0
        %6346 = vmatprep.subr.mxu0 0.0
        %6347 = vmatpush1.xpose.msra.mxu0 0.0
        %6348 = vmatprep.subr.mxu0 0.0
        %6349 = vmatpush1.xpose.msra.mxu0 0.0
        %6350 = vmatprep.subr.mxu0 0.0
        %6351 = vmatpush1.xpose.msra.mxu0 0.0
        %6352 = vmatprep.subr.mxu0 0.0
        %6353 = vmatpush1.xpose.msra.mxu0 0.0
        %6354 = vmatprep.subr.mxu0 0.0
        %6355 = vmatpush1.xpose.msra.mxu0 0.0
        %6356 = vmatprep.subr.mxu0 0.0
        %6357 = vmatpush1.xpose.msra.mxu0 0.0
        %6358 = vmatprep.subr.mxu0 0.0
        %6359 = vmatpush1.xpose.msra.mxu0 0.0
        %6360 = vmatprep.subr.mxu0 0.0
        %6361 = vmatpush1.xpose.msra.mxu0 0.0
        %6362 = vmatprep.subr.mxu0 0.0
        %6363 = vmatpush1.xpose.msra.mxu0 0.0
        %6364 = vmatprep.subr.mxu0 0.0
        %6365 = vmatpush1.xpose.msra.mxu0 0.0
        %6366 = vmatprep.subr.mxu0 0.0
        %6367 = vmatpush1.xpose.msra.mxu0 0.0
        %6368 = vmatprep.mubr.f32.mxu0 0.0
        %6369 = vmatmul.mubr.f32.gmra.mrb[0].mxu0 %v6300
        %v6370 = vpop.f32.mrb[0].mxu0
        %v6371 = vadd.f32 0.0, %v6370
        %v6372 = vpop.f32.mrb[0].mxu0
        %6373 = vdwg.mxu0
        %v6374 = vmul.f32 %v6371, 0.35355338
        %v6375 = vsub.f32 %v6374, %v5649
        %v6376 = vsel %vm571, %v6375, -inf
        %6377 = vmax.xlane.f32.xlu0 %v6376
        %v6378 = vpop.xlane.xlu0 %6377
        %v6379 = vsub.f32 %v6375, %v6378
        %v6380 = vmul.f32 %v6379, 1.442695
        %v6381 = vpow.pop %v6380
        %v6382 = vsel %vm571, %v6381, 0.0
        %6383 = vadd.xlane.f32.xlu0 %v6382
        %v6384 = vpop.xlane.xlu0 %6383
        %v6385 = vrcp.pop %v6384
        %v6386 = vmul.f32 %v6381, %v6385
        %6387 = vrot.lane.b32.xlu0 %v5558, 40
        %v6388 = vpop.permute.xlu0 %6387
        %v6391 = vsel %vm571, %v6386, 0
        %6393 = vmatprep.subr.mxu0 0.0
        %6394 = vmatpush1.msra.mxu0 %v6388
        %6395 = vmatprep.subr.mxu0 0.0
        %6396 = vmatpush1.msra.mxu0 0.0
        %6397 = vmatprep.subr.mxu0 0.0
        %6398 = vmatpush1.msra.mxu0 0.0
        %6399 = vmatprep.subr.mxu0 0.0
        %6400 = vmatpush1.msra.mxu0 0.0
        %6401 = vmatprep.subr.mxu0 0.0
        %6402 = vmatpush1.msra.mxu0 0.0
        %6403 = vmatprep.subr.mxu0 0.0
        %6404 = vmatpush1.msra.mxu0 0.0
        %6405 = vmatprep.subr.mxu0 0.0
        %6406 = vmatpush1.msra.mxu0 0.0
        %6407 = vmatprep.subr.mxu0 0.0
        %6408 = vmatpush1.msra.mxu0 0.0
        %6409 = vmatprep.subr.mxu0 0.0
        %6410 = vmatpush1.msra.mxu0 0.0
        %6411 = vmatprep.subr.mxu0 0.0
        %6412 = vmatpush1.msra.mxu0 0.0
        %6413 = vmatprep.subr.mxu0 0.0
        %6414 = vmatpush1.msra.mxu0 0.0
        %6415 = vmatprep.subr.mxu0 0.0
        %6416 = vmatpush1.msra.mxu0 0.0
        %6417 = vmatprep.subr.mxu0 0.0
        %6418 = vmatpush1.msra.mxu0 0.0
        %6419 = vmatprep.subr.mxu0 0.0
        %6420 = vmatpush1.msra.mxu0 0.0
        %6421 = vmatprep.subr.mxu0 0.0
        %6422 = vmatpush1.msra.mxu0 0.0
        %6423 = vmatprep.subr.mxu0 0.0
        %6424 = vmatpush1.msra.mxu0 0.0
        %6425 = vmatprep.subr.mxu0 0.0
        %6426 = vmatpush1.msra.mxu0 0.0
        %6427 = vmatprep.subr.mxu0 0.0
        %6428 = vmatpush1.msra.mxu0 0.0
        %6429 = vmatprep.subr.mxu0 0.0
        %6430 = vmatpush1.msra.mxu0 0.0
        %6431 = vmatprep.subr.mxu0 0.0
        %6432 = vmatpush1.msra.mxu0 0.0
        %6433 = vmatprep.subr.mxu0 0.0
        %6434 = vmatpush1.msra.mxu0 0.0
        %6435 = vmatprep.subr.mxu0 0.0
        %6436 = vmatpush1.msra.mxu0 0.0
        %6437 = vmatprep.subr.mxu0 0.0
        %6438 = vmatpush1.msra.mxu0 0.0
        %6439 = vmatprep.subr.mxu0 0.0
        %6440 = vmatpush1.msra.mxu0 0.0
        %6441 = vmatprep.subr.mxu0 0.0
        %6442 = vmatpush1.msra.mxu0 0.0
        %6443 = vmatprep.subr.mxu0 0.0
        %6444 = vmatpush1.msra.mxu0 0.0
        %6445 = vmatprep.subr.mxu0 0.0
        %6446 = vmatpush1.msra.mxu0 0.0
        %6447 = vmatprep.subr.mxu0 0.0
        %6448 = vmatpush1.msra.mxu0 0.0
        %6449 = vmatprep.subr.mxu0 0.0
        %6450 = vmatpush1.msra.mxu0 0.0
        %6451 = vmatprep.subr.mxu0 0.0
        %6452 = vmatpush1.msra.mxu0 0.0
        %6453 = vmatprep.subr.mxu0 0.0
        %6454 = vmatpush1.msra.mxu0 0.0
        %6455 = vmatprep.subr.mxu0 0.0
        %6456 = vmatpush1.msra.mxu0 0.0
        %6457 = vmatprep.mubr.f32.mxu0 0.0
        %6458 = vmatmul.mubr.f32.gmra.mrb[0].mxu0 %v6391
        %v6459 = vpop.f32.mrb[0].mxu0
        %v6460 = vadd.f32 0.0, %v6459
        %v6461 = vpop.f32.mrb[0].mxu0
        %6462 = vdwg.mxu0
        %v6463 = vld [vmem:[%s12 + $0x38] sm:$0xff]
        %v6465 = vsel %vm571, %v6460, 0
        %6467 = vmatprep.subr.mxu0 0.0
        %6468 = vmatpush1.msra.mxu0 %v6463
        %6469 = vmatprep.subr.mxu0 0.0
        %6470 = vmatpush1.msra.mxu0 0.0
        %6471 = vmatprep.subr.mxu0 0.0
        %6472 = vmatpush1.msra.mxu0 0.0
        %6473 = vmatprep.subr.mxu0 0.0
        %6474 = vmatpush1.msra.mxu0 0.0
        %6475 = vmatprep.subr.mxu0 0.0
        %6476 = vmatpush1.msra.mxu0 0.0
        %6477 = vmatprep.subr.mxu0 0.0
        %6478 = vmatpush1.msra.mxu0 0.0
        %6479 = vmatprep.subr.mxu0 0.0
        %6480 = vmatpush1.msra.mxu0 0.0
        %6481 = vmatprep.subr.mxu0 0.0
        %6482 = vmatpush1.msra.mxu0 0.0
        %6483 = vmatprep.subr.mxu0 0.0
        %6484 = vmatpush1.msra.mxu0 0.0
        %6485 = vmatprep.subr.mxu0 0.0
        %6486 = vmatpush1.msra.mxu0 0.0
        %6487 = vmatprep.subr.mxu0 0.0
        %6488 = vmatpush1.msra.mxu0 0.0
        %6489 = vmatprep.subr.mxu0 0.0
        %6490 = vmatpush1.msra.mxu0 0.0
        %6491 = vmatprep.subr.mxu0 0.0
        %6492 = vmatpush1.msra.mxu0 0.0
        %6493 = vmatprep.subr.mxu0 0.0
        %6494 = vmatpush1.msra.mxu0 0.0
        %6495 = vmatprep.subr.mxu0 0.0
        %6496 = vmatpush1.msra.mxu0 0.0
        %6497 = vmatprep.subr.mxu0 0.0
        %6498 = vmatpush1.msra.mxu0 0.0
        %6499 = vmatprep.subr.mxu0 0.0
        %6500 = vmatpush1.msra.mxu0 0.0
        %6501 = vmatprep.subr.mxu0 0.0
        %6502 = vmatpush1.msra.mxu0 0.0
        %6503 = vmatprep.subr.mxu0 0.0
        %6504 = vmatpush1.msra.mxu0 0.0
        %6505 = vmatprep.subr.mxu0 0.0
        %6506 = vmatpush1.msra.mxu0 0.0
        %6507 = vmatprep.subr.mxu0 0.0
        %6508 = vmatpush1.msra.mxu0 0.0
        %6509 = vmatprep.subr.mxu0 0.0
        %6510 = vmatpush1.msra.mxu0 0.0
        %6511 = vmatprep.subr.mxu0 0.0
        %6512 = vmatpush1.msra.mxu0 0.0
        %6513 = vmatprep.subr.mxu0 0.0
        %6514 = vmatpush1.msra.mxu0 0.0
        %6515 = vmatprep.subr.mxu0 0.0
        %6516 = vmatpush1.msra.mxu0 0.0
        %6517 = vmatprep.subr.mxu0 0.0
        %6518 = vmatpush1.msra.mxu0 0.0
        %6519 = vmatprep.subr.mxu0 0.0
        %6520 = vmatpush1.msra.mxu0 0.0
        %6521 = vmatprep.subr.mxu0 0.0
        %6522 = vmatpush1.msra.mxu0 0.0
        %6523 = vmatprep.subr.mxu0 0.0
        %6524 = vmatpush1.msra.mxu0 0.0
        %6525 = vmatprep.subr.mxu0 0.0
        %6526 = vmatpush1.msra.mxu0 0.0
        %6527 = vmatprep.subr.mxu0 0.0
        %6528 = vmatpush1.msra.mxu0 0.0
        %6529 = vmatprep.subr.mxu0 0.0
        %6530 = vmatpush1.msra.mxu0 0.0
        %6531 = vmatprep.mubr.f32.mxu0 0.0
        %6532 = vmatmul.mubr.f32.gmra.mrb[0].mxu0 %v6465
        %v6533 = vpop.f32.mrb[0].mxu0
        %v6534 = vadd.f32 0.0, %v6533
        %v6535 = vpop.f32.mrb[0].mxu0
        %6536 = vdwg.mxu0
        %v6537 = vadd.f32 %v6295, %v6534
        %v6538 = vlaneseq
        %v6539 = vshrl.u32 %v6538, 7
        %v6540 = vsub.s32 0, %v6539
        %v6541 = vrot.slane %v5561, %v6540
        %v6542 = vadd.f32 %v6537, %v6541
        %v6543 = vadd.f32 %v5477, %v6542
        %v6544 = vsel %vm733, %v6543, 0.0
        %6545 = vadd.xlane.f32.xlu0 %v6544
        %v6546 = vpop.xlane.xlu0 %6545
        %v6547 = vmul.f32 %v6546, %v1783
        %v6548 = vsub.f32 %v6543, %v6547
        %v6549 = vmul.f32 %v6548, %v6548
        %v6550 = vsel %vm733, %v6549, 0.0
        %6551 = vadd.xlane.f32.xlu0 %v6550
        %v6552 = vpop.xlane.xlu0 %6551
        %v6553 = vmul.f32 %v6552, %v1783
        %v6554 = vadd.f32 %v6553, 1e-05
        %v6555 = vrsqrt.pop %v6554
        %v6556 = vmul.f32 %v6548, %v6555
        %v6557 = vlaneseq
        %v6558 = vshrl.u32 %v6557, 7
        %v6559 = vsub.s32 0, %v6558
        %v6560 = vrot.slane %v5562, %v6559
        %v6561 = vmul.f32 %v6556, %v6560
        %v6562 = vlaneseq
        %v6563 = vshrl.u32 %v6562, 7
        %v6564 = vsub.s32 0, %v6563
        %v6565 = vrot.slane %v5563, %v6564
        %v6566 = vadd.f32 %v6561, %v6565
        %v6567 = vpack.c.bf16 %v6566, %v6566
        %s6568 = scalar_lea.vmem %s8, 256
        %v6569 = vld [vmem:[%s6568] sm:$0xff]
        %v6570 = vld [vmem:[%s6568 + $0x8] sm:$0xff]
        %v6571 = vld [vmem:[%s6568 + $0x10] sm:$0xff]
        %v6572 = vld [vmem:[%s6568 + $0x18] sm:$0xff]
        %v6573 = vld [vmem:[%s6568 + $0x20] sm:$0xff]
        %v6574 = vld [vmem:[%s6568 + $0x28] sm:$0xff]
        %v6575 = vld [vmem:[%s6568 + $0x30] sm:$0xff]
        %v6576 = vld [vmem:[%s6568 + $0x38] sm:$0xff]
        %v6577 = vld [vmem:[%s6568 + $0x40] sm:$0xff]
        %v6578 = vld [vmem:[%s6568 + $0x48] sm:$0xff]
        %v6579 = vld [vmem:[%s6568 + $0x50] sm:$0xff]
        %v6580 = vld [vmem:[%s6568 + $0x58] sm:$0xff]
        %v6581 = vld [vmem:[%s6568 + $0x60] sm:$0xff]
        %v6582 = vld [vmem:[%s6568 + $0x68] sm:$0xff]
        %v6583 = vld [vmem:[%s6568 + $0x70] sm:$0xff]
        %v6584 = vld [vmem:[%s6568 + $0x78] sm:$0xff]
        %v6585 = vld [vmem:[%s6568 + $0x80] sm:$0xff]
        %v6586 = vld [vmem:[%s6568 + $0x88] sm:$0xff]
        %v6587 = vld [vmem:[%s6568 + $0x90] sm:$0xff]
        %v6588 = vld [vmem:[%s6568 + $0x98] sm:$0xff]
        %v6589 = vld [vmem:[%s6568 + $0xa0] sm:$0xff]
        %v6590 = vld [vmem:[%s6568 + $0xa8] sm:$0xff]
        %v6591 = vld [vmem:[%s6568 + $0xb0] sm:$0xff]
        %v6592 = vld [vmem:[%s6568 + $0xb8] sm:$0xff]
        %v6593 = vld [vmem:[%s6568 + $0xc0] sm:$0xff]
        %v6594 = vld [vmem:[%s6568 + $0xc8] sm:$0xff]
        %v6595 = vld [vmem:[%s6568 + $0xd0] sm:$0xff]
        %v6596 = vld [vmem:[%s6568 + $0xd8] sm:$0xff]
        %v6597 = vld [vmem:[%s6568 + $0xe0] sm:$0xff]
        %v6598 = vld [vmem:[%s6568 + $0xe8] sm:$0xff]
        %v6599 = vld [vmem:[%s6568 + $0xf0] sm:$0xff]
        %v6600 = vld [vmem:[%s6568 + $0xf8] sm:$0xff]
        %s6601 = scalar_lea.vmem %s9, 16
        %v6602 = vld [vmem:[%s6601] sm:$0xff]
        %v6603 = vld [vmem:[%s6601 + $0x8] sm:$0xff]
        %v6606 = vlaneseq
        %v6607 = vshrl.u32 %v6606, 7
        %v6608 = vsub.s32 0, %v6607
        %v6609 = vrot.slane %v6602, %v6608
        %v6610 = vlaneseq
        %v6611 = vshrl.u32 %v6610, 7
        %v6612 = vsub.s32 1, %v6611
        %v6613 = vrot.slane %v6602, %v6612
        %v6614 = vlaneseq
        %v6615 = vshrl.u32 %v6614, 7
        %v6616 = vsub.s32 2, %v6615
        %v6617 = vrot.slane %v6602, %v6616
        %v6618 = vlaneseq
        %v6619 = vshrl.u32 %v6618, 7
        %v6620 = vsub.s32 3, %v6619
        %v6621 = vrot.slane %v6602, %v6620
        %v6622 = vlaneseq
        %v6623 = vshrl.u32 %v6622, 7
        %v6624 = vsub.s32 4, %v6623
        %v6625 = vrot.slane %v6602, %v6624
        %v6626 = vlaneseq
        %v6627 = vshrl.u32 %v6626, 7
        %v6628 = vsub.s32 5, %v6627
        %v6629 = vrot.slane %v6602, %v6628
        %v6630 = vlaneseq
        %v6631 = vshrl.u32 %v6630, 7
        %v6632 = vsub.s32 6, %v6631
        %v6633 = vrot.slane %v6602, %v6632
        %v6634 = vlaneseq
        %v6635 = vshrl.u32 %v6634, 7
        %v6636 = vsub.s32 7, %v6635
        %v6637 = vrot.slane %v6602, %v6636
        %v6638 = vlaneseq
        %v6639 = vshrl.u32 %v6638, 7
        %v6640 = vsub.s32 0, %v6639
        %v6641 = vrot.slane %v6603, %v6640
        %v6642 = vlaneseq
        %v6643 = vshrl.u32 %v6642, 7
        %v6644 = vsub.s32 1, %v6643
        %v6645 = vrot.slane %v6603, %v6644
        %v6646 = vlaneseq
        %v6647 = vshrl.u32 %v6646, 7
        %v6648 = vsub.s32 2, %v6647
        %v6649 = vrot.slane %v6603, %v6648
        %v6650 = vlaneseq
        %v6651 = vshrl.u32 %v6650, 7
        %v6652 = vsub.s32 3, %v6651
        %v6653 = vrot.slane %v6603, %v6652
        %v6654 = vlaneseq
        %v6655 = vshrl.u32 %v6654, 7
        %v6656 = vsub.s32 4, %v6655
        %v6657 = vrot.slane %v6603, %v6656
        %v6658 = vlaneseq
        %v6659 = vshrl.u32 %v6658, 7
        %v6660 = vsub.s32 5, %v6659
        %v6661 = vrot.slane %v6603, %v6660
        %v6662 = vlaneseq
        %v6663 = vshrl.u32 %v6662, 7
        %v6664 = vsub.s32 6, %v6663
        %v6665 = vrot.slane %v6603, %v6664
        %v6666 = vlaneseq
        %v6667 = vshrl.u32 %v6666, 7
        %v6668 = vsub.s32 7, %v6667
        %v6669 = vrot.slane %v6603, %v6668
        %v6718 = vunpack.c.l.b16 %v6569
        %v6719 = vunpack.c.h.b16 %v6569
        %v6720 = vunpack.c.l.b16 %v6570
        %v6721 = vunpack.c.h.b16 %v6570
        %v6722 = vunpack.c.l.b16 %v6571
        %v6723 = vunpack.c.h.b16 %v6571
        %v6724 = vunpack.c.l.b16 %v6572
        %v6725 = vunpack.c.h.b16 %v6572
        %v6726 = vunpack.c.l.b16 %v6573
        %v6727 = vunpack.c.h.b16 %v6573
        %v6728 = vunpack.c.l.b16 %v6574
        %v6729 = vunpack.c.h.b16 %v6574
        %v6730 = vunpack.c.l.b16 %v6575
        %v6731 = vunpack.c.h.b16 %v6575
        %v6732 = vunpack.c.l.b16 %v6576
        %v6733 = vunpack.c.h.b16 %v6576
        %v6734 = vunpack.c.l.b16 %v6577
        %v6735 = vunpack.c.h.b16 %v6577
        %v6736 = vunpack.c.l.b16 %v6578
        %v6737 = vunpack.c.h.b16 %v6578
        %v6738 = vunpack.c.l.b16 %v6579
        %v6739 = vunpack.c.h.b16 %v6579
        %v6740 = vunpack.c.l.b16 %v6580
        %v6741 = vunpack.c.h.b16 %v6580
        %v6742 = vunpack.c.l.b16 %v6581
        %v6743 = vunpack.c.h.b16 %v6581
        %v6744 = vunpack.c.l.b16 %v6582
        %v6745 = vunpack.c.h.b16 %v6582
        %v6746 = vunpack.c.l.b16 %v6583
        %v6747 = vunpack.c.h.b16 %v6583
        %v6748 = vunpack.c.l.b16 %v6584
        %v6749 = vunpack.c.h.b16 %v6584
        %v6750 = vunpack.c.l.b16 %v6585
        %v6751 = vunpack.c.h.b16 %v6585
        %v6752 = vunpack.c.l.b16 %v6586
        %v6753 = vunpack.c.h.b16 %v6586
        %v6754 = vunpack.c.l.b16 %v6587
        %v6755 = vunpack.c.h.b16 %v6587
        %v6756 = vunpack.c.l.b16 %v6588
        %v6757 = vunpack.c.h.b16 %v6588
        %v6758 = vunpack.c.l.b16 %v6589
        %v6759 = vunpack.c.h.b16 %v6589
        %v6760 = vunpack.c.l.b16 %v6590
        %v6761 = vunpack.c.h.b16 %v6590
        %v6762 = vunpack.c.l.b16 %v6591
        %v6763 = vunpack.c.h.b16 %v6591
        %v6764 = vunpack.c.l.b16 %v6592
        %v6765 = vunpack.c.h.b16 %v6592
        %v6766 = vunpack.c.l.b16 %v6593
        %v6767 = vunpack.c.h.b16 %v6593
        %v6768 = vunpack.c.l.b16 %v6594
        %v6769 = vunpack.c.h.b16 %v6594
        %v6770 = vunpack.c.l.b16 %v6595
        %v6771 = vunpack.c.h.b16 %v6595
        %v6772 = vunpack.c.l.b16 %v6596
        %v6773 = vunpack.c.h.b16 %v6596
        %v6774 = vunpack.c.l.b16 %v6597
        %v6775 = vunpack.c.h.b16 %v6597
        %v6776 = vunpack.c.l.b16 %v6598
        %v6777 = vunpack.c.h.b16 %v6598
        %v6778 = vunpack.c.l.b16 %v6599
        %v6779 = vunpack.c.h.b16 %v6599
        %v6780 = vunpack.c.l.b16 %v6600
        %v6781 = vunpack.c.h.b16 %v6600
        %v6782 = vpack.c.b16 %v6734, %v6718
        %v6783 = vpack.c.b16 %v6735, %v6719
        %v6784 = vpack.c.b16 %v6736, %v6720
        %v6785 = vpack.c.b16 %v6737, %v6721
        %v6786 = vpack.c.b16 %v6738, %v6722
        %v6787 = vpack.c.b16 %v6739, %v6723
        %v6788 = vpack.c.b16 %v6740, %v6724
        %v6789 = vpack.c.b16 %v6741, %v6725
        %v6790 = vpack.c.b16 %v6742, %v6726
        %v6791 = vpack.c.b16 %v6743, %v6727
        %v6792 = vpack.c.b16 %v6744, %v6728
        %v6793 = vpack.c.b16 %v6745, %v6729
        %v6794 = vpack.c.b16 %v6746, %v6730
        %v6795 = vpack.c.b16 %v6747, %v6731
        %v6796 = vpack.c.b16 %v6748, %v6732
        %v6797 = vpack.c.b16 %v6749, %v6733
        %v6798 = vpack.c.b16 %v6766, %v6750
        %v6799 = vpack.c.b16 %v6767, %v6751
        %v6800 = vpack.c.b16 %v6768, %v6752
        %v6801 = vpack.c.b16 %v6769, %v6753
        %v6802 = vpack.c.b16 %v6770, %v6754
        %v6803 = vpack.c.b16 %v6771, %v6755
        %v6804 = vpack.c.b16 %v6772, %v6756
        %v6805 = vpack.c.b16 %v6773, %v6757
        %v6806 = vpack.c.b16 %v6774, %v6758
        %v6807 = vpack.c.b16 %v6775, %v6759
        %v6808 = vpack.c.b16 %v6776, %v6760
        %v6809 = vpack.c.b16 %v6777, %v6761
        %v6810 = vpack.c.b16 %v6778, %v6762
        %v6811 = vpack.c.b16 %v6779, %v6763
        %v6812 = vpack.c.b16 %v6780, %v6764
        %v6813 = vpack.c.b16 %v6781, %v6765
        %v6847 = vsel %vm733, %v6567, 0
        %6849 = vmatprep.subr.bf16.mxu0 %v6783
        %6850 = vmatpush1.bf16.msra.mxu0 %v6782
        %6851 = vmatprep.subr.bf16.mxu0 %v6799
        %6852 = vmatpush1.bf16.msra.mxu0 %v6798
        %6853 = vmatprep.subr.bf16.mxu0 0
        %6854 = vmatpush1.bf16.msra.mxu0 0
        %6855 = vmatprep.subr.bf16.mxu0 0
        %6856 = vmatpush1.bf16.msra.mxu0 0
        %6857 = vmatprep.subr.bf16.mxu0 0
        %6858 = vmatpush1.bf16.msra.mxu0 0
        %6859 = vmatprep.subr.bf16.mxu0 0
        %6860 = vmatpush1.bf16.msra.mxu0 0
        %6861 = vmatprep.subr.bf16.mxu0 0
        %6862 = vmatpush1.bf16.msra.mxu0 0
        %6863 = vmatprep.subr.bf16.mxu0 0
        %6864 = vmatpush1.bf16.msra.mxu0 0
        %6865 = vmatprep.subr.bf16.mxu0 0
        %6866 = vmatpush1.bf16.msra.mxu0 0
        %6867 = vmatprep.subr.bf16.mxu0 0
        %6868 = vmatpush1.bf16.msra.mxu0 0
        %6869 = vmatprep.subr.bf16.mxu0 0
        %6870 = vmatpush1.bf16.msra.mxu0 0
        %6871 = vmatprep.subr.bf16.mxu0 0
        %6872 = vmatpush1.bf16.msra.mxu0 0
        %6873 = vmatprep.subr.bf16.mxu0 0
        %6874 = vmatpush1.bf16.msra.mxu0 0
        %6875 = vmatprep.subr.bf16.mxu0 0
        %6876 = vmatpush1.bf16.msra.mxu0 0
        %6877 = vmatprep.subr.bf16.mxu0 0
        %6878 = vmatpush1.bf16.msra.mxu0 0
        %6879 = vmatprep.subr.bf16.mxu0 0
        %6880 = vmatpush1.bf16.msra.mxu0 0
        %6881 = vmatprep.mubr.bf16.mxu0 0
        %6882 = vmatmul.mubr.bf16.gmra.mrb[0].mxu0 %v6847
        %v6883 = vpop.f32.mrb[0].mxu0
        %v6884 = vadd.f32 %v6609, %v6883
        %v6885 = vpop.f32.mrb[0].mxu0
        %v6886 = vadd.f32 %v6613, %v6885
        %v6887 = vpop.f32.mrb[0].mxu0
        %v6888 = vpop.f32.mrb[0].mxu0
        %6889 = vdwg.mxu0
        %6890 = vmatprep.subr.bf16.mxu0 %v6785
        %6891 = vmatpush1.bf16.msra.mxu0 %v6784
        %6892 = vmatprep.subr.bf16.mxu0 %v6801
        %6893 = vmatpush1.bf16.msra.mxu0 %v6800
        %6894 = vmatprep.subr.bf16.mxu0 0
        %6895 = vmatpush1.bf16.msra.mxu0 0
        %6896 = vmatprep.subr.bf16.mxu0 0
        %6897 = vmatpush1.bf16.msra.mxu0 0
        %6898 = vmatprep.subr.bf16.mxu0 0
        %6899 = vmatpush1.bf16.msra.mxu0 0
        %6900 = vmatprep.subr.bf16.mxu0 0
        %6901 = vmatpush1.bf16.msra.mxu0 0
        %6902 = vmatprep.subr.bf16.mxu0 0
        %6903 = vmatpush1.bf16.msra.mxu0 0
        %6904 = vmatprep.subr.bf16.mxu0 0
        %6905 = vmatpush1.bf16.msra.mxu0 0
        %6906 = vmatprep.subr.bf16.mxu0 0
        %6907 = vmatpush1.bf16.msra.mxu0 0
        %6908 = vmatprep.subr.bf16.mxu0 0
        %6909 = vmatpush1.bf16.msra.mxu0 0
        %6910 = vmatprep.subr.bf16.mxu0 0
        %6911 = vmatpush1.bf16.msra.mxu0 0
        %6912 = vmatprep.subr.bf16.mxu0 0
        %6913 = vmatpush1.bf16.msra.mxu0 0
        %6914 = vmatprep.subr.bf16.mxu0 0
        %6915 = vmatpush1.bf16.msra.mxu0 0
        %6916 = vmatprep.subr.bf16.mxu0 0
        %6917 = vmatpush1.bf16.msra.mxu0 0
        %6918 = vmatprep.subr.bf16.mxu0 0
        %6919 = vmatpush1.bf16.msra.mxu0 0
        %6920 = vmatprep.subr.bf16.mxu0 0
        %6921 = vmatpush1.bf16.msra.mxu0 0
        %6922 = vmatprep.mubr.bf16.mxu0 0
        %6923 = vmatmul.mubr.bf16.gmra.mrb[0].mxu0 %v6847
        %v6924 = vpop.f32.mrb[0].mxu0
        %v6925 = vadd.f32 %v6617, %v6924
        %v6926 = vpop.f32.mrb[0].mxu0
        %v6927 = vadd.f32 %v6621, %v6926
        %v6928 = vpop.f32.mrb[0].mxu0
        %v6929 = vpop.f32.mrb[0].mxu0
        %6930 = vdwg.mxu0
        %6931 = vmatprep.subr.bf16.mxu0 %v6787
        %6932 = vmatpush1.bf16.msra.mxu0 %v6786
        %6933 = vmatprep.subr.bf16.mxu0 %v6803
        %6934 = vmatpush1.bf16.msra.mxu0 %v6802
        %6935 = vmatprep.subr.bf16.mxu0 0
        %6936 = vmatpush1.bf16.msra.mxu0 0
        %6937 = vmatprep.subr.bf16.mxu0 0
        %6938 = vmatpush1.bf16.msra.mxu0 0
        %6939 = vmatprep.subr.bf16.mxu0 0
        %6940 = vmatpush1.bf16.msra.mxu0 0
        %6941 = vmatprep.subr.bf16.mxu0 0
        %6942 = vmatpush1.bf16.msra.mxu0 0
        %6943 = vmatprep.subr.bf16.mxu0 0
        %6944 = vmatpush1.bf16.msra.mxu0 0
        %6945 = vmatprep.subr.bf16.mxu0 0
        %6946 = vmatpush1.bf16.msra.mxu0 0
        %6947 = vmatprep.subr.bf16.mxu0 0
        %6948 = vmatpush1.bf16.msra.mxu0 0
        %6949 = vmatprep.subr.bf16.mxu0 0
        %6950 = vmatpush1.bf16.msra.mxu0 0
        %6951 = vmatprep.subr.bf16.mxu0 0
        %6952 = vmatpush1.bf16.msra.mxu0 0
        %6953 = vmatprep.subr.bf16.mxu0 0
        %6954 = vmatpush1.bf16.msra.mxu0 0
        %6955 = vmatprep.subr.bf16.mxu0 0
        %6956 = vmatpush1.bf16.msra.mxu0 0
        %6957 = vmatprep.subr.bf16.mxu0 0
        %6958 = vmatpush1.bf16.msra.mxu0 0
        %6959 = vmatprep.subr.bf16.mxu0 0
        %6960 = vmatpush1.bf16.msra.mxu0 0
        %6961 = vmatprep.subr.bf16.mxu0 0
        %6962 = vmatpush1.bf16.msra.mxu0 0
        %6963 = vmatprep.mubr.bf16.mxu0 0
        %6964 = vmatmul.mubr.bf16.gmra.mrb[0].mxu0 %v6847
        %v6965 = vpop.f32.mrb[0].mxu0
        %v6966 = vadd.f32 %v6625, %v6965
        %v6967 = vpop.f32.mrb[0].mxu0
        %v6968 = vadd.f32 %v6629, %v6967
        %v6969 = vpop.f32.mrb[0].mxu0
        %v6970 = vpop.f32.mrb[0].mxu0
        %6971 = vdwg.mxu0
        %6972 = vmatprep.subr.bf16.mxu0 %v6789
        %6973 = vmatpush1.bf16.msra.mxu0 %v6788
        %6974 = vmatprep.subr.bf16.mxu0 %v6805
        %6975 = vmatpush1.bf16.msra.mxu0 %v6804
        %6976 = vmatprep.subr.bf16.mxu0 0
        %6977 = vmatpush1.bf16.msra.mxu0 0
        %6978 = vmatprep.subr.bf16.mxu0 0
        %6979 = vmatpush1.bf16.msra.mxu0 0
        %6980 = vmatprep.subr.bf16.mxu0 0
        %6981 = vmatpush1.bf16.msra.mxu0 0
        %6982 = vmatprep.subr.bf16.mxu0 0
        %6983 = vmatpush1.bf16.msra.mxu0 0
        %6984 = vmatprep.subr.bf16.mxu0 0
        %6985 = vmatpush1.bf16.msra.mxu0 0
        %6986 = vmatprep.subr.bf16.mxu0 0
        %6987 = vmatpush1.bf16.msra.mxu0 0
        %6988 = vmatprep.subr.bf16.mxu0 0
        %6989 = vmatpush1.bf16.msra.mxu0 0
        %6990 = vmatprep.subr.bf16.mxu0 0
        %6991 = vmatpush1.bf16.msra.mxu0 0
        %6992 = vmatprep.subr.bf16.mxu0 0
        %6993 = vmatpush1.bf16.msra.mxu0 0
        %6994 = vmatprep.subr.bf16.mxu0 0
        %6995 = vmatpush1.bf16.msra.mxu0 0
        %6996 = vmatprep.subr.bf16.mxu0 0
        %6997 = vmatpush1.bf16.msra.mxu0 0
        %6998 = vmatprep.subr.bf16.mxu0 0
        %6999 = vmatpush1.bf16.msra.mxu0 0
        %7000 = vmatprep.subr.bf16.mxu0 0
        %7001 = vmatpush1.bf16.msra.mxu0 0
        %7002 = vmatprep.subr.bf16.mxu0 0
        %7003 = vmatpush1.bf16.msra.mxu0 0
        %7004 = vmatprep.mubr.bf16.mxu0 0
        %7005 = vmatmul.mubr.bf16.gmra.mrb[0].mxu0 %v6847
        %v7006 = vpop.f32.mrb[0].mxu0
        %v7007 = vadd.f32 %v6633, %v7006
        %v7008 = vpop.f32.mrb[0].mxu0
        %v7009 = vadd.f32 %v6637, %v7008
        %v7010 = vpop.f32.mrb[0].mxu0
        %v7011 = vpop.f32.mrb[0].mxu0
        %7012 = vdwg.mxu0
        %7013 = vmatprep.subr.bf16.mxu0 %v6791
        %7014 = vmatpush1.bf16.msra.mxu0 %v6790
        %7015 = vmatprep.subr.bf16.mxu0 %v6807
        %7016 = vmatpush1.bf16.msra.mxu0 %v6806
        %7017 = vmatprep.subr.bf16.mxu0 0
        %7018 = vmatpush1.bf16.msra.mxu0 0
        %7019 = vmatprep.subr.bf16.mxu0 0
        %7020 = vmatpush1.bf16.msra.mxu0 0
        %7021 = vmatprep.subr.bf16.mxu0 0
        %7022 = vmatpush1.bf16.msra.mxu0 0
        %7023 = vmatprep.subr.bf16.mxu0 0
        %7024 = vmatpush1.bf16.msra.mxu0 0
        %7025 = vmatprep.subr.bf16.mxu0 0
        %7026 = vmatpush1.bf16.msra.mxu0 0
        %7027 = vmatprep.subr.bf16.mxu0 0
        %7028 = vmatpush1.bf16.msra.mxu0 0
        %7029 = vmatprep.subr.bf16.mxu0 0
        %7030 = vmatpush1.bf16.msra.mxu0 0
        %7031 = vmatprep.subr.bf16.mxu0 0
        %7032 = vmatpush1.bf16.msra.mxu0 0
        %7033 = vmatprep.subr.bf16.mxu0 0
        %7034 = vmatpush1.bf16.msra.mxu0 0
        %7035 = vmatprep.subr.bf16.mxu0 0
        %7036 = vmatpush1.bf16.msra.mxu0 0
        %7037 = vmatprep.subr.bf16.mxu0 0
        %7038 = vmatpush1.bf16.msra.mxu0 0
        %7039 = vmatprep.subr.bf16.mxu0 0
        %7040 = vmatpush1.bf16.msra.mxu0 0
        %7041 = vmatprep.subr.bf16.mxu0 0
        %7042 = vmatpush1.bf16.msra.mxu0 0
        %7043 = vmatprep.subr.bf16.mxu0 0
        %7044 = vmatpush1.bf16.msra.mxu0 0
        %7045 = vmatprep.mubr.bf16.mxu0 0
        %7046 = vmatmul.mubr.bf16.gmra.mrb[0].mxu0 %v6847
        %v7047 = vpop.f32.mrb[0].mxu0
        %v7048 = vadd.f32 %v6641, %v7047
        %v7049 = vpop.f32.mrb[0].mxu0
        %v7050 = vadd.f32 %v6645, %v7049
        %v7051 = vpop.f32.mrb[0].mxu0
        %v7052 = vpop.f32.mrb[0].mxu0
        %7053 = vdwg.mxu0
        %7054 = vmatprep.subr.bf16.mxu0 %v6793
        %7055 = vmatpush1.bf16.msra.mxu0 %v6792
        %7056 = vmatprep.subr.bf16.mxu0 %v6809
        %7057 = vmatpush1.bf16.msra.mxu0 %v6808
        %7058 = vmatprep.subr.bf16.mxu0 0
        %7059 = vmatpush1.bf16.msra.mxu0 0
        %7060 = vmatprep.subr.bf16.mxu0 0
        %7061 = vmatpush1.bf16.msra.mxu0 0
        %7062 = vmatprep.subr.bf16.mxu0 0
        %7063 = vmatpush1.bf16.msra.mxu0 0
        %7064 = vmatprep.subr.bf16.mxu0 0
        %7065 = vmatpush1.bf16.msra.mxu0 0
        %7066 = vmatprep.subr.bf16.mxu0 0
        %7067 = vmatpush1.bf16.msra.mxu0 0
        %7068 = vmatprep.subr.bf16.mxu0 0
        %7069 = vmatpush1.bf16.msra.mxu0 0
        %7070 = vmatprep.subr.bf16.mxu0 0
        %7071 = vmatpush1.bf16.msra.mxu0 0
        %7072 = vmatprep.subr.bf16.mxu0 0
        %7073 = vmatpush1.bf16.msra.mxu0 0
        %7074 = vmatprep.subr.bf16.mxu0 0
        %7075 = vmatpush1.bf16.msra.mxu0 0
        %7076 = vmatprep.subr.bf16.mxu0 0
        %7077 = vmatpush1.bf16.msra.mxu0 0
        %7078 = vmatprep.subr.bf16.mxu0 0
        %7079 = vmatpush1.bf16.msra.mxu0 0
        %7080 = vmatprep.subr.bf16.mxu0 0
        %7081 = vmatpush1.bf16.msra.mxu0 0
        %7082 = vmatprep.subr.bf16.mxu0 0
        %7083 = vmatpush1.bf16.msra.mxu0 0
        %7084 = vmatprep.subr.bf16.mxu0 0
        %7085 = vmatpush1.bf16.msra.mxu0 0
        %7086 = vmatprep.mubr.bf16.mxu0 0
        %7087 = vmatmul.mubr.bf16.gmra.mrb[0].mxu0 %v6847
        %v7088 = vpop.f32.mrb[0].mxu0
        %v7089 = vadd.f32 %v6649, %v7088
        %v7090 = vpop.f32.mrb[0].mxu0
        %v7091 = vadd.f32 %v6653, %v7090
        %v7092 = vpop.f32.mrb[0].mxu0
        %v7093 = vpop.f32.mrb[0].mxu0
        %7094 = vdwg.mxu0
        %7095 = vmatprep.subr.bf16.mxu0 %v6795
        %7096 = vmatpush1.bf16.msra.mxu0 %v6794
        %7097 = vmatprep.subr.bf16.mxu0 %v6811
        %7098 = vmatpush1.bf16.msra.mxu0 %v6810
        %7099 = vmatprep.subr.bf16.mxu0 0
        %7100 = vmatpush1.bf16.msra.mxu0 0
        %7101 = vmatprep.subr.bf16.mxu0 0
        %7102 = vmatpush1.bf16.msra.mxu0 0
        %7103 = vmatprep.subr.bf16.mxu0 0
        %7104 = vmatpush1.bf16.msra.mxu0 0
        %7105 = vmatprep.subr.bf16.mxu0 0
        %7106 = vmatpush1.bf16.msra.mxu0 0
        %7107 = vmatprep.subr.bf16.mxu0 0
        %7108 = vmatpush1.bf16.msra.mxu0 0
        %7109 = vmatprep.subr.bf16.mxu0 0
        %7110 = vmatpush1.bf16.msra.mxu0 0
        %7111 = vmatprep.subr.bf16.mxu0 0
        %7112 = vmatpush1.bf16.msra.mxu0 0
        %7113 = vmatprep.subr.bf16.mxu0 0
        %7114 = vmatpush1.bf16.msra.mxu0 0
        %7115 = vmatprep.subr.bf16.mxu0 0
        %7116 = vmatpush1.bf16.msra.mxu0 0
        %7117 = vmatprep.subr.bf16.mxu0 0
        %7118 = vmatpush1.bf16.msra.mxu0 0
        %7119 = vmatprep.subr.bf16.mxu0 0
        %7120 = vmatpush1.bf16.msra.mxu0 0
        %7121 = vmatprep.subr.bf16.mxu0 0
        %7122 = vmatpush1.bf16.msra.mxu0 0
        %7123 = vmatprep.subr.bf16.mxu0 0
        %7124 = vmatpush1.bf16.msra.mxu0 0
        %7125 = vmatprep.subr.bf16.mxu0 0
        %7126 = vmatpush1.bf16.msra.mxu0 0
        %7127 = vmatprep.mubr.bf16.mxu0 0
        %7128 = vmatmul.mubr.bf16.gmra.mrb[0].mxu0 %v6847
        %v7129 = vpop.f32.mrb[0].mxu0
        %v7130 = vadd.f32 %v6657, %v7129
        %v7131 = vpop.f32.mrb[0].mxu0
        %v7132 = vadd.f32 %v6661, %v7131
        %v7133 = vpop.f32.mrb[0].mxu0
        %v7134 = vpop.f32.mrb[0].mxu0
        %7135 = vdwg.mxu0
        %7136 = vmatprep.subr.bf16.mxu0 %v6797
        %7137 = vmatpush1.bf16.msra.mxu0 %v6796
        %7138 = vmatprep.subr.bf16.mxu0 %v6813
        %7139 = vmatpush1.bf16.msra.mxu0 %v6812
        %7140 = vmatprep.subr.bf16.mxu0 0
        %7141 = vmatpush1.bf16.msra.mxu0 0
        %7142 = vmatprep.subr.bf16.mxu0 0
        %7143 = vmatpush1.bf16.msra.mxu0 0
        %7144 = vmatprep.subr.bf16.mxu0 0
        %7145 = vmatpush1.bf16.msra.mxu0 0
        %7146 = vmatprep.subr.bf16.mxu0 0
        %7147 = vmatpush1.bf16.msra.mxu0 0
        %7148 = vmatprep.subr.bf16.mxu0 0
        %7149 = vmatpush1.bf16.msra.mxu0 0
        %7150 = vmatprep.subr.bf16.mxu0 0
        %7151 = vmatpush1.bf16.msra.mxu0 0
        %7152 = vmatprep.subr.bf16.mxu0 0
        %7153 = vmatpush1.bf16.msra.mxu0 0
        %7154 = vmatprep.subr.bf16.mxu0 0
        %7155 = vmatpush1.bf16.msra.mxu0 0
        %7156 = vmatprep.subr.bf16.mxu0 0
        %7157 = vmatpush1.bf16.msra.mxu0 0
        %7158 = vmatprep.subr.bf16.mxu0 0
        %7159 = vmatpush1.bf16.msra.mxu0 0
        %7160 = vmatprep.subr.bf16.mxu0 0
        %7161 = vmatpush1.bf16.msra.mxu0 0
        %7162 = vmatprep.subr.bf16.mxu0 0
        %7163 = vmatpush1.bf16.msra.mxu0 0
        %7164 = vmatprep.subr.bf16.mxu0 0
        %7165 = vmatpush1.bf16.msra.mxu0 0
        %7166 = vmatprep.subr.bf16.mxu0 0
        %7167 = vmatpush1.bf16.msra.mxu0 0
        %7168 = vmatprep.mubr.bf16.mxu0 0
        %7169 = vmatmul.mubr.bf16.gmra.mrb[0].mxu0 %v6847
        %v7170 = vpop.f32.mrb[0].mxu0
        %v7171 = vadd.f32 %v6665, %v7170
        %v7172 = vpop.f32.mrb[0].mxu0
        %v7173 = vadd.f32 %v6669, %v7172
        %v7174 = vpop.f32.mrb[0].mxu0
        %v7175 = vpop.f32.mrb[0].mxu0
        %7176 = vdwg.mxu0
        %v7177 = vmax.f32 %v6884, 0.0
        %v7178 = vmax.f32 %v6886, 0.0
        %v7179 = vmax.f32 %v6925, 0.0
        %v7180 = vmax.f32 %v6927, 0.0
        %v7181 = vmax.f32 %v6966, 0.0
        %v7182 = vmax.f32 %v6968, 0.0
        %v7183 = vmax.f32 %v7007, 0.0
        %v7184 = vmax.f32 %v7009, 0.0
        %v7185 = vmax.f32 %v7048, 0.0
        %v7186 = vmax.f32 %v7050, 0.0
        %v7187 = vmax.f32 %v7089, 0.0
        %v7188 = vmax.f32 %v7091, 0.0
        %v7189 = vmax.f32 %v7130, 0.0
        %v7190 = vmax.f32 %v7132, 0.0
        %v7191 = vmax.f32 %v7171, 0.0
        %v7192 = vmax.f32 %v7173, 0.0
        %v7193 = vpack.c.bf16 %v7177, %v7177
        %v7194 = vpack.c.bf16 %v7178, %v7178
        %v7195 = vpack.c.bf16 %v7179, %v7179
        %v7196 = vpack.c.bf16 %v7180, %v7180
        %v7197 = vpack.c.bf16 %v7181, %v7181
        %v7198 = vpack.c.bf16 %v7182, %v7182
        %v7199 = vpack.c.bf16 %v7183, %v7183
        %v7200 = vpack.c.bf16 %v7184, %v7184
        %v7201 = vpack.c.bf16 %v7185, %v7185
        %v7202 = vpack.c.bf16 %v7186, %v7186
        %v7203 = vpack.c.bf16 %v7187, %v7187
        %v7204 = vpack.c.bf16 %v7188, %v7188
        %v7205 = vpack.c.bf16 %v7189, %v7189
        %v7206 = vpack.c.bf16 %v7190, %v7190
        %v7207 = vpack.c.bf16 %v7191, %v7191
        %v7208 = vpack.c.bf16 %v7192, %v7192
        %s7209 = scalar_lea.vmem %s10, 1024
        %v7210 = vld [vmem:[%s7209] sm:$0xf]
        %v7211 = vld [vmem:[%s7209 + $0x4] sm:$0xf]
        %v7212 = vld [vmem:[%s7209 + $0x8] sm:$0xf]
        %v7213 = vld [vmem:[%s7209 + $0xc] sm:$0xf]
        %v7214 = vld [vmem:[%s7209 + $0x10] sm:$0xf]
        %v7215 = vld [vmem:[%s7209 + $0x14] sm:$0xf]
        %v7216 = vld [vmem:[%s7209 + $0x18] sm:$0xf]
        %v7217 = vld [vmem:[%s7209 + $0x1c] sm:$0xf]
        %v7218 = vld [vmem:[%s7209 + $0x20] sm:$0xf]
        %v7219 = vld [vmem:[%s7209 + $0x24] sm:$0xf]
        %v7220 = vld [vmem:[%s7209 + $0x28] sm:$0xf]
        %v7221 = vld [vmem:[%s7209 + $0x2c] sm:$0xf]
        %v7222 = vld [vmem:[%s7209 + $0x30] sm:$0xf]
        %v7223 = vld [vmem:[%s7209 + $0x34] sm:$0xf]
        %v7224 = vld [vmem:[%s7209 + $0x38] sm:$0xf]
        %v7225 = vld [vmem:[%s7209 + $0x3c] sm:$0xf]
        %v7226 = vld [vmem:[%s7209 + $0x40] sm:$0xf]
        %v7227 = vld [vmem:[%s7209 + $0x44] sm:$0xf]
        %v7228 = vld [vmem:[%s7209 + $0x48] sm:$0xf]
        %v7229 = vld [vmem:[%s7209 + $0x4c] sm:$0xf]
        %v7230 = vld [vmem:[%s7209 + $0x50] sm:$0xf]
        %v7231 = vld [vmem:[%s7209 + $0x54] sm:$0xf]
        %v7232 = vld [vmem:[%s7209 + $0x58] sm:$0xf]
        %v7233 = vld [vmem:[%s7209 + $0x5c] sm:$0xf]
        %v7234 = vld [vmem:[%s7209 + $0x60] sm:$0xf]
        %v7235 = vld [vmem:[%s7209 + $0x64] sm:$0xf]
        %v7236 = vld [vmem:[%s7209 + $0x68] sm:$0xf]
        %v7237 = vld [vmem:[%s7209 + $0x6c] sm:$0xf]
        %v7238 = vld [vmem:[%s7209 + $0x70] sm:$0xf]
        %v7239 = vld [vmem:[%s7209 + $0x74] sm:$0xf]
        %v7240 = vld [vmem:[%s7209 + $0x78] sm:$0xf]
        %v7241 = vld [vmem:[%s7209 + $0x7c] sm:$0xf]
        %v7242 = vld [vmem:[%s7209 + $0x80] sm:$0xf]
        %v7243 = vld [vmem:[%s7209 + $0x84] sm:$0xf]
        %v7244 = vld [vmem:[%s7209 + $0x88] sm:$0xf]
        %v7245 = vld [vmem:[%s7209 + $0x8c] sm:$0xf]
        %v7246 = vld [vmem:[%s7209 + $0x90] sm:$0xf]
        %v7247 = vld [vmem:[%s7209 + $0x94] sm:$0xf]
        %v7248 = vld [vmem:[%s7209 + $0x98] sm:$0xf]
        %v7249 = vld [vmem:[%s7209 + $0x9c] sm:$0xf]
        %v7250 = vld [vmem:[%s7209 + $0xa0] sm:$0xf]
        %v7251 = vld [vmem:[%s7209 + $0xa4] sm:$0xf]
        %v7252 = vld [vmem:[%s7209 + $0xa8] sm:$0xf]
        %v7253 = vld [vmem:[%s7209 + $0xac] sm:$0xf]
        %v7254 = vld [vmem:[%s7209 + $0xb0] sm:$0xf]
        %v7255 = vld [vmem:[%s7209 + $0xb4] sm:$0xf]
        %v7256 = vld [vmem:[%s7209 + $0xb8] sm:$0xf]
        %v7257 = vld [vmem:[%s7209 + $0xbc] sm:$0xf]
        %v7258 = vld [vmem:[%s7209 + $0xc0] sm:$0xf]
        %v7259 = vld [vmem:[%s7209 + $0xc4] sm:$0xf]
        %v7260 = vld [vmem:[%s7209 + $0xc8] sm:$0xf]
        %v7261 = vld [vmem:[%s7209 + $0xcc] sm:$0xf]
        %v7262 = vld [vmem:[%s7209 + $0xd0] sm:$0xf]
        %v7263 = vld [vmem:[%s7209 + $0xd4] sm:$0xf]
        %v7264 = vld [vmem:[%s7209 + $0xd8] sm:$0xf]
        %v7265 = vld [vmem:[%s7209 + $0xdc] sm:$0xf]
        %v7266 = vld [vmem:[%s7209 + $0xe0] sm:$0xf]
        %v7267 = vld [vmem:[%s7209 + $0xe4] sm:$0xf]
        %v7268 = vld [vmem:[%s7209 + $0xe8] sm:$0xf]
        %v7269 = vld [vmem:[%s7209 + $0xec] sm:$0xf]
        %v7270 = vld [vmem:[%s7209 + $0xf0] sm:$0xf]
        %v7271 = vld [vmem:[%s7209 + $0xf4] sm:$0xf]
        %v7272 = vld [vmem:[%s7209 + $0xf8] sm:$0xf]
        %v7273 = vld [vmem:[%s7209 + $0xfc] sm:$0xf]
        %v7274 = vld [vmem:[%s7209 + $0x100] sm:$0xf]
        %v7275 = vld [vmem:[%s7209 + $0x104] sm:$0xf]
        %v7276 = vld [vmem:[%s7209 + $0x108] sm:$0xf]
        %v7277 = vld [vmem:[%s7209 + $0x10c] sm:$0xf]
        %v7278 = vld [vmem:[%s7209 + $0x110] sm:$0xf]
        %v7279 = vld [vmem:[%s7209 + $0x114] sm:$0xf]
        %v7280 = vld [vmem:[%s7209 + $0x118] sm:$0xf]
        %v7281 = vld [vmem:[%s7209 + $0x11c] sm:$0xf]
        %v7282 = vld [vmem:[%s7209 + $0x120] sm:$0xf]
        %v7283 = vld [vmem:[%s7209 + $0x124] sm:$0xf]
        %v7284 = vld [vmem:[%s7209 + $0x128] sm:$0xf]
        %v7285 = vld [vmem:[%s7209 + $0x12c] sm:$0xf]
        %v7286 = vld [vmem:[%s7209 + $0x130] sm:$0xf]
        %v7287 = vld [vmem:[%s7209 + $0x134] sm:$0xf]
        %v7288 = vld [vmem:[%s7209 + $0x138] sm:$0xf]
        %v7289 = vld [vmem:[%s7209 + $0x13c] sm:$0xf]
        %v7290 = vld [vmem:[%s7209 + $0x140] sm:$0xf]
        %v7291 = vld [vmem:[%s7209 + $0x144] sm:$0xf]
        %v7292 = vld [vmem:[%s7209 + $0x148] sm:$0xf]
        %v7293 = vld [vmem:[%s7209 + $0x14c] sm:$0xf]
        %v7294 = vld [vmem:[%s7209 + $0x150] sm:$0xf]
        %v7295 = vld [vmem:[%s7209 + $0x154] sm:$0xf]
        %v7296 = vld [vmem:[%s7209 + $0x158] sm:$0xf]
        %v7297 = vld [vmem:[%s7209 + $0x15c] sm:$0xf]
        %v7298 = vld [vmem:[%s7209 + $0x160] sm:$0xf]
        %v7299 = vld [vmem:[%s7209 + $0x164] sm:$0xf]
        %v7300 = vld [vmem:[%s7209 + $0x168] sm:$0xf]
        %v7301 = vld [vmem:[%s7209 + $0x16c] sm:$0xf]
        %v7302 = vld [vmem:[%s7209 + $0x170] sm:$0xf]
        %v7303 = vld [vmem:[%s7209 + $0x174] sm:$0xf]
        %v7304 = vld [vmem:[%s7209 + $0x178] sm:$0xf]
        %v7305 = vld [vmem:[%s7209 + $0x17c] sm:$0xf]
        %v7306 = vld [vmem:[%s7209 + $0x180] sm:$0xf]
        %v7307 = vld [vmem:[%s7209 + $0x184] sm:$0xf]
        %v7308 = vld [vmem:[%s7209 + $0x188] sm:$0xf]
        %v7309 = vld [vmem:[%s7209 + $0x18c] sm:$0xf]
        %v7310 = vld [vmem:[%s7209 + $0x190] sm:$0xf]
        %v7311 = vld [vmem:[%s7209 + $0x194] sm:$0xf]
        %v7312 = vld [vmem:[%s7209 + $0x198] sm:$0xf]
        %v7313 = vld [vmem:[%s7209 + $0x19c] sm:$0xf]
        %v7314 = vld [vmem:[%s7209 + $0x1a0] sm:$0xf]
        %v7315 = vld [vmem:[%s7209 + $0x1a4] sm:$0xf]
        %v7316 = vld [vmem:[%s7209 + $0x1a8] sm:$0xf]
        %v7317 = vld [vmem:[%s7209 + $0x1ac] sm:$0xf]
        %v7318 = vld [vmem:[%s7209 + $0x1b0] sm:$0xf]
        %v7319 = vld [vmem:[%s7209 + $0x1b4] sm:$0xf]
        %v7320 = vld [vmem:[%s7209 + $0x1b8] sm:$0xf]
        %v7321 = vld [vmem:[%s7209 + $0x1bc] sm:$0xf]
        %v7322 = vld [vmem:[%s7209 + $0x1c0] sm:$0xf]
        %v7323 = vld [vmem:[%s7209 + $0x1c4] sm:$0xf]
        %v7324 = vld [vmem:[%s7209 + $0x1c8] sm:$0xf]
        %v7325 = vld [vmem:[%s7209 + $0x1cc] sm:$0xf]
        %v7326 = vld [vmem:[%s7209 + $0x1d0] sm:$0xf]
        %v7327 = vld [vmem:[%s7209 + $0x1d4] sm:$0xf]
        %v7328 = vld [vmem:[%s7209 + $0x1d8] sm:$0xf]
        %v7329 = vld [vmem:[%s7209 + $0x1dc] sm:$0xf]
        %v7330 = vld [vmem:[%s7209 + $0x1e0] sm:$0xf]
        %v7331 = vld [vmem:[%s7209 + $0x1e4] sm:$0xf]
        %v7332 = vld [vmem:[%s7209 + $0x1e8] sm:$0xf]
        %v7333 = vld [vmem:[%s7209 + $0x1ec] sm:$0xf]
        %v7334 = vld [vmem:[%s7209 + $0x1f0] sm:$0xf]
        %v7335 = vld [vmem:[%s7209 + $0x1f4] sm:$0xf]
        %v7336 = vld [vmem:[%s7209 + $0x1f8] sm:$0xf]
        %v7337 = vld [vmem:[%s7209 + $0x1fc] sm:$0xf]
        %v7338 = vld [vmem:[%s7209 + $0x200] sm:$0xf]
        %v7339 = vld [vmem:[%s7209 + $0x204] sm:$0xf]
        %v7340 = vld [vmem:[%s7209 + $0x208] sm:$0xf]
        %v7341 = vld [vmem:[%s7209 + $0x20c] sm:$0xf]
        %v7342 = vld [vmem:[%s7209 + $0x210] sm:$0xf]
        %v7343 = vld [vmem:[%s7209 + $0x214] sm:$0xf]
        %v7344 = vld [vmem:[%s7209 + $0x218] sm:$0xf]
        %v7345 = vld [vmem:[%s7209 + $0x21c] sm:$0xf]
        %v7346 = vld [vmem:[%s7209 + $0x220] sm:$0xf]
        %v7347 = vld [vmem:[%s7209 + $0x224] sm:$0xf]
        %v7348 = vld [vmem:[%s7209 + $0x228] sm:$0xf]
        %v7349 = vld [vmem:[%s7209 + $0x22c] sm:$0xf]
        %v7350 = vld [vmem:[%s7209 + $0x230] sm:$0xf]
        %v7351 = vld [vmem:[%s7209 + $0x234] sm:$0xf]
        %v7352 = vld [vmem:[%s7209 + $0x238] sm:$0xf]
        %v7353 = vld [vmem:[%s7209 + $0x23c] sm:$0xf]
        %v7354 = vld [vmem:[%s7209 + $0x240] sm:$0xf]
        %v7355 = vld [vmem:[%s7209 + $0x244] sm:$0xf]
        %v7356 = vld [vmem:[%s7209 + $0x248] sm:$0xf]
        %v7357 = vld [vmem:[%s7209 + $0x24c] sm:$0xf]
        %v7358 = vld [vmem:[%s7209 + $0x250] sm:$0xf]
        %v7359 = vld [vmem:[%s7209 + $0x254] sm:$0xf]
        %v7360 = vld [vmem:[%s7209 + $0x258] sm:$0xf]
        %v7361 = vld [vmem:[%s7209 + $0x25c] sm:$0xf]
        %v7362 = vld [vmem:[%s7209 + $0x260] sm:$0xf]
        %v7363 = vld [vmem:[%s7209 + $0x264] sm:$0xf]
        %v7364 = vld [vmem:[%s7209 + $0x268] sm:$0xf]
        %v7365 = vld [vmem:[%s7209 + $0x26c] sm:$0xf]
        %v7366 = vld [vmem:[%s7209 + $0x270] sm:$0xf]
        %v7367 = vld [vmem:[%s7209 + $0x274] sm:$0xf]
        %v7368 = vld [vmem:[%s7209 + $0x278] sm:$0xf]
        %v7369 = vld [vmem:[%s7209 + $0x27c] sm:$0xf]
        %v7370 = vld [vmem:[%s7209 + $0x280] sm:$0xf]
        %v7371 = vld [vmem:[%s7209 + $0x284] sm:$0xf]
        %v7372 = vld [vmem:[%s7209 + $0x288] sm:$0xf]
        %v7373 = vld [vmem:[%s7209 + $0x28c] sm:$0xf]
        %v7374 = vld [vmem:[%s7209 + $0x290] sm:$0xf]
        %v7375 = vld [vmem:[%s7209 + $0x294] sm:$0xf]
        %v7376 = vld [vmem:[%s7209 + $0x298] sm:$0xf]
        %v7377 = vld [vmem:[%s7209 + $0x29c] sm:$0xf]
        %v7378 = vld [vmem:[%s7209 + $0x2a0] sm:$0xf]
        %v7379 = vld [vmem:[%s7209 + $0x2a4] sm:$0xf]
        %v7380 = vld [vmem:[%s7209 + $0x2a8] sm:$0xf]
        %v7381 = vld [vmem:[%s7209 + $0x2ac] sm:$0xf]
        %v7382 = vld [vmem:[%s7209 + $0x2b0] sm:$0xf]
        %v7383 = vld [vmem:[%s7209 + $0x2b4] sm:$0xf]
        %v7384 = vld [vmem:[%s7209 + $0x2b8] sm:$0xf]
        %v7385 = vld [vmem:[%s7209 + $0x2bc] sm:$0xf]
        %v7386 = vld [vmem:[%s7209 + $0x2c0] sm:$0xf]
        %v7387 = vld [vmem:[%s7209 + $0x2c4] sm:$0xf]
        %v7388 = vld [vmem:[%s7209 + $0x2c8] sm:$0xf]
        %v7389 = vld [vmem:[%s7209 + $0x2cc] sm:$0xf]
        %v7390 = vld [vmem:[%s7209 + $0x2d0] sm:$0xf]
        %v7391 = vld [vmem:[%s7209 + $0x2d4] sm:$0xf]
        %v7392 = vld [vmem:[%s7209 + $0x2d8] sm:$0xf]
        %v7393 = vld [vmem:[%s7209 + $0x2dc] sm:$0xf]
        %v7394 = vld [vmem:[%s7209 + $0x2e0] sm:$0xf]
        %v7395 = vld [vmem:[%s7209 + $0x2e4] sm:$0xf]
        %v7396 = vld [vmem:[%s7209 + $0x2e8] sm:$0xf]
        %v7397 = vld [vmem:[%s7209 + $0x2ec] sm:$0xf]
        %v7398 = vld [vmem:[%s7209 + $0x2f0] sm:$0xf]
        %v7399 = vld [vmem:[%s7209 + $0x2f4] sm:$0xf]
        %v7400 = vld [vmem:[%s7209 + $0x2f8] sm:$0xf]
        %v7401 = vld [vmem:[%s7209 + $0x2fc] sm:$0xf]
        %v7402 = vld [vmem:[%s7209 + $0x300] sm:$0xf]
        %v7403 = vld [vmem:[%s7209 + $0x304] sm:$0xf]
        %v7404 = vld [vmem:[%s7209 + $0x308] sm:$0xf]
        %v7405 = vld [vmem:[%s7209 + $0x30c] sm:$0xf]
        %v7406 = vld [vmem:[%s7209 + $0x310] sm:$0xf]
        %v7407 = vld [vmem:[%s7209 + $0x314] sm:$0xf]
        %v7408 = vld [vmem:[%s7209 + $0x318] sm:$0xf]
        %v7409 = vld [vmem:[%s7209 + $0x31c] sm:$0xf]
        %v7410 = vld [vmem:[%s7209 + $0x320] sm:$0xf]
        %v7411 = vld [vmem:[%s7209 + $0x324] sm:$0xf]
        %v7412 = vld [vmem:[%s7209 + $0x328] sm:$0xf]
        %v7413 = vld [vmem:[%s7209 + $0x32c] sm:$0xf]
        %v7414 = vld [vmem:[%s7209 + $0x330] sm:$0xf]
        %v7415 = vld [vmem:[%s7209 + $0x334] sm:$0xf]
        %v7416 = vld [vmem:[%s7209 + $0x338] sm:$0xf]
        %v7417 = vld [vmem:[%s7209 + $0x33c] sm:$0xf]
        %v7418 = vld [vmem:[%s7209 + $0x340] sm:$0xf]
        %v7419 = vld [vmem:[%s7209 + $0x344] sm:$0xf]
        %v7420 = vld [vmem:[%s7209 + $0x348] sm:$0xf]
        %v7421 = vld [vmem:[%s7209 + $0x34c] sm:$0xf]
        %v7422 = vld [vmem:[%s7209 + $0x350] sm:$0xf]
        %v7423 = vld [vmem:[%s7209 + $0x354] sm:$0xf]
        %v7424 = vld [vmem:[%s7209 + $0x358] sm:$0xf]
        %v7425 = vld [vmem:[%s7209 + $0x35c] sm:$0xf]
        %v7426 = vld [vmem:[%s7209 + $0x360] sm:$0xf]
        %v7427 = vld [vmem:[%s7209 + $0x364] sm:$0xf]
        %v7428 = vld [vmem:[%s7209 + $0x368] sm:$0xf]
        %v7429 = vld [vmem:[%s7209 + $0x36c] sm:$0xf]
        %v7430 = vld [vmem:[%s7209 + $0x370] sm:$0xf]
        %v7431 = vld [vmem:[%s7209 + $0x374] sm:$0xf]
        %v7432 = vld [vmem:[%s7209 + $0x378] sm:$0xf]
        %v7433 = vld [vmem:[%s7209 + $0x37c] sm:$0xf]
        %v7434 = vld [vmem:[%s7209 + $0x380] sm:$0xf]
        %v7435 = vld [vmem:[%s7209 + $0x384] sm:$0xf]
        %v7436 = vld [vmem:[%s7209 + $0x388] sm:$0xf]
        %v7437 = vld [vmem:[%s7209 + $0x38c] sm:$0xf]
        %v7438 = vld [vmem:[%s7209 + $0x390] sm:$0xf]
        %v7439 = vld [vmem:[%s7209 + $0x394] sm:$0xf]
        %v7440 = vld [vmem:[%s7209 + $0x398] sm:$0xf]
        %v7441 = vld [vmem:[%s7209 + $0x39c] sm:$0xf]
        %v7442 = vld [vmem:[%s7209 + $0x3a0] sm:$0xf]
        %v7443 = vld [vmem:[%s7209 + $0x3a4] sm:$0xf]
        %v7444 = vld [vmem:[%s7209 + $0x3a8] sm:$0xf]
        %v7445 = vld [vmem:[%s7209 + $0x3ac] sm:$0xf]
        %v7446 = vld [vmem:[%s7209 + $0x3b0] sm:$0xf]
        %v7447 = vld [vmem:[%s7209 + $0x3b4] sm:$0xf]
        %v7448 = vld [vmem:[%s7209 + $0x3b8] sm:$0xf]
        %v7449 = vld [vmem:[%s7209 + $0x3bc] sm:$0xf]
        %v7450 = vld [vmem:[%s7209 + $0x3c0] sm:$0xf]
        %v7451 = vld [vmem:[%s7209 + $0x3c4] sm:$0xf]
        %v7452 = vld [vmem:[%s7209 + $0x3c8] sm:$0xf]
        %v7453 = vld [vmem:[%s7209 + $0x3cc] sm:$0xf]
        %v7454 = vld [vmem:[%s7209 + $0x3d0] sm:$0xf]
        %v7455 = vld [vmem:[%s7209 + $0x3d4] sm:$0xf]
        %v7456 = vld [vmem:[%s7209 + $0x3d8] sm:$0xf]
        %v7457 = vld [vmem:[%s7209 + $0x3dc] sm:$0xf]
        %v7458 = vld [vmem:[%s7209 + $0x3e0] sm:$0xf]
        %v7459 = vld [vmem:[%s7209 + $0x3e4] sm:$0xf]
        %v7460 = vld [vmem:[%s7209 + $0x3e8] sm:$0xf]
        %v7461 = vld [vmem:[%s7209 + $0x3ec] sm:$0xf]
        %v7462 = vld [vmem:[%s7209 + $0x3f0] sm:$0xf]
        %v7463 = vld [vmem:[%s7209 + $0x3f4] sm:$0xf]
        %v7464 = vld [vmem:[%s7209 + $0x3f8] sm:$0xf]
        %v7465 = vld [vmem:[%s7209 + $0x3fc] sm:$0xf]
        %v7466 = vlaneseq
        %v7467 = vshrl.u32 %v7466, 7
        %v7468 = vsub.s32 0, %v7467
        %v7469 = vrot.slane %v5564, %v7468
        %v7726 = vunpack.c.l.b16 %v7210
        %v7727 = vunpack.c.l.b16 %v7211
        %v7728 = vunpack.c.l.b16 %v7212
        %v7729 = vunpack.c.l.b16 %v7213
        %v7730 = vunpack.c.l.b16 %v7214
        %v7731 = vunpack.c.l.b16 %v7215
        %v7732 = vunpack.c.l.b16 %v7216
        %v7733 = vunpack.c.l.b16 %v7217
        %v7734 = vunpack.c.l.b16 %v7218
        %v7735 = vunpack.c.l.b16 %v7219
        %v7736 = vunpack.c.l.b16 %v7220
        %v7737 = vunpack.c.l.b16 %v7221
        %v7738 = vunpack.c.l.b16 %v7222
        %v7739 = vunpack.c.l.b16 %v7223
        %v7740 = vunpack.c.l.b16 %v7224
        %v7741 = vunpack.c.l.b16 %v7225
        %v7742 = vunpack.c.l.b16 %v7226
        %v7743 = vunpack.c.l.b16 %v7227
        %v7744 = vunpack.c.l.b16 %v7228
        %v7745 = vunpack.c.l.b16 %v7229
        %v7746 = vunpack.c.l.b16 %v7230
        %v7747 = vunpack.c.l.b16 %v7231
        %v7748 = vunpack.c.l.b16 %v7232
        %v7749 = vunpack.c.l.b16 %v7233
        %v7750 = vunpack.c.l.b16 %v7234
        %v7751 = vunpack.c.l.b16 %v7235
        %v7752 = vunpack.c.l.b16 %v7236
        %v7753 = vunpack.c.l.b16 %v7237
        %v7754 = vunpack.c.l.b16 %v7238
        %v7755 = vunpack.c.l.b16 %v7239
        %v7756 = vunpack.c.l.b16 %v7240
        %v7757 = vunpack.c.l.b16 %v7241
        %v7758 = vunpack.c.l.b16 %v7242
        %v7759 = vunpack.c.l.b16 %v7243
        %v7760 = vunpack.c.l.b16 %v7244
        %v7761 = vunpack.c.l.b16 %v7245
        %v7762 = vunpack.c.l.b16 %v7246
        %v7763 = vunpack.c.l.b16 %v7247
        %v7764 = vunpack.c.l.b16 %v7248
        %v7765 = vunpack.c.l.b16 %v7249
        %v7766 = vunpack.c.l.b16 %v7250
        %v7767 = vunpack.c.l.b16 %v7251
        %v7768 = vunpack.c.l.b16 %v7252
        %v7769 = vunpack.c.l.b16 %v7253
        %v7770 = vunpack.c.l.b16 %v7254
        %v7771 = vunpack.c.l.b16 %v7255
        %v7772 = vunpack.c.l.b16 %v7256
        %v7773 = vunpack.c.l.b16 %v7257
        %v7774 = vunpack.c.l.b16 %v7258
        %v7775 = vunpack.c.l.b16 %v7259
        %v7776 = vunpack.c.l.b16 %v7260
        %v7777 = vunpack.c.l.b16 %v7261
        %v7778 = vunpack.c.l.b16 %v7262
        %v7779 = vunpack.c.l.b16 %v7263
        %v7780 = vunpack.c.l.b16 %v7264
        %v7781 = vunpack.c.l.b16 %v7265
        %v7782 = vunpack.c.l.b16 %v7266
        %v7783 = vunpack.c.l.b16 %v7267
        %v7784 = vunpack.c.l.b16 %v7268
        %v7785 = vunpack.c.l.b16 %v7269
        %v7786 = vunpack.c.l.b16 %v7270
        %v7787 = vunpack.c.l.b16 %v7271
        %v7788 = vunpack.c.l.b16 %v7272
        %v7789 = vunpack.c.l.b16 %v7273
        %v7790 = vunpack.c.l.b16 %v7274
        %v7791 = vunpack.c.l.b16 %v7275
        %v7792 = vunpack.c.l.b16 %v7276
        %v7793 = vunpack.c.l.b16 %v7277
        %v7794 = vunpack.c.l.b16 %v7278
        %v7795 = vunpack.c.l.b16 %v7279
        %v7796 = vunpack.c.l.b16 %v7280
        %v7797 = vunpack.c.l.b16 %v7281
        %v7798 = vunpack.c.l.b16 %v7282
        %v7799 = vunpack.c.l.b16 %v7283
        %v7800 = vunpack.c.l.b16 %v7284
        %v7801 = vunpack.c.l.b16 %v7285
        %v7802 = vunpack.c.l.b16 %v7286
        %v7803 = vunpack.c.l.b16 %v7287
        %v7804 = vunpack.c.l.b16 %v7288
        %v7805 = vunpack.c.l.b16 %v7289
        %v7806 = vunpack.c.l.b16 %v7290
        %v7807 = vunpack.c.l.b16 %v7291
        %v7808 = vunpack.c.l.b16 %v7292
        %v7809 = vunpack.c.l.b16 %v7293
        %v7810 = vunpack.c.l.b16 %v7294
        %v7811 = vunpack.c.l.b16 %v7295
        %v7812 = vunpack.c.l.b16 %v7296
        %v7813 = vunpack.c.l.b16 %v7297
        %v7814 = vunpack.c.l.b16 %v7298
        %v7815 = vunpack.c.l.b16 %v7299
        %v7816 = vunpack.c.l.b16 %v7300
        %v7817 = vunpack.c.l.b16 %v7301
        %v7818 = vunpack.c.l.b16 %v7302
        %v7819 = vunpack.c.l.b16 %v7303
        %v7820 = vunpack.c.l.b16 %v7304
        %v7821 = vunpack.c.l.b16 %v7305
        %v7822 = vunpack.c.l.b16 %v7306
        %v7823 = vunpack.c.l.b16 %v7307
        %v7824 = vunpack.c.l.b16 %v7308
        %v7825 = vunpack.c.l.b16 %v7309
        %v7826 = vunpack.c.l.b16 %v7310
        %v7827 = vunpack.c.l.b16 %v7311
        %v7828 = vunpack.c.l.b16 %v7312
        %v7829 = vunpack.c.l.b16 %v7313
        %v7830 = vunpack.c.l.b16 %v7314
        %v7831 = vunpack.c.l.b16 %v7315
        %v7832 = vunpack.c.l.b16 %v7316
        %v7833 = vunpack.c.l.b16 %v7317
        %v7834 = vunpack.c.l.b16 %v7318
        %v7835 = vunpack.c.l.b16 %v7319
        %v7836 = vunpack.c.l.b16 %v7320
        %v7837 = vunpack.c.l.b16 %v7321
        %v7838 = vunpack.c.l.b16 %v7322
        %v7839 = vunpack.c.l.b16 %v7323
        %v7840 = vunpack.c.l.b16 %v7324
        %v7841 = vunpack.c.l.b16 %v7325
        %v7842 = vunpack.c.l.b16 %v7326
        %v7843 = vunpack.c.l.b16 %v7327
        %v7844 = vunpack.c.l.b16 %v7328
        %v7845 = vunpack.c.l.b16 %v7329
        %v7846 = vunpack.c.l.b16 %v7330
        %v7847 = vunpack.c.l.b16 %v7331
        %v7848 = vunpack.c.l.b16 %v7332
        %v7849 = vunpack.c.l.b16 %v7333
        %v7850 = vunpack.c.l.b16 %v7334
        %v7851 = vunpack.c.l.b16 %v7335
        %v7852 = vunpack.c.l.b16 %v7336
        %v7853 = vunpack.c.l.b16 %v7337
        %v7854 = vunpack.c.l.b16 %v7338
        %v7855 = vunpack.c.l.b16 %v7339
        %v7856 = vunpack.c.l.b16 %v7340
        %v7857 = vunpack.c.l.b16 %v7341
        %v7858 = vunpack.c.l.b16 %v7342
        %v7859 = vunpack.c.l.b16 %v7343
        %v7860 = vunpack.c.l.b16 %v7344
        %v7861 = vunpack.c.l.b16 %v7345
        %v7862 = vunpack.c.l.b16 %v7346
        %v7863 = vunpack.c.l.b16 %v7347
        %v7864 = vunpack.c.l.b16 %v7348
        %v7865 = vunpack.c.l.b16 %v7349
        %v7866 = vunpack.c.l.b16 %v7350
        %v7867 = vunpack.c.l.b16 %v7351
        %v7868 = vunpack.c.l.b16 %v7352
        %v7869 = vunpack.c.l.b16 %v7353
        %v7870 = vunpack.c.l.b16 %v7354
        %v7871 = vunpack.c.l.b16 %v7355
        %v7872 = vunpack.c.l.b16 %v7356
        %v7873 = vunpack.c.l.b16 %v7357
        %v7874 = vunpack.c.l.b16 %v7358
        %v7875 = vunpack.c.l.b16 %v7359
        %v7876 = vunpack.c.l.b16 %v7360
        %v7877 = vunpack.c.l.b16 %v7361
        %v7878 = vunpack.c.l.b16 %v7362
        %v7879 = vunpack.c.l.b16 %v7363
        %v7880 = vunpack.c.l.b16 %v7364
        %v7881 = vunpack.c.l.b16 %v7365
        %v7882 = vunpack.c.l.b16 %v7366
        %v7883 = vunpack.c.l.b16 %v7367
        %v7884 = vunpack.c.l.b16 %v7368
        %v7885 = vunpack.c.l.b16 %v7369
        %v7886 = vunpack.c.l.b16 %v7370
        %v7887 = vunpack.c.l.b16 %v7371
        %v7888 = vunpack.c.l.b16 %v7372
        %v7889 = vunpack.c.l.b16 %v7373
        %v7890 = vunpack.c.l.b16 %v7374
        %v7891 = vunpack.c.l.b16 %v7375
        %v7892 = vunpack.c.l.b16 %v7376
        %v7893 = vunpack.c.l.b16 %v7377
        %v7894 = vunpack.c.l.b16 %v7378
        %v7895 = vunpack.c.l.b16 %v7379
        %v7896 = vunpack.c.l.b16 %v7380
        %v7897 = vunpack.c.l.b16 %v7381
        %v7898 = vunpack.c.l.b16 %v7382
        %v7899 = vunpack.c.l.b16 %v7383
        %v7900 = vunpack.c.l.b16 %v7384
        %v7901 = vunpack.c.l.b16 %v7385
        %v7902 = vunpack.c.l.b16 %v7386
        %v7903 = vunpack.c.l.b16 %v7387
        %v7904 = vunpack.c.l.b16 %v7388
        %v7905 = vunpack.c.l.b16 %v7389
        %v7906 = vunpack.c.l.b16 %v7390
        %v7907 = vunpack.c.l.b16 %v7391
        %v7908 = vunpack.c.l.b16 %v7392
        %v7909 = vunpack.c.l.b16 %v7393
        %v7910 = vunpack.c.l.b16 %v7394
        %v7911 = vunpack.c.l.b16 %v7395
        %v7912 = vunpack.c.l.b16 %v7396
        %v7913 = vunpack.c.l.b16 %v7397
        %v7914 = vunpack.c.l.b16 %v7398
        %v7915 = vunpack.c.l.b16 %v7399
        %v7916 = vunpack.c.l.b16 %v7400
        %v7917 = vunpack.c.l.b16 %v7401
        %v7918 = vunpack.c.l.b16 %v7402
        %v7919 = vunpack.c.l.b16 %v7403
        %v7920 = vunpack.c.l.b16 %v7404
        %v7921 = vunpack.c.l.b16 %v7405
        %v7922 = vunpack.c.l.b16 %v7406
        %v7923 = vunpack.c.l.b16 %v7407
        %v7924 = vunpack.c.l.b16 %v7408
        %v7925 = vunpack.c.l.b16 %v7409
        %v7926 = vunpack.c.l.b16 %v7410
        %v7927 = vunpack.c.l.b16 %v7411
        %v7928 = vunpack.c.l.b16 %v7412
        %v7929 = vunpack.c.l.b16 %v7413
        %v7930 = vunpack.c.l.b16 %v7414
        %v7931 = vunpack.c.l.b16 %v7415
        %v7932 = vunpack.c.l.b16 %v7416
        %v7933 = vunpack.c.l.b16 %v7417
        %v7934 = vunpack.c.l.b16 %v7418
        %v7935 = vunpack.c.l.b16 %v7419
        %v7936 = vunpack.c.l.b16 %v7420
        %v7937 = vunpack.c.l.b16 %v7421
        %v7938 = vunpack.c.l.b16 %v7422
        %v7939 = vunpack.c.l.b16 %v7423
        %v7940 = vunpack.c.l.b16 %v7424
        %v7941 = vunpack.c.l.b16 %v7425
        %v7942 = vunpack.c.l.b16 %v7426
        %v7943 = vunpack.c.l.b16 %v7427
        %v7944 = vunpack.c.l.b16 %v7428
        %v7945 = vunpack.c.l.b16 %v7429
        %v7946 = vunpack.c.l.b16 %v7430
        %v7947 = vunpack.c.l.b16 %v7431
        %v7948 = vunpack.c.l.b16 %v7432
        %v7949 = vunpack.c.l.b16 %v7433
        %v7950 = vunpack.c.l.b16 %v7434
        %v7951 = vunpack.c.l.b16 %v7435
        %v7952 = vunpack.c.l.b16 %v7436
        %v7953 = vunpack.c.l.b16 %v7437
        %v7954 = vunpack.c.l.b16 %v7438
        %v7955 = vunpack.c.l.b16 %v7439
        %v7956 = vunpack.c.l.b16 %v7440
        %v7957 = vunpack.c.l.b16 %v7441
        %v7958 = vunpack.c.l.b16 %v7442
        %v7959 = vunpack.c.l.b16 %v7443
        %v7960 = vunpack.c.l.b16 %v7444
        %v7961 = vunpack.c.l.b16 %v7445
        %v7962 = vunpack.c.l.b16 %v7446
        %v7963 = vunpack.c.l.b16 %v7447
        %v7964 = vunpack.c.l.b16 %v7448
        %v7965 = vunpack.c.l.b16 %v7449
        %v7966 = vunpack.c.l.b16 %v7450
        %v7967 = vunpack.c.l.b16 %v7451
        %v7968 = vunpack.c.l.b16 %v7452
        %v7969 = vunpack.c.l.b16 %v7453
        %v7970 = vunpack.c.l.b16 %v7454
        %v7971 = vunpack.c.l.b16 %v7455
        %v7972 = vunpack.c.l.b16 %v7456
        %v7973 = vunpack.c.l.b16 %v7457
        %v7974 = vunpack.c.l.b16 %v7458
        %v7975 = vunpack.c.l.b16 %v7459
        %v7976 = vunpack.c.l.b16 %v7460
        %v7977 = vunpack.c.l.b16 %v7461
        %v7978 = vunpack.c.l.b16 %v7462
        %v7979 = vunpack.c.l.b16 %v7463
        %v7980 = vunpack.c.l.b16 %v7464
        %v7981 = vunpack.c.l.b16 %v7465
        %v7982 = vpack.c.b16 %v7727, %v7726
        %v7983 = vpack.c.b16 %v7729, %v7728
        %v7984 = vpack.c.b16 %v7731, %v7730
        %v7985 = vpack.c.b16 %v7733, %v7732
        %v7986 = vpack.c.b16 %v7735, %v7734
        %v7987 = vpack.c.b16 %v7737, %v7736
        %v7988 = vpack.c.b16 %v7739, %v7738
        %v7989 = vpack.c.b16 %v7741, %v7740
        %v7990 = vpack.c.b16 %v7743, %v7742
        %v7991 = vpack.c.b16 %v7745, %v7744
        %v7992 = vpack.c.b16 %v7747, %v7746
        %v7993 = vpack.c.b16 %v7749, %v7748
        %v7994 = vpack.c.b16 %v7751, %v7750
        %v7995 = vpack.c.b16 %v7753, %v7752
        %v7996 = vpack.c.b16 %v7755, %v7754
        %v7997 = vpack.c.b16 %v7757, %v7756
        %v7998 = vpack.c.b16 %v7759, %v7758
        %v7999 = vpack.c.b16 %v7761, %v7760
        %v8000 = vpack.c.b16 %v7763, %v7762
        %v8001 = vpack.c.b16 %v7765, %v7764
        %v8002 = vpack.c.b16 %v7767, %v7766
        %v8003 = vpack.c.b16 %v7769, %v7768
        %v8004 = vpack.c.b16 %v7771, %v7770
        %v8005 = vpack.c.b16 %v7773, %v7772
        %v8006 = vpack.c.b16 %v7775, %v7774
        %v8007 = vpack.c.b16 %v7777, %v7776
        %v8008 = vpack.c.b16 %v7779, %v7778
        %v8009 = vpack.c.b16 %v7781, %v7780
        %v8010 = vpack.c.b16 %v7783, %v7782
        %v8011 = vpack.c.b16 %v7785, %v7784
        %v8012 = vpack.c.b16 %v7787, %v7786
        %v8013 = vpack.c.b16 %v7789, %v7788
        %v8014 = vpack.c.b16 %v7791, %v7790
        %v8015 = vpack.c.b16 %v7793, %v7792
        %v8016 = vpack.c.b16 %v7795, %v7794
        %v8017 = vpack.c.b16 %v7797, %v7796
        %v8018 = vpack.c.b16 %v7799, %v7798
        %v8019 = vpack.c.b16 %v7801, %v7800
        %v8020 = vpack.c.b16 %v7803, %v7802
        %v8021 = vpack.c.b16 %v7805, %v7804
        %v8022 = vpack.c.b16 %v7807, %v7806
        %v8023 = vpack.c.b16 %v7809, %v7808
        %v8024 = vpack.c.b16 %v7811, %v7810
        %v8025 = vpack.c.b16 %v7813, %v7812
        %v8026 = vpack.c.b16 %v7815, %v7814
        %v8027 = vpack.c.b16 %v7817, %v7816
        %v8028 = vpack.c.b16 %v7819, %v7818
        %v8029 = vpack.c.b16 %v7821, %v7820
        %v8030 = vpack.c.b16 %v7823, %v7822
        %v8031 = vpack.c.b16 %v7825, %v7824
        %v8032 = vpack.c.b16 %v7827, %v7826
        %v8033 = vpack.c.b16 %v7829, %v7828
        %v8034 = vpack.c.b16 %v7831, %v7830
        %v8035 = vpack.c.b16 %v7833, %v7832
        %v8036 = vpack.c.b16 %v7835, %v7834
        %v8037 = vpack.c.b16 %v7837, %v7836
        %v8038 = vpack.c.b16 %v7839, %v7838
        %v8039 = vpack.c.b16 %v7841, %v7840
        %v8040 = vpack.c.b16 %v7843, %v7842
        %v8041 = vpack.c.b16 %v7845, %v7844
        %v8042 = vpack.c.b16 %v7847, %v7846
        %v8043 = vpack.c.b16 %v7849, %v7848
        %v8044 = vpack.c.b16 %v7851, %v7850
        %v8045 = vpack.c.b16 %v7853, %v7852
        %v8046 = vpack.c.b16 %v7855, %v7854
        %v8047 = vpack.c.b16 %v7857, %v7856
        %v8048 = vpack.c.b16 %v7859, %v7858
        %v8049 = vpack.c.b16 %v7861, %v7860
        %v8050 = vpack.c.b16 %v7863, %v7862
        %v8051 = vpack.c.b16 %v7865, %v7864
        %v8052 = vpack.c.b16 %v7867, %v7866
        %v8053 = vpack.c.b16 %v7869, %v7868
        %v8054 = vpack.c.b16 %v7871, %v7870
        %v8055 = vpack.c.b16 %v7873, %v7872
        %v8056 = vpack.c.b16 %v7875, %v7874
        %v8057 = vpack.c.b16 %v7877, %v7876
        %v8058 = vpack.c.b16 %v7879, %v7878
        %v8059 = vpack.c.b16 %v7881, %v7880
        %v8060 = vpack.c.b16 %v7883, %v7882
        %v8061 = vpack.c.b16 %v7885, %v7884
        %v8062 = vpack.c.b16 %v7887, %v7886
        %v8063 = vpack.c.b16 %v7889, %v7888
        %v8064 = vpack.c.b16 %v7891, %v7890
        %v8065 = vpack.c.b16 %v7893, %v7892
        %v8066 = vpack.c.b16 %v7895, %v7894
        %v8067 = vpack.c.b16 %v7897, %v7896
        %v8068 = vpack.c.b16 %v7899, %v7898
        %v8069 = vpack.c.b16 %v7901, %v7900
        %v8070 = vpack.c.b16 %v7903, %v7902
        %v8071 = vpack.c.b16 %v7905, %v7904
        %v8072 = vpack.c.b16 %v7907, %v7906
        %v8073 = vpack.c.b16 %v7909, %v7908
        %v8074 = vpack.c.b16 %v7911, %v7910
        %v8075 = vpack.c.b16 %v7913, %v7912
        %v8076 = vpack.c.b16 %v7915, %v7914
        %v8077 = vpack.c.b16 %v7917, %v7916
        %v8078 = vpack.c.b16 %v7919, %v7918
        %v8079 = vpack.c.b16 %v7921, %v7920
        %v8080 = vpack.c.b16 %v7923, %v7922
        %v8081 = vpack.c.b16 %v7925, %v7924
        %v8082 = vpack.c.b16 %v7927, %v7926
        %v8083 = vpack.c.b16 %v7929, %v7928
        %v8084 = vpack.c.b16 %v7931, %v7930
        %v8085 = vpack.c.b16 %v7933, %v7932
        %v8086 = vpack.c.b16 %v7935, %v7934
        %v8087 = vpack.c.b16 %v7937, %v7936
        %v8088 = vpack.c.b16 %v7939, %v7938
        %v8089 = vpack.c.b16 %v7941, %v7940
        %v8090 = vpack.c.b16 %v7943, %v7942
        %v8091 = vpack.c.b16 %v7945, %v7944
        %v8092 = vpack.c.b16 %v7947, %v7946
        %v8093 = vpack.c.b16 %v7949, %v7948
        %v8094 = vpack.c.b16 %v7951, %v7950
        %v8095 = vpack.c.b16 %v7953, %v7952
        %v8096 = vpack.c.b16 %v7955, %v7954
        %v8097 = vpack.c.b16 %v7957, %v7956
        %v8098 = vpack.c.b16 %v7959, %v7958
        %v8099 = vpack.c.b16 %v7961, %v7960
        %v8100 = vpack.c.b16 %v7963, %v7962
        %v8101 = vpack.c.b16 %v7965, %v7964
        %v8102 = vpack.c.b16 %v7967, %v7966
        %v8103 = vpack.c.b16 %v7969, %v7968
        %v8104 = vpack.c.b16 %v7971, %v7970
        %v8105 = vpack.c.b16 %v7973, %v7972
        %v8106 = vpack.c.b16 %v7975, %v7974
        %v8107 = vpack.c.b16 %v7977, %v7976
        %v8108 = vpack.c.b16 %v7979, %v7978
        %v8109 = vpack.c.b16 %v7981, %v7980
        %8238 = vmatprep.subr.bf16.mxu0 0
        %8239 = vmatpush1.bf16.msra.mxu0 %v7982
        %8240 = vmatprep.subr.bf16.mxu0 0
        %8241 = vmatpush1.bf16.msra.mxu0 %v7983
        %8242 = vmatprep.subr.bf16.mxu0 0
        %8243 = vmatpush1.bf16.msra.mxu0 %v7984
        %8244 = vmatprep.subr.bf16.mxu0 0
        %8245 = vmatpush1.bf16.msra.mxu0 %v7985
        %8246 = vmatprep.subr.bf16.mxu0 0
        %8247 = vmatpush1.bf16.msra.mxu0 %v7986
        %8248 = vmatprep.subr.bf16.mxu0 0
        %8249 = vmatpush1.bf16.msra.mxu0 %v7987
        %8250 = vmatprep.subr.bf16.mxu0 0
        %8251 = vmatpush1.bf16.msra.mxu0 %v7988
        %8252 = vmatprep.subr.bf16.mxu0 0
        %8253 = vmatpush1.bf16.msra.mxu0 %v7989
        %8254 = vmatprep.subr.bf16.mxu0 0
        %8255 = vmatpush1.bf16.msra.mxu0 %v7990
        %8256 = vmatprep.subr.bf16.mxu0 0
        %8257 = vmatpush1.bf16.msra.mxu0 %v7991
        %8258 = vmatprep.subr.bf16.mxu0 0
        %8259 = vmatpush1.bf16.msra.mxu0 %v7992
        %8260 = vmatprep.subr.bf16.mxu0 0
        %8261 = vmatpush1.bf16.msra.mxu0 %v7993
        %8262 = vmatprep.subr.bf16.mxu0 0
        %8263 = vmatpush1.bf16.msra.mxu0 %v7994
        %8264 = vmatprep.subr.bf16.mxu0 0
        %8265 = vmatpush1.bf16.msra.mxu0 %v7995
        %8266 = vmatprep.subr.bf16.mxu0 0
        %8267 = vmatpush1.bf16.msra.mxu0 %v7996
        %8268 = vmatprep.subr.bf16.mxu0 0
        %8269 = vmatpush1.bf16.msra.mxu0 %v7997
        %8270 = vmatprep.mubr.bf16.mxu0 %v7194
        %8271 = vmatmul.mubr.bf16.gmra.mrb[0].mxu0 %v7193
        %v8272 = vpop.f32.mrb[0].mxu0
        %v8273 = vadd.f32 %v7469, %v8272
        %v8274 = vpop.f32.mrb[0].mxu0
        %v8275 = vpop.f32.mrb[0].mxu0
        %v8276 = vpop.f32.mrb[0].mxu0
        %8277 = vdwg.mxu0
        %8278 = vmatprep.subr.bf16.mxu0 0
        %8279 = vmatpush1.bf16.msra.mxu0 %v7998
        %8280 = vmatprep.subr.bf16.mxu0 0
        %8281 = vmatpush1.bf16.msra.mxu0 %v7999
        %8282 = vmatprep.subr.bf16.mxu0 0
        %8283 = vmatpush1.bf16.msra.mxu0 %v8000
        %8284 = vmatprep.subr.bf16.mxu0 0
        %8285 = vmatpush1.bf16.msra.mxu0 %v8001
        %8286 = vmatprep.subr.bf16.mxu0 0
        %8287 = vmatpush1.bf16.msra.mxu0 %v8002
        %8288 = vmatprep.subr.bf16.mxu0 0
        %8289 = vmatpush1.bf16.msra.mxu0 %v8003
        %8290 = vmatprep.subr.bf16.mxu0 0
        %8291 = vmatpush1.bf16.msra.mxu0 %v8004
        %8292 = vmatprep.subr.bf16.mxu0 0
        %8293 = vmatpush1.bf16.msra.mxu0 %v8005
        %8294 = vmatprep.subr.bf16.mxu0 0
        %8295 = vmatpush1.bf16.msra.mxu0 %v8006
        %8296 = vmatprep.subr.bf16.mxu0 0
        %8297 = vmatpush1.bf16.msra.mxu0 %v8007
        %8298 = vmatprep.subr.bf16.mxu0 0
        %8299 = vmatpush1.bf16.msra.mxu0 %v8008
        %8300 = vmatprep.subr.bf16.mxu0 0
        %8301 = vmatpush1.bf16.msra.mxu0 %v8009
        %8302 = vmatprep.subr.bf16.mxu0 0
        %8303 = vmatpush1.bf16.msra.mxu0 %v8010
        %8304 = vmatprep.subr.bf16.mxu0 0
        %8305 = vmatpush1.bf16.msra.mxu0 %v8011
        %8306 = vmatprep.subr.bf16.mxu0 0
        %8307 = vmatpush1.bf16.msra.mxu0 %v8012
        %8308 = vmatprep.subr.bf16.mxu0 0
        %8309 = vmatpush1.bf16.msra.mxu0 %v8013
        %8310 = vmatprep.mubr.bf16.mxu0 %v7196
        %8311 = vmatmul.mubr.bf16.gmra.mrb[0].mxu0 %v7195
        %v8312 = vpop.f32.mrb[0].mxu0
        %v8313 = vadd.f32 %v8273, %v8312
        %v8314 = vpop.f32.mrb[0].mxu0
        %v8315 = vpop.f32.mrb[0].mxu0
        %v8316 = vpop.f32.mrb[0].mxu0
        %8317 = vdwg.mxu0
        %8318 = vmatprep.subr.bf16.mxu0 0
        %8319 = vmatpush1.bf16.msra.mxu0 %v8014
        %8320 = vmatprep.subr.bf16.mxu0 0
        %8321 = vmatpush1.bf16.msra.mxu0 %v8015
        %8322 = vmatprep.subr.bf16.mxu0 0
        %8323 = vmatpush1.bf16.msra.mxu0 %v8016
        %8324 = vmatprep.subr.bf16.mxu0 0
        %8325 = vmatpush1.bf16.msra.mxu0 %v8017
        %8326 = vmatprep.subr.bf16.mxu0 0
        %8327 = vmatpush1.bf16.msra.mxu0 %v8018
        %8328 = vmatprep.subr.bf16.mxu0 0
        %8329 = vmatpush1.bf16.msra.mxu0 %v8019
        %8330 = vmatprep.subr.bf16.mxu0 0
        %8331 = vmatpush1.bf16.msra.mxu0 %v8020
        %8332 = vmatprep.subr.bf16.mxu0 0
        %8333 = vmatpush1.bf16.msra.mxu0 %v8021
        %8334 = vmatprep.subr.bf16.mxu0 0
        %8335 = vmatpush1.bf16.msra.mxu0 %v8022
        %8336 = vmatprep.subr.bf16.mxu0 0
        %8337 = vmatpush1.bf16.msra.mxu0 %v8023
        %8338 = vmatprep.subr.bf16.mxu0 0
        %8339 = vmatpush1.bf16.msra.mxu0 %v8024
        %8340 = vmatprep.subr.bf16.mxu0 0
        %8341 = vmatpush1.bf16.msra.mxu0 %v8025
        %8342 = vmatprep.subr.bf16.mxu0 0
        %8343 = vmatpush1.bf16.msra.mxu0 %v8026
        %8344 = vmatprep.subr.bf16.mxu0 0
        %8345 = vmatpush1.bf16.msra.mxu0 %v8027
        %8346 = vmatprep.subr.bf16.mxu0 0
        %8347 = vmatpush1.bf16.msra.mxu0 %v8028
        %8348 = vmatprep.subr.bf16.mxu0 0
        %8349 = vmatpush1.bf16.msra.mxu0 %v8029
        %8350 = vmatprep.mubr.bf16.mxu0 %v7198
        %8351 = vmatmul.mubr.bf16.gmra.mrb[0].mxu0 %v7197
        %v8352 = vpop.f32.mrb[0].mxu0
        %v8353 = vadd.f32 %v8313, %v8352
        %v8354 = vpop.f32.mrb[0].mxu0
        %v8355 = vpop.f32.mrb[0].mxu0
        %v8356 = vpop.f32.mrb[0].mxu0
        %8357 = vdwg.mxu0
        %8358 = vmatprep.subr.bf16.mxu0 0
        %8359 = vmatpush1.bf16.msra.mxu0 %v8030
        %8360 = vmatprep.subr.bf16.mxu0 0
        %8361 = vmatpush1.bf16.msra.mxu0 %v8031
        %8362 = vmatprep.subr.bf16.mxu0 0
        %8363 = vmatpush1.bf16.msra.mxu0 %v8032
        %8364 = vmatprep.subr.bf16.mxu0 0
        %8365 = vmatpush1.bf16.msra.mxu0 %v8033
        %8366 = vmatprep.subr.bf16.mxu0 0
        %8367 = vmatpush1.bf16.msra.mxu0 %v8034
        %8368 = vmatprep.subr.bf16.mxu0 0
        %8369 = vmatpush1.bf16.msra.mxu0 %v8035
        %8370 = vmatprep.subr.bf16.mxu0 0
        %8371 = vmatpush1.bf16.msra.mxu0 %v8036
        %8372 = vmatprep.subr.bf16.mxu0 0
        %8373 = vmatpush1.bf16.msra.mxu0 %v8037
        %8374 = vmatprep.subr.bf16.mxu0 0
        %8375 = vmatpush1.bf16.msra.mxu0 %v8038
        %8376 = vmatprep.subr.bf16.mxu0 0
        %8377 = vmatpush1.bf16.msra.mxu0 %v8039
        %8378 = vmatprep.subr.bf16.mxu0 0
        %8379 = vmatpush1.bf16.msra.mxu0 %v8040
        %8380 = vmatprep.subr.bf16.mxu0 0
        %8381 = vmatpush1.bf16.msra.mxu0 %v8041
        %8382 = vmatprep.subr.bf16.mxu0 0
        %8383 = vmatpush1.bf16.msra.mxu0 %v8042
        %8384 = vmatprep.subr.bf16.mxu0 0
        %8385 = vmatpush1.bf16.msra.mxu0 %v8043
        %8386 = vmatprep.subr.bf16.mxu0 0
        %8387 = vmatpush1.bf16.msra.mxu0 %v8044
        %8388 = vmatprep.subr.bf16.mxu0 0
        %8389 = vmatpush1.bf16.msra.mxu0 %v8045
        %8390 = vmatprep.mubr.bf16.mxu0 %v7200
        %8391 = vmatmul.mubr.bf16.gmra.mrb[0].mxu0 %v7199
        %v8392 = vpop.f32.mrb[0].mxu0
        %v8393 = vadd.f32 %v8353, %v8392
        %v8394 = vpop.f32.mrb[0].mxu0
        %v8395 = vpop.f32.mrb[0].mxu0
        %v8396 = vpop.f32.mrb[0].mxu0
        %8397 = vdwg.mxu0
        %8398 = vmatprep.subr.bf16.mxu0 0
        %8399 = vmatpush1.bf16.msra.mxu0 %v8046
        %8400 = vmatprep.subr.bf16.mxu0 0
        %8401 = vmatpush1.bf16.msra.mxu0 %v8047
        %8402 = vmatprep.subr.bf16.mxu0 0
        %8403 = vmatpush1.bf16.msra.mxu0 %v8048
        %8404 = vmatprep.subr.bf16.mxu0 0
        %8405 = vmatpush1.bf16.msra.mxu0 %v8049
        %8406 = vmatprep.subr.bf16.mxu0 0
        %8407 = vmatpush1.bf16.msra.mxu0 %v8050
        %8408 = vmatprep.subr.bf16.mxu0 0
        %8409 = vmatpush1.bf16.msra.mxu0 %v8051
        %8410 = vmatprep.subr.bf16.mxu0 0
        %8411 = vmatpush1.bf16.msra.mxu0 %v8052
        %8412 = vmatprep.subr.bf16.mxu0 0
        %8413 = vmatpush1.bf16.msra.mxu0 %v8053
        %8414 = vmatprep.subr.bf16.mxu0 0
        %8415 = vmatpush1.bf16.msra.mxu0 %v8054
        %8416 = vmatprep.subr.bf16.mxu0 0
        %8417 = vmatpush1.bf16.msra.mxu0 %v8055
        %8418 = vmatprep.subr.bf16.mxu0 0
        %8419 = vmatpush1.bf16.msra.mxu0 %v8056
        %8420 = vmatprep.subr.bf16.mxu0 0
        %8421 = vmatpush1.bf16.msra.mxu0 %v8057
        %8422 = vmatprep.subr.bf16.mxu0 0
        %8423 = vmatpush1.bf16.msra.mxu0 %v8058
        %8424 = vmatprep.subr.bf16.mxu0 0
        %8425 = vmatpush1.bf16.msra.mxu0 %v8059
        %8426 = vmatprep.subr.bf16.mxu0 0
        %8427 = vmatpush1.bf16.msra.mxu0 %v8060
        %8428 = vmatprep.subr.bf16.mxu0 0
        %8429 = vmatpush1.bf16.msra.mxu0 %v8061
        %8430 = vmatprep.mubr.bf16.mxu0 %v7202
        %8431 = vmatmul.mubr.bf16.gmra.mrb[0].mxu0 %v7201
        %v8432 = vpop.f32.mrb[0].mxu0
        %v8433 = vadd.f32 %v8393, %v8432
        %v8434 = vpop.f32.mrb[0].mxu0
        %v8435 = vpop.f32.mrb[0].mxu0
        %v8436 = vpop.f32.mrb[0].mxu0
        %8437 = vdwg.mxu0
        %8438 = vmatprep.subr.bf16.mxu0 0
        %8439 = vmatpush1.bf16.msra.mxu0 %v8062
        %8440 = vmatprep.subr.bf16.mxu0 0
        %8441 = vmatpush1.bf16.msra.mxu0 %v8063
        %8442 = vmatprep.subr.bf16.mxu0 0
        %8443 = vmatpush1.bf16.msra.mxu0 %v8064
        %8444 = vmatprep.subr.bf16.mxu0 0
        %8445 = vmatpush1.bf16.msra.mxu0 %v8065
        %8446 = vmatprep.subr.bf16.mxu0 0
        %8447 = vmatpush1.bf16.msra.mxu0 %v8066
        %8448 = vmatprep.subr.bf16.mxu0 0
        %8449 = vmatpush1.bf16.msra.mxu0 %v8067
        %8450 = vmatprep.subr.bf16.mxu0 0
        %8451 = vmatpush1.bf16.msra.mxu0 %v8068
        %8452 = vmatprep.subr.bf16.mxu0 0
        %8453 = vmatpush1.bf16.msra.mxu0 %v8069
        %8454 = vmatprep.subr.bf16.mxu0 0
        %8455 = vmatpush1.bf16.msra.mxu0 %v8070
        %8456 = vmatprep.subr.bf16.mxu0 0
        %8457 = vmatpush1.bf16.msra.mxu0 %v8071
        %8458 = vmatprep.subr.bf16.mxu0 0
        %8459 = vmatpush1.bf16.msra.mxu0 %v8072
        %8460 = vmatprep.subr.bf16.mxu0 0
        %8461 = vmatpush1.bf16.msra.mxu0 %v8073
        %8462 = vmatprep.subr.bf16.mxu0 0
        %8463 = vmatpush1.bf16.msra.mxu0 %v8074
        %8464 = vmatprep.subr.bf16.mxu0 0
        %8465 = vmatpush1.bf16.msra.mxu0 %v8075
        %8466 = vmatprep.subr.bf16.mxu0 0
        %8467 = vmatpush1.bf16.msra.mxu0 %v8076
        %8468 = vmatprep.subr.bf16.mxu0 0
        %8469 = vmatpush1.bf16.msra.mxu0 %v8077
        %8470 = vmatprep.mubr.bf16.mxu0 %v7204
        %8471 = vmatmul.mubr.bf16.gmra.mrb[0].mxu0 %v7203
        %v8472 = vpop.f32.mrb[0].mxu0
        %v8473 = vadd.f32 %v8433, %v8472
        %v8474 = vpop.f32.mrb[0].mxu0
        %v8475 = vpop.f32.mrb[0].mxu0
        %v8476 = vpop.f32.mrb[0].mxu0
        %8477 = vdwg.mxu0
        %8478 = vmatprep.subr.bf16.mxu0 0
        %8479 = vmatpush1.bf16.msra.mxu0 %v8078
        %8480 = vmatprep.subr.bf16.mxu0 0
        %8481 = vmatpush1.bf16.msra.mxu0 %v8079
        %8482 = vmatprep.subr.bf16.mxu0 0
        %8483 = vmatpush1.bf16.msra.mxu0 %v8080
        %8484 = vmatprep.subr.bf16.mxu0 0
        %8485 = vmatpush1.bf16.msra.mxu0 %v8081
        %8486 = vmatprep.subr.bf16.mxu0 0
        %8487 = vmatpush1.bf16.msra.mxu0 %v8082
        %8488 = vmatprep.subr.bf16.mxu0 0
        %8489 = vmatpush1.bf16.msra.mxu0 %v8083
        %8490 = vmatprep.subr.bf16.mxu0 0
        %8491 = vmatpush1.bf16.msra.mxu0 %v8084
        %8492 = vmatprep.subr.bf16.mxu0 0
        %8493 = vmatpush1.bf16.msra.mxu0 %v8085
        %8494 = vmatprep.subr.bf16.mxu0 0
        %8495 = vmatpush1.bf16.msra.mxu0 %v8086
        %8496 = vmatprep.subr.bf16.mxu0 0
        %8497 = vmatpush1.bf16.msra.mxu0 %v8087
        %8498 = vmatprep.subr.bf16.mxu0 0
        %8499 = vmatpush1.bf16.msra.mxu0 %v8088
        %8500 = vmatprep.subr.bf16.mxu0 0
        %8501 = vmatpush1.bf16.msra.mxu0 %v8089
        %8502 = vmatprep.subr.bf16.mxu0 0
        %8503 = vmatpush1.bf16.msra.mxu0 %v8090
        %8504 = vmatprep.subr.bf16.mxu0 0
        %8505 = vmatpush1.bf16.msra.mxu0 %v8091
        %8506 = vmatprep.subr.bf16.mxu0 0
        %8507 = vmatpush1.bf16.msra.mxu0 %v8092
        %8508 = vmatprep.subr.bf16.mxu0 0
        %8509 = vmatpush1.bf16.msra.mxu0 %v8093
        %8510 = vmatprep.mubr.bf16.mxu0 %v7206
        %8511 = vmatmul.mubr.bf16.gmra.mrb[0].mxu0 %v7205
        %v8512 = vpop.f32.mrb[0].mxu0
        %v8513 = vadd.f32 %v8473, %v8512
        %v8514 = vpop.f32.mrb[0].mxu0
        %v8515 = vpop.f32.mrb[0].mxu0
        %v8516 = vpop.f32.mrb[0].mxu0
        %8517 = vdwg.mxu0
        %8518 = vmatprep.subr.bf16.mxu0 0
        %8519 = vmatpush1.bf16.msra.mxu0 %v8094
        %8520 = vmatprep.subr.bf16.mxu0 0
        %8521 = vmatpush1.bf16.msra.mxu0 %v8095
        %8522 = vmatprep.subr.bf16.mxu0 0
        %8523 = vmatpush1.bf16.msra.mxu0 %v8096
        %8524 = vmatprep.subr.bf16.mxu0 0
        %8525 = vmatpush1.bf16.msra.mxu0 %v8097
        %8526 = vmatprep.subr.bf16.mxu0 0
        %8527 = vmatpush1.bf16.msra.mxu0 %v8098
        %8528 = vmatprep.subr.bf16.mxu0 0
        %8529 = vmatpush1.bf16.msra.mxu0 %v8099
        %8530 = vmatprep.subr.bf16.mxu0 0
        %8531 = vmatpush1.bf16.msra.mxu0 %v8100
        %8532 = vmatprep.subr.bf16.mxu0 0
        %8533 = vmatpush1.bf16.msra.mxu0 %v8101
        %8534 = vmatprep.subr.bf16.mxu0 0
        %8535 = vmatpush1.bf16.msra.mxu0 %v8102
        %8536 = vmatprep.subr.bf16.mxu0 0
        %8537 = vmatpush1.bf16.msra.mxu0 %v8103
        %8538 = vmatprep.subr.bf16.mxu0 0
        %8539 = vmatpush1.bf16.msra.mxu0 %v8104
        %8540 = vmatprep.subr.bf16.mxu0 0
        %8541 = vmatpush1.bf16.msra.mxu0 %v8105
        %8542 = vmatprep.subr.bf16.mxu0 0
        %8543 = vmatpush1.bf16.msra.mxu0 %v8106
        %8544 = vmatprep.subr.bf16.mxu0 0
        %8545 = vmatpush1.bf16.msra.mxu0 %v8107
        %8546 = vmatprep.subr.bf16.mxu0 0
        %8547 = vmatpush1.bf16.msra.mxu0 %v8108
        %8548 = vmatprep.subr.bf16.mxu0 0
        %8549 = vmatpush1.bf16.msra.mxu0 %v8109
        %8550 = vmatprep.mubr.bf16.mxu0 %v7208
        %8551 = vmatmul.mubr.bf16.gmra.mrb[0].mxu0 %v7207
        %v8552 = vpop.f32.mrb[0].mxu0
        %v8553 = vadd.f32 %v8513, %v8552
        %v8554 = vpop.f32.mrb[0].mxu0
        %v8555 = vpop.f32.mrb[0].mxu0
        %v8556 = vpop.f32.mrb[0].mxu0
        %8557 = vdwg.mxu0
        %v8558 = vadd.f32 %v6566, %v8553
        %v8559 = vsel %vm733, %v8558, 0.0
        %8560 = vadd.xlane.f32.xlu0 %v8559
        %v8561 = vpop.xlane.xlu0 %8560
        %v8562 = vmul.f32 %v8561, %v1783
        %v8563 = vsub.f32 %v8558, %v8562
        %v8564 = vmul.f32 %v8563, %v8563
        %v8565 = vsel %vm733, %v8564, 0.0
        %8566 = vadd.xlane.f32.xlu0 %v8565
        %v8567 = vpop.xlane.xlu0 %8566
        %v8568 = vmul.f32 %v8567, %v1783
        %v8569 = vadd.f32 %v8568, 1e-05
        %v8570 = vrsqrt.pop %v8569
        %v8571 = vmul.f32 %v8563, %v8570
        %v8572 = vlaneseq
        %v8573 = vshrl.u32 %v8572, 7
        %v8574 = vsub.s32 0, %v8573
        %v8575 = vrot.slane %v5565, %v8574
        %v8576 = vmul.f32 %v8571, %v8575
        %v8577 = vlaneseq
        %v8578 = vshrl.u32 %v8577, 7
        %v8579 = vsub.s32 0, %v8578
        %v8580 = vrot.slane %v5566, %v8579
        %v8581 = vadd.f32 %v8576, %v8580
        %8582 = vst.msk [vmem:[%s538] sm:$0xff] %vm733, %v8581
        %s8583 = sand.u32 %s365, 1
        %s8584 = scalar_lea.sflag [#allocation3], %s8583
        %s8585 = sand.u32 %s365, 1
        %s8586 = smul.addr %s8585, 8
        %s8587 = scalar_lea.vmem [#allocation2], %s8586
        // Predicated region
        $region77: #{_forward_core.1} parent=75 // pred_check
          %p8588 = pneg %p375
        $region78: #{_forward_core.1} parent=75 // pred_check_branch
          %8590 = sbr.rel (%p8588) target = $region80
        $region79: #{_forward_core.1} parent=75 // pred_region
          %s8592 = ssub.s32 128, 128
          %8593 = vsyncadd %s8584, %s8592
          %s8594 = smul.addr %s28, 128
          %s8595 = scalar_lea.hbm %s14, %s8594
          %s8597 = sshll.u32 %s8587, 4
          %s8598 = int_to_ptr.vmem [resolvable:$true] %s8597
          %8600 = dma.vmem_to_hbm [thread:$0]  %s8598, 128, %s8595, %s8584
        $region80: #{_forward_core.1} parent=75 // pred_fallthru
          _
      $region76: #{_forward_core.1} parent=5 // pred_fallthru
        _
      %p8601 = scmp.le.s32.totalorder 2, %s23
      // Predicated region
      $region81: #{_forward_core.1} parent=5 // pred_check
        %p8602 = pneg %p8601
      $region82: #{_forward_core.1} parent=5 // pred_check_branch
        %8604 = sbr.rel (%p8602) target = $region84
      $region83: #{_forward_core.1} parent=5 // pred_region
        %s8605 = ssub.s32 %s23, 2
        // Predicated region
        $region85: #{_forward_core.1} parent=83 // pred_check
          %p8606 = pneg %p381
        $region86: #{_forward_core.1} parent=83 // pred_check_branch
          %8608 = sbr.rel (%p8606) target = $region88
        $region87: #{_forward_core.1} parent=83 // pred_region
          %s8609 = sand.u32 %s366, 1
          %s8610 = scalar_lea.sflag [#allocation3], %s8609
          %s8611 = sand.u32 %s366, 1
          %s8612 = smul.addr %s8611, 8
          %s8613 = scalar_lea.vmem [#allocation2], %s8612
          %8614 = dma.done %s8610, 128
        $region88: #{_forward_core.1} parent=83 // pred_fallthru
          _
      $region84: #{_forward_core.1} parent=5 // pred_fallthru
        _
    $region6: #{_forward_core.1} parent=1 // loop_footer
      %s27 = sadd.s32 1, %s23
    $region7: #{_forward_core.1} parent=1 // loop_footer_branch
      %22 = sbr.rel target = $region3
    $region8: #{_forward_core.1} parent=1 // loop_exit
      _
    %8615 = vsyncpa [#allocation3], 1
    %s8616 = scalar_lea.sflag [#allocation3], 1
    %8617 = vsyncpa %s8616, 1

</llo_original>
